<compile_context>
chip_gen: v7x
topology: tpu7x:2x2x1
jax: 0.10.0
libtpu: 0.0.40
codegen_flags: <defaults>
</compile_context>

<pallas_src>
import math
from functools import partial

import numpy as np
import jax
import jax.numpy as jnp
from jax.experimental import pallas as pl
from jax.experimental.pallas import tpu as pltpu

# ----------------------------------------------------------------------------
# Hyper-parameters (mirrors get_parameter(); _M synthetic -> FC out_dim = 2*_M + 1)
# ----------------------------------------------------------------------------
PARAMS_M = 3
FC_OUT_DIM = 2 * PARAMS_M + 1              # 7
IN_CHANNELS = [2, 16, 32, 64]
OUT_CHANNELS = [16, 32, 64, 128]
HIDDEN_SIZE = 128
GRU_INPUT_SIZE = 128
KH, KW = 3, 3
STRIDE_W = 2
CONV_WIDTHS = (31, 15, 7, 3, 1)            # width after each conv; W must start at 31


# ----------------------------------------------------------------------------
# Kernel 1: fused 4-layer Conv2d stack (kernel (3,3), stride (1,2), no padding)
# ----------------------------------------------------------------------------
def _conv_stack_kernel(x_ref, w1, b1, w2, b2, w3, b3, w4, b4, out_ref, *, N, heights):
    """Activations live as 2-D (N*H_l, W_l*C_l) values (lanes = (width, channel),
    channel fastest).  Width + its stride-2 subsampling are folded into
    block-Toeplitz weights, so each layer = 3 height-tap slices + lane concat +
    one matmul + bias.  Nothing leaves VMEM between layers."""
    layers = ((w1, b1), (w2, b2), (w3, b3), (w4, b4))
    a = x_ref[...].astype(jnp.float32)                              # (N*H0, W0*C0)
    for l, (w_ref, b_ref) in enumerate(layers):
        h_in, h_out = heights[l], heights[l + 1]
        blocks = []
        for n in range(N):
            base = n * h_in
            blocks.append(jnp.concatenate(
                [a[base:base + h_out, :],
                 a[base + 1:base + 1 + h_out, :],
                 a[base + 2:base + 2 + h_out, :]], axis=1))          # (h_out, 3*K_in)
        patches = jnp.concatenate(blocks, axis=0)                    # (N*h_out, 3*K_in)
        a = (jnp.dot(patches.astype(jnp.bfloat16), w_ref[...],
                     preferred_element_type=jnp.float32) + b_ref[...])
    out_ref[...] = a.astype(out_ref.dtype)                           # (N*T, 128), rows (n, t)


# ----------------------------------------------------------------------------
# Kernel 2: fused two-layer GRU (PyTorch gate order r, z, n), wavefront-pipelined
# ----------------------------------------------------------------------------
def _gru2_kernel(x_ref, wih1_ref, bih1_ref, wstep_ref, bstep_ref, out_ref, gi_scr,
                 *, N, T):
    H = HIDDEN_SIZE
    # Hoisted layer-1 input projection: one (N*T, I) x (I, 3H) matmul, written to a
    # VMEM scratch so only an (N, 3H) slice is live per recurrence step.
    gi_all = (jnp.dot(x_ref[...], wih1_ref[...], preferred_element_type=jnp.float32)
              + bih1_ref[...])                                       # (N*T, 3H) f32
    for n in range(N):
        gi_scr[n] = gi_all[n * T:(n + 1) * T, :]

    wstep = wstep_ref[...]                                           # (2H, 9H) bf16
    bstep = bstep_ref[...]                                           # (1, 9H)  f32

    def gru_cell(gi, gh, h_prev):
        r = jax.nn.sigmoid(gi[:, 0:H] + gh[:, 0:H])
        z = jax.nn.sigmoid(gi[:, H:2 * H] + gh[:, H:2 * H])
        n = jnp.tanh(gi[:, 2 * H:3 * H] + r * gh[:, 2 * H:3 * H])
        return (1.0 - z) * n + z * h_prev

    h1 = jnp.zeros((N, H), jnp.float32)                              # f32 carries
    h2 = jnp.zeros((N, H), jnp.float32)
    # Wavefront step s: layer-1 time s and layer-2 time s-1.  One K=2H stacked
    # matmul yields gh1 | gi2 | gh2 for both layers.
    for s in range(T + 1):
        lhs = jnp.concatenate([h1, h2], axis=1).astype(jnp.bfloat16)  # (N, 2H)
        g = jnp.dot(lhs, wstep, preferred_element_type=jnp.float32) + bstep
        gh1 = g[:, 0:3 * H]
        gi2 = g[:, 3 * H:6 * H]
        gh2 = g[:, 6 * H:9 * H]
        if s < T:
            h1_new = gru_cell(gi_scr[:, s, :], gh1, h1)
        else:
            h1_new = h1
        if s >= 1:
            h2 = gru_cell(gi2, gh2, h2)
            out_ref[:, s - 1, :] = h2.astype(out_ref.dtype)          # (N, H) bf16
        h1 = h1_new


# ----------------------------------------------------------------------------
# Kernel 3: fused 4-layer ConvTranspose2d stack + FC head (fc1 -> tanh -> fc2)
# ----------------------------------------------------------------------------
def _deconv_fc_kernel(x_ref, w1, b1, w2, b2, w3, b3, w4, b4,
                      fc1w_ref, fc1b_ref, fc2w_ref, fc2b_ref, out_ref,
                      *, N, heights):
    """Same (rows=(image,height), lanes=(width,channel)) layout as the conv stack.
    Transposed-conv width upsampling is folded into block weights; each layer is
    zero-pad 2 rows top/bottom -> 3 height-tap slices + lane concat -> one matmul.
    fc1 is zero-embedded per output channel so the channel de-interleave never
    materializes; the lane-sparse deconv-4 output never leaves VMEM."""
    layers = ((w1, b1), (w2, b2), (w3, b3), (w4, b4))
    a = None
    for l, (w_ref, b_ref) in enumerate(layers):
        h_in, h_out = heights[l], heights[l + 1]
        blocks = []
        for n in range(N):
            if l == 0:
                xn = x_ref[n].astype(jnp.float32)                    # (T, 128)
            else:
                xn = a[n * h_in:(n + 1) * h_in, :]
            k_in = xn.shape[1]
            zpad = jnp.zeros((2, k_in), jnp.float32)
            xp = jnp.concatenate([zpad, xn, zpad], axis=0)           # (h_in + 4, K)
            blocks.append(jnp.concatenate(
                [xp[2:2 + h_out, :], xp[1:1 + h_out, :], xp[0:h_out, :]], axis=1))
        patches = jnp.concatenate(blocks, axis=0)                    # (N*h_out, 3*K)
        a = (jnp.dot(patches.astype(jnp.bfloat16), w_ref[...],
                     preferred_element_type=jnp.float32) + b_ref[...])
    hf = heights[-1]
    a16 = a.astype(jnp.bfloat16)                                     # (N*hf, 62)
    fc1b = fc1b_ref[...]
    fc2w = fc2w_ref[...]
    fc2b = fc2b_ref[...]
    for c in range(fc1w_ref.shape[0]):                               # 2 output channels
        h = jnp.dot(a16, fc1w_ref[c], preferred_element_type=jnp.float32) + fc1b
        h = jnp.tanh(h)
        z = jnp.dot(h.astype(jnp.bfloat16), fc2w,
                    preferred_element_type=jnp.float32) + fc2b       # (N*hf, 7)
        for n in range(N):
            out_ref[n, c, :, :] = z[n * hf:(n + 1) * hf, :].astype(out_ref.dtype)


# ----------------------------------------------------------------------------
# Host-side block-weight builders (width dim folded into the weight matrices)
# ----------------------------------------------------------------------------
def _conv_block_weight(w, w_in):
    """w: (Co, Ci, 3, 3) PyTorch Conv2d weight -> stacked (3*w_in*Ci, w_out*Co)."""
    co, ci = w.shape[0], w.shape[1]
    w_out = (w_in - KW) // STRIDE_W + 1
    wb = np.zeros((KH, w_in * ci, w_out * co), np.float32)
    for i in range(KH):
        for wo in range(w_out):
            for j in range(KW):
                wi = STRIDE_W * wo + j
                wb[i, wi * ci:(wi + 1) * ci, wo * co:(wo + 1) * co] = w[:, :, i, j].T
    return wb.reshape(KH * w_in * ci, w_out * co), w_out


def _deconv_block_weight(w, w_in):
    """w: (Ci, Co, 3, 3) PyTorch ConvTranspose2d weight -> stacked block matrix."""
    ci, co = w.shape[0], w.shape[1]
    w_out = (w_in - 1) * STRIDE_W + KW
    wb = np.zeros((KH, w_in * ci, w_out * co), np.float32)
    for i in range(KH):
        for wi in range(w_in):
            for j in range(KW):
                wo = STRIDE_W * wi + j
                wb[i, wi * ci:(wi + 1) * ci, wo * co:(wo + 1) * co] = w[:, :, i, j]
    return wb.reshape(KH * w_in * ci, w_out * co), w_out


def _xavier(key, shape, fan_in, fan_out, gain=math.sqrt(2.0)):
    bound = gain * math.sqrt(6.0 / (fan_in + fan_out))
    return jax.random.uniform(key, shape, jnp.float32, -bound, bound)


def make_params(key):
    k = key
    p = {}
    # Conv2d stack.
    conv = []
    for idx, (ci, co) in enumerate(zip(IN_CHANNELS, OUT_CHANNELS)):
        k, k1, k2 = jax.random.split(k, 3)
        w = np.asarray(_xavier(k1, (co, ci, KH, KW), ci * 9, co * 9))
        b = np.asarray(0.01 * jax.random.normal(k2, (co,), jnp.float32))
        wb, wout = _conv_block_weight(w, CONV_WIDTHS[idx])
        assert wout == CONV_WIDTHS[idx + 1]
        conv.append((jnp.asarray(wb, jnp.bfloat16),
                     jnp.asarray(np.tile(b, wout)[None, :], jnp.float32)))
    p["conv"] = conv
    # GRUs (PyTorch layout: weight_ih/hh (3H, in), gates stacked r, z, n).
    H = HIDDEN_SIZE
    gw = []
    for _ in range(2):
        k, k1, k2, k3, k4 = jax.random.split(k, 5)
        s = 1.0 / math.sqrt(H)
        gw.append(tuple(np.asarray(a) for a in (
            jax.random.uniform(k1, (3 * H, GRU_INPUT_SIZE), jnp.float32, -s, s),
            jax.random.uniform(k2, (3 * H, H), jnp.float32, -s, s),
            jax.random.uniform(k3, (3 * H,), jnp.float32, -s, s),
            jax.random.uniform(k4, (3 * H,), jnp.float32, -s, s))))
    (wih1, whh1, bih1, bhh1), (wih2, whh2, bih2, bhh2) = gw
    wstep = np.zeros((2 * H, 9 * H), np.float32)
    wstep[0:H, 0:3 * H] = whh1.T                      # layer-1 recurrent
    wstep[0:H, 3 * H:6 * H] = wih2.T                  # layer-2 input (from y1)
    wstep[H:2 * H, 6 * H:9 * H] = whh2.T              # layer-2 recurrent
    bstep = np.concatenate([bhh1, bih2, bhh2])[None, :]
    p["gru"] = (jnp.asarray(wih1.T, jnp.bfloat16),
                jnp.asarray(bih1[None, :], jnp.float32),
                jnp.asarray(wstep, jnp.bfloat16),
                jnp.asarray(bstep, jnp.float32))
    # ConvTranspose2d stack.
    dwidths = CONV_WIDTHS[::-1]
    dec = []
    for idx, (ci, co) in enumerate(zip(OUT_CHANNELS[::-1], IN_CHANNELS[::-1])):
        k, k1, k2 = jax.random.split(k, 3)
        w = np.asarray(_xavier(k1, (ci, co, KH, KW), ci * 9, co * 9))
        b = np.asarray(0.01 * jax.random.normal(k2, (co,), jnp.float32))
        wb, wout = _deconv_block_weight(w, dwidths[idx])
        assert wout == dwidths[idx + 1]
        dec.append((jnp.asarray(wb, jnp.bfloat16),
                    jnp.asarray(np.tile(b, wout)[None, :], jnp.float32)))
    p["deconv"] = dec
    # FC head; fc1 zero-embedded per output channel of the last deconv (62 -> 512).
    k, k1, k2, k3, k4 = jax.random.split(k, 5)
    fc1w = np.asarray(_xavier(k1, (512, 31), 31, 512))
    fc1b = np.asarray(0.01 * jax.random.normal(k2, (512,), jnp.float32))
    fc2w = np.asarray(_xavier(k3, (FC_OUT_DIM, 512), 512, FC_OUT_DIM))
    fc2b = np.asarray(0.01 * jax.random.normal(k4, (FC_OUT_DIM,), jnp.float32))
    co_last = IN_CHANNELS[0]                          # 2
    emb = np.zeros((co_last, co_last * 31, 512), np.float32)
    for c in range(co_last):
        for w_ in range(31):
            emb[c, w_ * co_last + c, :] = fc1w[:, w_]
    p["fc"] = (jnp.asarray(emb, jnp.bfloat16),
               jnp.asarray(fc1b[None, :], jnp.float32),
               jnp.asarray(fc2w.T, jnp.bfloat16),
               jnp.asarray(fc2b[None, :], jnp.float32))
    return p


# ----------------------------------------------------------------------------
# Full forward pass (matches CRN_Net.forward)
# ----------------------------------------------------------------------------
def crn_net_forward(x, params):
    B, Fc = x.shape[0], x.shape[1]
    N = B * Fc
    Cin, H0, W0 = x.shape[2], x.shape[3], x.shape[4]
    assert Cin == IN_CHANNELS[0] and W0 == CONV_WIDTHS[0] and H0 >= 9
    conv_heights = tuple(H0 - 2 * l for l in range(5))
    T = conv_heights[-1]
    dec_heights = tuple(T + 2 * l for l in range(5))

    # Single layout transform of the tiny input: NCHW -> rows=(n,h), lanes=(w,c).
    x2d = jnp.transpose(x.reshape(N, Cin, H0, W0), (0, 2, 3, 1))
    x2d = x2d.reshape(N * H0, W0 * Cin).astype(jnp.float32)

    vmem = pl.BlockSpec(memory_space=pltpu.MemorySpace.VMEM)

    conv_flat = [t for wb in params["conv"] for t in wb]
    g_in = pl.pallas_call(
        partial(_conv_stack_kernel, N=N, heights=conv_heights),
        out_shape=jax.ShapeDtypeStruct((N * T, GRU_INPUT_SIZE), jnp.bfloat16),
        in_specs=[vmem] * (1 + len(conv_flat)),
        out_specs=vmem,
    )(x2d, *conv_flat)

    wih1, bih1, wstep, bstep = params["gru"]
    g_out = pl.pallas_call(
        partial(_gru2_kernel, N=N, T=T),
        out_shape=jax.ShapeDtypeStruct((N, T, HIDDEN_SIZE), jnp.bfloat16),
        in_specs=[vmem] * 5,
        out_specs=vmem,
        scratch_shapes=[pltpu.VMEM((N, T, 3 * HIDDEN_SIZE), jnp.float32)],
    )(g_in, wih1, bih1, wstep, bstep)

    dec_flat = [t for wb in params["deconv"] for t in wb]
    fc1w, fc1b, fc2w, fc2b = params["fc"]
    co_out = IN_CHANNELS[0]
    y = pl.pallas_call(
        partial(_deconv_fc_kernel, N=N, heights=dec_heights),
        out_shape=jax.ShapeDtypeStruct((N, co_out, dec_heights[-1], FC_OUT_DIM),
                                       jnp.float32),
        in_specs=[vmem] * (1 + len(dec_flat) + 4),
        out_specs=vmem,
    )(g_out, *dec_flat, fc1w, fc1b, fc2w, fc2b)

    return y.reshape(B, Fc, co_out, dec_heights[-1], FC_OUT_DIM)


# ----------------------------------------------------------------------------
if __name__ == "__main__":
    key = jax.random.PRNGKey(0)
    k_params, k_x = jax.random.split(key)

    params = make_params(k_params)

    # W=31 so the 4 stride-(1,2) convs reduce width to 1 (GRU input = 128) and the
    # 4 transposed convs bring it back to 31 (FC in_dim = 31).
    B, F_cnt, C, H, W = 2, 2, 2, 12, 31
    x = jax.random.normal(k_x, (B, F_cnt, C, H, W), jnp.float32)

    fwd = jax.jit(crn_net_forward)
    y = jax.block_until_ready(fwd(x, params))

    assert y.shape == (B, F_cnt, 2, H, FC_OUT_DIM), y.shape
    assert bool(jnp.all(jnp.isfinite(y)))
    print("KERNEL_OK")
</pallas_src>

<mosaic_0001>
module attributes {stable_mosaic.version = 11 : i64} {
  func.func @_conv_stack_kernel(%arg0: memref<48x62xf32, #tpu.memory_space<vmem>>, %arg1: memref<186x240xbf16, #tpu.memory_space<vmem>>, %arg2: memref<1x240xf32, #tpu.memory_space<vmem>>, %arg3: memref<720x224xbf16, #tpu.memory_space<vmem>>, %arg4: memref<1x224xf32, #tpu.memory_space<vmem>>, %arg5: memref<672x192xbf16, #tpu.memory_space<vmem>>, %arg6: memref<1x192xf32, #tpu.memory_space<vmem>>, %arg7: memref<576x128xbf16, #tpu.memory_space<vmem>>, %arg8: memref<1x128xf32, #tpu.memory_space<vmem>>, %arg9: memref<16x128xbf16, #tpu.memory_space<vmem>>) attributes {dimension_semantics = [], scalar_prefetch = 0 : i64, scratch_operands = 0 : i64, tpu.core_type = #tpu.core_type<tc>} {
    %c0 = arith.constant 0 : index
    %c0_0 = arith.constant 0 : index
    %0 = vector.load %arg0[%c0, %c0_0] : memref<48x62xf32, #tpu.memory_space<vmem>>, vector<48x62xf32>
    %1 = vector.extract_strided_slice %0 {offsets = [0, 0], sizes = [10, 62], strides = [1, 1]} : vector<48x62xf32> to vector<10x62xf32>
    %2 = vector.extract_strided_slice %0 {offsets = [1, 0], sizes = [10, 62], strides = [1, 1]} : vector<48x62xf32> to vector<10x62xf32>
    %3 = vector.extract_strided_slice %0 {offsets = [2, 0], sizes = [10, 62], strides = [1, 1]} : vector<48x62xf32> to vector<10x62xf32>
    %4 = tpu.concatenate %1, %2, %3 in 1 : vector<10x62xf32>, vector<10x62xf32>, vector<10x62xf32> -> vector<10x186xf32>
    %5 = vector.extract_strided_slice %0 {offsets = [12, 0], sizes = [10, 62], strides = [1, 1]} : vector<48x62xf32> to vector<10x62xf32>
    %6 = vector.extract_strided_slice %0 {offsets = [13, 0], sizes = [10, 62], strides = [1, 1]} : vector<48x62xf32> to vector<10x62xf32>
    %7 = vector.extract_strided_slice %0 {offsets = [14, 0], sizes = [10, 62], strides = [1, 1]} : vector<48x62xf32> to vector<10x62xf32>
    %8 = tpu.concatenate %5, %6, %7 in 1 : vector<10x62xf32>, vector<10x62xf32>, vector<10x62xf32> -> vector<10x186xf32>
    %9 = vector.extract_strided_slice %0 {offsets = [24, 0], sizes = [10, 62], strides = [1, 1]} : vector<48x62xf32> to vector<10x62xf32>
    %10 = vector.extract_strided_slice %0 {offsets = [25, 0], sizes = [10, 62], strides = [1, 1]} : vector<48x62xf32> to vector<10x62xf32>
    %11 = vector.extract_strided_slice %0 {offsets = [26, 0], sizes = [10, 62], strides = [1, 1]} : vector<48x62xf32> to vector<10x62xf32>
    %12 = tpu.concatenate %9, %10, %11 in 1 : vector<10x62xf32>, vector<10x62xf32>, vector<10x62xf32> -> vector<10x186xf32>
    %13 = vector.extract_strided_slice %0 {offsets = [36, 0], sizes = [10, 62], strides = [1, 1]} : vector<48x62xf32> to vector<10x62xf32>
    %14 = vector.extract_strided_slice %0 {offsets = [37, 0], sizes = [10, 62], strides = [1, 1]} : vector<48x62xf32> to vector<10x62xf32>
    %15 = vector.extract_strided_slice %0 {offsets = [38, 0], sizes = [10, 62], strides = [1, 1]} : vector<48x62xf32> to vector<10x62xf32>
    %16 = tpu.concatenate %13, %14, %15 in 1 : vector<10x62xf32>, vector<10x62xf32>, vector<10x62xf32> -> vector<10x186xf32>
    %17 = tpu.concatenate %4, %8, %12, %16 in 0 : vector<10x186xf32>, vector<10x186xf32>, vector<10x186xf32>, vector<10x186xf32> -> vector<40x186xf32>
    %18 = arith.truncf %17 : vector<40x186xf32> to vector<40x186xbf16>
    %c0_1 = arith.constant 0 : index
    %c0_2 = arith.constant 0 : index
    %19 = vector.load %arg1[%c0_1, %c0_2] : memref<186x240xbf16, #tpu.memory_space<vmem>>, vector<186x240xbf16>
    %cst = arith.constant dense<0.000000e+00> : vector<40x240xf32>
    %20 = tpu.matmul %18, %19, %cst {dimension_numbers = #tpu.dot_dimension_numbers<[1], [0], [0], [1], [0, 0, 1, 1], [], []>} : vector<40x186xbf16>, vector<186x240xbf16>, vector<40x240xf32> -> vector<40x240xf32>
    %c0_3 = arith.constant 0 : index
    %c0_4 = arith.constant 0 : index
    %21 = vector.load %arg2[%c0_3, %c0_4] : memref<1x240xf32, #tpu.memory_space<vmem>>, vector<1x240xf32>
    %22 = vector.broadcast %21 : vector<1x240xf32> to vector<40x240xf32>
    %23 = arith.addf %20, %22 : vector<40x240xf32>
    %24 = vector.extract_strided_slice %23 {offsets = [0, 0], sizes = [8, 240], strides = [1, 1]} : vector<40x240xf32> to vector<8x240xf32>
    %25 = vector.extract_strided_slice %23 {offsets = [1, 0], sizes = [8, 240], strides = [1, 1]} : vector<40x240xf32> to vector<8x240xf32>
    %26 = vector.extract_strided_slice %23 {offsets = [2, 0], sizes = [8, 240], strides = [1, 1]} : vector<40x240xf32> to vector<8x240xf32>
    %27 = tpu.concatenate %24, %25, %26 in 1 : vector<8x240xf32>, vector<8x240xf32>, vector<8x240xf32> -> vector<8x720xf32>
    %28 = vector.extract_strided_slice %23 {offsets = [10, 0], sizes = [8, 240], strides = [1, 1]} : vector<40x240xf32> to vector<8x240xf32>
    %29 = vector.extract_strided_slice %23 {offsets = [11, 0], sizes = [8, 240], strides = [1, 1]} : vector<40x240xf32> to vector<8x240xf32>
    %30 = vector.extract_strided_slice %23 {offsets = [12, 0], sizes = [8, 240], strides = [1, 1]} : vector<40x240xf32> to vector<8x240xf32>
    %31 = tpu.concatenate %28, %29, %30 in 1 : vector<8x240xf32>, vector<8x240xf32>, vector<8x240xf32> -> vector<8x720xf32>
    %32 = vector.extract_strided_slice %23 {offsets = [20, 0], sizes = [8, 240], strides = [1, 1]} : vector<40x240xf32> to vector<8x240xf32>
    %33 = vector.extract_strided_slice %23 {offsets = [21, 0], sizes = [8, 240], strides = [1, 1]} : vector<40x240xf32> to vector<8x240xf32>
    %34 = vector.extract_strided_slice %23 {offsets = [22, 0], sizes = [8, 240], strides = [1, 1]} : vector<40x240xf32> to vector<8x240xf32>
    %35 = tpu.concatenate %32, %33, %34 in 1 : vector<8x240xf32>, vector<8x240xf32>, vector<8x240xf32> -> vector<8x720xf32>
    %36 = vector.extract_strided_slice %23 {offsets = [30, 0], sizes = [8, 240], strides = [1, 1]} : vector<40x240xf32> to vector<8x240xf32>
    %37 = vector.extract_strided_slice %23 {offsets = [31, 0], sizes = [8, 240], strides = [1, 1]} : vector<40x240xf32> to vector<8x240xf32>
    %38 = vector.extract_strided_slice %23 {offsets = [32, 0], sizes = [8, 240], strides = [1, 1]} : vector<40x240xf32> to vector<8x240xf32>
    %39 = tpu.concatenate %36, %37, %38 in 1 : vector<8x240xf32>, vector<8x240xf32>, vector<8x240xf32> -> vector<8x720xf32>
    %40 = tpu.concatenate %27, %31, %35, %39 in 0 : vector<8x720xf32>, vector<8x720xf32>, vector<8x720xf32>, vector<8x720xf32> -> vector<32x720xf32>
    %41 = arith.truncf %40 : vector<32x720xf32> to vector<32x720xbf16>
    %c0_5 = arith.constant 0 : index
    %c0_6 = arith.constant 0 : index
    %42 = vector.load %arg3[%c0_5, %c0_6] : memref<720x224xbf16, #tpu.memory_space<vmem>>, vector<720x224xbf16>
    %cst_7 = arith.constant dense<0.000000e+00> : vector<32x224xf32>
    %43 = tpu.matmul %41, %42, %cst_7 {dimension_numbers = #tpu.dot_dimension_numbers<[1], [0], [0], [1], [0, 0, 1, 1], [], []>} : vector<32x720xbf16>, vector<720x224xbf16>, vector<32x224xf32> -> vector<32x224xf32>
    %c0_8 = arith.constant 0 : index
    %c0_9 = arith.constant 0 : index
    %44 = vector.load %arg4[%c0_8, %c0_9] : memref<1x224xf32, #tpu.memory_space<vmem>>, vector<1x224xf32>
    %45 = vector.broadcast %44 : vector<1x224xf32> to vector<32x224xf32>
    %46 = arith.addf %43, %45 : vector<32x224xf32>
    %47 = vector.extract_strided_slice %46 {offsets = [0, 0], sizes = [6, 224], strides = [1, 1]} : vector<32x224xf32> to vector<6x224xf32>
    %48 = vector.extract_strided_slice %46 {offsets = [1, 0], sizes = [6, 224], strides = [1, 1]} : vector<32x224xf32> to vector<6x224xf32>
    %49 = vector.extract_strided_slice %46 {offsets = [2, 0], sizes = [6, 224], strides = [1, 1]} : vector<32x224xf32> to vector<6x224xf32>
    %50 = tpu.concatenate %47, %48, %49 in 1 : vector<6x224xf32>, vector<6x224xf32>, vector<6x224xf32> -> vector<6x672xf32>
    %51 = vector.extract_strided_slice %46 {offsets = [8, 0], sizes = [6, 224], strides = [1, 1]} : vector<32x224xf32> to vector<6x224xf32>
    %52 = vector.extract_strided_slice %46 {offsets = [9, 0], sizes = [6, 224], strides = [1, 1]} : vector<32x224xf32> to vector<6x224xf32>
    %53 = vector.extract_strided_slice %46 {offsets = [10, 0], sizes = [6, 224], strides = [1, 1]} : vector<32x224xf32> to vector<6x224xf32>
    %54 = tpu.concatenate %51, %52, %53 in 1 : vector<6x224xf32>, vector<6x224xf32>, vector<6x224xf32> -> vector<6x672xf32>
    %55 = vector.extract_strided_slice %46 {offsets = [16, 0], sizes = [6, 224], strides = [1, 1]} : vector<32x224xf32> to vector<6x224xf32>
    %56 = vector.extract_strided_slice %46 {offsets = [17, 0], sizes = [6, 224], strides = [1, 1]} : vector<32x224xf32> to vector<6x224xf32>
    %57 = vector.extract_strided_slice %46 {offsets = [18, 0], sizes = [6, 224], strides = [1, 1]} : vector<32x224xf32> to vector<6x224xf32>
    %58 = tpu.concatenate %55, %56, %57 in 1 : vector<6x224xf32>, vector<6x224xf32>, vector<6x224xf32> -> vector<6x672xf32>
    %59 = vector.extract_strided_slice %46 {offsets = [24, 0], sizes = [6, 224], strides = [1, 1]} : vector<32x224xf32> to vector<6x224xf32>
    %60 = vector.extract_strided_slice %46 {offsets = [25, 0], sizes = [6, 224], strides = [1, 1]} : vector<32x224xf32> to vector<6x224xf32>
    %61 = vector.extract_strided_slice %46 {offsets = [26, 0], sizes = [6, 224], strides = [1, 1]} : vector<32x224xf32> to vector<6x224xf32>
    %62 = tpu.concatenate %59, %60, %61 in 1 : vector<6x224xf32>, vector<6x224xf32>, vector<6x224xf32> -> vector<6x672xf32>
    %63 = tpu.concatenate %50, %54, %58, %62 in 0 : vector<6x672xf32>, vector<6x672xf32>, vector<6x672xf32>, vector<6x672xf32> -> vector<24x672xf32>
    %64 = arith.truncf %63 : vector<24x672xf32> to vector<24x672xbf16>
    %c0_10 = arith.constant 0 : index
    %c0_11 = arith.constant 0 : index
    %65 = vector.load %arg5[%c0_10, %c0_11] : memref<672x192xbf16, #tpu.memory_space<vmem>>, vector<672x192xbf16>
    %cst_12 = arith.constant dense<0.000000e+00> : vector<24x192xf32>
    %66 = tpu.matmul %64, %65, %cst_12 {dimension_numbers = #tpu.dot_dimension_numbers<[1], [0], [0], [1], [0, 0, 1, 1], [], []>} : vector<24x672xbf16>, vector<672x192xbf16>, vector<24x192xf32> -> vector<24x192xf32>
    %c0_13 = arith.constant 0 : index
    %c0_14 = arith.constant 0 : index
    %67 = vector.load %arg6[%c0_13, %c0_14] : memref<1x192xf32, #tpu.memory_space<vmem>>, vector<1x192xf32>
    %68 = vector.broadcast %67 : vector<1x192xf32> to vector<24x192xf32>
    %69 = arith.addf %66, %68 : vector<24x192xf32>
    %70 = vector.extract_strided_slice %69 {offsets = [0, 0], sizes = [4, 192], strides = [1, 1]} : vector<24x192xf32> to vector<4x192xf32>
    %71 = vector.extract_strided_slice %69 {offsets = [1, 0], sizes = [4, 192], strides = [1, 1]} : vector<24x192xf32> to vector<4x192xf32>
    %72 = vector.extract_strided_slice %69 {offsets = [2, 0], sizes = [4, 192], strides = [1, 1]} : vector<24x192xf32> to vector<4x192xf32>
    %73 = tpu.concatenate %70, %71, %72 in 1 : vector<4x192xf32>, vector<4x192xf32>, vector<4x192xf32> -> vector<4x576xf32>
    %74 = vector.extract_strided_slice %69 {offsets = [6, 0], sizes = [4, 192], strides = [1, 1]} : vector<24x192xf32> to vector<4x192xf32>
    %75 = vector.extract_strided_slice %69 {offsets = [7, 0], sizes = [4, 192], strides = [1, 1]} : vector<24x192xf32> to vector<4x192xf32>
    %76 = vector.extract_strided_slice %69 {offsets = [8, 0], sizes = [4, 192], strides = [1, 1]} : vector<24x192xf32> to vector<4x192xf32>
    %77 = tpu.concatenate %74, %75, %76 in 1 : vector<4x192xf32>, vector<4x192xf32>, vector<4x192xf32> -> vector<4x576xf32>
    %78 = vector.extract_strided_slice %69 {offsets = [12, 0], sizes = [4, 192], strides = [1, 1]} : vector<24x192xf32> to vector<4x192xf32>
    %79 = vector.extract_strided_slice %69 {offsets = [13, 0], sizes = [4, 192], strides = [1, 1]} : vector<24x192xf32> to vector<4x192xf32>
    %80 = vector.extract_strided_slice %69 {offsets = [14, 0], sizes = [4, 192], strides = [1, 1]} : vector<24x192xf32> to vector<4x192xf32>
    %81 = tpu.concatenate %78, %79, %80 in 1 : vector<4x192xf32>, vector<4x192xf32>, vector<4x192xf32> -> vector<4x576xf32>
    %82 = vector.extract_strided_slice %69 {offsets = [18, 0], sizes = [4, 192], strides = [1, 1]} : vector<24x192xf32> to vector<4x192xf32>
    %83 = vector.extract_strided_slice %69 {offsets = [19, 0], sizes = [4, 192], strides = [1, 1]} : vector<24x192xf32> to vector<4x192xf32>
    %84 = vector.extract_strided_slice %69 {offsets = [20, 0], sizes = [4, 192], strides = [1, 1]} : vector<24x192xf32> to vector<4x192xf32>
    %85 = tpu.concatenate %82, %83, %84 in 1 : vector<4x192xf32>, vector<4x192xf32>, vector<4x192xf32> -> vector<4x576xf32>
    %86 = tpu.concatenate %73, %77, %81, %85 in 0 : vector<4x576xf32>, vector<4x576xf32>, vector<4x576xf32>, vector<4x576xf32> -> vector<16x576xf32>
    %87 = arith.truncf %86 : vector<16x576xf32> to vector<16x576xbf16>
    %c0_15 = arith.constant 0 : index
    %c0_16 = arith.constant 0 : index
    %88 = vector.load %arg7[%c0_15, %c0_16] : memref<576x128xbf16, #tpu.memory_space<vmem>>, vector<576x128xbf16>
    %cst_17 = arith.constant dense<0.000000e+00> : vector<16x128xf32>
    %89 = tpu.matmul %87, %88, %cst_17 {dimension_numbers = #tpu.dot_dimension_numbers<[1], [0], [0], [1], [0, 0, 1, 1], [], []>} : vector<16x576xbf16>, vector<576x128xbf16>, vector<16x128xf32> -> vector<16x128xf32>
    %c0_18 = arith.constant 0 : index
    %c0_19 = arith.constant 0 : index
    %90 = vector.load %arg8[%c0_18, %c0_19] : memref<1x128xf32, #tpu.memory_space<vmem>>, vector<1x128xf32>
    %91 = vector.broadcast %90 : vector<1x128xf32> to vector<16x128xf32>
    %92 = arith.addf %89, %91 : vector<16x128xf32>
    %93 = arith.truncf %92 : vector<16x128xf32> to vector<16x128xbf16>
    %c0_20 = arith.constant 0 : index
    %c0_21 = arith.constant 0 : index
    %94 = vector.load %arg9[%c0_20, %c0_21] : memref<16x128xbf16, #tpu.memory_space<vmem>>, vector<16x128xbf16>
    tpu.vector_store %arg9[%c0_20, %c0_21], %93 {strides = array<i32>} : memref<16x128xbf16, #tpu.memory_space<vmem>>, vector<16x128xbf16>,
    return
  }
}

module attributes {stable_mosaic.version = 11 : i64} {
  func.func @_gru2_kernel(%arg0: memref<16x128xbf16, #tpu.memory_space<vmem>>, %arg1: memref<128x384xbf16, #tpu.memory_space<vmem>>, %arg2: memref<1x384xf32, #tpu.memory_space<vmem>>, %arg3: memref<256x1152xbf16, #tpu.memory_space<vmem>>, %arg4: memref<1x1152xf32, #tpu.memory_space<vmem>>, %arg5: memref<4x4x128xbf16, #tpu.memory_space<vmem>>, %arg6: memref<4x4x384xf32, #tpu.memory_space<vmem>>) attributes {dimension_semantics = [], scalar_prefetch = 0 : i64, scratch_operands = 1 : i64, tpu.core_type = #tpu.core_type<tc>} {
    %c0 = arith.constant 0 : index
    %c0_0 = arith.constant 0 : index
    %0 = vector.load %arg0[%c0, %c0_0] : memref<16x128xbf16, #tpu.memory_space<vmem>>, vector<16x128xbf16>
    %c0_1 = arith.constant 0 : index
    %c0_2 = arith.constant 0 : index
    %1 = vector.load %arg1[%c0_1, %c0_2] : memref<128x384xbf16, #tpu.memory_space<vmem>>, vector<128x384xbf16>
    %cst = arith.constant dense<0.000000e+00> : vector<16x384xf32>
    %2 = tpu.matmul %0, %1, %cst {dimension_numbers = #tpu.dot_dimension_numbers<[1], [0], [0], [1], [0, 0, 1, 1], [], []>} : vector<16x128xbf16>, vector<128x384xbf16>, vector<16x384xf32> -> vector<16x384xf32>
    %c0_3 = arith.constant 0 : index
    %c0_4 = arith.constant 0 : index
    %3 = vector.load %arg2[%c0_3, %c0_4] : memref<1x384xf32, #tpu.memory_space<vmem>>, vector<1x384xf32>
    %4 = vector.broadcast %3 : vector<1x384xf32> to vector<16x384xf32>
    %5 = arith.addf %2, %4 : vector<16x384xf32>
    %6 = vector.extract_strided_slice %5 {offsets = [0, 0], sizes = [4, 384], strides = [1, 1]} : vector<16x384xf32> to vector<4x384xf32>
    %c0_5 = arith.constant 0 : index
    %c0_6 = arith.constant 0 : index
    %c0_7 = arith.constant 0 : index
    %7 = vector.load %arg6[%c0_5, %c0_6, %c0_7] : memref<4x4x384xf32, #tpu.memory_space<vmem>>, vector<1x4x384xf32>
    %8 = vector.shape_cast %7 : vector<1x4x384xf32> to vector<4x384xf32>
    %9 = vector.shape_cast %6 : vector<4x384xf32> to vector<1x4x384xf32>
    tpu.vector_store %arg6[%c0_5, %c0_6, %c0_7], %9 {strides = array<i32>} : memref<4x4x384xf32, #tpu.memory_space<vmem>>, vector<1x4x384xf32>,
    %10 = vector.extract_strided_slice %5 {offsets = [4, 0], sizes = [4, 384], strides = [1, 1]} : vector<16x384xf32> to vector<4x384xf32>
    %c1 = arith.constant 1 : index
    %c0_8 = arith.constant 0 : index
    %c0_9 = arith.constant 0 : index
    %11 = vector.load %arg6[%c1, %c0_8, %c0_9] : memref<4x4x384xf32, #tpu.memory_space<vmem>>, vector<1x4x384xf32>
    %12 = vector.shape_cast %11 : vector<1x4x384xf32> to vector<4x384xf32>
    %13 = vector.shape_cast %10 : vector<4x384xf32> to vector<1x4x384xf32>
    tpu.vector_store %arg6[%c1, %c0_8, %c0_9], %13 {strides = array<i32>} : memref<4x4x384xf32, #tpu.memory_space<vmem>>, vector<1x4x384xf32>,
    %14 = vector.extract_strided_slice %5 {offsets = [8, 0], sizes = [4, 384], strides = [1, 1]} : vector<16x384xf32> to vector<4x384xf32>
    %c2 = arith.constant 2 : index
    %c0_10 = arith.constant 0 : index
    %c0_11 = arith.constant 0 : index
    %15 = vector.load %arg6[%c2, %c0_10, %c0_11] : memref<4x4x384xf32, #tpu.memory_space<vmem>>, vector<1x4x384xf32>
    %16 = vector.shape_cast %15 : vector<1x4x384xf32> to vector<4x384xf32>
    %17 = vector.shape_cast %14 : vector<4x384xf32> to vector<1x4x384xf32>
    tpu.vector_store %arg6[%c2, %c0_10, %c0_11], %17 {strides = array<i32>} : memref<4x4x384xf32, #tpu.memory_space<vmem>>, vector<1x4x384xf32>,
    %18 = vector.extract_strided_slice %5 {offsets = [12, 0], sizes = [4, 384], strides = [1, 1]} : vector<16x384xf32> to vector<4x384xf32>
    %c3 = arith.constant 3 : index
    %c0_12 = arith.constant 0 : index
    %c0_13 = arith.constant 0 : index
    %19 = vector.load %arg6[%c3, %c0_12, %c0_13] : memref<4x4x384xf32, #tpu.memory_space<vmem>>, vector<1x4x384xf32>
    %20 = vector.shape_cast %19 : vector<1x4x384xf32> to vector<4x384xf32>
    %21 = vector.shape_cast %18 : vector<4x384xf32> to vector<1x4x384xf32>
    tpu.vector_store %arg6[%c3, %c0_12, %c0_13], %21 {strides = array<i32>} : memref<4x4x384xf32, #tpu.memory_space<vmem>>, vector<1x4x384xf32>,
    %c0_14 = arith.constant 0 : index
    %c0_15 = arith.constant 0 : index
    %22 = vector.load %arg3[%c0_14, %c0_15] : memref<256x1152xbf16, #tpu.memory_space<vmem>>, vector<256x1152xbf16>
    %c0_16 = arith.constant 0 : index
    %c0_17 = arith.constant 0 : index
    %23 = vector.load %arg4[%c0_16, %c0_17] : memref<1x1152xf32, #tpu.memory_space<vmem>>, vector<1x1152xf32>
    %cst_18 = arith.constant 0.000000e+00 : f32
    %24 = vector.broadcast %cst_18 : f32 to vector<4x128xf32>
    %cst_19 = arith.constant 0.000000e+00 : f32
    %25 = vector.broadcast %cst_19 : f32 to vector<4x128xf32>
    %26 = tpu.concatenate %24, %25 in 1 : vector<4x128xf32>, vector<4x128xf32> -> vector<4x256xf32>
    %27 = arith.truncf %26 : vector<4x256xf32> to vector<4x256xbf16>
    %cst_20 = arith.constant dense<0.000000e+00> : vector<4x1152xf32>
    %28 = tpu.matmul %27, %22, %cst_20 {dimension_numbers = #tpu.dot_dimension_numbers<[1], [0], [0], [1], [0, 0, 1, 1], [], []>} : vector<4x256xbf16>, vector<256x1152xbf16>, vector<4x1152xf32> -> vector<4x1152xf32>
    %29 = vector.broadcast %23 : vector<1x1152xf32> to vector<4x1152xf32>
    %30 = arith.addf %28, %29 : vector<4x1152xf32>
    %31 = vector.extract_strided_slice %30 {offsets = [0, 0], sizes = [4, 384], strides = [1, 1]} : vector<4x1152xf32> to vector<4x384xf32>
    %c0_21 = arith.constant 0 : index
    %c0_22 = arith.constant 0 : index
    %c0_23 = arith.constant 0 : index
    %32 = vector.load %arg6[%c0_21, %c0_22, %c0_23] : memref<4x4x384xf32, #tpu.memory_space<vmem>>, vector<4x1x384xf32>
    %33 = vector.shape_cast %32 : vector<4x1x384xf32> to vector<4x384xf32>
    %34 = vector.extract_strided_slice %33 {offsets = [0, 0], sizes = [4, 128], strides = [1, 1]} : vector<4x384xf32> to vector<4x128xf32>
    %35 = vector.extract_strided_slice %31 {offsets = [0, 0], sizes = [4, 128], strides = [1, 1]} : vector<4x384xf32> to vector<4x128xf32>
    %36 = arith.addf %34, %35 : vector<4x128xf32>
    %37 = arith.negf %36 : vector<4x128xf32>
    %38 = math.exp %37 : vector<4x128xf32>
    %cst_24 = arith.constant 1.000000e+00 : f32
    %39 = vector.broadcast %cst_24 : f32 to vector<4x128xf32>
    %40 = arith.addf %39, %38 : vector<4x128xf32>
    %41 = arith.divf %39, %40 : vector<4x128xf32>
    %42 = vector.extract_strided_slice %33 {offsets = [0, 128], sizes = [4, 128], strides = [1, 1]} : vector<4x384xf32> to vector<4x128xf32>
    %43 = vector.extract_strided_slice %31 {offsets = [0, 128], sizes = [4, 128], strides = [1, 1]} : vector<4x384xf32> to vector<4x128xf32>
    %44 = arith.addf %42, %43 : vector<4x128xf32>
    %45 = arith.negf %44 : vector<4x128xf32>
    %46 = math.exp %45 : vector<4x128xf32>
    %cst_25 = arith.constant 1.000000e+00 : f32
    %47 = vector.broadcast %cst_25 : f32 to vector<4x128xf32>
    %48 = arith.addf %47, %46 : vector<4x128xf32>
    %49 = arith.divf %47, %48 : vector<4x128xf32>
    %50 = vector.extract_strided_slice %33 {offsets = [0, 256], sizes = [4, 128], strides = [1, 1]} : vector<4x384xf32> to vector<4x128xf32>
    %51 = vector.extract_strided_slice %31 {offsets = [0, 256], sizes = [4, 128], strides = [1, 1]} : vector<4x384xf32> to vector<4x128xf32>
    %52 = arith.mulf %41, %51 : vector<4x128xf32>
    %53 = arith.addf %50, %52 : vector<4x128xf32>
    %54 = math.tanh %53 : vector<4x128xf32>
    %cst_26 = arith.constant 1.000000e+00 : f32
    %55 = vector.broadcast %cst_26 : f32 to vector<4x128xf32>
    %56 = arith.subf %55, %49 : vector<4x128xf32>
    %57 = arith.mulf %56, %54 : vector<4x128xf32>
    %58 = arith.mulf %49, %24 : vector<4x128xf32>
    %59 = arith.addf %57, %58 : vector<4x128xf32>
    %60 = tpu.concatenate %59, %25 in 1 : vector<4x128xf32>, vector<4x128xf32> -> vector<4x256xf32>
    %61 = arith.truncf %60 : vector<4x256xf32> to vector<4x256xbf16>
    %cst_27 = arith.constant dense<0.000000e+00> : vector<4x1152xf32>
    %62 = tpu.matmul %61, %22, %cst_27 {dimension_numbers = #tpu.dot_dimension_numbers<[1], [0], [0], [1], [0, 0, 1, 1], [], []>} : vector<4x256xbf16>, vector<256x1152xbf16>, vector<4x1152xf32> -> vector<4x1152xf32>
    %63 = vector.broadcast %23 : vector<1x1152xf32> to vector<4x1152xf32>
    %64 = arith.addf %62, %63 : vector<4x1152xf32>
    %65 = vector.extract_strided_slice %64 {offsets = [0, 0], sizes = [4, 384], strides = [1, 1]} : vector<4x1152xf32> to vector<4x384xf32>
    %66 = vector.extract_strided_slice %64 {offsets = [0, 384], sizes = [4, 384], strides = [1, 1]} : vector<4x1152xf32> to vector<4x384xf32>
    %67 = vector.extract_strided_slice %64 {offsets = [0, 768], sizes = [4, 384], strides = [1, 1]} : vector<4x1152xf32> to vector<4x384xf32>
    %c0_28 = arith.constant 0 : index
    %c1_29 = arith.constant 1 : index
    %c0_30 = arith.constant 0 : index
    %68 = vector.load %arg6[%c0_28, %c1_29, %c0_30] : memref<4x4x384xf32, #tpu.memory_space<vmem>>, vector<4x1x384xf32>
    %69 = vector.shape_cast %68 : vector<4x1x384xf32> to vector<4x384xf32>
    %70 = vector.extract_strided_slice %69 {offsets = [0, 0], sizes = [4, 128], strides = [1, 1]} : vector<4x384xf32> to vector<4x128xf32>
    %71 = vector.extract_strided_slice %65 {offsets = [0, 0], sizes = [4, 128], strides = [1, 1]} : vector<4x384xf32> to vector<4x128xf32>
    %72 = arith.addf %70, %71 : vector<4x128xf32>
    %73 = arith.negf %72 : vector<4x128xf32>
    %74 = math.exp %73 : vector<4x128xf32>
    %cst_31 = arith.constant 1.000000e+00 : f32
    %75 = vector.broadcast %cst_31 : f32 to vector<4x128xf32>
    %76 = arith.addf %75, %74 : vector<4x128xf32>
    %77 = arith.divf %75, %76 : vector<4x128xf32>
    %78 = vector.extract_strided_slice %69 {offsets = [0, 128], sizes = [4, 128], strides = [1, 1]} : vector<4x384xf32> to vector<4x128xf32>
    %79 = vector.extract_strided_slice %65 {offsets = [0, 128], sizes = [4, 128], strides = [1, 1]} : vector<4x384xf32> to vector<4x128xf32>
    %80 = arith.addf %78, %79 : vector<4x128xf32>
    %81 = arith.negf %80 : vector<4x128xf32>
    %82 = math.exp %81 : vector<4x128xf32>
    %cst_32 = arith.constant 1.000000e+00 : f32
    %83 = vector.broadcast %cst_32 : f32 to vector<4x128xf32>
    %84 = arith.addf %83, %82 : vector<4x128xf32>
    %85 = arith.divf %83, %84 : vector<4x128xf32>
    %86 = vector.extract_strided_slice %69 {offsets = [0, 256], sizes = [4, 128], strides = [1, 1]} : vector<4x384xf32> to vector<4x128xf32>
    %87 = vector.extract_strided_slice %65 {offsets = [0, 256], sizes = [4, 128], strides = [1, 1]} : vector<4x384xf32> to vector<4x128xf32>
    %88 = arith.mulf %77, %87 : vector<4x128xf32>
    %89 = arith.addf %86, %88 : vector<4x128xf32>
    %90 = math.tanh %89 : vector<4x128xf32>
    %cst_33 = arith.constant 1.000000e+00 : f32
    %91 = vector.broadcast %cst_33 : f32 to vector<4x128xf32>
    %92 = arith.subf %91, %85 : vector<4x128xf32>
    %93 = arith.mulf %92, %90 : vector<4x128xf32>
    %94 = arith.mulf %85, %59 : vector<4x128xf32>
    %95 = arith.addf %93, %94 : vector<4x128xf32>
    %96 = vector.extract_strided_slice %66 {offsets = [0, 0], sizes = [4, 128], strides = [1, 1]} : vector<4x384xf32> to vector<4x128xf32>
    %97 = vector.extract_strided_slice %67 {offsets = [0, 0], sizes = [4, 128], strides = [1, 1]} : vector<4x384xf32> to vector<4x128xf32>
    %98 = arith.addf %96, %97 : vector<4x128xf32>
    %99 = arith.negf %98 : vector<4x128xf32>
    %100 = math.exp %99 : vector<4x128xf32>
    %cst_34 = arith.constant 1.000000e+00 : f32
    %101 = vector.broadcast %cst_34 : f32 to vector<4x128xf32>
    %102 = arith.addf %101, %100 : vector<4x128xf32>
    %103 = arith.divf %101, %102 : vector<4x128xf32>
    %104 = vector.extract_strided_slice %66 {offsets = [0, 128], sizes = [4, 128], strides = [1, 1]} : vector<4x384xf32> to vector<4x128xf32>
    %105 = vector.extract_strided_slice %67 {offsets = [0, 128], sizes = [4, 128], strides = [1, 1]} : vector<4x384xf32> to vector<4x128xf32>
    %106 = arith.addf %104, %105 : vector<4x128xf32>
    %107 = arith.negf %106 : vector<4x128xf32>
    %108 = math.exp %107 : vector<4x128xf32>
    %cst_35 = arith.constant 1.000000e+00 : f32
    %109 = vector.broadcast %cst_35 : f32 to vector<4x128xf32>
    %110 = arith.addf %109, %108 : vector<4x128xf32>
    %111 = arith.divf %109, %110 : vector<4x128xf32>
    %112 = vector.extract_strided_slice %66 {offsets = [0, 256], sizes = [4, 128], strides = [1, 1]} : vector<4x384xf32> to vector<4x128xf32>
    %113 = vector.extract_strided_slice %67 {offsets = [0, 256], sizes = [4, 128], strides = [1, 1]} : vector<4x384xf32> to vector<4x128xf32>
    %114 = arith.mulf %103, %113 : vector<4x128xf32>
    %115 = arith.addf %112, %114 : vector<4x128xf32>
    %116 = math.tanh %115 : vector<4x128xf32>
    %cst_36 = arith.constant 1.000000e+00 : f32
    %117 = vector.broadcast %cst_36 : f32 to vector<4x128xf32>
    %118 = arith.subf %117, %111 : vector<4x128xf32>
    %119 = arith.mulf %118, %116 : vector<4x128xf32>
    %120 = arith.mulf %111, %25 : vector<4x128xf32>
    %121 = arith.addf %119, %120 : vector<4x128xf32>
    %122 = arith.truncf %121 : vector<4x128xf32> to vector<4x128xbf16>
    %c0_37 = arith.constant 0 : index
    %c0_38 = arith.constant 0 : index
    %c0_39 = arith.constant 0 : index
    %123 = vector.load %arg5[%c0_37, %c0_38, %c0_39] : memref<4x4x128xbf16, #tpu.memory_space<vmem>>, vector<4x1x128xbf16>
    %124 = vector.shape_cast %123 : vector<4x1x128xbf16> to vector<4x128xbf16>
    %125 = vector.shape_cast %122 : vector<4x128xbf16> to vector<4x1x128xbf16>
    tpu.vector_store %arg5[%c0_37, %c0_38, %c0_39], %125 {strides = array<i32>} : memref<4x4x128xbf16, #tpu.memory_space<vmem>>, vector<4x1x128xbf16>,
    %126 = tpu.concatenate %95, %121 in 1 : vector<4x128xf32>, vector<4x128xf32> -> vector<4x256xf32>
    %127 = arith.truncf %126 : vector<4x256xf32> to vector<4x256xbf16>
    %cst_40 = arith.constant dense<0.000000e+00> : vector<4x1152xf32>
    %128 = tpu.matmul %127, %22, %cst_40 {dimension_numbers = #tpu.dot_dimension_numbers<[1], [0], [0], [1], [0, 0, 1, 1], [], []>} : vector<4x256xbf16>, vector<256x1152xbf16>, vector<4x1152xf32> -> vector<4x1152xf32>
    %129 = vector.broadcast %23 : vector<1x1152xf32> to vector<4x1152xf32>
    %130 = arith.addf %128, %129 : vector<4x1152xf32>
    %131 = vector.extract_strided_slice %130 {offsets = [0, 0], sizes = [4, 384], strides = [1, 1]} : vector<4x1152xf32> to vector<4x384xf32>
    %132 = vector.extract_strided_slice %130 {offsets = [0, 384], sizes = [4, 384], strides = [1, 1]} : vector<4x1152xf32> to vector<4x384xf32>
    %133 = vector.extract_strided_slice %130 {offsets = [0, 768], sizes = [4, 384], strides = [1, 1]} : vector<4x1152xf32> to vector<4x384xf32>
    %c0_41 = arith.constant 0 : index
    %c2_42 = arith.constant 2 : index
    %c0_43 = arith.constant 0 : index
    %134 = vector.load %arg6[%c0_41, %c2_42, %c0_43] : memref<4x4x384xf32, #tpu.memory_space<vmem>>, vector<4x1x384xf32>
    %135 = vector.shape_cast %134 : vector<4x1x384xf32> to vector<4x384xf32>
    %136 = vector.extract_strided_slice %135 {offsets = [0, 0], sizes = [4, 128], strides = [1, 1]} : vector<4x384xf32> to vector<4x128xf32>
    %137 = vector.extract_strided_slice %131 {offsets = [0, 0], sizes = [4, 128], strides = [1, 1]} : vector<4x384xf32> to vector<4x128xf32>
    %138 = arith.addf %136, %137 : vector<4x128xf32>
    %139 = arith.negf %138 : vector<4x128xf32>
    %140 = math.exp %139 : vector<4x128xf32>
    %cst_44 = arith.constant 1.000000e+00 : f32
    %141 = vector.broadcast %cst_44 : f32 to vector<4x128xf32>
    %142 = arith.addf %141, %140 : vector<4x128xf32>
    %143 = arith.divf %141, %142 : vector<4x128xf32>
    %144 = vector.extract_strided_slice %135 {offsets = [0, 128], sizes = [4, 128], strides = [1, 1]} : vector<4x384xf32> to vector<4x128xf32>
    %145 = vector.extract_strided_slice %131 {offsets = [0, 128], sizes = [4, 128], strides = [1, 1]} : vector<4x384xf32> to vector<4x128xf32>
    %146 = arith.addf %144, %145 : vector<4x128xf32>
    %147 = arith.negf %146 : vector<4x128xf32>
    %148 = math.exp %147 : vector<4x128xf32>
    %cst_45 = arith.constant 1.000000e+00 : f32
    %149 = vector.broadcast %cst_45 : f32 to vector<4x128xf32>
    %150 = arith.addf %149, %148 : vector<4x128xf32>
    %151 = arith.divf %149, %150 : vector<4x128xf32>
    %152 = vector.extract_strided_slice %135 {offsets = [0, 256], sizes = [4, 128], strides = [1, 1]} : vector<4x384xf32> to vector<4x128xf32>
    %153 = vector.extract_strided_slice %131 {offsets = [0, 256], sizes = [4, 128], strides = [1, 1]} : vector<4x384xf32> to vector<4x128xf32>
    %154 = arith.mulf %143, %153 : vector<4x128xf32>
    %155 = arith.addf %152, %154 : vector<4x128xf32>
    %156 = math.tanh %155 : vector<4x128xf32>
    %cst_46 = arith.constant 1.000000e+00 : f32
    %157 = vector.broadcast %cst_46 : f32 to vector<4x128xf32>
    %158 = arith.subf %157, %151 : vector<4x128xf32>
    %159 = arith.mulf %158, %156 : vector<4x128xf32>
    %160 = arith.mulf %151, %95 : vector<4x128xf32>
    %161 = arith.addf %159, %160 : vector<4x128xf32>
    %162 = vector.extract_strided_slice %132 {offsets = [0, 0], sizes = [4, 128], strides = [1, 1]} : vector<4x384xf32> to vector<4x128xf32>
    %163 = vector.extract_strided_slice %133 {offsets = [0, 0], sizes = [4, 128], strides = [1, 1]} : vector<4x384xf32> to vector<4x128xf32>
    %164 = arith.addf %162, %163 : vector<4x128xf32>
    %165 = arith.negf %164 : vector<4x128xf32>
    %166 = math.exp %165 : vector<4x128xf32>
    %cst_47 = arith.constant 1.000000e+00 : f32
    %167 = vector.broadcast %cst_47 : f32 to vector<4x128xf32>
    %168 = arith.addf %167, %166 : vector<4x128xf32>
    %169 = arith.divf %167, %168 : vector<4x128xf32>
    %170 = vector.extract_strided_slice %132 {offsets = [0, 128], sizes = [4, 128], strides = [1, 1]} : vector<4x384xf32> to vector<4x128xf32>
    %171 = vector.extract_strided_slice %133 {offsets = [0, 128], sizes = [4, 128], strides = [1, 1]} : vector<4x384xf32> to vector<4x128xf32>
    %172 = arith.addf %170, %171 : vector<4x128xf32>
    %173 = arith.negf %172 : vector<4x128xf32>
    %174 = math.exp %173 : vector<4x128xf32>
    %cst_48 = arith.constant 1.000000e+00 : f32
    %175 = vector.broadcast %cst_48 : f32 to vector<4x128xf32>
    %176 = arith.addf %175, %174 : vector<4x128xf32>
    %177 = arith.divf %175, %176 : vector<4x128xf32>
    %178 = vector.extract_strided_slice %132 {offsets = [0, 256], sizes = [4, 128], strides = [1, 1]} : vector<4x384xf32> to vector<4x128xf32>
    %179 = vector.extract_strided_slice %133 {offsets = [0, 256], sizes = [4, 128], strides = [1, 1]} : vector<4x384xf32> to vector<4x128xf32>
    %180 = arith.mulf %169, %179 : vector<4x128xf32>
    %181 = arith.addf %178, %180 : vector<4x128xf32>
    %182 = math.tanh %181 : vector<4x128xf32>
    %cst_49 = arith.constant 1.000000e+00 : f32
    %183 = vector.broadcast %cst_49 : f32 to vector<4x128xf32>
    %184 = arith.subf %183, %177 : vector<4x128xf32>
    %185 = arith.mulf %184, %182 : vector<4x128xf32>
    %186 = arith.mulf %177, %121 : vector<4x128xf32>
    %187 = arith.addf %185, %186 : vector<4x128xf32>
    %188 = arith.truncf %187 : vector<4x128xf32> to vector<4x128xbf16>
    %c0_50 = arith.constant 0 : index
    %c1_51 = arith.constant 1 : index
    %c0_52 = arith.constant 0 : index
    %189 = vector.load %arg5[%c0_50, %c1_51, %c0_52] : memref<4x4x128xbf16, #tpu.memory_space<vmem>>, vector<4x1x128xbf16>
    %190 = vector.shape_cast %189 : vector<4x1x128xbf16> to vector<4x128xbf16>
    %191 = vector.shape_cast %188 : vector<4x128xbf16> to vector<4x1x128xbf16>
    tpu.vector_store %arg5[%c0_50, %c1_51, %c0_52], %191 {strides = array<i32>} : memref<4x4x128xbf16, #tpu.memory_space<vmem>>, vector<4x1x128xbf16>,
    %192 = tpu.concatenate %161, %187 in 1 : vector<4x128xf32>, vector<4x128xf32> -> vector<4x256xf32>
    %193 = arith.truncf %192 : vector<4x256xf32> to vector<4x256xbf16>
    %cst_53 = arith.constant dense<0.000000e+00> : vector<4x1152xf32>
    %194 = tpu.matmul %193, %22, %cst_53 {dimension_numbers = #tpu.dot_dimension_numbers<[1], [0], [0], [1], [0, 0, 1, 1], [], []>} : vector<4x256xbf16>, vector<256x1152xbf16>, vector<4x1152xf32> -> vector<4x1152xf32>
    %195 = vector.broadcast %23 : vector<1x1152xf32> to vector<4x1152xf32>
    %196 = arith.addf %194, %195 : vector<4x1152xf32>
    %197 = vector.extract_strided_slice %196 {offsets = [0, 0], sizes = [4, 384], strides = [1, 1]} : vector<4x1152xf32> to vector<4x384xf32>
    %198 = vector.extract_strided_slice %196 {offsets = [0, 384], sizes = [4, 384], strides = [1, 1]} : vector<4x1152xf32> to vector<4x384xf32>
    %199 = vector.extract_strided_slice %196 {offsets = [0, 768], sizes = [4, 384], strides = [1, 1]} : vector<4x1152xf32> to vector<4x384xf32>
    %c0_54 = arith.constant 0 : index
    %c3_55 = arith.constant 3 : index
    %c0_56 = arith.constant 0 : index
    %200 = vector.load %arg6[%c0_54, %c3_55, %c0_56] : memref<4x4x384xf32, #tpu.memory_space<vmem>>, vector<4x1x384xf32>
    %201 = vector.shape_cast %200 : vector<4x1x384xf32> to vector<4x384xf32>
    %202 = vector.extract_strided_slice %201 {offsets = [0, 0], sizes = [4, 128], strides = [1, 1]} : vector<4x384xf32> to vector<4x128xf32>
    %203 = vector.extract_strided_slice %197 {offsets = [0, 0], sizes = [4, 128], strides = [1, 1]} : vector<4x384xf32> to vector<4x128xf32>
    %204 = arith.addf %202, %203 : vector<4x128xf32>
    %205 = arith.negf %204 : vector<4x128xf32>
    %206 = math.exp %205 : vector<4x128xf32>
    %cst_57 = arith.constant 1.000000e+00 : f32
    %207 = vector.broadcast %cst_57 : f32 to vector<4x128xf32>
    %208 = arith.addf %207, %206 : vector<4x128xf32>
    %209 = arith.divf %207, %208 : vector<4x128xf32>
    %210 = vector.extract_strided_slice %201 {offsets = [0, 128], sizes = [4, 128], strides = [1, 1]} : vector<4x384xf32> to vector<4x128xf32>
    %211 = vector.extract_strided_slice %197 {offsets = [0, 128], sizes = [4, 128], strides = [1, 1]} : vector<4x384xf32> to vector<4x128xf32>
    %212 = arith.addf %210, %211 : vector<4x128xf32>
    %213 = arith.negf %212 : vector<4x128xf32>
    %214 = math.exp %213 : vector<4x128xf32>
    %cst_58 = arith.constant 1.000000e+00 : f32
    %215 = vector.broadcast %cst_58 : f32 to vector<4x128xf32>
    %216 = arith.addf %215, %214 : vector<4x128xf32>
    %217 = arith.divf %215, %216 : vector<4x128xf32>
    %218 = vector.extract_strided_slice %201 {offsets = [0, 256], sizes = [4, 128], strides = [1, 1]} : vector<4x384xf32> to vector<4x128xf32>
    %219 = vector.extract_strided_slice %197 {offsets = [0, 256], sizes = [4, 128], strides = [1, 1]} : vector<4x384xf32> to vector<4x128xf32>
    %220 = arith.mulf %209, %219 : vector<4x128xf32>
    %221 = arith.addf %218, %220 : vector<4x128xf32>
    %222 = math.tanh %221 : vector<4x128xf32>
    %cst_59 = arith.constant 1.000000e+00 : f32
    %223 = vector.broadcast %cst_59 : f32 to vector<4x128xf32>
    %224 = arith.subf %223, %217 : vector<4x128xf32>
    %225 = arith.mulf %224, %222 : vector<4x128xf32>
    %226 = arith.mulf %217, %161 : vector<4x128xf32>
    %227 = arith.addf %225, %226 : vector<4x128xf32>
    %228 = vector.extract_strided_slice %198 {offsets = [0, 0], sizes = [4, 128], strides = [1, 1]} : vector<4x384xf32> to vector<4x128xf32>
    %229 = vector.extract_strided_slice %199 {offsets = [0, 0], sizes = [4, 128], strides = [1, 1]} : vector<4x384xf32> to vector<4x128xf32>
    %230 = arith.addf %228, %229 : vector<4x128xf32>
    %231 = arith.negf %230 : vector<4x128xf32>
    %232 = math.exp %231 : vector<4x128xf32>
    %cst_60 = arith.constant 1.000000e+00 : f32
    %233 = vector.broadcast %cst_60 : f32 to vector<4x128xf32>
    %234 = arith.addf %233, %232 : vector<4x128xf32>
    %235 = arith.divf %233, %234 : vector<4x128xf32>
    %236 = vector.extract_strided_slice %198 {offsets = [0, 128], sizes = [4, 128], strides = [1, 1]} : vector<4x384xf32> to vector<4x128xf32>
    %237 = vector.extract_strided_slice %199 {offsets = [0, 128], sizes = [4, 128], strides = [1, 1]} : vector<4x384xf32> to vector<4x128xf32>
    %238 = arith.addf %236, %237 : vector<4x128xf32>
    %239 = arith.negf %238 : vector<4x128xf32>
    %240 = math.exp %239 : vector<4x128xf32>
    %cst_61 = arith.constant 1.000000e+00 : f32
    %241 = vector.broadcast %cst_61 : f32 to vector<4x128xf32>
    %242 = arith.addf %241, %240 : vector<4x128xf32>
    %243 = arith.divf %241, %242 : vector<4x128xf32>
    %244 = vector.extract_strided_slice %198 {offsets = [0, 256], sizes = [4, 128], strides = [1, 1]} : vector<4x384xf32> to vector<4x128xf32>
    %245 = vector.extract_strided_slice %199 {offsets = [0, 256], sizes = [4, 128], strides = [1, 1]} : vector<4x384xf32> to vector<4x128xf32>
    %246 = arith.mulf %235, %245 : vector<4x128xf32>
    %247 = arith.addf %244, %246 : vector<4x128xf32>
    %248 = math.tanh %247 : vector<4x128xf32>
    %cst_62 = arith.constant 1.000000e+00 : f32
    %249 = vector.broadcast %cst_62 : f32 to vector<4x128xf32>
    %250 = arith.subf %249, %243 : vector<4x128xf32>
    %251 = arith.mulf %250, %248 : vector<4x128xf32>
    %252 = arith.mulf %243, %187 : vector<4x128xf32>
    %253 = arith.addf %251, %252 : vector<4x128xf32>
    %254 = arith.truncf %253 : vector<4x128xf32> to vector<4x128xbf16>
    %c0_63 = arith.constant 0 : index
    %c2_64 = arith.constant 2 : index
    %c0_65 = arith.constant 0 : index
    %255 = vector.load %arg5[%c0_63, %c2_64, %c0_65] : memref<4x4x128xbf16, #tpu.memory_space<vmem>>, vector<4x1x128xbf16>
    %256 = vector.shape_cast %255 : vector<4x1x128xbf16> to vector<4x128xbf16>
    %257 = vector.shape_cast %254 : vector<4x128xbf16> to vector<4x1x128xbf16>
    tpu.vector_store %arg5[%c0_63, %c2_64, %c0_65], %257 {strides = array<i32>} : memref<4x4x128xbf16, #tpu.memory_space<vmem>>, vector<4x1x128xbf16>,
    %258 = tpu.concatenate %227, %253 in 1 : vector<4x128xf32>, vector<4x128xf32> -> vector<4x256xf32>
    %259 = arith.truncf %258 : vector<4x256xf32> to vector<4x256xbf16>
    %cst_66 = arith.constant dense<0.000000e+00> : vector<4x1152xf32>
    %260 = tpu.matmul %259, %22, %cst_66 {dimension_numbers = #tpu.dot_dimension_numbers<[1], [0], [0], [1], [0, 0, 1, 1], [], []>} : vector<4x256xbf16>, vector<256x1152xbf16>, vector<4x1152xf32> -> vector<4x1152xf32>
    %261 = vector.broadcast %23 : vector<1x1152xf32> to vector<4x1152xf32>
    %262 = arith.addf %260, %261 : vector<4x1152xf32>
    %263 = vector.extract_strided_slice %262 {offsets = [0, 384], sizes = [4, 384], strides = [1, 1]} : vector<4x1152xf32> to vector<4x384xf32>
    %264 = vector.extract_strided_slice %262 {offsets = [0, 768], sizes = [4, 384], strides = [1, 1]} : vector<4x1152xf32> to vector<4x384xf32>
    %265 = vector.extract_strided_slice %263 {offsets = [0, 0], sizes = [4, 128], strides = [1, 1]} : vector<4x384xf32> to vector<4x128xf32>
    %266 = vector.extract_strided_slice %264 {offsets = [0, 0], sizes = [4, 128], strides = [1, 1]} : vector<4x384xf32> to vector<4x128xf32>
    %267 = arith.addf %265, %266 : vector<4x128xf32>
    %268 = arith.negf %267 : vector<4x128xf32>
    %269 = math.exp %268 : vector<4x128xf32>
    %cst_67 = arith.constant 1.000000e+00 : f32
    %270 = vector.broadcast %cst_67 : f32 to vector<4x128xf32>
    %271 = arith.addf %270, %269 : vector<4x128xf32>
    %272 = arith.divf %270, %271 : vector<4x128xf32>
    %273 = vector.extract_strided_slice %263 {offsets = [0, 128], sizes = [4, 128], strides = [1, 1]} : vector<4x384xf32> to vector<4x128xf32>
    %274 = vector.extract_strided_slice %264 {offsets = [0, 128], sizes = [4, 128], strides = [1, 1]} : vector<4x384xf32> to vector<4x128xf32>
    %275 = arith.addf %273, %274 : vector<4x128xf32>
    %276 = arith.negf %275 : vector<4x128xf32>
    %277 = math.exp %276 : vector<4x128xf32>
    %cst_68 = arith.constant 1.000000e+00 : f32
    %278 = vector.broadcast %cst_68 : f32 to vector<4x128xf32>
    %279 = arith.addf %278, %277 : vector<4x128xf32>
    %280 = arith.divf %278, %279 : vector<4x128xf32>
    %281 = vector.extract_strided_slice %263 {offsets = [0, 256], sizes = [4, 128], strides = [1, 1]} : vector<4x384xf32> to vector<4x128xf32>
    %282 = vector.extract_strided_slice %264 {offsets = [0, 256], sizes = [4, 128], strides = [1, 1]} : vector<4x384xf32> to vector<4x128xf32>
    %283 = arith.mulf %272, %282 : vector<4x128xf32>
    %284 = arith.addf %281, %283 : vector<4x128xf32>
    %285 = math.tanh %284 : vector<4x128xf32>
    %cst_69 = arith.constant 1.000000e+00 : f32
    %286 = vector.broadcast %cst_69 : f32 to vector<4x128xf32>
    %287 = arith.subf %286, %280 : vector<4x128xf32>
    %288 = arith.mulf %287, %285 : vector<4x128xf32>
    %289 = arith.mulf %280, %253 : vector<4x128xf32>
    %290 = arith.addf %288, %289 : vector<4x128xf32>
    %291 = arith.truncf %290 : vector<4x128xf32> to vector<4x128xbf16>
    %c0_70 = arith.constant 0 : index
    %c3_71 = arith.constant 3 : index
    %c0_72 = arith.constant 0 : index
    %292 = vector.load %arg5[%c0_70, %c3_71, %c0_72] : memref<4x4x128xbf16, #tpu.memory_space<vmem>>, vector<4x1x128xbf16>
    %293 = vector.shape_cast %292 : vector<4x1x128xbf16> to vector<4x128xbf16>
    %294 = vector.shape_cast %291 : vector<4x128xbf16> to vector<4x1x128xbf16>
    tpu.vector_store %arg5[%c0_70, %c3_71, %c0_72], %294 {strides = array<i32>} : memref<4x4x128xbf16, #tpu.memory_space<vmem>>, vector<4x1x128xbf16>,
    return
  }
}

module attributes {stable_mosaic.version = 11 : i64} {
  func.func @_deconv_fc_kernel(%arg0: memref<4x4x128xbf16, #tpu.memory_space<vmem>>, %arg1: memref<384x192xbf16, #tpu.memory_space<vmem>>, %arg2: memref<1x192xf32, #tpu.memory_space<vmem>>, %arg3: memref<576x224xbf16, #tpu.memory_space<vmem>>, %arg4: memref<1x224xf32, #tpu.memory_space<vmem>>, %arg5: memref<672x240xbf16, #tpu.memory_space<vmem>>, %arg6: memref<1x240xf32, #tpu.memory_space<vmem>>, %arg7: memref<720x62xbf16, #tpu.memory_space<vmem>>, %arg8: memref<1x62xf32, #tpu.memory_space<vmem>>, %arg9: memref<2x62x512xbf16, #tpu.memory_space<vmem>>, %arg10: memref<1x512xf32, #tpu.memory_space<vmem>>, %arg11: memref<512x7xbf16, #tpu.memory_space<vmem>>, %arg12: memref<1x7xf32, #tpu.memory_space<vmem>>, %arg13: memref<4x2x12x7xf32, #tpu.memory_space<vmem>>) attributes {dimension_semantics = [], scalar_prefetch = 0 : i64, scratch_operands = 0 : i64, tpu.core_type = #tpu.core_type<tc>} {
    %c0 = arith.constant 0 : index
    %c0_0 = arith.constant 0 : index
    %c0_1 = arith.constant 0 : index
    %0 = vector.load %arg0[%c0, %c0_0, %c0_1] : memref<4x4x128xbf16, #tpu.memory_space<vmem>>, vector<1x4x128xbf16>
    %1 = vector.shape_cast %0 : vector<1x4x128xbf16> to vector<4x128xbf16>
    %2 = arith.extf %1 : vector<4x128xbf16> to vector<4x128xf32>
    %cst = arith.constant 0.000000e+00 : f32
    %3 = vector.broadcast %cst : f32 to vector<2x128xf32>
    %4 = tpu.concatenate %3, %2, %3 in 0 : vector<2x128xf32>, vector<4x128xf32>, vector<2x128xf32> -> vector<8x128xf32>
    %5 = vector.extract_strided_slice %4 {offsets = [2, 0], sizes = [6, 128], strides = [1, 1]} : vector<8x128xf32> to vector<6x128xf32>
    %6 = vector.extract_strided_slice %4 {offsets = [1, 0], sizes = [6, 128], strides = [1, 1]} : vector<8x128xf32> to vector<6x128xf32>
    %7 = vector.extract_strided_slice %4 {offsets = [0, 0], sizes = [6, 128], strides = [1, 1]} : vector<8x128xf32> to vector<6x128xf32>
    %8 = tpu.concatenate %5, %6, %7 in 1 : vector<6x128xf32>, vector<6x128xf32>, vector<6x128xf32> -> vector<6x384xf32>
    %c1 = arith.constant 1 : index
    %c0_2 = arith.constant 0 : index
    %c0_3 = arith.constant 0 : index
    %9 = vector.load %arg0[%c1, %c0_2, %c0_3] : memref<4x4x128xbf16, #tpu.memory_space<vmem>>, vector<1x4x128xbf16>
    %10 = vector.shape_cast %9 : vector<1x4x128xbf16> to vector<4x128xbf16>
    %11 = arith.extf %10 : vector<4x128xbf16> to vector<4x128xf32>
    %cst_4 = arith.constant 0.000000e+00 : f32
    %12 = vector.broadcast %cst_4 : f32 to vector<2x128xf32>
    %13 = tpu.concatenate %12, %11, %12 in 0 : vector<2x128xf32>, vector<4x128xf32>, vector<2x128xf32> -> vector<8x128xf32>
    %14 = vector.extract_strided_slice %13 {offsets = [2, 0], sizes = [6, 128], strides = [1, 1]} : vector<8x128xf32> to vector<6x128xf32>
    %15 = vector.extract_strided_slice %13 {offsets = [1, 0], sizes = [6, 128], strides = [1, 1]} : vector<8x128xf32> to vector<6x128xf32>
    %16 = vector.extract_strided_slice %13 {offsets = [0, 0], sizes = [6, 128], strides = [1, 1]} : vector<8x128xf32> to vector<6x128xf32>
    %17 = tpu.concatenate %14, %15, %16 in 1 : vector<6x128xf32>, vector<6x128xf32>, vector<6x128xf32> -> vector<6x384xf32>
    %c2 = arith.constant 2 : index
    %c0_5 = arith.constant 0 : index
    %c0_6 = arith.constant 0 : index
    %18 = vector.load %arg0[%c2, %c0_5, %c0_6] : memref<4x4x128xbf16, #tpu.memory_space<vmem>>, vector<1x4x128xbf16>
    %19 = vector.shape_cast %18 : vector<1x4x128xbf16> to vector<4x128xbf16>
    %20 = arith.extf %19 : vector<4x128xbf16> to vector<4x128xf32>
    %cst_7 = arith.constant 0.000000e+00 : f32
    %21 = vector.broadcast %cst_7 : f32 to vector<2x128xf32>
    %22 = tpu.concatenate %21, %20, %21 in 0 : vector<2x128xf32>, vector<4x128xf32>, vector<2x128xf32> -> vector<8x128xf32>
    %23 = vector.extract_strided_slice %22 {offsets = [2, 0], sizes = [6, 128], strides = [1, 1]} : vector<8x128xf32> to vector<6x128xf32>
    %24 = vector.extract_strided_slice %22 {offsets = [1, 0], sizes = [6, 128], strides = [1, 1]} : vector<8x128xf32> to vector<6x128xf32>
    %25 = vector.extract_strided_slice %22 {offsets = [0, 0], sizes = [6, 128], strides = [1, 1]} : vector<8x128xf32> to vector<6x128xf32>
    %26 = tpu.concatenate %23, %24, %25 in 1 : vector<6x128xf32>, vector<6x128xf32>, vector<6x128xf32> -> vector<6x384xf32>
    %c3 = arith.constant 3 : index
    %c0_8 = arith.constant 0 : index
    %c0_9 = arith.constant 0 : index
    %27 = vector.load %arg0[%c3, %c0_8, %c0_9] : memref<4x4x128xbf16, #tpu.memory_space<vmem>>, vector<1x4x128xbf16>
    %28 = vector.shape_cast %27 : vector<1x4x128xbf16> to vector<4x128xbf16>
    %29 = arith.extf %28 : vector<4x128xbf16> to vector<4x128xf32>
    %cst_10 = arith.constant 0.000000e+00 : f32
    %30 = vector.broadcast %cst_10 : f32 to vector<2x128xf32>
    %31 = tpu.concatenate %30, %29, %30 in 0 : vector<2x128xf32>, vector<4x128xf32>, vector<2x128xf32> -> vector<8x128xf32>
    %32 = vector.extract_strided_slice %31 {offsets = [2, 0], sizes = [6, 128], strides = [1, 1]} : vector<8x128xf32> to vector<6x128xf32>
    %33 = vector.extract_strided_slice %31 {offsets = [1, 0], sizes = [6, 128], strides = [1, 1]} : vector<8x128xf32> to vector<6x128xf32>
    %34 = vector.extract_strided_slice %31 {offsets = [0, 0], sizes = [6, 128], strides = [1, 1]} : vector<8x128xf32> to vector<6x128xf32>
    %35 = tpu.concatenate %32, %33, %34 in 1 : vector<6x128xf32>, vector<6x128xf32>, vector<6x128xf32> -> vector<6x384xf32>
    %36 = tpu.concatenate %8, %17, %26, %35 in 0 : vector<6x384xf32>, vector<6x384xf32>, vector<6x384xf32>, vector<6x384xf32> -> vector<24x384xf32>
    %37 = arith.truncf %36 : vector<24x384xf32> to vector<24x384xbf16>
    %c0_11 = arith.constant 0 : index
    %c0_12 = arith.constant 0 : index
    %38 = vector.load %arg1[%c0_11, %c0_12] : memref<384x192xbf16, #tpu.memory_space<vmem>>, vector<384x192xbf16>
    %cst_13 = arith.constant dense<0.000000e+00> : vector<24x192xf32>
    %39 = tpu.matmul %37, %38, %cst_13 {dimension_numbers = #tpu.dot_dimension_numbers<[1], [0], [0], [1], [0, 0, 1, 1], [], []>} : vector<24x384xbf16>, vector<384x192xbf16>, vector<24x192xf32> -> vector<24x192xf32>
    %c0_14 = arith.constant 0 : index
    %c0_15 = arith.constant 0 : index
    %40 = vector.load %arg2[%c0_14, %c0_15] : memref<1x192xf32, #tpu.memory_space<vmem>>, vector<1x192xf32>
    %41 = vector.broadcast %40 : vector<1x192xf32> to vector<24x192xf32>
    %42 = arith.addf %39, %41 : vector<24x192xf32>
    %43 = vector.extract_strided_slice %42 {offsets = [0, 0], sizes = [6, 192], strides = [1, 1]} : vector<24x192xf32> to vector<6x192xf32>
    %cst_16 = arith.constant 0.000000e+00 : f32
    %44 = vector.broadcast %cst_16 : f32 to vector<2x192xf32>
    %45 = tpu.concatenate %44, %43, %44 in 0 : vector<2x192xf32>, vector<6x192xf32>, vector<2x192xf32> -> vector<10x192xf32>
    %46 = vector.extract_strided_slice %45 {offsets = [2, 0], sizes = [8, 192], strides = [1, 1]} : vector<10x192xf32> to vector<8x192xf32>
    %47 = vector.extract_strided_slice %45 {offsets = [1, 0], sizes = [8, 192], strides = [1, 1]} : vector<10x192xf32> to vector<8x192xf32>
    %48 = vector.extract_strided_slice %45 {offsets = [0, 0], sizes = [8, 192], strides = [1, 1]} : vector<10x192xf32> to vector<8x192xf32>
    %49 = tpu.concatenate %46, %47, %48 in 1 : vector<8x192xf32>, vector<8x192xf32>, vector<8x192xf32> -> vector<8x576xf32>
    %50 = vector.extract_strided_slice %42 {offsets = [6, 0], sizes = [6, 192], strides = [1, 1]} : vector<24x192xf32> to vector<6x192xf32>
    %cst_17 = arith.constant 0.000000e+00 : f32
    %51 = vector.broadcast %cst_17 : f32 to vector<2x192xf32>
    %52 = tpu.concatenate %51, %50, %51 in 0 : vector<2x192xf32>, vector<6x192xf32>, vector<2x192xf32> -> vector<10x192xf32>
    %53 = vector.extract_strided_slice %52 {offsets = [2, 0], sizes = [8, 192], strides = [1, 1]} : vector<10x192xf32> to vector<8x192xf32>
    %54 = vector.extract_strided_slice %52 {offsets = [1, 0], sizes = [8, 192], strides = [1, 1]} : vector<10x192xf32> to vector<8x192xf32>
    %55 = vector.extract_strided_slice %52 {offsets = [0, 0], sizes = [8, 192], strides = [1, 1]} : vector<10x192xf32> to vector<8x192xf32>
    %56 = tpu.concatenate %53, %54, %55 in 1 : vector<8x192xf32>, vector<8x192xf32>, vector<8x192xf32> -> vector<8x576xf32>
    %57 = vector.extract_strided_slice %42 {offsets = [12, 0], sizes = [6, 192], strides = [1, 1]} : vector<24x192xf32> to vector<6x192xf32>
    %cst_18 = arith.constant 0.000000e+00 : f32
    %58 = vector.broadcast %cst_18 : f32 to vector<2x192xf32>
    %59 = tpu.concatenate %58, %57, %58 in 0 : vector<2x192xf32>, vector<6x192xf32>, vector<2x192xf32> -> vector<10x192xf32>
    %60 = vector.extract_strided_slice %59 {offsets = [2, 0], sizes = [8, 192], strides = [1, 1]} : vector<10x192xf32> to vector<8x192xf32>
    %61 = vector.extract_strided_slice %59 {offsets = [1, 0], sizes = [8, 192], strides = [1, 1]} : vector<10x192xf32> to vector<8x192xf32>
    %62 = vector.extract_strided_slice %59 {offsets = [0, 0], sizes = [8, 192], strides = [1, 1]} : vector<10x192xf32> to vector<8x192xf32>
    %63 = tpu.concatenate %60, %61, %62 in 1 : vector<8x192xf32>, vector<8x192xf32>, vector<8x192xf32> -> vector<8x576xf32>
    %64 = vector.extract_strided_slice %42 {offsets = [18, 0], sizes = [6, 192], strides = [1, 1]} : vector<24x192xf32> to vector<6x192xf32>
    %cst_19 = arith.constant 0.000000e+00 : f32
    %65 = vector.broadcast %cst_19 : f32 to vector<2x192xf32>
    %66 = tpu.concatenate %65, %64, %65 in 0 : vector<2x192xf32>, vector<6x192xf32>, vector<2x192xf32> -> vector<10x192xf32>
    %67 = vector.extract_strided_slice %66 {offsets = [2, 0], sizes = [8, 192], strides = [1, 1]} : vector<10x192xf32> to vector<8x192xf32>
    %68 = vector.extract_strided_slice %66 {offsets = [1, 0], sizes = [8, 192], strides = [1, 1]} : vector<10x192xf32> to vector<8x192xf32>
    %69 = vector.extract_strided_slice %66 {offsets = [0, 0], sizes = [8, 192], strides = [1, 1]} : vector<10x192xf32> to vector<8x192xf32>
    %70 = tpu.concatenate %67, %68, %69 in 1 : vector<8x192xf32>, vector<8x192xf32>, vector<8x192xf32> -> vector<8x576xf32>
    %71 = tpu.concatenate %49, %56, %63, %70 in 0 : vector<8x576xf32>, vector<8x576xf32>, vector<8x576xf32>, vector<8x576xf32> -> vector<32x576xf32>
    %72 = arith.truncf %71 : vector<32x576xf32> to vector<32x576xbf16>
    %c0_20 = arith.constant 0 : index
    %c0_21 = arith.constant 0 : index
    %73 = vector.load %arg3[%c0_20, %c0_21] : memref<576x224xbf16, #tpu.memory_space<vmem>>, vector<576x224xbf16>
    %cst_22 = arith.constant dense<0.000000e+00> : vector<32x224xf32>
    %74 = tpu.matmul %72, %73, %cst_22 {dimension_numbers = #tpu.dot_dimension_numbers<[1], [0], [0], [1], [0, 0, 1, 1], [], []>} : vector<32x576xbf16>, vector<576x224xbf16>, vector<32x224xf32> -> vector<32x224xf32>
    %c0_23 = arith.constant 0 : index
    %c0_24 = arith.constant 0 : index
    %75 = vector.load %arg4[%c0_23, %c0_24] : memref<1x224xf32, #tpu.memory_space<vmem>>, vector<1x224xf32>
    %76 = vector.broadcast %75 : vector<1x224xf32> to vector<32x224xf32>
    %77 = arith.addf %74, %76 : vector<32x224xf32>
    %78 = vector.extract_strided_slice %77 {offsets = [0, 0], sizes = [8, 224], strides = [1, 1]} : vector<32x224xf32> to vector<8x224xf32>
    %cst_25 = arith.constant 0.000000e+00 : f32
    %79 = vector.broadcast %cst_25 : f32 to vector<2x224xf32>
    %80 = tpu.concatenate %79, %78, %79 in 0 : vector<2x224xf32>, vector<8x224xf32>, vector<2x224xf32> -> vector<12x224xf32>
    %81 = vector.extract_strided_slice %80 {offsets = [2, 0], sizes = [10, 224], strides = [1, 1]} : vector<12x224xf32> to vector<10x224xf32>
    %82 = vector.extract_strided_slice %80 {offsets = [1, 0], sizes = [10, 224], strides = [1, 1]} : vector<12x224xf32> to vector<10x224xf32>
    %83 = vector.extract_strided_slice %80 {offsets = [0, 0], sizes = [10, 224], strides = [1, 1]} : vector<12x224xf32> to vector<10x224xf32>
    %84 = tpu.concatenate %81, %82, %83 in 1 : vector<10x224xf32>, vector<10x224xf32>, vector<10x224xf32> -> vector<10x672xf32>
    %85 = vector.extract_strided_slice %77 {offsets = [8, 0], sizes = [8, 224], strides = [1, 1]} : vector<32x224xf32> to vector<8x224xf32>
    %cst_26 = arith.constant 0.000000e+00 : f32
    %86 = vector.broadcast %cst_26 : f32 to vector<2x224xf32>
    %87 = tpu.concatenate %86, %85, %86 in 0 : vector<2x224xf32>, vector<8x224xf32>, vector<2x224xf32> -> vector<12x224xf32>
    %88 = vector.extract_strided_slice %87 {offsets = [2, 0], sizes = [10, 224], strides = [1, 1]} : vector<12x224xf32> to vector<10x224xf32>
    %89 = vector.extract_strided_slice %87 {offsets = [1, 0], sizes = [10, 224], strides = [1, 1]} : vector<12x224xf32> to vector<10x224xf32>
    %90 = vector.extract_strided_slice %87 {offsets = [0, 0], sizes = [10, 224], strides = [1, 1]} : vector<12x224xf32> to vector<10x224xf32>
    %91 = tpu.concatenate %88, %89, %90 in 1 : vector<10x224xf32>, vector<10x224xf32>, vector<10x224xf32> -> vector<10x672xf32>
    %92 = vector.extract_strided_slice %77 {offsets = [16, 0], sizes = [8, 224], strides = [1, 1]} : vector<32x224xf32> to vector<8x224xf32>
    %cst_27 = arith.constant 0.000000e+00 : f32
    %93 = vector.broadcast %cst_27 : f32 to vector<2x224xf32>
    %94 = tpu.concatenate %93, %92, %93 in 0 : vector<2x224xf32>, vector<8x224xf32>, vector<2x224xf32> -> vector<12x224xf32>
    %95 = vector.extract_strided_slice %94 {offsets = [2, 0], sizes = [10, 224], strides = [1, 1]} : vector<12x224xf32> to vector<10x224xf32>
    %96 = vector.extract_strided_slice %94 {offsets = [1, 0], sizes = [10, 224], strides = [1, 1]} : vector<12x224xf32> to vector<10x224xf32>
    %97 = vector.extract_strided_slice %94 {offsets = [0, 0], sizes = [10, 224], strides = [1, 1]} : vector<12x224xf32> to vector<10x224xf32>
    %98 = tpu.concatenate %95, %96, %97 in 1 : vector<10x224xf32>, vector<10x224xf32>, vector<10x224xf32> -> vector<10x672xf32>
    %99 = vector.extract_strided_slice %77 {offsets = [24, 0], sizes = [8, 224], strides = [1, 1]} : vector<32x224xf32> to vector<8x224xf32>
    %cst_28 = arith.constant 0.000000e+00 : f32
    %100 = vector.broadcast %cst_28 : f32 to vector<2x224xf32>
    %101 = tpu.concatenate %100, %99, %100 in 0 : vector<2x224xf32>, vector<8x224xf32>, vector<2x224xf32> -> vector<12x224xf32>
    %102 = vector.extract_strided_slice %101 {offsets = [2, 0], sizes = [10, 224], strides = [1, 1]} : vector<12x224xf32> to vector<10x224xf32>
    %103 = vector.extract_strided_slice %101 {offsets = [1, 0], sizes = [10, 224], strides = [1, 1]} : vector<12x224xf32> to vector<10x224xf32>
    %104 = vector.extract_strided_slice %101 {offsets = [0, 0], sizes = [10, 224], strides = [1, 1]} : vector<12x224xf32> to vector<10x224xf32>
    %105 = tpu.concatenate %102, %103, %104 in 1 : vector<10x224xf32>, vector<10x224xf32>, vector<10x224xf32> -> vector<10x672xf32>
    %106 = tpu.concatenate %84, %91, %98, %105 in 0 : vector<10x672xf32>, vector<10x672xf32>, vector<10x672xf32>, vector<10x672xf32> -> vector<40x672xf32>
    %107 = arith.truncf %106 : vector<40x672xf32> to vector<40x672xbf16>
    %c0_29 = arith.constant 0 : index
    %c0_30 = arith.constant 0 : index
    %108 = vector.load %arg5[%c0_29, %c0_30] : memref<672x240xbf16, #tpu.memory_space<vmem>>, vector<672x240xbf16>
    %cst_31 = arith.constant dense<0.000000e+00> : vector<40x240xf32>
    %109 = tpu.matmul %107, %108, %cst_31 {dimension_numbers = #tpu.dot_dimension_numbers<[1], [0], [0], [1], [0, 0, 1, 1], [], []>} : vector<40x672xbf16>, vector<672x240xbf16>, vector<40x240xf32> -> vector<40x240xf32>
    %c0_32 = arith.constant 0 : index
    %c0_33 = arith.constant 0 : index
    %110 = vector.load %arg6[%c0_32, %c0_33] : memref<1x240xf32, #tpu.memory_space<vmem>>, vector<1x240xf32>
    %111 = vector.broadcast %110 : vector<1x240xf32> to vector<40x240xf32>
    %112 = arith.addf %109, %111 : vector<40x240xf32>
    %113 = vector.extract_strided_slice %112 {offsets = [0, 0], sizes = [10, 240], strides = [1, 1]} : vector<40x240xf32> to vector<10x240xf32>
    %cst_34 = arith.constant 0.000000e+00 : f32
    %114 = vector.broadcast %cst_34 : f32 to vector<2x240xf32>
    %115 = tpu.concatenate %114, %113, %114 in 0 : vector<2x240xf32>, vector<10x240xf32>, vector<2x240xf32> -> vector<14x240xf32>
    %116 = vector.extract_strided_slice %115 {offsets = [2, 0], sizes = [12, 240], strides = [1, 1]} : vector<14x240xf32> to vector<12x240xf32>
    %117 = vector.extract_strided_slice %115 {offsets = [1, 0], sizes = [12, 240], strides = [1, 1]} : vector<14x240xf32> to vector<12x240xf32>
    %118 = vector.extract_strided_slice %115 {offsets = [0, 0], sizes = [12, 240], strides = [1, 1]} : vector<14x240xf32> to vector<12x240xf32>
    %119 = tpu.concatenate %116, %117, %118 in 1 : vector<12x240xf32>, vector<12x240xf32>, vector<12x240xf32> -> vector<12x720xf32>
    %120 = vector.extract_strided_slice %112 {offsets = [10, 0], sizes = [10, 240], strides = [1, 1]} : vector<40x240xf32> to vector<10x240xf32>
    %cst_35 = arith.constant 0.000000e+00 : f32
    %121 = vector.broadcast %cst_35 : f32 to vector<2x240xf32>
    %122 = tpu.concatenate %121, %120, %121 in 0 : vector<2x240xf32>, vector<10x240xf32>, vector<2x240xf32> -> vector<14x240xf32>
    %123 = vector.extract_strided_slice %122 {offsets = [2, 0], sizes = [12, 240], strides = [1, 1]} : vector<14x240xf32> to vector<12x240xf32>
    %124 = vector.extract_strided_slice %122 {offsets = [1, 0], sizes = [12, 240], strides = [1, 1]} : vector<14x240xf32> to vector<12x240xf32>
    %125 = vector.extract_strided_slice %122 {offsets = [0, 0], sizes = [12, 240], strides = [1, 1]} : vector<14x240xf32> to vector<12x240xf32>
    %126 = tpu.concatenate %123, %124, %125 in 1 : vector<12x240xf32>, vector<12x240xf32>, vector<12x240xf32> -> vector<12x720xf32>
    %127 = vector.extract_strided_slice %112 {offsets = [20, 0], sizes = [10, 240], strides = [1, 1]} : vector<40x240xf32> to vector<10x240xf32>
    %cst_36 = arith.constant 0.000000e+00 : f32
    %128 = vector.broadcast %cst_36 : f32 to vector<2x240xf32>
    %129 = tpu.concatenate %128, %127, %128 in 0 : vector<2x240xf32>, vector<10x240xf32>, vector<2x240xf32> -> vector<14x240xf32>
    %130 = vector.extract_strided_slice %129 {offsets = [2, 0], sizes = [12, 240], strides = [1, 1]} : vector<14x240xf32> to vector<12x240xf32>
    %131 = vector.extract_strided_slice %129 {offsets = [1, 0], sizes = [12, 240], strides = [1, 1]} : vector<14x240xf32> to vector<12x240xf32>
    %132 = vector.extract_strided_slice %129 {offsets = [0, 0], sizes = [12, 240], strides = [1, 1]} : vector<14x240xf32> to vector<12x240xf32>
    %133 = tpu.concatenate %130, %131, %132 in 1 : vector<12x240xf32>, vector<12x240xf32>, vector<12x240xf32> -> vector<12x720xf32>
    %134 = vector.extract_strided_slice %112 {offsets = [30, 0], sizes = [10, 240], strides = [1, 1]} : vector<40x240xf32> to vector<10x240xf32>
    %cst_37 = arith.constant 0.000000e+00 : f32
    %135 = vector.broadcast %cst_37 : f32 to vector<2x240xf32>
    %136 = tpu.concatenate %135, %134, %135 in 0 : vector<2x240xf32>, vector<10x240xf32>, vector<2x240xf32> -> vector<14x240xf32>
    %137 = vector.extract_strided_slice %136 {offsets = [2, 0], sizes = [12, 240], strides = [1, 1]} : vector<14x240xf32> to vector<12x240xf32>
    %138 = vector.extract_strided_slice %136 {offsets = [1, 0], sizes = [12, 240], strides = [1, 1]} : vector<14x240xf32> to vector<12x240xf32>
    %139 = vector.extract_strided_slice %136 {offsets = [0, 0], sizes = [12, 240], strides = [1, 1]} : vector<14x240xf32> to vector<12x240xf32>
    %140 = tpu.concatenate %137, %138, %139 in 1 : vector<12x240xf32>, vector<12x240xf32>, vector<12x240xf32> -> vector<12x720xf32>
    %141 = tpu.concatenate %119, %126, %133, %140 in 0 : vector<12x720xf32>, vector<12x720xf32>, vector<12x720xf32>, vector<12x720xf32> -> vector<48x720xf32>
    %142 = arith.truncf %141 : vector<48x720xf32> to vector<48x720xbf16>
    %c0_38 = arith.constant 0 : index
    %c0_39 = arith.constant 0 : index
    %143 = vector.load %arg7[%c0_38, %c0_39] : memref<720x62xbf16, #tpu.memory_space<vmem>>, vector<720x62xbf16>
    %cst_40 = arith.constant dense<0.000000e+00> : vector<48x62xf32>
    %144 = tpu.matmul %142, %143, %cst_40 {dimension_numbers = #tpu.dot_dimension_numbers<[1], [0], [0], [1], [0, 0, 1, 1], [], []>} : vector<48x720xbf16>, vector<720x62xbf16>, vector<48x62xf32> -> vector<48x62xf32>
    %c0_41 = arith.constant 0 : index
    %c0_42 = arith.constant 0 : index
    %145 = vector.load %arg8[%c0_41, %c0_42] : memref<1x62xf32, #tpu.memory_space<vmem>>, vector<1x62xf32>
    %146 = vector.broadcast %145 : vector<1x62xf32> to vector<48x62xf32>
    %147 = arith.addf %144, %146 : vector<48x62xf32>
    %148 = arith.truncf %147 : vector<48x62xf32> to vector<48x62xbf16>
    %c0_43 = arith.constant 0 : index
    %c0_44 = arith.constant 0 : index
    %149 = vector.load %arg10[%c0_43, %c0_44] : memref<1x512xf32, #tpu.memory_space<vmem>>, vector<1x512xf32>
    %c0_45 = arith.constant 0 : index
    %c0_46 = arith.constant 0 : index
    %150 = vector.load %arg11[%c0_45, %c0_46] : memref<512x7xbf16, #tpu.memory_space<vmem>>, vector<512x7xbf16>
    %c0_47 = arith.constant 0 : index
    %c0_48 = arith.constant 0 : index
    %151 = vector.load %arg12[%c0_47, %c0_48] : memref<1x7xf32, #tpu.memory_space<vmem>>, vector<1x7xf32>
    %c0_49 = arith.constant 0 : index
    %c0_50 = arith.constant 0 : index
    %c0_51 = arith.constant 0 : index
    %152 = vector.load %arg9[%c0_49, %c0_50, %c0_51] : memref<2x62x512xbf16, #tpu.memory_space<vmem>>, vector<1x62x512xbf16>
    %153 = vector.shape_cast %152 : vector<1x62x512xbf16> to vector<62x512xbf16>
    %cst_52 = arith.constant dense<0.000000e+00> : vector<48x512xf32>
    %154 = tpu.matmul %148, %153, %cst_52 {dimension_numbers = #tpu.dot_dimension_numbers<[1], [0], [0], [1], [0, 0, 1, 1], [], []>} : vector<48x62xbf16>, vector<62x512xbf16>, vector<48x512xf32> -> vector<48x512xf32>
    %155 = vector.broadcast %149 : vector<1x512xf32> to vector<48x512xf32>
    %156 = arith.addf %154, %155 : vector<48x512xf32>
    %157 = math.tanh %156 : vector<48x512xf32>
    %158 = arith.truncf %157 : vector<48x512xf32> to vector<48x512xbf16>
    %cst_53 = arith.constant dense<0.000000e+00> : vector<48x7xf32>
    %159 = tpu.matmul %158, %150, %cst_53 {dimension_numbers = #tpu.dot_dimension_numbers<[1], [0], [0], [1], [0, 0, 1, 1], [], []>} : vector<48x512xbf16>, vector<512x7xbf16>, vector<48x7xf32> -> vector<48x7xf32>
    %160 = vector.broadcast %151 : vector<1x7xf32> to vector<48x7xf32>
    %161 = arith.addf %159, %160 : vector<48x7xf32>
    %162 = vector.extract_strided_slice %161 {offsets = [0, 0], sizes = [12, 7], strides = [1, 1]} : vector<48x7xf32> to vector<12x7xf32>
    %c0_54 = arith.constant 0 : index
    %c0_55 = arith.constant 0 : index
    %c0_56 = arith.constant 0 : index
    %c0_57 = arith.constant 0 : index
    %163 = vector.load %arg13[%c0_54, %c0_55, %c0_56, %c0_57] : memref<4x2x12x7xf32, #tpu.memory_space<vmem>>, vector<1x1x12x7xf32>
    %164 = vector.shape_cast %163 : vector<1x1x12x7xf32> to vector<12x7xf32>
    %165 = vector.shape_cast %162 : vector<12x7xf32> to vector<1x1x12x7xf32>
    tpu.vector_store %arg13[%c0_54, %c0_55, %c0_56, %c0_57], %165 {strides = array<i32>} : memref<4x2x12x7xf32, #tpu.memory_space<vmem>>, vector<1x1x12x7xf32>,
    %166 = vector.extract_strided_slice %161 {offsets = [12, 0], sizes = [12, 7], strides = [1, 1]} : vector<48x7xf32> to vector<12x7xf32>
    %c1_58 = arith.constant 1 : index
    %c0_59 = arith.constant 0 : index
    %c0_60 = arith.constant 0 : index
    %c0_61 = arith.constant 0 : index
    %167 = vector.load %arg13[%c1_58, %c0_59, %c0_60, %c0_61] : memref<4x2x12x7xf32, #tpu.memory_space<vmem>>, vector<1x1x12x7xf32>
    %168 = vector.shape_cast %167 : vector<1x1x12x7xf32> to vector<12x7xf32>
    %169 = vector.shape_cast %166 : vector<12x7xf32> to vector<1x1x12x7xf32>
    tpu.vector_store %arg13[%c1_58, %c0_59, %c0_60, %c0_61], %169 {strides = array<i32>} : memref<4x2x12x7xf32, #tpu.memory_space<vmem>>, vector<1x1x12x7xf32>,
    %170 = vector.extract_strided_slice %161 {offsets = [24, 0], sizes = [12, 7], strides = [1, 1]} : vector<48x7xf32> to vector<12x7xf32>
    %c2_62 = arith.constant 2 : index
    %c0_63 = arith.constant 0 : index
    %c0_64 = arith.constant 0 : index
    %c0_65 = arith.constant 0 : index
    %171 = vector.load %arg13[%c2_62, %c0_63, %c0_64, %c0_65] : memref<4x2x12x7xf32, #tpu.memory_space<vmem>>, vector<1x1x12x7xf32>
    %172 = vector.shape_cast %171 : vector<1x1x12x7xf32> to vector<12x7xf32>
    %173 = vector.shape_cast %170 : vector<12x7xf32> to vector<1x1x12x7xf32>
    tpu.vector_store %arg13[%c2_62, %c0_63, %c0_64, %c0_65], %173 {strides = array<i32>} : memref<4x2x12x7xf32, #tpu.memory_space<vmem>>, vector<1x1x12x7xf32>,
    %174 = vector.extract_strided_slice %161 {offsets = [36, 0], sizes = [12, 7], strides = [1, 1]} : vector<48x7xf32> to vector<12x7xf32>
    %c3_66 = arith.constant 3 : index
    %c0_67 = arith.constant 0 : index
    %c0_68 = arith.constant 0 : index
    %c0_69 = arith.constant 0 : index
    %175 = vector.load %arg13[%c3_66, %c0_67, %c0_68, %c0_69] : memref<4x2x12x7xf32, #tpu.memory_space<vmem>>, vector<1x1x12x7xf32>
    %176 = vector.shape_cast %175 : vector<1x1x12x7xf32> to vector<12x7xf32>
    %177 = vector.shape_cast %174 : vector<12x7xf32> to vector<1x1x12x7xf32>
    tpu.vector_store %arg13[%c3_66, %c0_67, %c0_68, %c0_69], %177 {strides = array<i32>} : memref<4x2x12x7xf32, #tpu.memory_space<vmem>>, vector<1x1x12x7xf32>,
    %c1_70 = arith.constant 1 : index
    %c0_71 = arith.constant 0 : index
    %c0_72 = arith.constant 0 : index
    %178 = vector.load %arg9[%c1_70, %c0_71, %c0_72] : memref<2x62x512xbf16, #tpu.memory_space<vmem>>, vector<1x62x512xbf16>
    %179 = vector.shape_cast %178 : vector<1x62x512xbf16> to vector<62x512xbf16>
    %cst_73 = arith.constant dense<0.000000e+00> : vector<48x512xf32>
    %180 = tpu.matmul %148, %179, %cst_73 {dimension_numbers = #tpu.dot_dimension_numbers<[1], [0], [0], [1], [0, 0, 1, 1], [], []>} : vector<48x62xbf16>, vector<62x512xbf16>, vector<48x512xf32> -> vector<48x512xf32>
    %181 = vector.broadcast %149 : vector<1x512xf32> to vector<48x512xf32>
    %182 = arith.addf %180, %181 : vector<48x512xf32>
    %183 = math.tanh %182 : vector<48x512xf32>
    %184 = arith.truncf %183 : vector<48x512xf32> to vector<48x512xbf16>
    %cst_74 = arith.constant dense<0.000000e+00> : vector<48x7xf32>
    %185 = tpu.matmul %184, %150, %cst_74 {dimension_numbers = #tpu.dot_dimension_numbers<[1], [0], [0], [1], [0, 0, 1, 1], [], []>} : vector<48x512xbf16>, vector<512x7xbf16>, vector<48x7xf32> -> vector<48x7xf32>
    %186 = vector.broadcast %151 : vector<1x7xf32> to vector<48x7xf32>
    %187 = arith.addf %185, %186 : vector<48x7xf32>
    %188 = vector.extract_strided_slice %187 {offsets = [0, 0], sizes = [12, 7], strides = [1, 1]} : vector<48x7xf32> to vector<12x7xf32>
    %c0_75 = arith.constant 0 : index
    %c1_76 = arith.constant 1 : index
    %c0_77 = arith.constant 0 : index
    %c0_78 = arith.constant 0 : index
    %189 = vector.load %arg13[%c0_75, %c1_76, %c0_77, %c0_78] : memref<4x2x12x7xf32, #tpu.memory_space<vmem>>, vector<1x1x12x7xf32>
    %190 = vector.shape_cast %189 : vector<1x1x12x7xf32> to vector<12x7xf32>
    %191 = vector.shape_cast %188 : vector<12x7xf32> to vector<1x1x12x7xf32>
    tpu.vector_store %arg13[%c0_75, %c1_76, %c0_77, %c0_78], %191 {strides = array<i32>} : memref<4x2x12x7xf32, #tpu.memory_space<vmem>>, vector<1x1x12x7xf32>,
    %192 = vector.extract_strided_slice %187 {offsets = [12, 0], sizes = [12, 7], strides = [1, 1]} : vector<48x7xf32> to vector<12x7xf32>
    %c1_79 = arith.constant 1 : index
    %c1_80 = arith.constant 1 : index
    %c0_81 = arith.constant 0 : index
    %c0_82 = arith.constant 0 : index
    %193 = vector.load %arg13[%c1_79, %c1_80, %c0_81, %c0_82] : memref<4x2x12x7xf32, #tpu.memory_space<vmem>>, vector<1x1x12x7xf32>
    %194 = vector.shape_cast %193 : vector<1x1x12x7xf32> to vector<12x7xf32>
    %195 = vector.shape_cast %192 : vector<12x7xf32> to vector<1x1x12x7xf32>
    tpu.vector_store %arg13[%c1_79, %c1_80, %c0_81, %c0_82], %195 {strides = array<i32>} : memref<4x2x12x7xf32, #tpu.memory_space<vmem>>, vector<1x1x12x7xf32>,
    %196 = vector.extract_strided_slice %187 {offsets = [24, 0], sizes = [12, 7], strides = [1, 1]} : vector<48x7xf32> to vector<12x7xf32>
    %c2_83 = arith.constant 2 : index
    %c1_84 = arith.constant 1 : index
    %c0_85 = arith.constant 0 : index
    %c0_86 = arith.constant 0 : index
    %197 = vector.load %arg13[%c2_83, %c1_84, %c0_85, %c0_86] : memref<4x2x12x7xf32, #tpu.memory_space<vmem>>, vector<1x1x12x7xf32>
    %198 = vector.shape_cast %197 : vector<1x1x12x7xf32> to vector<12x7xf32>
    %199 = vector.shape_cast %196 : vector<12x7xf32> to vector<1x1x12x7xf32>
    tpu.vector_store %arg13[%c2_83, %c1_84, %c0_85, %c0_86], %199 {strides = array<i32>} : memref<4x2x12x7xf32, #tpu.memory_space<vmem>>, vector<1x1x12x7xf32>,
    %200 = vector.extract_strided_slice %187 {offsets = [36, 0], sizes = [12, 7], strides = [1, 1]} : vector<48x7xf32> to vector<12x7xf32>
    %c3_87 = arith.constant 3 : index
    %c1_88 = arith.constant 1 : index
    %c0_89 = arith.constant 0 : index
    %c0_90 = arith.constant 0 : index
    %201 = vector.load %arg13[%c3_87, %c1_88, %c0_89, %c0_90] : memref<4x2x12x7xf32, #tpu.memory_space<vmem>>, vector<1x1x12x7xf32>
    %202 = vector.shape_cast %201 : vector<1x1x12x7xf32> to vector<12x7xf32>
    %203 = vector.shape_cast %200 : vector<12x7xf32> to vector<1x1x12x7xf32>
    tpu.vector_store %arg13[%c3_87, %c1_88, %c0_89, %c0_90], %203 {strides = array<i32>} : memref<4x2x12x7xf32, #tpu.memory_space<vmem>>, vector<1x1x12x7xf32>,
    return
  }
}

</mosaic_0001>

<llo_original>
// kernel: crn_net_forward.3
$region0: #{crn_net_forward.3}
  #allocation0 [shape = 'u32[]', space=smem, size = 0x4, offset = 0x4, fixed_abs, tag = 'smem constant byte address 0x4 - core index']
  #allocation1 [shape = 'u32[144,128]{1,0:T(1,128)}', space=vmem, size = 0x12000, scoped, tag = 'internal scratch']
  %s0 = inlined_call_operand.vmem [shape: f32[48,62], index: 0, kind: input, shape index: {}]
  %s1 = inlined_call_operand.vmem [shape: bf16[186,240], index: 1, kind: input, shape index: {}]
  %s2 = inlined_call_operand.vmem [shape: f32[1,240], index: 2, kind: input, shape index: {}]
  %s3 = inlined_call_operand.vmem [shape: bf16[720,224], index: 3, kind: input, shape index: {}]
  %s4 = inlined_call_operand.vmem [shape: f32[1,224], index: 4, kind: input, shape index: {}]
  %s5 = inlined_call_operand.vmem [shape: bf16[672,192], index: 5, kind: input, shape index: {}]
  %s6 = inlined_call_operand.vmem [shape: f32[1,192], index: 6, kind: input, shape index: {}]
  %s7 = inlined_call_operand.vmem [shape: bf16[576,128], index: 7, kind: input, shape index: {}]
  %s8 = inlined_call_operand.vmem [shape: f32[1,128], index: 8, kind: input, shape index: {}]
  %s9 = inlined_call_operand.vmem [shape: bf16[16,128], index: 9, kind: output, shape index: {}]
  %s10 = sld [smem:[#allocation0]]
  $region46: #{crn_net_forward.3} parent=0
    _
  %s12 = ssub.s32 1, %s10
  %s13 = scalar_select 0, %s12, %s10
  // Predicated region
  $region2: #{crn_net_forward.3} parent=0 // pred_check
    _
  $region3: #{crn_net_forward.3} parent=0 // pred_check_branch
    %15 = sbr.rel (0) target = $region5
  $region4: #{crn_net_forward.3} parent=0 // pred_region
    _
  $region5: #{crn_net_forward.3} parent=0 // pred_fallthru
    _
  // Predicated region
  $region6: #{crn_net_forward.3} parent=0 // pred_check
    _
  $region7: #{crn_net_forward.3} parent=0 // pred_check_branch
    %17 = sbr.rel (0) target = $region9
  $region8: #{crn_net_forward.3} parent=0 // pred_region
    _
  $region9: #{crn_net_forward.3} parent=0 // pred_fallthru
    _
  // Predicated region
  $region10: #{crn_net_forward.3} parent=0 // pred_check
    _
  $region11: #{crn_net_forward.3} parent=0 // pred_check_branch
    %19 = sbr.rel (0) target = $region13
  $region12: #{crn_net_forward.3} parent=0 // pred_region
    _
  $region13: #{crn_net_forward.3} parent=0 // pred_fallthru
    _
  // Predicated region
  $region14: #{crn_net_forward.3} parent=0 // pred_check
    _
  $region15: #{crn_net_forward.3} parent=0 // pred_check_branch
    %21 = sbr.rel (0) target = $region17
  $region16: #{crn_net_forward.3} parent=0 // pred_region
    _
  $region17: #{crn_net_forward.3} parent=0 // pred_fallthru
    _
  // Predicated region
  $region18: #{crn_net_forward.3} parent=0 // pred_check
    _
  $region19: #{crn_net_forward.3} parent=0 // pred_check_branch
    %23 = sbr.rel (0) target = $region21
  $region20: #{crn_net_forward.3} parent=0 // pred_region
    _
  $region21: #{crn_net_forward.3} parent=0 // pred_fallthru
    _
  // Predicated region
  $region22: #{crn_net_forward.3} parent=0 // pred_check
    _
  $region23: #{crn_net_forward.3} parent=0 // pred_check_branch
    %25 = sbr.rel (0) target = $region25
  $region24: #{crn_net_forward.3} parent=0 // pred_region
    _
  $region25: #{crn_net_forward.3} parent=0 // pred_fallthru
    _
  // Predicated region
  $region26: #{crn_net_forward.3} parent=0 // pred_check
    _
  $region27: #{crn_net_forward.3} parent=0 // pred_check_branch
    %27 = sbr.rel (0) target = $region29
  $region28: #{crn_net_forward.3} parent=0 // pred_region
    _
  $region29: #{crn_net_forward.3} parent=0 // pred_fallthru
    _
  // Predicated region
  $region30: #{crn_net_forward.3} parent=0 // pred_check
    _
  $region31: #{crn_net_forward.3} parent=0 // pred_check_branch
    %29 = sbr.rel (0) target = $region33
  $region32: #{crn_net_forward.3} parent=0 // pred_region
    _
  $region33: #{crn_net_forward.3} parent=0 // pred_fallthru
    _
  // Predicated region
  $region34: #{crn_net_forward.3} parent=0 // pred_check
    _
  $region35: #{crn_net_forward.3} parent=0 // pred_check_branch
    %31 = sbr.rel (0) target = $region37
  $region36: #{crn_net_forward.3} parent=0 // pred_region
    _
  $region37: #{crn_net_forward.3} parent=0 // pred_fallthru
    _
  %v33 = vld [vmem:[%s0] sm:$0xff]
  %v34 = vld [vmem:[%s0 + $0x8] sm:$0xff]
  %v35 = vld [vmem:[%s0 + $0x10] sm:$0xff]
  %v36 = vld [vmem:[%s0 + $0x18] sm:$0xff]
  %v37 = vld [vmem:[%s0 + $0x20] sm:$0xff]
  %v38 = vld [vmem:[%s0 + $0x28] sm:$0xff]
  %vm41 = vcmask 1046528
  %v42 = vrot.slane %v33, 1
  %v43 = vrot.slane %v34, 1
  %v44 = vsel %vm41, %v42, %v43
  %45 = vrot.lane.b32.xlu0 %v44, 62
  %v46 = vpop.permute.xlu0 %45
  %47 = vrot.lane.b32.xlu0 %v43, 62
  %v48 = vpop.permute.xlu0 %47
  %vm51 = vcmask 1045504
  %v52 = vrot.slane %v33, 2
  %v53 = vrot.slane %v34, 2
  %v54 = vsel %vm51, %v52, %v53
  %55 = vrot.lane.b32.xlu0 %v54, 124
  %v56 = vpop.permute.xlu0 %55
  %57 = vrot.lane.b32.xlu0 %v53, 124
  %v58 = vpop.permute.xlu0 %57
  %vm61 = vcmask 506880
  %v62 = vsel %vm61, %v33, %v46
  %v63 = vsel %vm61, %v34, %v48
  %vm64 = vcmask 1014784
  %v65 = vsel %vm64, %v62, %v56
  %v66 = vsel %vm64, %v63, %v58
  %v68 = vrot.slane %v35, 1
  %v69 = vsel %vm41, %v43, %v68
  %70 = vrot.lane.b32.xlu0 %v69, 62
  %v71 = vpop.permute.xlu0 %70
  %72 = vrot.lane.b32.xlu0 %v68, 62
  %v73 = vpop.permute.xlu0 %72
  %v76 = vrot.slane %v35, 2
  %v77 = vsel %vm51, %v53, %v76
  %78 = vrot.lane.b32.xlu0 %v77, 124
  %v79 = vpop.permute.xlu0 %78
  %80 = vrot.lane.b32.xlu0 %v76, 124
  %v81 = vpop.permute.xlu0 %80
  %v84 = vsel %vm61, %v34, %v71
  %v85 = vsel %vm61, %v35, %v73
  %v86 = vsel %vm64, %v84, %v79
  %v87 = vsel %vm64, %v85, %v81
  %v90 = vrot.slane %v36, 1
  %v91 = vrot.slane %v37, 1
  %v92 = vsel %vm41, %v90, %v91
  %93 = vrot.lane.b32.xlu0 %v92, 62
  %v94 = vpop.permute.xlu0 %93
  %95 = vrot.lane.b32.xlu0 %v91, 62
  %v96 = vpop.permute.xlu0 %95
  %v99 = vrot.slane %v36, 2
  %v100 = vrot.slane %v37, 2
  %v101 = vsel %vm51, %v99, %v100
  %102 = vrot.lane.b32.xlu0 %v101, 124
  %v103 = vpop.permute.xlu0 %102
  %104 = vrot.lane.b32.xlu0 %v100, 124
  %v105 = vpop.permute.xlu0 %104
  %v108 = vsel %vm61, %v36, %v94
  %v109 = vsel %vm61, %v37, %v96
  %v110 = vsel %vm64, %v108, %v103
  %v111 = vsel %vm64, %v109, %v105
  %v113 = vrot.slane %v38, 1
  %v114 = vsel %vm41, %v91, %v113
  %115 = vrot.lane.b32.xlu0 %v114, 62
  %v116 = vpop.permute.xlu0 %115
  %117 = vrot.lane.b32.xlu0 %v113, 62
  %v118 = vpop.permute.xlu0 %117
  %v121 = vrot.slane %v38, 2
  %v122 = vsel %vm51, %v100, %v121
  %123 = vrot.lane.b32.xlu0 %v122, 124
  %v124 = vpop.permute.xlu0 %123
  %125 = vrot.lane.b32.xlu0 %v121, 124
  %v126 = vpop.permute.xlu0 %125
  %v129 = vsel %vm61, %v37, %v116
  %v130 = vsel %vm61, %v38, %v118
  %v131 = vsel %vm64, %v129, %v124
  %v132 = vsel %vm64, %v130, %v126
  %v135 = vrot.slane %v86, 2
  %v136 = vrot.slane %v87, 2
  %v137 = vsel %vm51, %v135, %v136
  %v138 = vrot.slane %v79, 2
  %v139 = vrot.slane %v81, 2
  %v140 = vsel %vm51, %v138, %v139
  %vm147 = vcmask 1043456
  %v148 = vrot.slane %v110, 4
  %v149 = vrot.slane %v103, 4
  %v150 = vrot.slane %v111, 4
  %v151 = vsel %vm147, %v148, %v150
  %v152 = vrot.slane %v105, 4
  %v153 = vsel %vm147, %v149, %v152
  %vm160 = vcmask 1041408
  %v161 = vrot.slane %v131, 6
  %v162 = vrot.slane %v124, 6
  %v163 = vrot.slane %v132, 6
  %v164 = vsel %vm160, %v161, %v163
  %v165 = vrot.slane %v126, 6
  %v166 = vsel %vm160, %v162, %v165
  %v171 = vsel %vm160, %v66, %v137
  %v172 = vsel %vm160, %v58, %v140
  %v173 = vsel %vm147, %v136, %v148
  %v174 = vsel %vm147, %v139, %v149
  %v175 = vsel %vm51, %v151, %v161
  %v176 = vsel %vm51, %v153, %v162
  %v177 = vpack.c.bf16 %v171, %v65
  %v178 = vpack.c.bf16 %v172, %v56
  %v179 = vpack.c.bf16 %v175, %v173
  %v180 = vpack.c.bf16 %v176, %v174
  %v181 = vpack.c.bf16 %v164, %v164
  %v182 = vpack.c.bf16 %v166, %v166
  %v183 = vld [vmem:[%s1] sm:$0xff]
  %v184 = vld [vmem:[%s1 + $0x8] sm:$0xff]
  %v185 = vld [vmem:[%s1 + $0x10] sm:$0xff]
  %v186 = vld [vmem:[%s1 + $0x18] sm:$0xff]
  %v187 = vld [vmem:[%s1 + $0x20] sm:$0xff]
  %v188 = vld [vmem:[%s1 + $0x28] sm:$0xff]
  %v189 = vld [vmem:[%s1 + $0x30] sm:$0xff]
  %v190 = vld [vmem:[%s1 + $0x38] sm:$0xff]
  %v191 = vld [vmem:[%s1 + $0x40] sm:$0xff]
  %v192 = vld [vmem:[%s1 + $0x48] sm:$0xff]
  %v193 = vld [vmem:[%s1 + $0x50] sm:$0xff]
  %v194 = vld [vmem:[%s1 + $0x58] sm:$0xff]
  %v195 = vld [vmem:[%s1 + $0x60] sm:$0xff]
  %v196 = vld [vmem:[%s1 + $0x68] sm:$0xff]
  %v197 = vld [vmem:[%s1 + $0x70] sm:$0xff]
  %v198 = vld [vmem:[%s1 + $0x78] sm:$0xff]
  %v199 = vld [vmem:[%s1 + $0x80] sm:$0xff]
  %v200 = vld [vmem:[%s1 + $0x88] sm:$0xff]
  %v201 = vld [vmem:[%s1 + $0x90] sm:$0xff]
  %v202 = vld [vmem:[%s1 + $0x98] sm:$0xff]
  %v203 = vld [vmem:[%s1 + $0xa0] sm:$0xff]
  %v204 = vld [vmem:[%s1 + $0xa8] sm:$0xff]
  %v205 = vld [vmem:[%s1 + $0xb0] sm:$0xff]
  %v206 = vld [vmem:[%s1 + $0xb8] sm:$0x11]
  %v207 = vld [vmem:[%s2] sm:$0x3]
  %v209 = vlaneseq
  %v210 = vshrl.u32 %v209, 7
  %v211 = vsub.s32 0, %v210
  %v212 = vrot.slane %v207, %v211
  %v213 = vlaneseq
  %v214 = vshrl.u32 %v213, 7
  %v215 = vsub.s32 1, %v214
  %v216 = vrot.slane %v207, %v215
  %v243 = vunpack.c.l.b16 %v183
  %v244 = vunpack.c.h.b16 %v183
  %v245 = vunpack.c.l.b16 %v184
  %v246 = vunpack.c.h.b16 %v184
  %v247 = vunpack.c.l.b16 %v185
  %v248 = vunpack.c.h.b16 %v185
  %v249 = vunpack.c.l.b16 %v186
  %v250 = vunpack.c.h.b16 %v186
  %v251 = vunpack.c.l.b16 %v187
  %v252 = vunpack.c.h.b16 %v187
  %v253 = vunpack.c.l.b16 %v188
  %v254 = vunpack.c.h.b16 %v188
  %v255 = vunpack.c.l.b16 %v189
  %v256 = vunpack.c.h.b16 %v189
  %v257 = vunpack.c.l.b16 %v190
  %v258 = vunpack.c.h.b16 %v190
  %v259 = vunpack.c.l.b16 %v191
  %v260 = vunpack.c.h.b16 %v191
  %v261 = vunpack.c.l.b16 %v192
  %v262 = vunpack.c.h.b16 %v192
  %v263 = vunpack.c.l.b16 %v193
  %v264 = vunpack.c.h.b16 %v193
  %v265 = vunpack.c.l.b16 %v194
  %v266 = vunpack.c.h.b16 %v194
  %v267 = vunpack.c.l.b16 %v195
  %v268 = vunpack.c.h.b16 %v195
  %v269 = vunpack.c.l.b16 %v196
  %v270 = vunpack.c.h.b16 %v196
  %v271 = vunpack.c.l.b16 %v197
  %v272 = vunpack.c.h.b16 %v197
  %v273 = vunpack.c.l.b16 %v198
  %v274 = vunpack.c.h.b16 %v198
  %v275 = vunpack.c.l.b16 %v199
  %v276 = vunpack.c.h.b16 %v199
  %v277 = vunpack.c.l.b16 %v200
  %v278 = vunpack.c.h.b16 %v200
  %v279 = vunpack.c.l.b16 %v201
  %v280 = vunpack.c.h.b16 %v201
  %v281 = vunpack.c.l.b16 %v202
  %v282 = vunpack.c.h.b16 %v202
  %v283 = vunpack.c.l.b16 %v203
  %v284 = vunpack.c.h.b16 %v203
  %v285 = vunpack.c.l.b16 %v204
  %v286 = vunpack.c.h.b16 %v204
  %v287 = vunpack.c.l.b16 %v205
  %v288 = vunpack.c.h.b16 %v205
  %v289 = vunpack.c.l.b16 %v206
  %v290 = vunpack.c.h.b16 %v206
  %v291 = vpack.c.b16 %v245, %v243
  %v292 = vpack.c.b16 %v246, %v244
  %v293 = vpack.c.b16 %v249, %v247
  %v294 = vpack.c.b16 %v250, %v248
  %v295 = vpack.c.b16 %v253, %v251
  %v296 = vpack.c.b16 %v254, %v252
  %v297 = vpack.c.b16 %v257, %v255
  %v298 = vpack.c.b16 %v258, %v256
  %v299 = vpack.c.b16 %v261, %v259
  %v300 = vpack.c.b16 %v262, %v260
  %v301 = vpack.c.b16 %v265, %v263
  %v302 = vpack.c.b16 %v266, %v264
  %v303 = vpack.c.b16 %v269, %v267
  %v304 = vpack.c.b16 %v270, %v268
  %v305 = vpack.c.b16 %v273, %v271
  %v306 = vpack.c.b16 %v274, %v272
  %v307 = vpack.c.b16 %v277, %v275
  %v308 = vpack.c.b16 %v278, %v276
  %v309 = vpack.c.b16 %v281, %v279
  %v310 = vpack.c.b16 %v282, %v280
  %v311 = vpack.c.b16 %v285, %v283
  %v312 = vpack.c.b16 %v286, %v284
  %v313 = vpack.c.b16 %v289, %v287
  %v314 = vpack.c.b16 %v290, %v288
  %vm337 = vcmask 474112
  %v339 = vsel %vm337, %v178, 0
  %v342 = vsel %vm337, %v180, 0
  %v345 = vsel %vm337, %v182, 0
  %vm347 = vcmask 1044480
  %v349 = vsel %vm347, %v313, 0
  %v352 = vsel %vm347, %v314, 0
  %354 = vmatprep.subr.bf16.mxu0 %v292
  %355 = vmatpush1.bf16.msra.mxu0 %v291
  %356 = vmatprep.subr.bf16.mxu0 %v294
  %357 = vmatpush1.bf16.msra.mxu0 %v293
  %358 = vmatprep.subr.bf16.mxu0 %v296
  %359 = vmatpush1.bf16.msra.mxu0 %v295
  %360 = vmatprep.subr.bf16.mxu0 %v298
  %361 = vmatpush1.bf16.msra.mxu0 %v297
  %362 = vmatprep.subr.bf16.mxu0 %v300
  %363 = vmatpush1.bf16.msra.mxu0 %v299
  %364 = vmatprep.subr.bf16.mxu0 %v302
  %365 = vmatpush1.bf16.msra.mxu0 %v301
  %366 = vmatprep.subr.bf16.mxu0 %v304
  %367 = vmatpush1.bf16.msra.mxu0 %v303
  %368 = vmatprep.subr.bf16.mxu0 %v306
  %369 = vmatpush1.bf16.msra.mxu0 %v305
  %370 = vmatprep.subr.bf16.mxu0 %v308
  %371 = vmatpush1.bf16.msra.mxu0 %v307
  %372 = vmatprep.subr.bf16.mxu0 %v310
  %373 = vmatpush1.bf16.msra.mxu0 %v309
  %374 = vmatprep.subr.bf16.mxu0 %v312
  %375 = vmatpush1.bf16.msra.mxu0 %v311
  %376 = vmatprep.subr.bf16.mxu0 %v352
  %377 = vmatpush1.bf16.msra.mxu0 %v349
  %378 = vmatprep.subr.bf16.mxu0 0
  %379 = vmatpush1.bf16.msra.mxu0 0
  %380 = vmatprep.subr.bf16.mxu0 0
  %381 = vmatpush1.bf16.msra.mxu0 0
  %382 = vmatprep.subr.bf16.mxu0 0
  %383 = vmatpush1.bf16.msra.mxu0 0
  %384 = vmatprep.subr.bf16.mxu0 0
  %385 = vmatpush1.bf16.msra.mxu0 0
  %386 = vmatprep.mubr.bf16.mxu0 %v339
  %387 = vmatmul.mubr.bf16.gmra.mrb[0].mxu0 %v177
  %v388 = vpop.f32.mrb[0].mxu0
  %v389 = vadd.f32 %v212, %v388
  %v390 = vpop.f32.mrb[0].mxu0
  %v391 = vadd.f32 %v216, %v390
  %v392 = vpop.f32.mrb[0].mxu0
  %v393 = vadd.f32 %v212, %v392
  %v394 = vpop.f32.mrb[0].mxu0
  %v395 = vadd.f32 %v216, %v394
  %396 = vmatprep.mubr.bf16.mxu0 %v342
  %397 = vmatmul.mubr.bf16.gmra.mrb[0].mxu0 %v179
  %v398 = vpop.f32.mrb[0].mxu0
  %v399 = vadd.f32 %v212, %v398
  %v400 = vpop.f32.mrb[0].mxu0
  %v401 = vadd.f32 %v216, %v400
  %v402 = vpop.f32.mrb[0].mxu0
  %v403 = vadd.f32 %v212, %v402
  %v404 = vpop.f32.mrb[0].mxu0
  %v405 = vadd.f32 %v216, %v404
  %406 = vmatprep.mubr.bf16.mxu0 %v345
  %407 = vmatmul.mubr.bf16.gmra.mrb[0].mxu0 %v181
  %v408 = vpop.f32.mrb[0].mxu0
  %v409 = vadd.f32 %v212, %v408
  %v410 = vpop.f32.mrb[0].mxu0
  %v411 = vadd.f32 %v216, %v410
  %v412 = vpop.f32.mrb[0].mxu0
  %v413 = vpop.f32.mrb[0].mxu0
  %414 = vdwg.mxu0
  %v419 = vrot.slane %v389, 1
  %v420 = vrot.slane %v393, 1
  %v421 = vsel %vm41, %v419, %v420
  %v422 = vrot.slane %v391, 1
  %v423 = vrot.slane %v395, 1
  %v424 = vsel %vm41, %v422, %v423
  %425 = vrot.lane.b32.xlu0 %v421, 112
  %v426 = vpop.permute.xlu0 %425
  %427 = vrot.lane.b32.xlu0 %v424, 112
  %v428 = vpop.permute.xlu0 %427
  %vm429 = vcmask 916480
  %v430 = vsel %vm429, %v426, %v428
  %v434 = vrot.slane %v389, 2
  %v435 = vrot.slane %v393, 2
  %v436 = vsel %vm51, %v434, %v435
  %v437 = vrot.slane %v391, 2
  %v438 = vrot.slane %v395, 2
  %v439 = vsel %vm51, %v437, %v438
  %440 = vrot.lane.b32.xlu0 %v436, 96
  %v441 = vpop.permute.xlu0 %440
  %442 = vrot.lane.b32.xlu0 %v439, 96
  %v443 = vpop.permute.xlu0 %442
  %vm444 = vcmask 785408
  %v445 = vsel %vm444, %v441, %v443
  %v449 = vsel %vm429, %v391, %v426
  %v450 = vsel %vm444, %v428, %v441
  %v453 = vrot.slane %v399, 1
  %v454 = vsel %vm41, %v420, %v453
  %v455 = vrot.slane %v401, 1
  %v456 = vsel %vm41, %v423, %v455
  %457 = vrot.lane.b32.xlu0 %v454, 112
  %v458 = vpop.permute.xlu0 %457
  %459 = vrot.lane.b32.xlu0 %v456, 112
  %v460 = vpop.permute.xlu0 %459
  %461 = vrot.lane.b32.xlu0 %v453, 112
  %v462 = vpop.permute.xlu0 %461
  %463 = vrot.lane.b32.xlu0 %v455, 112
  %v464 = vpop.permute.xlu0 %463
  %v465 = vsel %vm429, %v458, %v460
  %v466 = vsel %vm429, %v462, %v464
  %v471 = vrot.slane %v399, 2
  %v472 = vsel %vm51, %v435, %v471
  %v473 = vrot.slane %v401, 2
  %v474 = vsel %vm51, %v438, %v473
  %475 = vrot.lane.b32.xlu0 %v472, 96
  %v476 = vpop.permute.xlu0 %475
  %477 = vrot.lane.b32.xlu0 %v474, 96
  %v478 = vpop.permute.xlu0 %477
  %479 = vrot.lane.b32.xlu0 %v471, 96
  %v480 = vpop.permute.xlu0 %479
  %481 = vrot.lane.b32.xlu0 %v473, 96
  %v482 = vpop.permute.xlu0 %481
  %v483 = vsel %vm444, %v476, %v478
  %v484 = vsel %vm444, %v480, %v482
  %v487 = vsel %vm429, %v395, %v458
  %v488 = vsel %vm429, %v401, %v462
  %v489 = vsel %vm444, %v460, %v476
  %v490 = vsel %vm444, %v464, %v480
  %v493 = vrot.slane %v403, 1
  %v494 = vsel %vm41, %v453, %v493
  %v495 = vrot.slane %v405, 1
  %v496 = vsel %vm41, %v455, %v495
  %497 = vrot.lane.b32.xlu0 %v494, 112
  %v498 = vpop.permute.xlu0 %497
  %499 = vrot.lane.b32.xlu0 %v496, 112
  %v500 = vpop.permute.xlu0 %499
  %501 = vrot.lane.b32.xlu0 %v493, 112
  %v502 = vpop.permute.xlu0 %501
  %503 = vrot.lane.b32.xlu0 %v495, 112
  %v504 = vpop.permute.xlu0 %503
  %v505 = vsel %vm429, %v498, %v500
  %v506 = vsel %vm429, %v502, %v504
  %v511 = vrot.slane %v403, 2
  %v512 = vsel %vm51, %v471, %v511
  %v513 = vrot.slane %v405, 2
  %v514 = vsel %vm51, %v473, %v513
  %515 = vrot.lane.b32.xlu0 %v512, 96
  %v516 = vpop.permute.xlu0 %515
  %517 = vrot.lane.b32.xlu0 %v514, 96
  %v518 = vpop.permute.xlu0 %517
  %519 = vrot.lane.b32.xlu0 %v511, 96
  %v520 = vpop.permute.xlu0 %519
  %521 = vrot.lane.b32.xlu0 %v513, 96
  %v522 = vpop.permute.xlu0 %521
  %v523 = vsel %vm444, %v516, %v518
  %v524 = vsel %vm444, %v520, %v522
  %v527 = vsel %vm429, %v401, %v498
  %v528 = vsel %vm429, %v405, %v502
  %v529 = vsel %vm444, %v500, %v516
  %v530 = vsel %vm444, %v504, %v520
  %v533 = vrot.slane %v409, 1
  %v534 = vsel %vm41, %v493, %v533
  %v535 = vrot.slane %v411, 1
  %v536 = vsel %vm41, %v495, %v535
  %537 = vrot.lane.b32.xlu0 %v534, 112
  %v538 = vpop.permute.xlu0 %537
  %539 = vrot.lane.b32.xlu0 %v536, 112
  %v540 = vpop.permute.xlu0 %539
  %541 = vrot.lane.b32.xlu0 %v533, 112
  %v542 = vpop.permute.xlu0 %541
  %543 = vrot.lane.b32.xlu0 %v535, 112
  %v544 = vpop.permute.xlu0 %543
  %v545 = vsel %vm429, %v538, %v540
  %v546 = vsel %vm429, %v542, %v544
  %v551 = vrot.slane %v409, 2
  %v552 = vrot.slane %v411, 2
  %553 = vrot.lane.b32.xlu0 %v551, 96
  %v554 = vpop.permute.xlu0 %553
  %555 = vrot.lane.b32.xlu0 %v552, 96
  %v556 = vpop.permute.xlu0 %555
  %v557 = vsel %vm444, %v554, %v556
  %v559 = vsel %vm429, %v405, %v538
  %v560 = vsel %vm429, %v411, %v542
  %v561 = vsel %vm444, %v540, %v554
  %v562 = vsel %vm444, %v544, %v554
  %v567 = vrot.slane %v487, 2
  %v568 = vrot.slane %v488, 2
  %v569 = vsel %vm51, %v567, %v568
  %v570 = vrot.slane %v465, 2
  %v571 = vrot.slane %v466, 2
  %v572 = vsel %vm51, %v570, %v571
  %v573 = vrot.slane %v489, 2
  %v574 = vrot.slane %v490, 2
  %v575 = vsel %vm51, %v573, %v574
  %v576 = vrot.slane %v483, 2
  %v577 = vrot.slane %v484, 2
  %v578 = vsel %vm51, %v576, %v577
  %v579 = vrot.slane %v478, 2
  %v580 = vrot.slane %v482, 2
  %v581 = vsel %vm51, %v579, %v580
  %v592 = vrot.slane %v399, 4
  %v593 = vrot.slane %v403, 4
  %v594 = vsel %vm147, %v592, %v593
  %v595 = vrot.slane %v527, 4
  %v596 = vrot.slane %v528, 4
  %v597 = vsel %vm147, %v595, %v596
  %v598 = vrot.slane %v505, 4
  %v599 = vrot.slane %v506, 4
  %v600 = vsel %vm147, %v598, %v599
  %v601 = vrot.slane %v529, 4
  %v602 = vrot.slane %v530, 4
  %v603 = vsel %vm147, %v601, %v602
  %v604 = vrot.slane %v523, 4
  %v605 = vrot.slane %v524, 4
  %v606 = vsel %vm147, %v604, %v605
  %v607 = vrot.slane %v518, 4
  %v608 = vrot.slane %v522, 4
  %v609 = vsel %vm147, %v607, %v608
  %v620 = vrot.slane %v403, 6
  %v621 = vrot.slane %v409, 6
  %v622 = vsel %vm160, %v620, %v621
  %v623 = vrot.slane %v559, 6
  %v624 = vrot.slane %v560, 6
  %v625 = vsel %vm160, %v623, %v624
  %v626 = vrot.slane %v545, 6
  %v627 = vrot.slane %v546, 6
  %v628 = vsel %vm160, %v626, %v627
  %v629 = vrot.slane %v561, 6
  %v630 = vrot.slane %v562, 6
  %v631 = vsel %vm160, %v629, %v630
  %v632 = vrot.slane %v557, 6
  %v633 = vsel %vm160, %v632, %v632
  %v634 = vrot.slane %v556, 6
  %v635 = vsel %vm160, %v634, %v634
  %v642 = vpack.c.bf16 %v472, %v389
  %v643 = vpack.c.bf16 %v569, %v449
  %v644 = vpack.c.bf16 %v572, %v430
  %v645 = vpack.c.bf16 %v575, %v450
  %v646 = vpack.c.bf16 %v578, %v445
  %v647 = vpack.c.bf16 %v581, %v443
  %v648 = vpack.c.bf16 %v622, %v594
  %v649 = vpack.c.bf16 %v625, %v597
  %v650 = vpack.c.bf16 %v628, %v600
  %v651 = vpack.c.bf16 %v631, %v603
  %v652 = vpack.c.bf16 %v633, %v606
  %v653 = vpack.c.bf16 %v635, %v609
  %v654 = vld [vmem:[%s3] sm:$0xff]
  %v655 = vld [vmem:[%s3 + $0x8] sm:$0xff]
  %v656 = vld [vmem:[%s3 + $0x10] sm:$0xff]
  %v657 = vld [vmem:[%s3 + $0x18] sm:$0xff]
  %v658 = vld [vmem:[%s3 + $0x20] sm:$0xff]
  %v659 = vld [vmem:[%s3 + $0x28] sm:$0xff]
  %v660 = vld [vmem:[%s3 + $0x30] sm:$0xff]
  %v661 = vld [vmem:[%s3 + $0x38] sm:$0xff]
  %v662 = vld [vmem:[%s3 + $0x40] sm:$0xff]
  %v663 = vld [vmem:[%s3 + $0x48] sm:$0xff]
  %v664 = vld [vmem:[%s3 + $0x50] sm:$0xff]
  %v665 = vld [vmem:[%s3 + $0x58] sm:$0xff]
  %v666 = vld [vmem:[%s3 + $0x60] sm:$0xff]
  %v667 = vld [vmem:[%s3 + $0x68] sm:$0xff]
  %v668 = vld [vmem:[%s3 + $0x70] sm:$0xff]
  %v669 = vld [vmem:[%s3 + $0x78] sm:$0xff]
  %v670 = vld [vmem:[%s3 + $0x80] sm:$0xff]
  %v671 = vld [vmem:[%s3 + $0x88] sm:$0xff]
  %v672 = vld [vmem:[%s3 + $0x90] sm:$0xff]
  %v673 = vld [vmem:[%s3 + $0x98] sm:$0xff]
  %v674 = vld [vmem:[%s3 + $0xa0] sm:$0xff]
  %v675 = vld [vmem:[%s3 + $0xa8] sm:$0xff]
  %v676 = vld [vmem:[%s3 + $0xb0] sm:$0xff]
  %v677 = vld [vmem:[%s3 + $0xb8] sm:$0xff]
  %v678 = vld [vmem:[%s3 + $0xc0] sm:$0xff]
  %v679 = vld [vmem:[%s3 + $0xc8] sm:$0xff]
  %v680 = vld [vmem:[%s3 + $0xd0] sm:$0xff]
  %v681 = vld [vmem:[%s3 + $0xd8] sm:$0xff]
  %v682 = vld [vmem:[%s3 + $0xe0] sm:$0xff]
  %v683 = vld [vmem:[%s3 + $0xe8] sm:$0xff]
  %v684 = vld [vmem:[%s3 + $0xf0] sm:$0xff]
  %v685 = vld [vmem:[%s3 + $0xf8] sm:$0xff]
  %v686 = vld [vmem:[%s3 + $0x100] sm:$0xff]
  %v687 = vld [vmem:[%s3 + $0x108] sm:$0xff]
  %v688 = vld [vmem:[%s3 + $0x110] sm:$0xff]
  %v689 = vld [vmem:[%s3 + $0x118] sm:$0xff]
  %v690 = vld [vmem:[%s3 + $0x120] sm:$0xff]
  %v691 = vld [vmem:[%s3 + $0x128] sm:$0xff]
  %v692 = vld [vmem:[%s3 + $0x130] sm:$0xff]
  %v693 = vld [vmem:[%s3 + $0x138] sm:$0xff]
  %v694 = vld [vmem:[%s3 + $0x140] sm:$0xff]
  %v695 = vld [vmem:[%s3 + $0x148] sm:$0xff]
  %v696 = vld [vmem:[%s3 + $0x150] sm:$0xff]
  %v697 = vld [vmem:[%s3 + $0x158] sm:$0xff]
  %v698 = vld [vmem:[%s3 + $0x160] sm:$0xff]
  %v699 = vld [vmem:[%s3 + $0x168] sm:$0xff]
  %v700 = vld [vmem:[%s3 + $0x170] sm:$0xff]
  %v701 = vld [vmem:[%s3 + $0x178] sm:$0xff]
  %v702 = vld [vmem:[%s3 + $0x180] sm:$0xff]
  %v703 = vld [vmem:[%s3 + $0x188] sm:$0xff]
  %v704 = vld [vmem:[%s3 + $0x190] sm:$0xff]
  %v705 = vld [vmem:[%s3 + $0x198] sm:$0xff]
  %v706 = vld [vmem:[%s3 + $0x1a0] sm:$0xff]
  %v707 = vld [vmem:[%s3 + $0x1a8] sm:$0xff]
  %v708 = vld [vmem:[%s3 + $0x1b0] sm:$0xff]
  %v709 = vld [vmem:[%s3 + $0x1b8] sm:$0xff]
  %v710 = vld [vmem:[%s3 + $0x1c0] sm:$0xff]
  %v711 = vld [vmem:[%s3 + $0x1c8] sm:$0xff]
  %v712 = vld [vmem:[%s3 + $0x1d0] sm:$0xff]
  %v713 = vld [vmem:[%s3 + $0x1d8] sm:$0xff]
  %v714 = vld [vmem:[%s3 + $0x1e0] sm:$0xff]
  %v715 = vld [vmem:[%s3 + $0x1e8] sm:$0xff]
  %v716 = vld [vmem:[%s3 + $0x1f0] sm:$0xff]
  %v717 = vld [vmem:[%s3 + $0x1f8] sm:$0xff]
  %v718 = vld [vmem:[%s3 + $0x200] sm:$0xff]
  %v719 = vld [vmem:[%s3 + $0x208] sm:$0xff]
  %v720 = vld [vmem:[%s3 + $0x210] sm:$0xff]
  %v721 = vld [vmem:[%s3 + $0x218] sm:$0xff]
  %v722 = vld [vmem:[%s3 + $0x220] sm:$0xff]
  %v723 = vld [vmem:[%s3 + $0x228] sm:$0xff]
  %v724 = vld [vmem:[%s3 + $0x230] sm:$0xff]
  %v725 = vld [vmem:[%s3 + $0x238] sm:$0xff]
  %v726 = vld [vmem:[%s3 + $0x240] sm:$0xff]
  %v727 = vld [vmem:[%s3 + $0x248] sm:$0xff]
  %v728 = vld [vmem:[%s3 + $0x250] sm:$0xff]
  %v729 = vld [vmem:[%s3 + $0x258] sm:$0xff]
  %v730 = vld [vmem:[%s3 + $0x260] sm:$0xff]
  %v731 = vld [vmem:[%s3 + $0x268] sm:$0xff]
  %v732 = vld [vmem:[%s3 + $0x270] sm:$0xff]
  %v733 = vld [vmem:[%s3 + $0x278] sm:$0xff]
  %v734 = vld [vmem:[%s3 + $0x280] sm:$0xff]
  %v735 = vld [vmem:[%s3 + $0x288] sm:$0xff]
  %v736 = vld [vmem:[%s3 + $0x290] sm:$0xff]
  %v737 = vld [vmem:[%s3 + $0x298] sm:$0xff]
  %v738 = vld [vmem:[%s3 + $0x2a0] sm:$0xff]
  %v739 = vld [vmem:[%s3 + $0x2a8] sm:$0xff]
  %v740 = vld [vmem:[%s3 + $0x2b0] sm:$0xff]
  %v741 = vld [vmem:[%s3 + $0x2b8] sm:$0xff]
  %v742 = vld [vmem:[%s3 + $0x2c0] sm:$0xff]
  %v743 = vld [vmem:[%s3 + $0x2c8] sm:$0xff]
  %v744 = vld [vmem:[%s4] sm:$0x3]
  %v746 = vlaneseq
  %v747 = vshrl.u32 %v746, 7
  %v748 = vsub.s32 0, %v747
  %v749 = vrot.slane %v744, %v748
  %v750 = vlaneseq
  %v751 = vshrl.u32 %v750, 7
  %v752 = vsub.s32 1, %v751
  %v753 = vrot.slane %v744, %v752
  %v846 = vunpack.c.l.b16 %v654
  %v847 = vunpack.c.h.b16 %v654
  %v848 = vunpack.c.l.b16 %v655
  %v849 = vunpack.c.h.b16 %v655
  %v850 = vunpack.c.l.b16 %v656
  %v851 = vunpack.c.h.b16 %v656
  %v852 = vunpack.c.l.b16 %v657
  %v853 = vunpack.c.h.b16 %v657
  %v854 = vunpack.c.l.b16 %v658
  %v855 = vunpack.c.h.b16 %v658
  %v856 = vunpack.c.l.b16 %v659
  %v857 = vunpack.c.h.b16 %v659
  %v858 = vunpack.c.l.b16 %v660
  %v859 = vunpack.c.h.b16 %v660
  %v860 = vunpack.c.l.b16 %v661
  %v861 = vunpack.c.h.b16 %v661
  %v862 = vunpack.c.l.b16 %v662
  %v863 = vunpack.c.h.b16 %v662
  %v864 = vunpack.c.l.b16 %v663
  %v865 = vunpack.c.h.b16 %v663
  %v866 = vunpack.c.l.b16 %v664
  %v867 = vunpack.c.h.b16 %v664
  %v868 = vunpack.c.l.b16 %v665
  %v869 = vunpack.c.h.b16 %v665
  %v870 = vunpack.c.l.b16 %v666
  %v871 = vunpack.c.h.b16 %v666
  %v872 = vunpack.c.l.b16 %v667
  %v873 = vunpack.c.h.b16 %v667
  %v874 = vunpack.c.l.b16 %v668
  %v875 = vunpack.c.h.b16 %v668
  %v876 = vunpack.c.l.b16 %v669
  %v877 = vunpack.c.h.b16 %v669
  %v878 = vunpack.c.l.b16 %v670
  %v879 = vunpack.c.h.b16 %v670
  %v880 = vunpack.c.l.b16 %v671
  %v881 = vunpack.c.h.b16 %v671
  %v882 = vunpack.c.l.b16 %v672
  %v883 = vunpack.c.h.b16 %v672
  %v884 = vunpack.c.l.b16 %v673
  %v885 = vunpack.c.h.b16 %v673
  %v886 = vunpack.c.l.b16 %v674
  %v887 = vunpack.c.h.b16 %v674
  %v888 = vunpack.c.l.b16 %v675
  %v889 = vunpack.c.h.b16 %v675
  %v890 = vunpack.c.l.b16 %v676
  %v891 = vunpack.c.h.b16 %v676
  %v892 = vunpack.c.l.b16 %v677
  %v893 = vunpack.c.h.b16 %v677
  %v894 = vunpack.c.l.b16 %v678
  %v895 = vunpack.c.h.b16 %v678
  %v896 = vunpack.c.l.b16 %v679
  %v897 = vunpack.c.h.b16 %v679
  %v898 = vunpack.c.l.b16 %v680
  %v899 = vunpack.c.h.b16 %v680
  %v900 = vunpack.c.l.b16 %v681
  %v901 = vunpack.c.h.b16 %v681
  %v902 = vunpack.c.l.b16 %v682
  %v903 = vunpack.c.h.b16 %v682
  %v904 = vunpack.c.l.b16 %v683
  %v905 = vunpack.c.h.b16 %v683
  %v906 = vunpack.c.l.b16 %v684
  %v907 = vunpack.c.h.b16 %v684
  %v908 = vunpack.c.l.b16 %v685
  %v909 = vunpack.c.h.b16 %v685
  %v910 = vunpack.c.l.b16 %v686
  %v911 = vunpack.c.h.b16 %v686
  %v912 = vunpack.c.l.b16 %v687
  %v913 = vunpack.c.h.b16 %v687
  %v914 = vunpack.c.l.b16 %v688
  %v915 = vunpack.c.h.b16 %v688
  %v916 = vunpack.c.l.b16 %v689
  %v917 = vunpack.c.h.b16 %v689
  %v918 = vunpack.c.l.b16 %v690
  %v919 = vunpack.c.h.b16 %v690
  %v920 = vunpack.c.l.b16 %v691
  %v921 = vunpack.c.h.b16 %v691
  %v922 = vunpack.c.l.b16 %v692
  %v923 = vunpack.c.h.b16 %v692
  %v924 = vunpack.c.l.b16 %v693
  %v925 = vunpack.c.h.b16 %v693
  %v926 = vunpack.c.l.b16 %v694
  %v927 = vunpack.c.h.b16 %v694
  %v928 = vunpack.c.l.b16 %v695
  %v929 = vunpack.c.h.b16 %v695
  %v930 = vunpack.c.l.b16 %v696
  %v931 = vunpack.c.h.b16 %v696
  %v932 = vunpack.c.l.b16 %v697
  %v933 = vunpack.c.h.b16 %v697
  %v934 = vunpack.c.l.b16 %v698
  %v935 = vunpack.c.h.b16 %v698
  %v936 = vunpack.c.l.b16 %v699
  %v937 = vunpack.c.h.b16 %v699
  %v938 = vunpack.c.l.b16 %v700
  %v939 = vunpack.c.h.b16 %v700
  %v940 = vunpack.c.l.b16 %v701
  %v941 = vunpack.c.h.b16 %v701
  %v942 = vunpack.c.l.b16 %v702
  %v943 = vunpack.c.h.b16 %v702
  %v944 = vunpack.c.l.b16 %v703
  %v945 = vunpack.c.h.b16 %v703
  %v946 = vunpack.c.l.b16 %v704
  %v947 = vunpack.c.h.b16 %v704
  %v948 = vunpack.c.l.b16 %v705
  %v949 = vunpack.c.h.b16 %v705
  %v950 = vunpack.c.l.b16 %v706
  %v951 = vunpack.c.h.b16 %v706
  %v952 = vunpack.c.l.b16 %v707
  %v953 = vunpack.c.h.b16 %v707
  %v954 = vunpack.c.l.b16 %v708
  %v955 = vunpack.c.h.b16 %v708
  %v956 = vunpack.c.l.b16 %v709
  %v957 = vunpack.c.h.b16 %v709
  %v958 = vunpack.c.l.b16 %v710
  %v959 = vunpack.c.h.b16 %v710
  %v960 = vunpack.c.l.b16 %v711
  %v961 = vunpack.c.h.b16 %v711
  %v962 = vunpack.c.l.b16 %v712
  %v963 = vunpack.c.h.b16 %v712
  %v964 = vunpack.c.l.b16 %v713
  %v965 = vunpack.c.h.b16 %v713
  %v966 = vunpack.c.l.b16 %v714
  %v967 = vunpack.c.h.b16 %v714
  %v968 = vunpack.c.l.b16 %v715
  %v969 = vunpack.c.h.b16 %v715
  %v970 = vunpack.c.l.b16 %v716
  %v971 = vunpack.c.h.b16 %v716
  %v972 = vunpack.c.l.b16 %v717
  %v973 = vunpack.c.h.b16 %v717
  %v974 = vunpack.c.l.b16 %v718
  %v975 = vunpack.c.h.b16 %v718
  %v976 = vunpack.c.l.b16 %v719
  %v977 = vunpack.c.h.b16 %v719
  %v978 = vunpack.c.l.b16 %v720
  %v979 = vunpack.c.h.b16 %v720
  %v980 = vunpack.c.l.b16 %v721
  %v981 = vunpack.c.h.b16 %v721
  %v982 = vunpack.c.l.b16 %v722
  %v983 = vunpack.c.h.b16 %v722
  %v984 = vunpack.c.l.b16 %v723
  %v985 = vunpack.c.h.b16 %v723
  %v986 = vunpack.c.l.b16 %v724
  %v987 = vunpack.c.h.b16 %v724
  %v988 = vunpack.c.l.b16 %v725
  %v989 = vunpack.c.h.b16 %v725
  %v990 = vunpack.c.l.b16 %v726
  %v991 = vunpack.c.h.b16 %v726
  %v992 = vunpack.c.l.b16 %v727
  %v993 = vunpack.c.h.b16 %v727
  %v994 = vunpack.c.l.b16 %v728
  %v995 = vunpack.c.h.b16 %v728
  %v996 = vunpack.c.l.b16 %v729
  %v997 = vunpack.c.h.b16 %v729
  %v998 = vunpack.c.l.b16 %v730
  %v999 = vunpack.c.h.b16 %v730
  %v1000 = vunpack.c.l.b16 %v731
  %v1001 = vunpack.c.h.b16 %v731
  %v1002 = vunpack.c.l.b16 %v732
  %v1003 = vunpack.c.h.b16 %v732
  %v1004 = vunpack.c.l.b16 %v733
  %v1005 = vunpack.c.h.b16 %v733
  %v1006 = vunpack.c.l.b16 %v734
  %v1007 = vunpack.c.h.b16 %v734
  %v1008 = vunpack.c.l.b16 %v735
  %v1009 = vunpack.c.h.b16 %v735
  %v1010 = vunpack.c.l.b16 %v736
  %v1011 = vunpack.c.h.b16 %v736
  %v1012 = vunpack.c.l.b16 %v737
  %v1013 = vunpack.c.h.b16 %v737
  %v1014 = vunpack.c.l.b16 %v738
  %v1015 = vunpack.c.h.b16 %v738
  %v1016 = vunpack.c.l.b16 %v739
  %v1017 = vunpack.c.h.b16 %v739
  %v1018 = vunpack.c.l.b16 %v740
  %v1019 = vunpack.c.h.b16 %v740
  %v1020 = vunpack.c.l.b16 %v741
  %v1021 = vunpack.c.h.b16 %v741
  %v1022 = vunpack.c.l.b16 %v742
  %v1023 = vunpack.c.h.b16 %v742
  %v1024 = vunpack.c.l.b16 %v743
  %v1025 = vunpack.c.h.b16 %v743
  %v1026 = vpack.c.b16 %v848, %v846
  %v1027 = vpack.c.b16 %v849, %v847
  %v1028 = vpack.c.b16 %v852, %v850
  %v1029 = vpack.c.b16 %v853, %v851
  %v1030 = vpack.c.b16 %v856, %v854
  %v1031 = vpack.c.b16 %v857, %v855
  %v1032 = vpack.c.b16 %v860, %v858
  %v1033 = vpack.c.b16 %v861, %v859
  %v1034 = vpack.c.b16 %v864, %v862
  %v1035 = vpack.c.b16 %v865, %v863
  %v1036 = vpack.c.b16 %v868, %v866
  %v1037 = vpack.c.b16 %v869, %v867
  %v1038 = vpack.c.b16 %v872, %v870
  %v1039 = vpack.c.b16 %v873, %v871
  %v1040 = vpack.c.b16 %v876, %v874
  %v1041 = vpack.c.b16 %v877, %v875
  %v1042 = vpack.c.b16 %v880, %v878
  %v1043 = vpack.c.b16 %v881, %v879
  %v1044 = vpack.c.b16 %v884, %v882
  %v1045 = vpack.c.b16 %v885, %v883
  %v1046 = vpack.c.b16 %v888, %v886
  %v1047 = vpack.c.b16 %v889, %v887
  %v1048 = vpack.c.b16 %v892, %v890
  %v1049 = vpack.c.b16 %v893, %v891
  %v1050 = vpack.c.b16 %v896, %v894
  %v1051 = vpack.c.b16 %v897, %v895
  %v1052 = vpack.c.b16 %v900, %v898
  %v1053 = vpack.c.b16 %v901, %v899
  %v1054 = vpack.c.b16 %v904, %v902
  %v1055 = vpack.c.b16 %v905, %v903
  %v1056 = vpack.c.b16 %v908, %v906
  %v1057 = vpack.c.b16 %v909, %v907
  %v1058 = vpack.c.b16 %v912, %v910
  %v1059 = vpack.c.b16 %v913, %v911
  %v1060 = vpack.c.b16 %v916, %v914
  %v1061 = vpack.c.b16 %v917, %v915
  %v1062 = vpack.c.b16 %v920, %v918
  %v1063 = vpack.c.b16 %v921, %v919
  %v1064 = vpack.c.b16 %v924, %v922
  %v1065 = vpack.c.b16 %v925, %v923
  %v1066 = vpack.c.b16 %v928, %v926
  %v1067 = vpack.c.b16 %v929, %v927
  %v1068 = vpack.c.b16 %v932, %v930
  %v1069 = vpack.c.b16 %v933, %v931
  %v1070 = vpack.c.b16 %v936, %v934
  %v1071 = vpack.c.b16 %v937, %v935
  %v1072 = vpack.c.b16 %v940, %v938
  %v1073 = vpack.c.b16 %v941, %v939
  %v1074 = vpack.c.b16 %v944, %v942
  %v1075 = vpack.c.b16 %v945, %v943
  %v1076 = vpack.c.b16 %v948, %v946
  %v1077 = vpack.c.b16 %v949, %v947
  %v1078 = vpack.c.b16 %v952, %v950
  %v1079 = vpack.c.b16 %v953, %v951
  %v1080 = vpack.c.b16 %v956, %v954
  %v1081 = vpack.c.b16 %v957, %v955
  %v1082 = vpack.c.b16 %v960, %v958
  %v1083 = vpack.c.b16 %v961, %v959
  %v1084 = vpack.c.b16 %v964, %v962
  %v1085 = vpack.c.b16 %v965, %v963
  %v1086 = vpack.c.b16 %v968, %v966
  %v1087 = vpack.c.b16 %v969, %v967
  %v1088 = vpack.c.b16 %v972, %v970
  %v1089 = vpack.c.b16 %v973, %v971
  %v1090 = vpack.c.b16 %v976, %v974
  %v1091 = vpack.c.b16 %v977, %v975
  %v1092 = vpack.c.b16 %v980, %v978
  %v1093 = vpack.c.b16 %v981, %v979
  %v1094 = vpack.c.b16 %v984, %v982
  %v1095 = vpack.c.b16 %v985, %v983
  %v1096 = vpack.c.b16 %v988, %v986
  %v1097 = vpack.c.b16 %v989, %v987
  %v1098 = vpack.c.b16 %v992, %v990
  %v1099 = vpack.c.b16 %v993, %v991
  %v1100 = vpack.c.b16 %v996, %v994
  %v1101 = vpack.c.b16 %v997, %v995
  %v1102 = vpack.c.b16 %v1000, %v998
  %v1103 = vpack.c.b16 %v1001, %v999
  %v1104 = vpack.c.b16 %v1004, %v1002
  %v1105 = vpack.c.b16 %v1005, %v1003
  %v1106 = vpack.c.b16 %v1008, %v1006
  %v1107 = vpack.c.b16 %v1009, %v1007
  %v1108 = vpack.c.b16 %v1012, %v1010
  %v1109 = vpack.c.b16 %v1013, %v1011
  %v1110 = vpack.c.b16 %v1016, %v1014
  %v1111 = vpack.c.b16 %v1017, %v1015
  %v1112 = vpack.c.b16 %v1020, %v1018
  %v1113 = vpack.c.b16 %v1021, %v1019
  %v1114 = vpack.c.b16 %v1024, %v1022
  %v1115 = vpack.c.b16 %v1025, %v1023
  %vm1206 = vcmask 654336
  %v1208 = vsel %vm1206, %v647, 0
  %v1211 = vsel %vm1206, %v653, 0
  %1213 = vmatprep.subr.bf16.mxu0 %v1027
  %1214 = vmatpush1.bf16.msra.mxu0 %v1026
  %1215 = vmatprep.subr.bf16.mxu0 %v1029
  %1216 = vmatpush1.bf16.msra.mxu0 %v1028
  %1217 = vmatprep.subr.bf16.mxu0 %v1031
  %1218 = vmatpush1.bf16.msra.mxu0 %v1030
  %1219 = vmatprep.subr.bf16.mxu0 %v1033
  %1220 = vmatpush1.bf16.msra.mxu0 %v1032
  %1221 = vmatprep.subr.bf16.mxu0 %v1035
  %1222 = vmatpush1.bf16.msra.mxu0 %v1034
  %1223 = vmatprep.subr.bf16.mxu0 %v1037
  %1224 = vmatpush1.bf16.msra.mxu0 %v1036
  %1225 = vmatprep.subr.bf16.mxu0 %v1039
  %1226 = vmatpush1.bf16.msra.mxu0 %v1038
  %1227 = vmatprep.subr.bf16.mxu0 %v1041
  %1228 = vmatpush1.bf16.msra.mxu0 %v1040
  %1229 = vmatprep.subr.bf16.mxu0 %v1043
  %1230 = vmatpush1.bf16.msra.mxu0 %v1042
  %1231 = vmatprep.subr.bf16.mxu0 %v1045
  %1232 = vmatpush1.bf16.msra.mxu0 %v1044
  %1233 = vmatprep.subr.bf16.mxu0 %v1047
  %1234 = vmatpush1.bf16.msra.mxu0 %v1046
  %1235 = vmatprep.subr.bf16.mxu0 %v1049
  %1236 = vmatpush1.bf16.msra.mxu0 %v1048
  %1237 = vmatprep.subr.bf16.mxu0 %v1051
  %1238 = vmatpush1.bf16.msra.mxu0 %v1050
  %1239 = vmatprep.subr.bf16.mxu0 %v1053
  %1240 = vmatpush1.bf16.msra.mxu0 %v1052
  %1241 = vmatprep.subr.bf16.mxu0 %v1055
  %1242 = vmatpush1.bf16.msra.mxu0 %v1054
  %1243 = vmatprep.subr.bf16.mxu0 %v1057
  %1244 = vmatpush1.bf16.msra.mxu0 %v1056
  %1245 = vmatprep.mubr.bf16.mxu0 %v643
  %1246 = vmatmul.mubr.bf16.gmra.mrb[0].mxu0 %v642
  %v1247 = vpop.f32.mrb[0].mxu0
  %v1248 = vadd.f32 %v749, %v1247
  %v1249 = vpop.f32.mrb[0].mxu0
  %v1250 = vadd.f32 %v753, %v1249
  %v1251 = vpop.f32.mrb[0].mxu0
  %v1252 = vadd.f32 %v749, %v1251
  %v1253 = vpop.f32.mrb[0].mxu0
  %v1254 = vadd.f32 %v753, %v1253
  %1255 = vmatprep.mubr.bf16.mxu0 %v649
  %1256 = vmatmul.mubr.bf16.gmra.mrb[0].mxu0 %v648
  %v1257 = vpop.f32.mrb[0].mxu0
  %v1258 = vadd.f32 %v749, %v1257
  %v1259 = vpop.f32.mrb[0].mxu0
  %v1260 = vadd.f32 %v753, %v1259
  %v1261 = vpop.f32.mrb[0].mxu0
  %v1262 = vadd.f32 %v749, %v1261
  %v1263 = vpop.f32.mrb[0].mxu0
  %v1264 = vadd.f32 %v753, %v1263
  %1265 = vdwg.mxu0
  %1266 = vmatprep.subr.bf16.mxu0 %v1059
  %1267 = vmatpush1.bf16.msra.mxu0 %v1058
  %1268 = vmatprep.subr.bf16.mxu0 %v1061
  %1269 = vmatpush1.bf16.msra.mxu0 %v1060
  %1270 = vmatprep.subr.bf16.mxu0 %v1063
  %1271 = vmatpush1.bf16.msra.mxu0 %v1062
  %1272 = vmatprep.subr.bf16.mxu0 %v1065
  %1273 = vmatpush1.bf16.msra.mxu0 %v1064
  %1274 = vmatprep.subr.bf16.mxu0 %v1067
  %1275 = vmatpush1.bf16.msra.mxu0 %v1066
  %1276 = vmatprep.subr.bf16.mxu0 %v1069
  %1277 = vmatpush1.bf16.msra.mxu0 %v1068
  %1278 = vmatprep.subr.bf16.mxu0 %v1071
  %1279 = vmatpush1.bf16.msra.mxu0 %v1070
  %1280 = vmatprep.subr.bf16.mxu0 %v1073
  %1281 = vmatpush1.bf16.msra.mxu0 %v1072
  %1282 = vmatprep.subr.bf16.mxu0 %v1075
  %1283 = vmatpush1.bf16.msra.mxu0 %v1074
  %1284 = vmatprep.subr.bf16.mxu0 %v1077
  %1285 = vmatpush1.bf16.msra.mxu0 %v1076
  %1286 = vmatprep.subr.bf16.mxu0 %v1079
  %1287 = vmatpush1.bf16.msra.mxu0 %v1078
  %1288 = vmatprep.subr.bf16.mxu0 %v1081
  %1289 = vmatpush1.bf16.msra.mxu0 %v1080
  %1290 = vmatprep.subr.bf16.mxu0 %v1083
  %1291 = vmatpush1.bf16.msra.mxu0 %v1082
  %1292 = vmatprep.subr.bf16.mxu0 %v1085
  %1293 = vmatpush1.bf16.msra.mxu0 %v1084
  %1294 = vmatprep.subr.bf16.mxu0 %v1087
  %1295 = vmatpush1.bf16.msra.mxu0 %v1086
  %1296 = vmatprep.subr.bf16.mxu0 %v1089
  %1297 = vmatpush1.bf16.msra.mxu0 %v1088
  %1298 = vmatprep.mubr.bf16.mxu0 %v645
  %1299 = vmatmul.mubr.bf16.gmra.mrb[0].mxu0 %v644
  %v1300 = vpop.f32.mrb[0].mxu0
  %v1301 = vadd.f32 %v1248, %v1300
  %v1302 = vpop.f32.mrb[0].mxu0
  %v1303 = vadd.f32 %v1250, %v1302
  %v1304 = vpop.f32.mrb[0].mxu0
  %v1305 = vadd.f32 %v1252, %v1304
  %v1306 = vpop.f32.mrb[0].mxu0
  %v1307 = vadd.f32 %v1254, %v1306
  %1308 = vmatprep.mubr.bf16.mxu0 %v651
  %1309 = vmatmul.mubr.bf16.gmra.mrb[0].mxu0 %v650
  %v1310 = vpop.f32.mrb[0].mxu0
  %v1311 = vadd.f32 %v1258, %v1310
  %v1312 = vpop.f32.mrb[0].mxu0
  %v1313 = vadd.f32 %v1260, %v1312
  %v1314 = vpop.f32.mrb[0].mxu0
  %v1315 = vadd.f32 %v1262, %v1314
  %v1316 = vpop.f32.mrb[0].mxu0
  %v1317 = vadd.f32 %v1264, %v1316
  %1318 = vdwg.mxu0
  %1319 = vmatprep.subr.bf16.mxu0 %v1091
  %1320 = vmatpush1.bf16.msra.mxu0 %v1090
  %1321 = vmatprep.subr.bf16.mxu0 %v1093
  %1322 = vmatpush1.bf16.msra.mxu0 %v1092
  %1323 = vmatprep.subr.bf16.mxu0 %v1095
  %1324 = vmatpush1.bf16.msra.mxu0 %v1094
  %1325 = vmatprep.subr.bf16.mxu0 %v1097
  %1326 = vmatpush1.bf16.msra.mxu0 %v1096
  %1327 = vmatprep.subr.bf16.mxu0 %v1099
  %1328 = vmatpush1.bf16.msra.mxu0 %v1098
  %1329 = vmatprep.subr.bf16.mxu0 %v1101
  %1330 = vmatpush1.bf16.msra.mxu0 %v1100
  %1331 = vmatprep.subr.bf16.mxu0 %v1103
  %1332 = vmatpush1.bf16.msra.mxu0 %v1102
  %1333 = vmatprep.subr.bf16.mxu0 %v1105
  %1334 = vmatpush1.bf16.msra.mxu0 %v1104
  %1335 = vmatprep.subr.bf16.mxu0 %v1107
  %1336 = vmatpush1.bf16.msra.mxu0 %v1106
  %1337 = vmatprep.subr.bf16.mxu0 %v1109
  %1338 = vmatpush1.bf16.msra.mxu0 %v1108
  %1339 = vmatprep.subr.bf16.mxu0 %v1111
  %1340 = vmatpush1.bf16.msra.mxu0 %v1110
  %1341 = vmatprep.subr.bf16.mxu0 %v1113
  %1342 = vmatpush1.bf16.msra.mxu0 %v1112
  %1343 = vmatprep.subr.bf16.mxu0 %v1115
  %1344 = vmatpush1.bf16.msra.mxu0 %v1114
  %1345 = vmatprep.subr.bf16.mxu0 0
  %1346 = vmatpush1.bf16.msra.mxu0 0
  %1347 = vmatprep.subr.bf16.mxu0 0
  %1348 = vmatpush1.bf16.msra.mxu0 0
  %1349 = vmatprep.subr.bf16.mxu0 0
  %1350 = vmatpush1.bf16.msra.mxu0 0
  %1351 = vmatprep.mubr.bf16.mxu0 %v1208
  %1352 = vmatmul.mubr.bf16.gmra.mrb[0].mxu0 %v646
  %v1353 = vpop.f32.mrb[0].mxu0
  %v1354 = vadd.f32 %v1301, %v1353
  %v1355 = vpop.f32.mrb[0].mxu0
  %v1356 = vadd.f32 %v1303, %v1355
  %v1357 = vpop.f32.mrb[0].mxu0
  %v1358 = vadd.f32 %v1305, %v1357
  %v1359 = vpop.f32.mrb[0].mxu0
  %v1360 = vadd.f32 %v1307, %v1359
  %1361 = vmatprep.mubr.bf16.mxu0 %v1211
  %1362 = vmatmul.mubr.bf16.gmra.mrb[0].mxu0 %v652
  %v1363 = vpop.f32.mrb[0].mxu0
  %v1364 = vadd.f32 %v1311, %v1363
  %v1365 = vpop.f32.mrb[0].mxu0
  %v1366 = vadd.f32 %v1313, %v1365
  %v1367 = vpop.f32.mrb[0].mxu0
  %v1368 = vadd.f32 %v1315, %v1367
  %v1369 = vpop.f32.mrb[0].mxu0
  %v1370 = vadd.f32 %v1317, %v1369
  %1371 = vdwg.mxu0
  %v1374 = vrot.slane %v1354, 1
  %v1375 = vrot.slane %v1356, 1
  %1376 = vrot.lane.b32.xlu0 %v1374, 96
  %v1377 = vpop.permute.xlu0 %1376
  %1378 = vrot.lane.b32.xlu0 %v1375, 96
  %v1379 = vpop.permute.xlu0 %1378
  %v1380 = vsel %vm444, %v1377, %v1379
  %v1384 = vrot.slane %v1354, 2
  %v1385 = vrot.slane %v1356, 2
  %1386 = vrot.lane.b32.xlu0 %v1384, 64
  %v1387 = vpop.permute.xlu0 %1386
  %1388 = vrot.lane.b32.xlu0 %v1385, 64
  %v1389 = vpop.permute.xlu0 %1388
  %vm1390 = vcmask 523264
  %v1391 = vsel %vm1390, %v1387, %v1389
  %v1395 = vsel %vm444, %v1356, %v1377
  %v1396 = vsel %vm1390, %v1379, %v1387
  %v1399 = vrot.slane %v1358, 1
  %v1400 = vrot.slane %v1360, 1
  %1401 = vrot.lane.b32.xlu0 %v1399, 96
  %v1402 = vpop.permute.xlu0 %1401
  %1403 = vrot.lane.b32.xlu0 %v1400, 96
  %v1404 = vpop.permute.xlu0 %1403
  %v1405 = vsel %vm444, %v1402, %v1404
  %v1408 = vrot.slane %v1358, 2
  %v1409 = vrot.slane %v1360, 2
  %1410 = vrot.lane.b32.xlu0 %v1408, 64
  %v1411 = vpop.permute.xlu0 %1410
  %1412 = vrot.lane.b32.xlu0 %v1409, 64
  %v1413 = vpop.permute.xlu0 %1412
  %v1414 = vsel %vm1390, %v1411, %v1413
  %v1416 = vsel %vm444, %v1360, %v1402
  %v1417 = vsel %vm1390, %v1404, %v1411
  %v1420 = vrot.slane %v1364, 1
  %v1421 = vrot.slane %v1366, 1
  %1422 = vrot.lane.b32.xlu0 %v1420, 96
  %v1423 = vpop.permute.xlu0 %1422
  %1424 = vrot.lane.b32.xlu0 %v1421, 96
  %v1425 = vpop.permute.xlu0 %1424
  %v1426 = vsel %vm444, %v1423, %v1425
  %v1429 = vrot.slane %v1364, 2
  %v1430 = vrot.slane %v1366, 2
  %1431 = vrot.lane.b32.xlu0 %v1429, 64
  %v1432 = vpop.permute.xlu0 %1431
  %1433 = vrot.lane.b32.xlu0 %v1430, 64
  %v1434 = vpop.permute.xlu0 %1433
  %v1435 = vsel %vm1390, %v1432, %v1434
  %v1437 = vsel %vm444, %v1366, %v1423
  %v1438 = vsel %vm1390, %v1425, %v1432
  %v1441 = vrot.slane %v1368, 1
  %v1442 = vrot.slane %v1370, 1
  %1443 = vrot.lane.b32.xlu0 %v1441, 96
  %v1444 = vpop.permute.xlu0 %1443
  %1445 = vrot.lane.b32.xlu0 %v1442, 96
  %v1446 = vpop.permute.xlu0 %1445
  %v1447 = vsel %vm444, %v1444, %v1446
  %v1450 = vrot.slane %v1368, 2
  %v1451 = vrot.slane %v1370, 2
  %1452 = vrot.lane.b32.xlu0 %v1450, 64
  %v1453 = vpop.permute.xlu0 %1452
  %1454 = vrot.lane.b32.xlu0 %v1451, 64
  %v1455 = vpop.permute.xlu0 %1454
  %v1456 = vsel %vm1390, %v1453, %v1455
  %v1458 = vsel %vm444, %v1370, %v1444
  %v1459 = vsel %vm1390, %v1446, %v1453
  %v1462 = vrot.slane %v1416, 2
  %v1463 = vrot.slane %v1405, 2
  %v1464 = vrot.slane %v1417, 2
  %v1465 = vrot.slane %v1414, 2
  %v1466 = vrot.slane %v1413, 2
  %v1475 = vrot.slane %v1364, 4
  %v1476 = vrot.slane %v1437, 4
  %v1477 = vrot.slane %v1426, 4
  %v1478 = vrot.slane %v1438, 4
  %v1479 = vrot.slane %v1435, 4
  %v1480 = vrot.slane %v1434, 4
  %v1489 = vrot.slane %v1368, 6
  %v1490 = vrot.slane %v1458, 6
  %v1491 = vrot.slane %v1447, 6
  %v1492 = vrot.slane %v1459, 6
  %v1493 = vrot.slane %v1456, 6
  %v1494 = vrot.slane %v1455, 6
  %v1501 = vsel %vm51, %v1354, %v1408
  %v1502 = vsel %vm51, %v1395, %v1462
  %v1503 = vsel %vm51, %v1380, %v1463
  %v1504 = vsel %vm51, %v1396, %v1464
  %v1505 = vsel %vm51, %v1391, %v1465
  %v1506 = vsel %vm51, %v1389, %v1466
  %v1507 = vsel %vm147, %v1408, %v1475
  %v1508 = vsel %vm147, %v1462, %v1476
  %v1509 = vsel %vm147, %v1463, %v1477
  %v1510 = vsel %vm147, %v1464, %v1478
  %v1511 = vsel %vm147, %v1465, %v1479
  %v1512 = vsel %vm147, %v1466, %v1480
  %v1513 = vsel %vm160, %v1475, %v1489
  %v1514 = vsel %vm160, %v1476, %v1490
  %v1515 = vsel %vm160, %v1477, %v1491
  %v1516 = vsel %vm160, %v1478, %v1492
  %v1517 = vsel %vm160, %v1479, %v1493
  %v1518 = vsel %vm160, %v1480, %v1494
  %v1519 = vpack.c.bf16 %v1507, %v1501
  %v1520 = vpack.c.bf16 %v1508, %v1502
  %v1521 = vpack.c.bf16 %v1509, %v1503
  %v1522 = vpack.c.bf16 %v1510, %v1504
  %v1523 = vpack.c.bf16 %v1511, %v1505
  %v1524 = vpack.c.bf16 %v1512, %v1506
  %v1525 = vpack.c.bf16 %v1513, %v1513
  %v1526 = vpack.c.bf16 %v1514, %v1514
  %v1527 = vpack.c.bf16 %v1515, %v1515
  %v1528 = vpack.c.bf16 %v1516, %v1516
  %v1529 = vpack.c.bf16 %v1517, %v1517
  %v1530 = vpack.c.bf16 %v1518, %v1518
  %v1531 = vld [vmem:[%s5] sm:$0xff]
  %v1532 = vld [vmem:[%s5 + $0x8] sm:$0xff]
  %v1533 = vld [vmem:[%s5 + $0x10] sm:$0xff]
  %v1534 = vld [vmem:[%s5 + $0x18] sm:$0xff]
  %v1535 = vld [vmem:[%s5 + $0x20] sm:$0xff]
  %v1536 = vld [vmem:[%s5 + $0x28] sm:$0xff]
  %v1537 = vld [vmem:[%s5 + $0x30] sm:$0xff]
  %v1538 = vld [vmem:[%s5 + $0x38] sm:$0xff]
  %v1539 = vld [vmem:[%s5 + $0x40] sm:$0xff]
  %v1540 = vld [vmem:[%s5 + $0x48] sm:$0xff]
  %v1541 = vld [vmem:[%s5 + $0x50] sm:$0xff]
  %v1542 = vld [vmem:[%s5 + $0x58] sm:$0xff]
  %v1543 = vld [vmem:[%s5 + $0x60] sm:$0xff]
  %v1544 = vld [vmem:[%s5 + $0x68] sm:$0xff]
  %v1545 = vld [vmem:[%s5 + $0x70] sm:$0xff]
  %v1546 = vld [vmem:[%s5 + $0x78] sm:$0xff]
  %v1547 = vld [vmem:[%s5 + $0x80] sm:$0xff]
  %v1548 = vld [vmem:[%s5 + $0x88] sm:$0xff]
  %v1549 = vld [vmem:[%s5 + $0x90] sm:$0xff]
  %v1550 = vld [vmem:[%s5 + $0x98] sm:$0xff]
  %v1551 = vld [vmem:[%s5 + $0xa0] sm:$0xff]
  %v1552 = vld [vmem:[%s5 + $0xa8] sm:$0xff]
  %v1553 = vld [vmem:[%s5 + $0xb0] sm:$0xff]
  %v1554 = vld [vmem:[%s5 + $0xb8] sm:$0xff]
  %v1555 = vld [vmem:[%s5 + $0xc0] sm:$0xff]
  %v1556 = vld [vmem:[%s5 + $0xc8] sm:$0xff]
  %v1557 = vld [vmem:[%s5 + $0xd0] sm:$0xff]
  %v1558 = vld [vmem:[%s5 + $0xd8] sm:$0xff]
  %v1559 = vld [vmem:[%s5 + $0xe0] sm:$0xff]
  %v1560 = vld [vmem:[%s5 + $0xe8] sm:$0xff]
  %v1561 = vld [vmem:[%s5 + $0xf0] sm:$0xff]
  %v1562 = vld [vmem:[%s5 + $0xf8] sm:$0xff]
  %v1563 = vld [vmem:[%s5 + $0x100] sm:$0xff]
  %v1564 = vld [vmem:[%s5 + $0x108] sm:$0xff]
  %v1565 = vld [vmem:[%s5 + $0x110] sm:$0xff]
  %v1566 = vld [vmem:[%s5 + $0x118] sm:$0xff]
  %v1567 = vld [vmem:[%s5 + $0x120] sm:$0xff]
  %v1568 = vld [vmem:[%s5 + $0x128] sm:$0xff]
  %v1569 = vld [vmem:[%s5 + $0x130] sm:$0xff]
  %v1570 = vld [vmem:[%s5 + $0x138] sm:$0xff]
  %v1571 = vld [vmem:[%s5 + $0x140] sm:$0xff]
  %v1572 = vld [vmem:[%s5 + $0x148] sm:$0xff]
  %v1573 = vld [vmem:[%s5 + $0x150] sm:$0xff]
  %v1574 = vld [vmem:[%s5 + $0x158] sm:$0xff]
  %v1575 = vld [vmem:[%s5 + $0x160] sm:$0xff]
  %v1576 = vld [vmem:[%s5 + $0x168] sm:$0xff]
  %v1577 = vld [vmem:[%s5 + $0x170] sm:$0xff]
  %v1578 = vld [vmem:[%s5 + $0x178] sm:$0xff]
  %v1579 = vld [vmem:[%s5 + $0x180] sm:$0xff]
  %v1580 = vld [vmem:[%s5 + $0x188] sm:$0xff]
  %v1581 = vld [vmem:[%s5 + $0x190] sm:$0xff]
  %v1582 = vld [vmem:[%s5 + $0x198] sm:$0xff]
  %v1583 = vld [vmem:[%s5 + $0x1a0] sm:$0xff]
  %v1584 = vld [vmem:[%s5 + $0x1a8] sm:$0xff]
  %v1585 = vld [vmem:[%s5 + $0x1b0] sm:$0xff]
  %v1586 = vld [vmem:[%s5 + $0x1b8] sm:$0xff]
  %v1587 = vld [vmem:[%s5 + $0x1c0] sm:$0xff]
  %v1588 = vld [vmem:[%s5 + $0x1c8] sm:$0xff]
  %v1589 = vld [vmem:[%s5 + $0x1d0] sm:$0xff]
  %v1590 = vld [vmem:[%s5 + $0x1d8] sm:$0xff]
  %v1591 = vld [vmem:[%s5 + $0x1e0] sm:$0xff]
  %v1592 = vld [vmem:[%s5 + $0x1e8] sm:$0xff]
  %v1593 = vld [vmem:[%s5 + $0x1f0] sm:$0xff]
  %v1594 = vld [vmem:[%s5 + $0x1f8] sm:$0xff]
  %v1595 = vld [vmem:[%s5 + $0x200] sm:$0xff]
  %v1596 = vld [vmem:[%s5 + $0x208] sm:$0xff]
  %v1597 = vld [vmem:[%s5 + $0x210] sm:$0xff]
  %v1598 = vld [vmem:[%s5 + $0x218] sm:$0xff]
  %v1599 = vld [vmem:[%s5 + $0x220] sm:$0xff]
  %v1600 = vld [vmem:[%s5 + $0x228] sm:$0xff]
  %v1601 = vld [vmem:[%s5 + $0x230] sm:$0xff]
  %v1602 = vld [vmem:[%s5 + $0x238] sm:$0xff]
  %v1603 = vld [vmem:[%s5 + $0x240] sm:$0xff]
  %v1604 = vld [vmem:[%s5 + $0x248] sm:$0xff]
  %v1605 = vld [vmem:[%s5 + $0x250] sm:$0xff]
  %v1606 = vld [vmem:[%s5 + $0x258] sm:$0xff]
  %v1607 = vld [vmem:[%s5 + $0x260] sm:$0xff]
  %v1608 = vld [vmem:[%s5 + $0x268] sm:$0xff]
  %v1609 = vld [vmem:[%s5 + $0x270] sm:$0xff]
  %v1610 = vld [vmem:[%s5 + $0x278] sm:$0xff]
  %v1611 = vld [vmem:[%s5 + $0x280] sm:$0xff]
  %v1612 = vld [vmem:[%s5 + $0x288] sm:$0xff]
  %v1613 = vld [vmem:[%s5 + $0x290] sm:$0xff]
  %v1614 = vld [vmem:[%s5 + $0x298] sm:$0xff]
  %v1615 = vld [vmem:[%s6] sm:$0x3]
  %v1617 = vlaneseq
  %v1618 = vshrl.u32 %v1617, 7
  %v1619 = vsub.s32 0, %v1618
  %v1620 = vrot.slane %v1615, %v1619
  %v1621 = vlaneseq
  %v1622 = vshrl.u32 %v1621, 7
  %v1623 = vsub.s32 1, %v1622
  %v1624 = vrot.slane %v1615, %v1623
  %v1711 = vunpack.c.l.b16 %v1531
  %v1712 = vunpack.c.h.b16 %v1531
  %v1713 = vunpack.c.l.b16 %v1532
  %v1714 = vunpack.c.h.b16 %v1532
  %v1715 = vunpack.c.l.b16 %v1533
  %v1716 = vunpack.c.h.b16 %v1533
  %v1717 = vunpack.c.l.b16 %v1534
  %v1718 = vunpack.c.h.b16 %v1534
  %v1719 = vunpack.c.l.b16 %v1535
  %v1720 = vunpack.c.h.b16 %v1535
  %v1721 = vunpack.c.l.b16 %v1536
  %v1722 = vunpack.c.h.b16 %v1536
  %v1723 = vunpack.c.l.b16 %v1537
  %v1724 = vunpack.c.h.b16 %v1537
  %v1725 = vunpack.c.l.b16 %v1538
  %v1726 = vunpack.c.h.b16 %v1538
  %v1727 = vunpack.c.l.b16 %v1539
  %v1728 = vunpack.c.h.b16 %v1539
  %v1729 = vunpack.c.l.b16 %v1540
  %v1730 = vunpack.c.h.b16 %v1540
  %v1731 = vunpack.c.l.b16 %v1541
  %v1732 = vunpack.c.h.b16 %v1541
  %v1733 = vunpack.c.l.b16 %v1542
  %v1734 = vunpack.c.h.b16 %v1542
  %v1735 = vunpack.c.l.b16 %v1543
  %v1736 = vunpack.c.h.b16 %v1543
  %v1737 = vunpack.c.l.b16 %v1544
  %v1738 = vunpack.c.h.b16 %v1544
  %v1739 = vunpack.c.l.b16 %v1545
  %v1740 = vunpack.c.h.b16 %v1545
  %v1741 = vunpack.c.l.b16 %v1546
  %v1742 = vunpack.c.h.b16 %v1546
  %v1743 = vunpack.c.l.b16 %v1547
  %v1744 = vunpack.c.h.b16 %v1547
  %v1745 = vunpack.c.l.b16 %v1548
  %v1746 = vunpack.c.h.b16 %v1548
  %v1747 = vunpack.c.l.b16 %v1549
  %v1748 = vunpack.c.h.b16 %v1549
  %v1749 = vunpack.c.l.b16 %v1550
  %v1750 = vunpack.c.h.b16 %v1550
  %v1751 = vunpack.c.l.b16 %v1551
  %v1752 = vunpack.c.h.b16 %v1551
  %v1753 = vunpack.c.l.b16 %v1552
  %v1754 = vunpack.c.h.b16 %v1552
  %v1755 = vunpack.c.l.b16 %v1553
  %v1756 = vunpack.c.h.b16 %v1553
  %v1757 = vunpack.c.l.b16 %v1554
  %v1758 = vunpack.c.h.b16 %v1554
  %v1759 = vunpack.c.l.b16 %v1555
  %v1760 = vunpack.c.h.b16 %v1555
  %v1761 = vunpack.c.l.b16 %v1556
  %v1762 = vunpack.c.h.b16 %v1556
  %v1763 = vunpack.c.l.b16 %v1557
  %v1764 = vunpack.c.h.b16 %v1557
  %v1765 = vunpack.c.l.b16 %v1558
  %v1766 = vunpack.c.h.b16 %v1558
  %v1767 = vunpack.c.l.b16 %v1559
  %v1768 = vunpack.c.h.b16 %v1559
  %v1769 = vunpack.c.l.b16 %v1560
  %v1770 = vunpack.c.h.b16 %v1560
  %v1771 = vunpack.c.l.b16 %v1561
  %v1772 = vunpack.c.h.b16 %v1561
  %v1773 = vunpack.c.l.b16 %v1562
  %v1774 = vunpack.c.h.b16 %v1562
  %v1775 = vunpack.c.l.b16 %v1563
  %v1776 = vunpack.c.h.b16 %v1563
  %v1777 = vunpack.c.l.b16 %v1564
  %v1778 = vunpack.c.h.b16 %v1564
  %v1779 = vunpack.c.l.b16 %v1565
  %v1780 = vunpack.c.h.b16 %v1565
  %v1781 = vunpack.c.l.b16 %v1566
  %v1782 = vunpack.c.h.b16 %v1566
  %v1783 = vunpack.c.l.b16 %v1567
  %v1784 = vunpack.c.h.b16 %v1567
  %v1785 = vunpack.c.l.b16 %v1568
  %v1786 = vunpack.c.h.b16 %v1568
  %v1787 = vunpack.c.l.b16 %v1569
  %v1788 = vunpack.c.h.b16 %v1569
  %v1789 = vunpack.c.l.b16 %v1570
  %v1790 = vunpack.c.h.b16 %v1570
  %v1791 = vunpack.c.l.b16 %v1571
  %v1792 = vunpack.c.h.b16 %v1571
  %v1793 = vunpack.c.l.b16 %v1572
  %v1794 = vunpack.c.h.b16 %v1572
  %v1795 = vunpack.c.l.b16 %v1573
  %v1796 = vunpack.c.h.b16 %v1573
  %v1797 = vunpack.c.l.b16 %v1574
  %v1798 = vunpack.c.h.b16 %v1574
  %v1799 = vunpack.c.l.b16 %v1575
  %v1800 = vunpack.c.h.b16 %v1575
  %v1801 = vunpack.c.l.b16 %v1576
  %v1802 = vunpack.c.h.b16 %v1576
  %v1803 = vunpack.c.l.b16 %v1577
  %v1804 = vunpack.c.h.b16 %v1577
  %v1805 = vunpack.c.l.b16 %v1578
  %v1806 = vunpack.c.h.b16 %v1578
  %v1807 = vunpack.c.l.b16 %v1579
  %v1808 = vunpack.c.h.b16 %v1579
  %v1809 = vunpack.c.l.b16 %v1580
  %v1810 = vunpack.c.h.b16 %v1580
  %v1811 = vunpack.c.l.b16 %v1581
  %v1812 = vunpack.c.h.b16 %v1581
  %v1813 = vunpack.c.l.b16 %v1582
  %v1814 = vunpack.c.h.b16 %v1582
  %v1815 = vunpack.c.l.b16 %v1583
  %v1816 = vunpack.c.h.b16 %v1583
  %v1817 = vunpack.c.l.b16 %v1584
  %v1818 = vunpack.c.h.b16 %v1584
  %v1819 = vunpack.c.l.b16 %v1585
  %v1820 = vunpack.c.h.b16 %v1585
  %v1821 = vunpack.c.l.b16 %v1586
  %v1822 = vunpack.c.h.b16 %v1586
  %v1823 = vunpack.c.l.b16 %v1587
  %v1824 = vunpack.c.h.b16 %v1587
  %v1825 = vunpack.c.l.b16 %v1588
  %v1826 = vunpack.c.h.b16 %v1588
  %v1827 = vunpack.c.l.b16 %v1589
  %v1828 = vunpack.c.h.b16 %v1589
  %v1829 = vunpack.c.l.b16 %v1590
  %v1830 = vunpack.c.h.b16 %v1590
  %v1831 = vunpack.c.l.b16 %v1591
  %v1832 = vunpack.c.h.b16 %v1591
  %v1833 = vunpack.c.l.b16 %v1592
  %v1834 = vunpack.c.h.b16 %v1592
  %v1835 = vunpack.c.l.b16 %v1593
  %v1836 = vunpack.c.h.b16 %v1593
  %v1837 = vunpack.c.l.b16 %v1594
  %v1838 = vunpack.c.h.b16 %v1594
  %v1839 = vunpack.c.l.b16 %v1595
  %v1840 = vunpack.c.h.b16 %v1595
  %v1841 = vunpack.c.l.b16 %v1596
  %v1842 = vunpack.c.h.b16 %v1596
  %v1843 = vunpack.c.l.b16 %v1597
  %v1844 = vunpack.c.h.b16 %v1597
  %v1845 = vunpack.c.l.b16 %v1598
  %v1846 = vunpack.c.h.b16 %v1598
  %v1847 = vunpack.c.l.b16 %v1599
  %v1848 = vunpack.c.h.b16 %v1599
  %v1849 = vunpack.c.l.b16 %v1600
  %v1850 = vunpack.c.h.b16 %v1600
  %v1851 = vunpack.c.l.b16 %v1601
  %v1852 = vunpack.c.h.b16 %v1601
  %v1853 = vunpack.c.l.b16 %v1602
  %v1854 = vunpack.c.h.b16 %v1602
  %v1855 = vunpack.c.l.b16 %v1603
  %v1856 = vunpack.c.h.b16 %v1603
  %v1857 = vunpack.c.l.b16 %v1604
  %v1858 = vunpack.c.h.b16 %v1604
  %v1859 = vunpack.c.l.b16 %v1605
  %v1860 = vunpack.c.h.b16 %v1605
  %v1861 = vunpack.c.l.b16 %v1606
  %v1862 = vunpack.c.h.b16 %v1606
  %v1863 = vunpack.c.l.b16 %v1607
  %v1864 = vunpack.c.h.b16 %v1607
  %v1865 = vunpack.c.l.b16 %v1608
  %v1866 = vunpack.c.h.b16 %v1608
  %v1867 = vunpack.c.l.b16 %v1609
  %v1868 = vunpack.c.h.b16 %v1609
  %v1869 = vunpack.c.l.b16 %v1610
  %v1870 = vunpack.c.h.b16 %v1610
  %v1871 = vunpack.c.l.b16 %v1611
  %v1872 = vunpack.c.h.b16 %v1611
  %v1873 = vunpack.c.l.b16 %v1612
  %v1874 = vunpack.c.h.b16 %v1612
  %v1875 = vunpack.c.l.b16 %v1613
  %v1876 = vunpack.c.h.b16 %v1613
  %v1877 = vunpack.c.l.b16 %v1614
  %v1878 = vunpack.c.h.b16 %v1614
  %v1879 = vpack.c.b16 %v1713, %v1711
  %v1880 = vpack.c.b16 %v1714, %v1712
  %v1881 = vpack.c.b16 %v1717, %v1715
  %v1882 = vpack.c.b16 %v1718, %v1716
  %v1883 = vpack.c.b16 %v1721, %v1719
  %v1884 = vpack.c.b16 %v1722, %v1720
  %v1885 = vpack.c.b16 %v1725, %v1723
  %v1886 = vpack.c.b16 %v1726, %v1724
  %v1887 = vpack.c.b16 %v1729, %v1727
  %v1888 = vpack.c.b16 %v1730, %v1728
  %v1889 = vpack.c.b16 %v1733, %v1731
  %v1890 = vpack.c.b16 %v1734, %v1732
  %v1891 = vpack.c.b16 %v1737, %v1735
  %v1892 = vpack.c.b16 %v1738, %v1736
  %v1893 = vpack.c.b16 %v1741, %v1739
  %v1894 = vpack.c.b16 %v1742, %v1740
  %v1895 = vpack.c.b16 %v1745, %v1743
  %v1896 = vpack.c.b16 %v1746, %v1744
  %v1897 = vpack.c.b16 %v1749, %v1747
  %v1898 = vpack.c.b16 %v1750, %v1748
  %v1899 = vpack.c.b16 %v1753, %v1751
  %v1900 = vpack.c.b16 %v1754, %v1752
  %v1901 = vpack.c.b16 %v1757, %v1755
  %v1902 = vpack.c.b16 %v1758, %v1756
  %v1903 = vpack.c.b16 %v1761, %v1759
  %v1904 = vpack.c.b16 %v1762, %v1760
  %v1905 = vpack.c.b16 %v1765, %v1763
  %v1906 = vpack.c.b16 %v1766, %v1764
  %v1907 = vpack.c.b16 %v1769, %v1767
  %v1908 = vpack.c.b16 %v1770, %v1768
  %v1909 = vpack.c.b16 %v1773, %v1771
  %v1910 = vpack.c.b16 %v1774, %v1772
  %v1911 = vpack.c.b16 %v1777, %v1775
  %v1912 = vpack.c.b16 %v1778, %v1776
  %v1913 = vpack.c.b16 %v1781, %v1779
  %v1914 = vpack.c.b16 %v1782, %v1780
  %v1915 = vpack.c.b16 %v1785, %v1783
  %v1916 = vpack.c.b16 %v1786, %v1784
  %v1917 = vpack.c.b16 %v1789, %v1787
  %v1918 = vpack.c.b16 %v1790, %v1788
  %v1919 = vpack.c.b16 %v1793, %v1791
  %v1920 = vpack.c.b16 %v1794, %v1792
  %v1921 = vpack.c.b16 %v1797, %v1795
  %v1922 = vpack.c.b16 %v1798, %v1796
  %v1923 = vpack.c.b16 %v1801, %v1799
  %v1924 = vpack.c.b16 %v1802, %v1800
  %v1925 = vpack.c.b16 %v1805, %v1803
  %v1926 = vpack.c.b16 %v1806, %v1804
  %v1927 = vpack.c.b16 %v1809, %v1807
  %v1928 = vpack.c.b16 %v1810, %v1808
  %v1929 = vpack.c.b16 %v1813, %v1811
  %v1930 = vpack.c.b16 %v1814, %v1812
  %v1931 = vpack.c.b16 %v1817, %v1815
  %v1932 = vpack.c.b16 %v1818, %v1816
  %v1933 = vpack.c.b16 %v1821, %v1819
  %v1934 = vpack.c.b16 %v1822, %v1820
  %v1935 = vpack.c.b16 %v1825, %v1823
  %v1936 = vpack.c.b16 %v1826, %v1824
  %v1937 = vpack.c.b16 %v1829, %v1827
  %v1938 = vpack.c.b16 %v1830, %v1828
  %v1939 = vpack.c.b16 %v1833, %v1831
  %v1940 = vpack.c.b16 %v1834, %v1832
  %v1941 = vpack.c.b16 %v1837, %v1835
  %v1942 = vpack.c.b16 %v1838, %v1836
  %v1943 = vpack.c.b16 %v1841, %v1839
  %v1944 = vpack.c.b16 %v1842, %v1840
  %v1945 = vpack.c.b16 %v1845, %v1843
  %v1946 = vpack.c.b16 %v1846, %v1844
  %v1947 = vpack.c.b16 %v1849, %v1847
  %v1948 = vpack.c.b16 %v1850, %v1848
  %v1949 = vpack.c.b16 %v1853, %v1851
  %v1950 = vpack.c.b16 %v1854, %v1852
  %v1951 = vpack.c.b16 %v1857, %v1855
  %v1952 = vpack.c.b16 %v1858, %v1856
  %v1953 = vpack.c.b16 %v1861, %v1859
  %v1954 = vpack.c.b16 %v1862, %v1860
  %v1955 = vpack.c.b16 %v1865, %v1863
  %v1956 = vpack.c.b16 %v1866, %v1864
  %v1957 = vpack.c.b16 %v1869, %v1867
  %v1958 = vpack.c.b16 %v1870, %v1868
  %v1959 = vpack.c.b16 %v1873, %v1871
  %v1960 = vpack.c.b16 %v1874, %v1872
  %v1961 = vpack.c.b16 %v1877, %v1875
  %v1962 = vpack.c.b16 %v1878, %v1876
  %vm2047 = vcmask 261120
  %v2049 = vsel %vm2047, %v1524, 0
  %v2052 = vsel %vm2047, %v1530, 0
  %2054 = vmatprep.subr.bf16.mxu0 %v1880
  %2055 = vmatpush1.bf16.msra.mxu0 %v1879
  %2056 = vmatprep.subr.bf16.mxu0 %v1882
  %2057 = vmatpush1.bf16.msra.mxu0 %v1881
  %2058 = vmatprep.subr.bf16.mxu0 %v1884
  %2059 = vmatpush1.bf16.msra.mxu0 %v1883
  %2060 = vmatprep.subr.bf16.mxu0 %v1886
  %2061 = vmatpush1.bf16.msra.mxu0 %v1885
  %2062 = vmatprep.subr.bf16.mxu0 %v1888
  %2063 = vmatpush1.bf16.msra.mxu0 %v1887
  %2064 = vmatprep.subr.bf16.mxu0 %v1890
  %2065 = vmatpush1.bf16.msra.mxu0 %v1889
  %2066 = vmatprep.subr.bf16.mxu0 %v1892
  %2067 = vmatpush1.bf16.msra.mxu0 %v1891
  %2068 = vmatprep.subr.bf16.mxu0 %v1894
  %2069 = vmatpush1.bf16.msra.mxu0 %v1893
  %2070 = vmatprep.subr.bf16.mxu0 %v1896
  %2071 = vmatpush1.bf16.msra.mxu0 %v1895
  %2072 = vmatprep.subr.bf16.mxu0 %v1898
  %2073 = vmatpush1.bf16.msra.mxu0 %v1897
  %2074 = vmatprep.subr.bf16.mxu0 %v1900
  %2075 = vmatpush1.bf16.msra.mxu0 %v1899
  %2076 = vmatprep.subr.bf16.mxu0 %v1902
  %2077 = vmatpush1.bf16.msra.mxu0 %v1901
  %2078 = vmatprep.subr.bf16.mxu0 %v1904
  %2079 = vmatpush1.bf16.msra.mxu0 %v1903
  %2080 = vmatprep.subr.bf16.mxu0 %v1906
  %2081 = vmatpush1.bf16.msra.mxu0 %v1905
  %2082 = vmatprep.subr.bf16.mxu0 %v1908
  %2083 = vmatpush1.bf16.msra.mxu0 %v1907
  %2084 = vmatprep.subr.bf16.mxu0 %v1910
  %2085 = vmatpush1.bf16.msra.mxu0 %v1909
  %2086 = vmatprep.mubr.bf16.mxu0 %v1520
  %2087 = vmatmul.mubr.bf16.gmra.mrb[0].mxu0 %v1519
  %v2088 = vpop.f32.mrb[0].mxu0
  %v2089 = vadd.f32 %v1620, %v2088
  %v2090 = vpop.f32.mrb[0].mxu0
  %v2091 = vadd.f32 %v1624, %v2090
  %v2092 = vpop.f32.mrb[0].mxu0
  %v2093 = vadd.f32 %v1620, %v2092
  %v2094 = vpop.f32.mrb[0].mxu0
  %v2095 = vadd.f32 %v1624, %v2094
  %2096 = vmatprep.mubr.bf16.mxu0 %v1526
  %2097 = vmatmul.mubr.bf16.gmra.mrb[0].mxu0 %v1525
  %v2098 = vpop.f32.mrb[0].mxu0
  %v2099 = vadd.f32 %v1620, %v2098
  %v2100 = vpop.f32.mrb[0].mxu0
  %v2101 = vadd.f32 %v1624, %v2100
  %v2102 = vpop.f32.mrb[0].mxu0
  %v2103 = vpop.f32.mrb[0].mxu0
  %2104 = vdwg.mxu0
  %2105 = vmatprep.subr.bf16.mxu0 %v1912
  %2106 = vmatpush1.bf16.msra.mxu0 %v1911
  %2107 = vmatprep.subr.bf16.mxu0 %v1914
  %2108 = vmatpush1.bf16.msra.mxu0 %v1913
  %2109 = vmatprep.subr.bf16.mxu0 %v1916
  %2110 = vmatpush1.bf16.msra.mxu0 %v1915
  %2111 = vmatprep.subr.bf16.mxu0 %v1918
  %2112 = vmatpush1.bf16.msra.mxu0 %v1917
  %2113 = vmatprep.subr.bf16.mxu0 %v1920
  %2114 = vmatpush1.bf16.msra.mxu0 %v1919
  %2115 = vmatprep.subr.bf16.mxu0 %v1922
  %2116 = vmatpush1.bf16.msra.mxu0 %v1921
  %2117 = vmatprep.subr.bf16.mxu0 %v1924
  %2118 = vmatpush1.bf16.msra.mxu0 %v1923
  %2119 = vmatprep.subr.bf16.mxu0 %v1926
  %2120 = vmatpush1.bf16.msra.mxu0 %v1925
  %2121 = vmatprep.subr.bf16.mxu0 %v1928
  %2122 = vmatpush1.bf16.msra.mxu0 %v1927
  %2123 = vmatprep.subr.bf16.mxu0 %v1930
  %2124 = vmatpush1.bf16.msra.mxu0 %v1929
  %2125 = vmatprep.subr.bf16.mxu0 %v1932
  %2126 = vmatpush1.bf16.msra.mxu0 %v1931
  %2127 = vmatprep.subr.bf16.mxu0 %v1934
  %2128 = vmatpush1.bf16.msra.mxu0 %v1933
  %2129 = vmatprep.subr.bf16.mxu0 %v1936
  %2130 = vmatpush1.bf16.msra.mxu0 %v1935
  %2131 = vmatprep.subr.bf16.mxu0 %v1938
  %2132 = vmatpush1.bf16.msra.mxu0 %v1937
  %2133 = vmatprep.subr.bf16.mxu0 %v1940
  %2134 = vmatpush1.bf16.msra.mxu0 %v1939
  %2135 = vmatprep.subr.bf16.mxu0 %v1942
  %2136 = vmatpush1.bf16.msra.mxu0 %v1941
  %2137 = vmatprep.mubr.bf16.mxu0 %v1522
  %2138 = vmatmul.mubr.bf16.gmra.mrb[0].mxu0 %v1521
  %v2139 = vpop.f32.mrb[0].mxu0
  %v2140 = vadd.f32 %v2089, %v2139
  %v2141 = vpop.f32.mrb[0].mxu0
  %v2142 = vadd.f32 %v2091, %v2141
  %v2143 = vpop.f32.mrb[0].mxu0
  %v2144 = vadd.f32 %v2093, %v2143
  %v2145 = vpop.f32.mrb[0].mxu0
  %v2146 = vadd.f32 %v2095, %v2145
  %2147 = vmatprep.mubr.bf16.mxu0 %v1528
  %2148 = vmatmul.mubr.bf16.gmra.mrb[0].mxu0 %v1527
  %v2149 = vpop.f32.mrb[0].mxu0
  %v2150 = vadd.f32 %v2099, %v2149
  %v2151 = vpop.f32.mrb[0].mxu0
  %v2152 = vadd.f32 %v2101, %v2151
  %v2153 = vpop.f32.mrb[0].mxu0
  %v2154 = vpop.f32.mrb[0].mxu0
  %2155 = vdwg.mxu0
  %2156 = vmatprep.subr.bf16.mxu0 %v1944
  %2157 = vmatpush1.bf16.msra.mxu0 %v1943
  %2158 = vmatprep.subr.bf16.mxu0 %v1946
  %2159 = vmatpush1.bf16.msra.mxu0 %v1945
  %2160 = vmatprep.subr.bf16.mxu0 %v1948
  %2161 = vmatpush1.bf16.msra.mxu0 %v1947
  %2162 = vmatprep.subr.bf16.mxu0 %v1950
  %2163 = vmatpush1.bf16.msra.mxu0 %v1949
  %2164 = vmatprep.subr.bf16.mxu0 %v1952
  %2165 = vmatpush1.bf16.msra.mxu0 %v1951
  %2166 = vmatprep.subr.bf16.mxu0 %v1954
  %2167 = vmatpush1.bf16.msra.mxu0 %v1953
  %2168 = vmatprep.subr.bf16.mxu0 %v1956
  %2169 = vmatpush1.bf16.msra.mxu0 %v1955
  %2170 = vmatprep.subr.bf16.mxu0 %v1958
  %2171 = vmatpush1.bf16.msra.mxu0 %v1957
  %2172 = vmatprep.subr.bf16.mxu0 %v1960
  %2173 = vmatpush1.bf16.msra.mxu0 %v1959
  %2174 = vmatprep.subr.bf16.mxu0 %v1962
  %2175 = vmatpush1.bf16.msra.mxu0 %v1961
  %2176 = vmatprep.subr.bf16.mxu0 0
  %2177 = vmatpush1.bf16.msra.mxu0 0
  %2178 = vmatprep.subr.bf16.mxu0 0
  %2179 = vmatpush1.bf16.msra.mxu0 0
  %2180 = vmatprep.subr.bf16.mxu0 0
  %2181 = vmatpush1.bf16.msra.mxu0 0
  %2182 = vmatprep.subr.bf16.mxu0 0
  %2183 = vmatpush1.bf16.msra.mxu0 0
  %2184 = vmatprep.subr.bf16.mxu0 0
  %2185 = vmatpush1.bf16.msra.mxu0 0
  %2186 = vmatprep.subr.bf16.mxu0 0
  %2187 = vmatpush1.bf16.msra.mxu0 0
  %2188 = vmatprep.mubr.bf16.mxu0 %v2049
  %2189 = vmatmul.mubr.bf16.gmra.mrb[0].mxu0 %v1523
  %v2190 = vpop.f32.mrb[0].mxu0
  %v2191 = vadd.f32 %v2140, %v2190
  %v2192 = vpop.f32.mrb[0].mxu0
  %v2193 = vadd.f32 %v2142, %v2192
  %v2194 = vpop.f32.mrb[0].mxu0
  %v2195 = vadd.f32 %v2144, %v2194
  %v2196 = vpop.f32.mrb[0].mxu0
  %v2197 = vadd.f32 %v2146, %v2196
  %2198 = vmatprep.mubr.bf16.mxu0 %v2052
  %2199 = vmatmul.mubr.bf16.gmra.mrb[0].mxu0 %v1529
  %v2200 = vpop.f32.mrb[0].mxu0
  %v2201 = vadd.f32 %v2150, %v2200
  %v2202 = vpop.f32.mrb[0].mxu0
  %v2203 = vadd.f32 %v2152, %v2202
  %v2204 = vpop.f32.mrb[0].mxu0
  %v2205 = vpop.f32.mrb[0].mxu0
  %2206 = vdwg.mxu0
  %v2209 = vrot.slane %v2191, 1
  %v2210 = vrot.slane %v2193, 1
  %2211 = vrot.lane.b32.xlu0 %v2209, 64
  %v2212 = vpop.permute.xlu0 %2211
  %2213 = vrot.lane.b32.xlu0 %v2210, 64
  %v2214 = vpop.permute.xlu0 %2213
  %v2215 = vsel %vm1390, %v2212, %v2214
  %v2218 = vrot.slane %v2191, 2
  %v2219 = vrot.slane %v2193, 2
  %v2222 = vsel %vm1390, %v2193, %v2212
  %v2225 = vrot.slane %v2195, 1
  %v2226 = vsel %vm41, %v2209, %v2225
  %v2227 = vrot.slane %v2197, 1
  %v2228 = vsel %vm41, %v2210, %v2227
  %2229 = vrot.lane.b32.xlu0 %v2226, 64
  %v2230 = vpop.permute.xlu0 %2229
  %2231 = vrot.lane.b32.xlu0 %v2228, 64
  %v2232 = vpop.permute.xlu0 %2231
  %2233 = vrot.lane.b32.xlu0 %v2225, 64
  %v2234 = vpop.permute.xlu0 %2233
  %2235 = vrot.lane.b32.xlu0 %v2227, 64
  %v2236 = vpop.permute.xlu0 %2235
  %v2237 = vsel %vm1390, %v2230, %v2232
  %v2238 = vsel %vm1390, %v2234, %v2236
  %v2241 = vrot.slane %v2195, 2
  %v2242 = vrot.slane %v2197, 2
  %v2243 = vsel %vm1390, %v2193, %v2230
  %v2244 = vsel %vm1390, %v2197, %v2234
  %v2247 = vrot.slane %v2201, 1
  %v2248 = vsel %vm41, %v2225, %v2247
  %v2249 = vrot.slane %v2203, 1
  %v2250 = vsel %vm41, %v2227, %v2249
  %2251 = vrot.lane.b32.xlu0 %v2248, 64
  %v2252 = vpop.permute.xlu0 %2251
  %2253 = vrot.lane.b32.xlu0 %v2250, 64
  %v2254 = vpop.permute.xlu0 %2253
  %v2255 = vsel %vm1390, %v2252, %v2254
  %v2257 = vrot.slane %v2201, 2
  %v2258 = vsel %vm51, %v2241, %v2257
  %v2259 = vrot.slane %v2203, 2
  %v2260 = vsel %vm51, %v2242, %v2259
  %v2261 = vsel %vm1390, %v2197, %v2252
  %2262 = vrot.lane.b32.xlu0 %v2247, 64
  %v2263 = vpop.permute.xlu0 %2262
  %2264 = vrot.lane.b32.xlu0 %v2249, 64
  %v2265 = vpop.permute.xlu0 %2264
  %v2266 = vsel %vm1390, %v2263, %v2265
  %v2268 = vsel %vm1390, %v2203, %v2263
  %v2271 = vsel %vm51, %v2218, %v2241
  %v2272 = vrot.slane %v2243, 2
  %v2273 = vrot.slane %v2244, 2
  %v2274 = vsel %vm51, %v2272, %v2273
  %v2275 = vrot.slane %v2237, 2
  %v2276 = vrot.slane %v2238, 2
  %v2277 = vsel %vm51, %v2275, %v2276
  %v2278 = vrot.slane %v2241, 2
  %v2279 = vsel %vm51, %v2278, %v2278
  %v2280 = vrot.slane %v2242, 2
  %v2281 = vsel %vm51, %v2280, %v2280
  %v2288 = vrot.slane %v2195, 4
  %v2289 = vrot.slane %v2261, 4
  %v2290 = vrot.slane %v2255, 4
  %v2291 = vrot.slane %v2258, 4
  %v2292 = vrot.slane %v2260, 4
  %v2299 = vrot.slane %v2201, 6
  %v2300 = vrot.slane %v2268, 6
  %v2301 = vrot.slane %v2266, 6
  %v2302 = vrot.slane %v2257, 6
  %v2303 = vrot.slane %v2259, 6
  %v2309 = vsel %vm147, %v2191, %v2271
  %v2310 = vsel %vm147, %v2222, %v2274
  %v2311 = vsel %vm147, %v2215, %v2277
  %v2312 = vsel %vm147, %v2218, %v2279
  %v2313 = vsel %vm147, %v2219, %v2281
  %v2314 = vsel %vm147, %v2288, %v2299
  %v2315 = vsel %vm147, %v2289, %v2300
  %v2316 = vsel %vm147, %v2290, %v2301
  %v2317 = vsel %vm147, %v2291, %v2302
  %v2318 = vsel %vm147, %v2292, %v2303
  %v2319 = vpack.c.bf16 %v2314, %v2309
  %v2320 = vpack.c.bf16 %v2315, %v2310
  %v2321 = vpack.c.bf16 %v2316, %v2311
  %v2322 = vpack.c.bf16 %v2317, %v2312
  %v2323 = vpack.c.bf16 %v2318, %v2313
  %v2324 = vld [vmem:[%s7] sm:$0xf]
  %v2325 = vld [vmem:[%s7 + $0x4] sm:$0xf]
  %v2326 = vld [vmem:[%s7 + $0x8] sm:$0xf]
  %v2327 = vld [vmem:[%s7 + $0xc] sm:$0xf]
  %v2328 = vld [vmem:[%s7 + $0x10] sm:$0xf]
  %v2329 = vld [vmem:[%s7 + $0x14] sm:$0xf]
  %v2330 = vld [vmem:[%s7 + $0x18] sm:$0xf]
  %v2331 = vld [vmem:[%s7 + $0x1c] sm:$0xf]
  %v2332 = vld [vmem:[%s7 + $0x20] sm:$0xf]
  %v2333 = vld [vmem:[%s7 + $0x24] sm:$0xf]
  %v2334 = vld [vmem:[%s7 + $0x28] sm:$0xf]
  %v2335 = vld [vmem:[%s7 + $0x2c] sm:$0xf]
  %v2336 = vld [vmem:[%s7 + $0x30] sm:$0xf]
  %v2337 = vld [vmem:[%s7 + $0x34] sm:$0xf]
  %v2338 = vld [vmem:[%s7 + $0x38] sm:$0xf]
  %v2339 = vld [vmem:[%s7 + $0x3c] sm:$0xf]
  %v2340 = vld [vmem:[%s7 + $0x40] sm:$0xf]
  %v2341 = vld [vmem:[%s7 + $0x44] sm:$0xf]
  %v2342 = vld [vmem:[%s7 + $0x48] sm:$0xf]
  %v2343 = vld [vmem:[%s7 + $0x4c] sm:$0xf]
  %v2344 = vld [vmem:[%s7 + $0x50] sm:$0xf]
  %v2345 = vld [vmem:[%s7 + $0x54] sm:$0xf]
  %v2346 = vld [vmem:[%s7 + $0x58] sm:$0xf]
  %v2347 = vld [vmem:[%s7 + $0x5c] sm:$0xf]
  %v2348 = vld [vmem:[%s7 + $0x60] sm:$0xf]
  %v2349 = vld [vmem:[%s7 + $0x64] sm:$0xf]
  %v2350 = vld [vmem:[%s7 + $0x68] sm:$0xf]
  %v2351 = vld [vmem:[%s7 + $0x6c] sm:$0xf]
  %v2352 = vld [vmem:[%s7 + $0x70] sm:$0xf]
  %v2353 = vld [vmem:[%s7 + $0x74] sm:$0xf]
  %v2354 = vld [vmem:[%s7 + $0x78] sm:$0xf]
  %v2355 = vld [vmem:[%s7 + $0x7c] sm:$0xf]
  %v2356 = vld [vmem:[%s7 + $0x80] sm:$0xf]
  %v2357 = vld [vmem:[%s7 + $0x84] sm:$0xf]
  %v2358 = vld [vmem:[%s7 + $0x88] sm:$0xf]
  %v2359 = vld [vmem:[%s7 + $0x8c] sm:$0xf]
  %v2360 = vld [vmem:[%s7 + $0x90] sm:$0xf]
  %v2361 = vld [vmem:[%s7 + $0x94] sm:$0xf]
  %v2362 = vld [vmem:[%s7 + $0x98] sm:$0xf]
  %v2363 = vld [vmem:[%s7 + $0x9c] sm:$0xf]
  %v2364 = vld [vmem:[%s7 + $0xa0] sm:$0xf]
  %v2365 = vld [vmem:[%s7 + $0xa4] sm:$0xf]
  %v2366 = vld [vmem:[%s7 + $0xa8] sm:$0xf]
  %v2367 = vld [vmem:[%s7 + $0xac] sm:$0xf]
  %v2368 = vld [vmem:[%s7 + $0xb0] sm:$0xf]
  %v2369 = vld [vmem:[%s7 + $0xb4] sm:$0xf]
  %v2370 = vld [vmem:[%s7 + $0xb8] sm:$0xf]
  %v2371 = vld [vmem:[%s7 + $0xbc] sm:$0xf]
  %v2372 = vld [vmem:[%s7 + $0xc0] sm:$0xf]
  %v2373 = vld [vmem:[%s7 + $0xc4] sm:$0xf]
  %v2374 = vld [vmem:[%s7 + $0xc8] sm:$0xf]
  %v2375 = vld [vmem:[%s7 + $0xcc] sm:$0xf]
  %v2376 = vld [vmem:[%s7 + $0xd0] sm:$0xf]
  %v2377 = vld [vmem:[%s7 + $0xd4] sm:$0xf]
  %v2378 = vld [vmem:[%s7 + $0xd8] sm:$0xf]
  %v2379 = vld [vmem:[%s7 + $0xdc] sm:$0xf]
  %v2380 = vld [vmem:[%s7 + $0xe0] sm:$0xf]
  %v2381 = vld [vmem:[%s7 + $0xe4] sm:$0xf]
  %v2382 = vld [vmem:[%s7 + $0xe8] sm:$0xf]
  %v2383 = vld [vmem:[%s7 + $0xec] sm:$0xf]
  %v2384 = vld [vmem:[%s7 + $0xf0] sm:$0xf]
  %v2385 = vld [vmem:[%s7 + $0xf4] sm:$0xf]
  %v2386 = vld [vmem:[%s7 + $0xf8] sm:$0xf]
  %v2387 = vld [vmem:[%s7 + $0xfc] sm:$0xf]
  %v2388 = vld [vmem:[%s7 + $0x100] sm:$0xf]
  %v2389 = vld [vmem:[%s7 + $0x104] sm:$0xf]
  %v2390 = vld [vmem:[%s7 + $0x108] sm:$0xf]
  %v2391 = vld [vmem:[%s7 + $0x10c] sm:$0xf]
  %v2392 = vld [vmem:[%s7 + $0x110] sm:$0xf]
  %v2393 = vld [vmem:[%s7 + $0x114] sm:$0xf]
  %v2394 = vld [vmem:[%s7 + $0x118] sm:$0xf]
  %v2395 = vld [vmem:[%s7 + $0x11c] sm:$0xf]
  %v2396 = vld [vmem:[%s8] sm:$0x1]
  %v2398 = vlaneseq
  %v2399 = vshrl.u32 %v2398, 7
  %v2400 = vsub.s32 0, %v2399
  %v2401 = vrot.slane %v2396, %v2400
  %v2475 = vunpack.c.l.b16 %v2324
  %v2476 = vunpack.c.l.b16 %v2325
  %v2477 = vunpack.c.l.b16 %v2326
  %v2478 = vunpack.c.l.b16 %v2327
  %v2479 = vunpack.c.l.b16 %v2328
  %v2480 = vunpack.c.l.b16 %v2329
  %v2481 = vunpack.c.l.b16 %v2330
  %v2482 = vunpack.c.l.b16 %v2331
  %v2483 = vunpack.c.l.b16 %v2332
  %v2484 = vunpack.c.l.b16 %v2333
  %v2485 = vunpack.c.l.b16 %v2334
  %v2486 = vunpack.c.l.b16 %v2335
  %v2487 = vunpack.c.l.b16 %v2336
  %v2488 = vunpack.c.l.b16 %v2337
  %v2489 = vunpack.c.l.b16 %v2338
  %v2490 = vunpack.c.l.b16 %v2339
  %v2491 = vunpack.c.l.b16 %v2340
  %v2492 = vunpack.c.l.b16 %v2341
  %v2493 = vunpack.c.l.b16 %v2342
  %v2494 = vunpack.c.l.b16 %v2343
  %v2495 = vunpack.c.l.b16 %v2344
  %v2496 = vunpack.c.l.b16 %v2345
  %v2497 = vunpack.c.l.b16 %v2346
  %v2498 = vunpack.c.l.b16 %v2347
  %v2499 = vunpack.c.l.b16 %v2348
  %v2500 = vunpack.c.l.b16 %v2349
  %v2501 = vunpack.c.l.b16 %v2350
  %v2502 = vunpack.c.l.b16 %v2351
  %v2503 = vunpack.c.l.b16 %v2352
  %v2504 = vunpack.c.l.b16 %v2353
  %v2505 = vunpack.c.l.b16 %v2354
  %v2506 = vunpack.c.l.b16 %v2355
  %v2507 = vunpack.c.l.b16 %v2356
  %v2508 = vunpack.c.l.b16 %v2357
  %v2509 = vunpack.c.l.b16 %v2358
  %v2510 = vunpack.c.l.b16 %v2359
  %v2511 = vunpack.c.l.b16 %v2360
  %v2512 = vunpack.c.l.b16 %v2361
  %v2513 = vunpack.c.l.b16 %v2362
  %v2514 = vunpack.c.l.b16 %v2363
  %v2515 = vunpack.c.l.b16 %v2364
  %v2516 = vunpack.c.l.b16 %v2365
  %v2517 = vunpack.c.l.b16 %v2366
  %v2518 = vunpack.c.l.b16 %v2367
  %v2519 = vunpack.c.l.b16 %v2368
  %v2520 = vunpack.c.l.b16 %v2369
  %v2521 = vunpack.c.l.b16 %v2370
  %v2522 = vunpack.c.l.b16 %v2371
  %v2523 = vunpack.c.l.b16 %v2372
  %v2524 = vunpack.c.l.b16 %v2373
  %v2525 = vunpack.c.l.b16 %v2374
  %v2526 = vunpack.c.l.b16 %v2375
  %v2527 = vunpack.c.l.b16 %v2376
  %v2528 = vunpack.c.l.b16 %v2377
  %v2529 = vunpack.c.l.b16 %v2378
  %v2530 = vunpack.c.l.b16 %v2379
  %v2531 = vunpack.c.l.b16 %v2380
  %v2532 = vunpack.c.l.b16 %v2381
  %v2533 = vunpack.c.l.b16 %v2382
  %v2534 = vunpack.c.l.b16 %v2383
  %v2535 = vunpack.c.l.b16 %v2384
  %v2536 = vunpack.c.l.b16 %v2385
  %v2537 = vunpack.c.l.b16 %v2386
  %v2538 = vunpack.c.l.b16 %v2387
  %v2539 = vunpack.c.l.b16 %v2388
  %v2540 = vunpack.c.l.b16 %v2389
  %v2541 = vunpack.c.l.b16 %v2390
  %v2542 = vunpack.c.l.b16 %v2391
  %v2543 = vunpack.c.l.b16 %v2392
  %v2544 = vunpack.c.l.b16 %v2393
  %v2545 = vunpack.c.l.b16 %v2394
  %v2546 = vunpack.c.l.b16 %v2395
  %v2547 = vpack.c.b16 %v2476, %v2475
  %v2548 = vpack.c.b16 %v2478, %v2477
  %v2549 = vpack.c.b16 %v2480, %v2479
  %v2550 = vpack.c.b16 %v2482, %v2481
  %v2551 = vpack.c.b16 %v2484, %v2483
  %v2552 = vpack.c.b16 %v2486, %v2485
  %v2553 = vpack.c.b16 %v2488, %v2487
  %v2554 = vpack.c.b16 %v2490, %v2489
  %v2555 = vpack.c.b16 %v2492, %v2491
  %v2556 = vpack.c.b16 %v2494, %v2493
  %v2557 = vpack.c.b16 %v2496, %v2495
  %v2558 = vpack.c.b16 %v2498, %v2497
  %v2559 = vpack.c.b16 %v2500, %v2499
  %v2560 = vpack.c.b16 %v2502, %v2501
  %v2561 = vpack.c.b16 %v2504, %v2503
  %v2562 = vpack.c.b16 %v2506, %v2505
  %v2563 = vpack.c.b16 %v2508, %v2507
  %v2564 = vpack.c.b16 %v2510, %v2509
  %v2565 = vpack.c.b16 %v2512, %v2511
  %v2566 = vpack.c.b16 %v2514, %v2513
  %v2567 = vpack.c.b16 %v2516, %v2515
  %v2568 = vpack.c.b16 %v2518, %v2517
  %v2569 = vpack.c.b16 %v2520, %v2519
  %v2570 = vpack.c.b16 %v2522, %v2521
  %v2571 = vpack.c.b16 %v2524, %v2523
  %v2572 = vpack.c.b16 %v2526, %v2525
  %v2573 = vpack.c.b16 %v2528, %v2527
  %v2574 = vpack.c.b16 %v2530, %v2529
  %v2575 = vpack.c.b16 %v2532, %v2531
  %v2576 = vpack.c.b16 %v2534, %v2533
  %v2577 = vpack.c.b16 %v2536, %v2535
  %v2578 = vpack.c.b16 %v2538, %v2537
  %v2579 = vpack.c.b16 %v2540, %v2539
  %v2580 = vpack.c.b16 %v2542, %v2541
  %v2581 = vpack.c.b16 %v2544, %v2543
  %v2582 = vpack.c.b16 %v2546, %v2545
  %v2620 = vsel %vm1390, %v2323, 0
  %2622 = vmatprep.subr.bf16.mxu0 0
  %2623 = vmatpush1.bf16.msra.mxu0 %v2547
  %2624 = vmatprep.subr.bf16.mxu0 0
  %2625 = vmatpush1.bf16.msra.mxu0 %v2548
  %2626 = vmatprep.subr.bf16.mxu0 0
  %2627 = vmatpush1.bf16.msra.mxu0 %v2549
  %2628 = vmatprep.subr.bf16.mxu0 0
  %2629 = vmatpush1.bf16.msra.mxu0 %v2550
  %2630 = vmatprep.subr.bf16.mxu0 0
  %2631 = vmatpush1.bf16.msra.mxu0 %v2551
  %2632 = vmatprep.subr.bf16.mxu0 0
  %2633 = vmatpush1.bf16.msra.mxu0 %v2552
  %2634 = vmatprep.subr.bf16.mxu0 0
  %2635 = vmatpush1.bf16.msra.mxu0 %v2553
  %2636 = vmatprep.subr.bf16.mxu0 0
  %2637 = vmatpush1.bf16.msra.mxu0 %v2554
  %2638 = vmatprep.subr.bf16.mxu0 0
  %2639 = vmatpush1.bf16.msra.mxu0 %v2555
  %2640 = vmatprep.subr.bf16.mxu0 0
  %2641 = vmatpush1.bf16.msra.mxu0 %v2556
  %2642 = vmatprep.subr.bf16.mxu0 0
  %2643 = vmatpush1.bf16.msra.mxu0 %v2557
  %2644 = vmatprep.subr.bf16.mxu0 0
  %2645 = vmatpush1.bf16.msra.mxu0 %v2558
  %2646 = vmatprep.subr.bf16.mxu0 0
  %2647 = vmatpush1.bf16.msra.mxu0 %v2559
  %2648 = vmatprep.subr.bf16.mxu0 0
  %2649 = vmatpush1.bf16.msra.mxu0 %v2560
  %2650 = vmatprep.subr.bf16.mxu0 0
  %2651 = vmatpush1.bf16.msra.mxu0 %v2561
  %2652 = vmatprep.subr.bf16.mxu0 0
  %2653 = vmatpush1.bf16.msra.mxu0 %v2562
  %2654 = vmatprep.mubr.bf16.mxu0 %v2320
  %2655 = vmatmul.mubr.bf16.gmra.mrb[0].mxu0 %v2319
  %v2656 = vpop.f32.mrb[0].mxu0
  %v2657 = vadd.f32 %v2401, %v2656
  %v2658 = vpop.f32.mrb[0].mxu0
  %v2659 = vpop.f32.mrb[0].mxu0
  %v2660 = vadd.f32 %v2401, %v2659
  %v2661 = vpop.f32.mrb[0].mxu0
  %2662 = vdwg.mxu0
  %2663 = vmatprep.subr.bf16.mxu0 0
  %2664 = vmatpush1.bf16.msra.mxu0 %v2563
  %2665 = vmatprep.subr.bf16.mxu0 0
  %2666 = vmatpush1.bf16.msra.mxu0 %v2564
  %2667 = vmatprep.subr.bf16.mxu0 0
  %2668 = vmatpush1.bf16.msra.mxu0 %v2565
  %2669 = vmatprep.subr.bf16.mxu0 0
  %2670 = vmatpush1.bf16.msra.mxu0 %v2566
  %2671 = vmatprep.subr.bf16.mxu0 0
  %2672 = vmatpush1.bf16.msra.mxu0 %v2567
  %2673 = vmatprep.subr.bf16.mxu0 0
  %2674 = vmatpush1.bf16.msra.mxu0 %v2568
  %2675 = vmatprep.subr.bf16.mxu0 0
  %2676 = vmatpush1.bf16.msra.mxu0 %v2569
  %2677 = vmatprep.subr.bf16.mxu0 0
  %2678 = vmatpush1.bf16.msra.mxu0 %v2570
  %2679 = vmatprep.subr.bf16.mxu0 0
  %2680 = vmatpush1.bf16.msra.mxu0 %v2571
  %2681 = vmatprep.subr.bf16.mxu0 0
  %2682 = vmatpush1.bf16.msra.mxu0 %v2572
  %2683 = vmatprep.subr.bf16.mxu0 0
  %2684 = vmatpush1.bf16.msra.mxu0 %v2573
  %2685 = vmatprep.subr.bf16.mxu0 0
  %2686 = vmatpush1.bf16.msra.mxu0 %v2574
  %2687 = vmatprep.subr.bf16.mxu0 0
  %2688 = vmatpush1.bf16.msra.mxu0 %v2575
  %2689 = vmatprep.subr.bf16.mxu0 0
  %2690 = vmatpush1.bf16.msra.mxu0 %v2576
  %2691 = vmatprep.subr.bf16.mxu0 0
  %2692 = vmatpush1.bf16.msra.mxu0 %v2577
  %2693 = vmatprep.subr.bf16.mxu0 0
  %2694 = vmatpush1.bf16.msra.mxu0 %v2578
  %2695 = vmatprep.mubr.bf16.mxu0 %v2322
  %2696 = vmatmul.mubr.bf16.gmra.mrb[0].mxu0 %v2321
  %v2697 = vpop.f32.mrb[0].mxu0
  %v2698 = vadd.f32 %v2657, %v2697
  %v2699 = vpop.f32.mrb[0].mxu0
  %v2700 = vpop.f32.mrb[0].mxu0
  %v2701 = vadd.f32 %v2660, %v2700
  %v2702 = vpop.f32.mrb[0].mxu0
  %2703 = vdwg.mxu0
  %2704 = vmatprep.subr.bf16.mxu0 0
  %2705 = vmatpush1.bf16.msra.mxu0 %v2579
  %2706 = vmatprep.subr.bf16.mxu0 0
  %2707 = vmatpush1.bf16.msra.mxu0 %v2580
  %2708 = vmatprep.subr.bf16.mxu0 0
  %2709 = vmatpush1.bf16.msra.mxu0 %v2581
  %2710 = vmatprep.subr.bf16.mxu0 0
  %2711 = vmatpush1.bf16.msra.mxu0 %v2582
  %2712 = vmatprep.subr.bf16.mxu0 0
  %2713 = vmatpush1.bf16.msra.mxu0 0
  %2714 = vmatprep.subr.bf16.mxu0 0
  %2715 = vmatpush1.bf16.msra.mxu0 0
  %2716 = vmatprep.subr.bf16.mxu0 0
  %2717 = vmatpush1.bf16.msra.mxu0 0
  %2718 = vmatprep.subr.bf16.mxu0 0
  %2719 = vmatpush1.bf16.msra.mxu0 0
  %2720 = vmatprep.subr.bf16.mxu0 0
  %2721 = vmatpush1.bf16.msra.mxu0 0
  %2722 = vmatprep.subr.bf16.mxu0 0
  %2723 = vmatpush1.bf16.msra.mxu0 0
  %2724 = vmatprep.subr.bf16.mxu0 0
  %2725 = vmatpush1.bf16.msra.mxu0 0
  %2726 = vmatprep.subr.bf16.mxu0 0
  %2727 = vmatpush1.bf16.msra.mxu0 0
  %2728 = vmatprep.subr.bf16.mxu0 0
  %2729 = vmatpush1.bf16.msra.mxu0 0
  %2730 = vmatprep.subr.bf16.mxu0 0
  %2731 = vmatpush1.bf16.msra.mxu0 0
  %2732 = vmatprep.subr.bf16.mxu0 0
  %2733 = vmatpush1.bf16.msra.mxu0 0
  %2734 = vmatprep.subr.bf16.mxu0 0
  %2735 = vmatpush1.bf16.msra.mxu0 0
  %2736 = vmatprep.mubr.bf16.mxu0 0
  %2737 = vmatmul.mubr.bf16.gmra.mrb[0].mxu0 %v2620
  %v2738 = vpop.f32.mrb[0].mxu0
  %v2739 = vadd.f32 %v2698, %v2738
  %v2740 = vpop.f32.mrb[0].mxu0
  %v2741 = vpop.f32.mrb[0].mxu0
  %v2742 = vadd.f32 %v2701, %v2741
  %v2743 = vpop.f32.mrb[0].mxu0
  %2744 = vdwg.mxu0
  %v2745 = vpack.c.bf16 %v2742, %v2739
  %v2747 = vunpack.c.l.b16 %v2745
  %v2748 = vunpack.c.h.b16 %v2745
  %v2749 = vpack.c.b16 %v2747, %v2747
  %v2750 = vpack.c.b16 %v2748, %v2748
  %2753 = vst [vmem:[%s9] sm:$0xf] %v2749
  %2754 = vst [vmem:[%s9 + $0x4] sm:$0xf] %v2750
  // Predicated region
  $region38: #{crn_net_forward.3} parent=0 // pred_check
    _
  $region39: #{crn_net_forward.3} parent=0 // pred_check_branch
    %2756 = sbr.rel (0) target = $region41
  $region40: #{crn_net_forward.3} parent=0 // pred_region
    _
  $region41: #{crn_net_forward.3} parent=0 // pred_fallthru
    _
  // Predicated region
  $region42: #{crn_net_forward.3} parent=0 // pred_check
    _
  $region43: #{crn_net_forward.3} parent=0 // pred_check_branch
    %2758 = sbr.rel (0) target = $region45
  $region44: #{crn_net_forward.3} parent=0 // pred_region
    _
  $region45: #{crn_net_forward.3} parent=0 // pred_fallthru
    _

// kernel: crn_net_forward.4
$region0: #{crn_net_forward.4}
  #allocation0 [shape = 'u32[]', space=smem, size = 0x4, offset = 0x4, fixed_abs, tag = 'smem constant byte address 0x4 - core index']
  #allocation1 [shape = 'u32[144,128]{1,0:T(1,128)}', space=vmem, size = 0x12000, scoped, tag = 'internal scratch']
  #allocation2 [shape = 'f32[4,4,384]{2,1,0:T(4,128)}', space=vmem, size = 0x6000, scoped, tag = 'scratch operand']
  %s0 = inlined_call_operand.vmem [shape: bf16[16,128], index: 0, kind: input, shape index: {}]
  %s1 = inlined_call_operand.vmem [shape: bf16[128,384], index: 1, kind: input, shape index: {}]
  %s2 = inlined_call_operand.vmem [shape: f32[1,384], index: 2, kind: input, shape index: {}]
  %s3 = inlined_call_operand.vmem [shape: bf16[256,1152], index: 3, kind: input, shape index: {}]
  %s4 = inlined_call_operand.vmem [shape: f32[1,1152], index: 4, kind: input, shape index: {}]
  %s5 = inlined_call_operand.vmem [shape: bf16[4,4,128], index: 5, kind: output, shape index: {}]
  %s6 = sld [smem:[#allocation0]]
  $region30: #{crn_net_forward.4} parent=0
    _
  %s8 = ssub.s32 1, %s6
  %s9 = scalar_select 0, %s8, %s6
  // Predicated region
  $region2: #{crn_net_forward.4} parent=0 // pred_check
    _
  $region3: #{crn_net_forward.4} parent=0 // pred_check_branch
    %11 = sbr.rel (0) target = $region5
  $region4: #{crn_net_forward.4} parent=0 // pred_region
    _
  $region5: #{crn_net_forward.4} parent=0 // pred_fallthru
    _
  // Predicated region
  $region6: #{crn_net_forward.4} parent=0 // pred_check
    _
  $region7: #{crn_net_forward.4} parent=0 // pred_check_branch
    %13 = sbr.rel (0) target = $region9
  $region8: #{crn_net_forward.4} parent=0 // pred_region
    _
  $region9: #{crn_net_forward.4} parent=0 // pred_fallthru
    _
  // Predicated region
  $region10: #{crn_net_forward.4} parent=0 // pred_check
    _
  $region11: #{crn_net_forward.4} parent=0 // pred_check_branch
    %15 = sbr.rel (0) target = $region13
  $region12: #{crn_net_forward.4} parent=0 // pred_region
    _
  $region13: #{crn_net_forward.4} parent=0 // pred_fallthru
    _
  // Predicated region
  $region14: #{crn_net_forward.4} parent=0 // pred_check
    _
  $region15: #{crn_net_forward.4} parent=0 // pred_check_branch
    %17 = sbr.rel (0) target = $region17
  $region16: #{crn_net_forward.4} parent=0 // pred_region
    _
  $region17: #{crn_net_forward.4} parent=0 // pred_fallthru
    _
  // Predicated region
  $region18: #{crn_net_forward.4} parent=0 // pred_check
    _
  $region19: #{crn_net_forward.4} parent=0 // pred_check_branch
    %19 = sbr.rel (0) target = $region21
  $region20: #{crn_net_forward.4} parent=0 // pred_region
    _
  $region21: #{crn_net_forward.4} parent=0 // pred_fallthru
    _
  %v21 = vld [vmem:[%s0] sm:$0xf]
  %v22 = vld [vmem:[%s0 + $0x4] sm:$0xf]
  %v23 = vld [vmem:[%s1] sm:$0xff]
  %v24 = vld [vmem:[%s1 + $0x8] sm:$0xf]
  %v25 = vld [vmem:[%s1 + $0xc] sm:$0xff]
  %v26 = vld [vmem:[%s1 + $0x14] sm:$0xf]
  %v27 = vld [vmem:[%s1 + $0x18] sm:$0xff]
  %v28 = vld [vmem:[%s1 + $0x20] sm:$0xf]
  %v29 = vld [vmem:[%s1 + $0x24] sm:$0xff]
  %v30 = vld [vmem:[%s1 + $0x2c] sm:$0xf]
  %v31 = vld [vmem:[%s1 + $0x30] sm:$0xff]
  %v32 = vld [vmem:[%s1 + $0x38] sm:$0xf]
  %v33 = vld [vmem:[%s1 + $0x3c] sm:$0xff]
  %v34 = vld [vmem:[%s1 + $0x44] sm:$0xf]
  %v35 = vld [vmem:[%s1 + $0x48] sm:$0xff]
  %v36 = vld [vmem:[%s1 + $0x50] sm:$0xf]
  %v37 = vld [vmem:[%s1 + $0x54] sm:$0xff]
  %v38 = vld [vmem:[%s1 + $0x5c] sm:$0xf]
  %v39 = vld [vmem:[%s1 + $0x60] sm:$0xff]
  %v40 = vld [vmem:[%s1 + $0x68] sm:$0xf]
  %v41 = vld [vmem:[%s1 + $0x6c] sm:$0xff]
  %v42 = vld [vmem:[%s1 + $0x74] sm:$0xf]
  %v43 = vld [vmem:[%s1 + $0x78] sm:$0xff]
  %v44 = vld [vmem:[%s1 + $0x80] sm:$0xf]
  %v45 = vld [vmem:[%s1 + $0x84] sm:$0xff]
  %v46 = vld [vmem:[%s1 + $0x8c] sm:$0xf]
  %v47 = vld [vmem:[%s1 + $0x90] sm:$0xff]
  %v48 = vld [vmem:[%s1 + $0x98] sm:$0xf]
  %v49 = vld [vmem:[%s1 + $0x9c] sm:$0xff]
  %v50 = vld [vmem:[%s1 + $0xa4] sm:$0xf]
  %v51 = vld [vmem:[%s1 + $0xa8] sm:$0xff]
  %v52 = vld [vmem:[%s1 + $0xb0] sm:$0xf]
  %v53 = vld [vmem:[%s1 + $0xb4] sm:$0xff]
  %v54 = vld [vmem:[%s1 + $0xbc] sm:$0xf]
  %v55 = vld [vmem:[%s2] sm:$0x7]
  %v57 = vlaneseq
  %v58 = vshrl.u32 %v57, 7
  %v59 = vsub.s32 0, %v58
  %v60 = vrot.slane %v55, %v59
  %v61 = vlaneseq
  %v62 = vshrl.u32 %v61, 7
  %v63 = vsub.s32 1, %v62
  %v64 = vrot.slane %v55, %v63
  %v65 = vlaneseq
  %v66 = vshrl.u32 %v65, 7
  %v67 = vsub.s32 2, %v66
  %v68 = vrot.slane %v55, %v67
  %v74 = vunpack.c.l.b16 %v21
  %v75 = vunpack.c.l.b16 %v22
  %v76 = vpack.c.b16 %v75, %v74
  %v110 = vunpack.c.l.b16 %v23
  %v111 = vunpack.c.h.b16 %v23
  %v112 = vunpack.c.l.b16 %v24
  %v113 = vunpack.c.l.b16 %v25
  %v114 = vunpack.c.h.b16 %v25
  %v115 = vunpack.c.l.b16 %v26
  %v116 = vunpack.c.l.b16 %v27
  %v117 = vunpack.c.h.b16 %v27
  %v118 = vunpack.c.l.b16 %v28
  %v119 = vunpack.c.l.b16 %v29
  %v120 = vunpack.c.h.b16 %v29
  %v121 = vunpack.c.l.b16 %v30
  %v122 = vunpack.c.l.b16 %v31
  %v123 = vunpack.c.h.b16 %v31
  %v124 = vunpack.c.l.b16 %v32
  %v125 = vunpack.c.l.b16 %v33
  %v126 = vunpack.c.h.b16 %v33
  %v127 = vunpack.c.l.b16 %v34
  %v128 = vunpack.c.l.b16 %v35
  %v129 = vunpack.c.h.b16 %v35
  %v130 = vunpack.c.l.b16 %v36
  %v131 = vunpack.c.l.b16 %v37
  %v132 = vunpack.c.h.b16 %v37
  %v133 = vunpack.c.l.b16 %v38
  %v134 = vunpack.c.l.b16 %v39
  %v135 = vunpack.c.h.b16 %v39
  %v136 = vunpack.c.l.b16 %v40
  %v137 = vunpack.c.l.b16 %v41
  %v138 = vunpack.c.h.b16 %v41
  %v139 = vunpack.c.l.b16 %v42
  %v140 = vunpack.c.l.b16 %v43
  %v141 = vunpack.c.h.b16 %v43
  %v142 = vunpack.c.l.b16 %v44
  %v143 = vunpack.c.l.b16 %v45
  %v144 = vunpack.c.h.b16 %v45
  %v145 = vunpack.c.l.b16 %v46
  %v146 = vunpack.c.l.b16 %v47
  %v147 = vunpack.c.h.b16 %v47
  %v148 = vunpack.c.l.b16 %v48
  %v149 = vunpack.c.l.b16 %v49
  %v150 = vunpack.c.h.b16 %v49
  %v151 = vunpack.c.l.b16 %v50
  %v152 = vunpack.c.l.b16 %v51
  %v153 = vunpack.c.h.b16 %v51
  %v154 = vunpack.c.l.b16 %v52
  %v155 = vunpack.c.l.b16 %v53
  %v156 = vunpack.c.h.b16 %v53
  %v157 = vunpack.c.l.b16 %v54
  %v158 = vpack.c.b16 %v113, %v110
  %v159 = vpack.c.b16 %v114, %v111
  %v160 = vpack.c.b16 %v115, %v112
  %v161 = vpack.c.b16 %v119, %v116
  %v162 = vpack.c.b16 %v120, %v117
  %v163 = vpack.c.b16 %v121, %v118
  %v164 = vpack.c.b16 %v125, %v122
  %v165 = vpack.c.b16 %v126, %v123
  %v166 = vpack.c.b16 %v127, %v124
  %v167 = vpack.c.b16 %v131, %v128
  %v168 = vpack.c.b16 %v132, %v129
  %v169 = vpack.c.b16 %v133, %v130
  %v170 = vpack.c.b16 %v137, %v134
  %v171 = vpack.c.b16 %v138, %v135
  %v172 = vpack.c.b16 %v139, %v136
  %v173 = vpack.c.b16 %v143, %v140
  %v174 = vpack.c.b16 %v144, %v141
  %v175 = vpack.c.b16 %v145, %v142
  %v176 = vpack.c.b16 %v149, %v146
  %v177 = vpack.c.b16 %v150, %v147
  %v178 = vpack.c.b16 %v151, %v148
  %v179 = vpack.c.b16 %v155, %v152
  %v180 = vpack.c.b16 %v156, %v153
  %v181 = vpack.c.b16 %v157, %v154
  %206 = vmatprep.subr.bf16.mxu0 %v159
  %207 = vmatpush1.bf16.msra.mxu0 %v158
  %208 = vmatprep.subr.bf16.mxu0 %v162
  %209 = vmatpush1.bf16.msra.mxu0 %v161
  %210 = vmatprep.subr.bf16.mxu0 %v165
  %211 = vmatpush1.bf16.msra.mxu0 %v164
  %212 = vmatprep.subr.bf16.mxu0 %v168
  %213 = vmatpush1.bf16.msra.mxu0 %v167
  %214 = vmatprep.subr.bf16.mxu0 %v171
  %215 = vmatpush1.bf16.msra.mxu0 %v170
  %216 = vmatprep.subr.bf16.mxu0 %v174
  %217 = vmatpush1.bf16.msra.mxu0 %v173
  %218 = vmatprep.subr.bf16.mxu0 %v177
  %219 = vmatpush1.bf16.msra.mxu0 %v176
  %220 = vmatprep.subr.bf16.mxu0 %v180
  %221 = vmatpush1.bf16.msra.mxu0 %v179
  %222 = vmatprep.subr.bf16.mxu0 0
  %223 = vmatpush1.bf16.msra.mxu0 0
  %224 = vmatprep.subr.bf16.mxu0 0
  %225 = vmatpush1.bf16.msra.mxu0 0
  %226 = vmatprep.subr.bf16.mxu0 0
  %227 = vmatpush1.bf16.msra.mxu0 0
  %228 = vmatprep.subr.bf16.mxu0 0
  %229 = vmatpush1.bf16.msra.mxu0 0
  %230 = vmatprep.subr.bf16.mxu0 0
  %231 = vmatpush1.bf16.msra.mxu0 0
  %232 = vmatprep.subr.bf16.mxu0 0
  %233 = vmatpush1.bf16.msra.mxu0 0
  %234 = vmatprep.subr.bf16.mxu0 0
  %235 = vmatpush1.bf16.msra.mxu0 0
  %236 = vmatprep.subr.bf16.mxu0 0
  %237 = vmatpush1.bf16.msra.mxu0 0
  %238 = vmatprep.mubr.bf16.mxu0 0
  %239 = vmatmul.mubr.bf16.gmra.mrb[0].mxu0 %v76
  %v240 = vpop.f32.mrb[0].mxu0
  %v241 = vadd.f32 %v60, %v240
  %v242 = vpop.f32.mrb[0].mxu0
  %v243 = vadd.f32 %v64, %v242
  %v244 = vpop.f32.mrb[0].mxu0
  %v245 = vadd.f32 %v60, %v244
  %v246 = vpop.f32.mrb[0].mxu0
  %v247 = vadd.f32 %v64, %v246
  %248 = vdwg.mxu0
  %249 = vmatprep.subr.bf16.mxu0 0
  %250 = vmatpush1.bf16.msra.mxu0 %v160
  %251 = vmatprep.subr.bf16.mxu0 0
  %252 = vmatpush1.bf16.msra.mxu0 %v163
  %253 = vmatprep.subr.bf16.mxu0 0
  %254 = vmatpush1.bf16.msra.mxu0 %v166
  %255 = vmatprep.subr.bf16.mxu0 0
  %256 = vmatpush1.bf16.msra.mxu0 %v169
  %257 = vmatprep.subr.bf16.mxu0 0
  %258 = vmatpush1.bf16.msra.mxu0 %v172
  %259 = vmatprep.subr.bf16.mxu0 0
  %260 = vmatpush1.bf16.msra.mxu0 %v175
  %261 = vmatprep.subr.bf16.mxu0 0
  %262 = vmatpush1.bf16.msra.mxu0 %v178
  %263 = vmatprep.subr.bf16.mxu0 0
  %264 = vmatpush1.bf16.msra.mxu0 %v181
  %265 = vmatprep.subr.bf16.mxu0 0
  %266 = vmatpush1.bf16.msra.mxu0 0
  %267 = vmatprep.subr.bf16.mxu0 0
  %268 = vmatpush1.bf16.msra.mxu0 0
  %269 = vmatprep.subr.bf16.mxu0 0
  %270 = vmatpush1.bf16.msra.mxu0 0
  %271 = vmatprep.subr.bf16.mxu0 0
  %272 = vmatpush1.bf16.msra.mxu0 0
  %273 = vmatprep.subr.bf16.mxu0 0
  %274 = vmatpush1.bf16.msra.mxu0 0
  %275 = vmatprep.subr.bf16.mxu0 0
  %276 = vmatpush1.bf16.msra.mxu0 0
  %277 = vmatprep.subr.bf16.mxu0 0
  %278 = vmatpush1.bf16.msra.mxu0 0
  %279 = vmatprep.subr.bf16.mxu0 0
  %280 = vmatpush1.bf16.msra.mxu0 0
  %281 = vmatprep.mubr.bf16.mxu0 0
  %282 = vmatmul.mubr.bf16.gmra.mrb[0].mxu0 %v76
  %v283 = vpop.f32.mrb[0].mxu0
  %v284 = vadd.f32 %v68, %v283
  %v285 = vpop.f32.mrb[0].mxu0
  %v286 = vpop.f32.mrb[0].mxu0
  %v287 = vadd.f32 %v68, %v286
  %v288 = vpop.f32.mrb[0].mxu0
  %289 = vdwg.mxu0
  %v293 = vcombine.low %v241, %v243
  %295 = vst [vmem:[#allocation2] sm:$0xff] %v293
  %296 = vst [vmem:[#allocation2 + $0x8] sm:$0xf] %v284
  %v297 = vcombine.high %v241, %v243
  %v298 = vcombine.high %v284, %v284
  %s301 = scalar_lea.vmem [#allocation2], 12
  %302 = vst [vmem:[%s301] sm:$0xff] %v297
  %303 = vst [vmem:[%s301 + $0x8] sm:$0xf] %v298
  %v307 = vcombine.low %v245, %v247
  %s309 = scalar_lea.vmem [#allocation2], 24
  %310 = vst [vmem:[%s309] sm:$0xff] %v307
  %311 = vst [vmem:[%s309 + $0x8] sm:$0xf] %v287
  %v312 = vcombine.high %v245, %v247
  %v313 = vcombine.high %v287, %v287
  %s316 = scalar_lea.vmem [#allocation2], 36
  %317 = vst [vmem:[%s316] sm:$0xff] %v312
  %318 = vst [vmem:[%s316 + $0x8] sm:$0xf] %v313
  %v319 = vld [vmem:[%s3] sm:$0xff]
  %v320 = vld [vmem:[%s3 + $0x8] sm:$0xff]
  %v321 = vld [vmem:[%s3 + $0x10] sm:$0xff]
  %v322 = vld [vmem:[%s3 + $0x18] sm:$0xff]
  %v323 = vld [vmem:[%s3 + $0x20] sm:$0xf]
  %v324 = vld [vmem:[%s3 + $0x24] sm:$0xff]
  %v325 = vld [vmem:[%s3 + $0x2c] sm:$0xff]
  %v326 = vld [vmem:[%s3 + $0x34] sm:$0xff]
  %v327 = vld [vmem:[%s3 + $0x3c] sm:$0xff]
  %v328 = vld [vmem:[%s3 + $0x44] sm:$0xf]
  %v329 = vld [vmem:[%s3 + $0x48] sm:$0xff]
  %v330 = vld [vmem:[%s3 + $0x50] sm:$0xff]
  %v331 = vld [vmem:[%s3 + $0x58] sm:$0xff]
  %v332 = vld [vmem:[%s3 + $0x60] sm:$0xff]
  %v333 = vld [vmem:[%s3 + $0x68] sm:$0xf]
  %v334 = vld [vmem:[%s3 + $0x6c] sm:$0xff]
  %v335 = vld [vmem:[%s3 + $0x74] sm:$0xff]
  %v336 = vld [vmem:[%s3 + $0x7c] sm:$0xff]
  %v337 = vld [vmem:[%s3 + $0x84] sm:$0xff]
  %v338 = vld [vmem:[%s3 + $0x8c] sm:$0xf]
  %v339 = vld [vmem:[%s3 + $0x90] sm:$0xff]
  %v340 = vld [vmem:[%s3 + $0x98] sm:$0xff]
  %v341 = vld [vmem:[%s3 + $0xa0] sm:$0xff]
  %v342 = vld [vmem:[%s3 + $0xa8] sm:$0xff]
  %v343 = vld [vmem:[%s3 + $0xb0] sm:$0xf]
  %v344 = vld [vmem:[%s3 + $0xb4] sm:$0xff]
  %v345 = vld [vmem:[%s3 + $0xbc] sm:$0xff]
  %v346 = vld [vmem:[%s3 + $0xc4] sm:$0xff]
  %v347 = vld [vmem:[%s3 + $0xcc] sm:$0xff]
  %v348 = vld [vmem:[%s3 + $0xd4] sm:$0xf]
  %v349 = vld [vmem:[%s3 + $0xd8] sm:$0xff]
  %v350 = vld [vmem:[%s3 + $0xe0] sm:$0xff]
  %v351 = vld [vmem:[%s3 + $0xe8] sm:$0xff]
  %v352 = vld [vmem:[%s3 + $0xf0] sm:$0xff]
  %v353 = vld [vmem:[%s3 + $0xf8] sm:$0xf]
  %v354 = vld [vmem:[%s3 + $0xfc] sm:$0xff]
  %v355 = vld [vmem:[%s3 + $0x104] sm:$0xff]
  %v356 = vld [vmem:[%s3 + $0x10c] sm:$0xff]
  %v357 = vld [vmem:[%s3 + $0x114] sm:$0xff]
  %v358 = vld [vmem:[%s3 + $0x11c] sm:$0xf]
  %v359 = vld [vmem:[%s3 + $0x120] sm:$0xff]
  %v360 = vld [vmem:[%s3 + $0x128] sm:$0xff]
  %v361 = vld [vmem:[%s3 + $0x130] sm:$0xff]
  %v362 = vld [vmem:[%s3 + $0x138] sm:$0xff]
  %v363 = vld [vmem:[%s3 + $0x140] sm:$0xf]
  %v364 = vld [vmem:[%s3 + $0x144] sm:$0xff]
  %v365 = vld [vmem:[%s3 + $0x14c] sm:$0xff]
  %v366 = vld [vmem:[%s3 + $0x154] sm:$0xff]
  %v367 = vld [vmem:[%s3 + $0x15c] sm:$0xff]
  %v368 = vld [vmem:[%s3 + $0x164] sm:$0xf]
  %v369 = vld [vmem:[%s3 + $0x168] sm:$0xff]
  %v370 = vld [vmem:[%s3 + $0x170] sm:$0xff]
  %v371 = vld [vmem:[%s3 + $0x178] sm:$0xff]
  %v372 = vld [vmem:[%s3 + $0x180] sm:$0xff]
  %v373 = vld [vmem:[%s3 + $0x188] sm:$0xf]
  %v374 = vld [vmem:[%s3 + $0x18c] sm:$0xff]
  %v375 = vld [vmem:[%s3 + $0x194] sm:$0xff]
  %v376 = vld [vmem:[%s3 + $0x19c] sm:$0xff]
  %v377 = vld [vmem:[%s3 + $0x1a4] sm:$0xff]
  %v378 = vld [vmem:[%s3 + $0x1ac] sm:$0xf]
  %v379 = vld [vmem:[%s3 + $0x1b0] sm:$0xff]
  %v380 = vld [vmem:[%s3 + $0x1b8] sm:$0xff]
  %v381 = vld [vmem:[%s3 + $0x1c0] sm:$0xff]
  %v382 = vld [vmem:[%s3 + $0x1c8] sm:$0xff]
  %v383 = vld [vmem:[%s3 + $0x1d0] sm:$0xf]
  %v384 = vld [vmem:[%s3 + $0x1d4] sm:$0xff]
  %v385 = vld [vmem:[%s3 + $0x1dc] sm:$0xff]
  %v386 = vld [vmem:[%s3 + $0x1e4] sm:$0xff]
  %v387 = vld [vmem:[%s3 + $0x1ec] sm:$0xff]
  %v388 = vld [vmem:[%s3 + $0x1f4] sm:$0xf]
  %v389 = vld [vmem:[%s3 + $0x1f8] sm:$0xff]
  %v390 = vld [vmem:[%s3 + $0x200] sm:$0xff]
  %v391 = vld [vmem:[%s3 + $0x208] sm:$0xff]
  %v392 = vld [vmem:[%s3 + $0x210] sm:$0xff]
  %v393 = vld [vmem:[%s3 + $0x218] sm:$0xf]
  %v394 = vld [vmem:[%s3 + $0x21c] sm:$0xff]
  %v395 = vld [vmem:[%s3 + $0x224] sm:$0xff]
  %v396 = vld [vmem:[%s3 + $0x22c] sm:$0xff]
  %v397 = vld [vmem:[%s3 + $0x234] sm:$0xff]
  %v398 = vld [vmem:[%s3 + $0x23c] sm:$0xf]
  %v399 = vld [vmem:[%s3 + $0x240] sm:$0xff]
  %v400 = vld [vmem:[%s3 + $0x248] sm:$0xff]
  %v401 = vld [vmem:[%s3 + $0x250] sm:$0xff]
  %v402 = vld [vmem:[%s3 + $0x258] sm:$0xff]
  %v403 = vld [vmem:[%s3 + $0x260] sm:$0xf]
  %v404 = vld [vmem:[%s3 + $0x264] sm:$0xff]
  %v405 = vld [vmem:[%s3 + $0x26c] sm:$0xff]
  %v406 = vld [vmem:[%s3 + $0x274] sm:$0xff]
  %v407 = vld [vmem:[%s3 + $0x27c] sm:$0xff]
  %v408 = vld [vmem:[%s3 + $0x284] sm:$0xf]
  %v409 = vld [vmem:[%s3 + $0x288] sm:$0xff]
  %v410 = vld [vmem:[%s3 + $0x290] sm:$0xff]
  %v411 = vld [vmem:[%s3 + $0x298] sm:$0xff]
  %v412 = vld [vmem:[%s3 + $0x2a0] sm:$0xff]
  %v413 = vld [vmem:[%s3 + $0x2a8] sm:$0xf]
  %v414 = vld [vmem:[%s3 + $0x2ac] sm:$0xff]
  %v415 = vld [vmem:[%s3 + $0x2b4] sm:$0xff]
  %v416 = vld [vmem:[%s3 + $0x2bc] sm:$0xff]
  %v417 = vld [vmem:[%s3 + $0x2c4] sm:$0xff]
  %v418 = vld [vmem:[%s3 + $0x2cc] sm:$0xf]
  %v419 = vld [vmem:[%s3 + $0x2d0] sm:$0xff]
  %v420 = vld [vmem:[%s3 + $0x2d8] sm:$0xff]
  %v421 = vld [vmem:[%s3 + $0x2e0] sm:$0xff]
  %v422 = vld [vmem:[%s3 + $0x2e8] sm:$0xff]
  %v423 = vld [vmem:[%s3 + $0x2f0] sm:$0xf]
  %v424 = vld [vmem:[%s3 + $0x2f4] sm:$0xff]
  %v425 = vld [vmem:[%s3 + $0x2fc] sm:$0xff]
  %v426 = vld [vmem:[%s3 + $0x304] sm:$0xff]
  %v427 = vld [vmem:[%s3 + $0x30c] sm:$0xff]
  %v428 = vld [vmem:[%s3 + $0x314] sm:$0xf]
  %v429 = vld [vmem:[%s3 + $0x318] sm:$0xff]
  %v430 = vld [vmem:[%s3 + $0x320] sm:$0xff]
  %v431 = vld [vmem:[%s3 + $0x328] sm:$0xff]
  %v432 = vld [vmem:[%s3 + $0x330] sm:$0xff]
  %v433 = vld [vmem:[%s3 + $0x338] sm:$0xf]
  %v434 = vld [vmem:[%s3 + $0x33c] sm:$0xff]
  %v435 = vld [vmem:[%s3 + $0x344] sm:$0xff]
  %v436 = vld [vmem:[%s3 + $0x34c] sm:$0xff]
  %v437 = vld [vmem:[%s3 + $0x354] sm:$0xff]
  %v438 = vld [vmem:[%s3 + $0x35c] sm:$0xf]
  %v439 = vld [vmem:[%s3 + $0x360] sm:$0xff]
  %v440 = vld [vmem:[%s3 + $0x368] sm:$0xff]
  %v441 = vld [vmem:[%s3 + $0x370] sm:$0xff]
  %v442 = vld [vmem:[%s3 + $0x378] sm:$0xff]
  %v443 = vld [vmem:[%s3 + $0x380] sm:$0xf]
  %v444 = vld [vmem:[%s3 + $0x384] sm:$0xff]
  %v445 = vld [vmem:[%s3 + $0x38c] sm:$0xff]
  %v446 = vld [vmem:[%s3 + $0x394] sm:$0xff]
  %v447 = vld [vmem:[%s3 + $0x39c] sm:$0xff]
  %v448 = vld [vmem:[%s3 + $0x3a4] sm:$0xf]
  %v449 = vld [vmem:[%s3 + $0x3a8] sm:$0xff]
  %v450 = vld [vmem:[%s3 + $0x3b0] sm:$0xff]
  %v451 = vld [vmem:[%s3 + $0x3b8] sm:$0xff]
  %v452 = vld [vmem:[%s3 + $0x3c0] sm:$0xff]
  %v453 = vld [vmem:[%s3 + $0x3c8] sm:$0xf]
  %v454 = vld [vmem:[%s3 + $0x3cc] sm:$0xff]
  %v455 = vld [vmem:[%s3 + $0x3d4] sm:$0xff]
  %v456 = vld [vmem:[%s3 + $0x3dc] sm:$0xff]
  %v457 = vld [vmem:[%s3 + $0x3e4] sm:$0xff]
  %v458 = vld [vmem:[%s3 + $0x3ec] sm:$0xf]
  %v459 = vld [vmem:[%s3 + $0x3f0] sm:$0xff]
  %v460 = vld [vmem:[%s3 + $0x3f8] sm:$0xff]
  %v461 = vld [vmem:[%s3 + $0x400] sm:$0xff]
  %v462 = vld [vmem:[%s3 + $0x408] sm:$0xff]
  %v463 = vld [vmem:[%s3 + $0x410] sm:$0xf]
  %v464 = vld [vmem:[%s3 + $0x414] sm:$0xff]
  %v465 = vld [vmem:[%s3 + $0x41c] sm:$0xff]
  %v466 = vld [vmem:[%s3 + $0x424] sm:$0xff]
  %v467 = vld [vmem:[%s3 + $0x42c] sm:$0xff]
  %v468 = vld [vmem:[%s3 + $0x434] sm:$0xf]
  %v469 = vld [vmem:[%s3 + $0x438] sm:$0xff]
  %v470 = vld [vmem:[%s3 + $0x440] sm:$0xff]
  %v471 = vld [vmem:[%s3 + $0x448] sm:$0xff]
  %v472 = vld [vmem:[%s3 + $0x450] sm:$0xff]
  %v473 = vld [vmem:[%s3 + $0x458] sm:$0xf]
  %v474 = vld [vmem:[%s3 + $0x45c] sm:$0xff]
  %v475 = vld [vmem:[%s3 + $0x464] sm:$0xff]
  %v476 = vld [vmem:[%s3 + $0x46c] sm:$0xff]
  %v477 = vld [vmem:[%s3 + $0x474] sm:$0xff]
  %v478 = vld [vmem:[%s3 + $0x47c] sm:$0xf]
  %v479 = vld [vmem:[%s4] sm:$0xff]
  %v480 = vld [vmem:[%s4 + $0x8] sm:$0x1]
  %v481 = vpack.c.bf16 0.0, 0.0
  %v484 = vlaneseq
  %v485 = vshrl.u32 %v484, 7
  %v486 = vsub.s32 0, %v485
  %v487 = vrot.slane %v479, %v486
  %v488 = vlaneseq
  %v489 = vshrl.u32 %v488, 7
  %v490 = vsub.s32 1, %v489
  %v491 = vrot.slane %v479, %v490
  %v492 = vlaneseq
  %v493 = vshrl.u32 %v492, 7
  %v494 = vsub.s32 2, %v493
  %v495 = vrot.slane %v479, %v494
  %v496 = vlaneseq
  %v497 = vshrl.u32 %v496, 7
  %v498 = vsub.s32 3, %v497
  %v499 = vrot.slane %v479, %v498
  %v500 = vlaneseq
  %v501 = vshrl.u32 %v500, 7
  %v502 = vsub.s32 4, %v501
  %v503 = vrot.slane %v479, %v502
  %v504 = vlaneseq
  %v505 = vshrl.u32 %v504, 7
  %v506 = vsub.s32 5, %v505
  %v507 = vrot.slane %v479, %v506
  %v508 = vlaneseq
  %v509 = vshrl.u32 %v508, 7
  %v510 = vsub.s32 6, %v509
  %v511 = vrot.slane %v479, %v510
  %v512 = vlaneseq
  %v513 = vshrl.u32 %v512, 7
  %v514 = vsub.s32 7, %v513
  %v515 = vrot.slane %v479, %v514
  %v516 = vlaneseq
  %v517 = vshrl.u32 %v516, 7
  %v518 = vsub.s32 0, %v517
  %v519 = vrot.slane %v480, %v518
  %v593 = vunpack.c.l.b16 %v319
  %v594 = vunpack.c.h.b16 %v319
  %v595 = vunpack.c.l.b16 %v320
  %v596 = vunpack.c.h.b16 %v320
  %v597 = vunpack.c.l.b16 %v324
  %v598 = vunpack.c.h.b16 %v324
  %v599 = vunpack.c.l.b16 %v325
  %v600 = vunpack.c.h.b16 %v325
  %v601 = vunpack.c.l.b16 %v329
  %v602 = vunpack.c.h.b16 %v329
  %v603 = vunpack.c.l.b16 %v330
  %v604 = vunpack.c.h.b16 %v330
  %v605 = vunpack.c.l.b16 %v334
  %v606 = vunpack.c.h.b16 %v334
  %v607 = vunpack.c.l.b16 %v335
  %v608 = vunpack.c.h.b16 %v335
  %v609 = vunpack.c.l.b16 %v339
  %v610 = vunpack.c.h.b16 %v339
  %v611 = vunpack.c.l.b16 %v340
  %v612 = vunpack.c.h.b16 %v340
  %v613 = vunpack.c.l.b16 %v344
  %v614 = vunpack.c.h.b16 %v344
  %v615 = vunpack.c.l.b16 %v345
  %v616 = vunpack.c.h.b16 %v345
  %v617 = vunpack.c.l.b16 %v349
  %v618 = vunpack.c.h.b16 %v349
  %v619 = vunpack.c.l.b16 %v350
  %v620 = vunpack.c.h.b16 %v350
  %v621 = vunpack.c.l.b16 %v354
  %v622 = vunpack.c.h.b16 %v354
  %v623 = vunpack.c.l.b16 %v355
  %v624 = vunpack.c.h.b16 %v355
  %v625 = vunpack.c.l.b16 %v359
  %v626 = vunpack.c.h.b16 %v359
  %v627 = vunpack.c.l.b16 %v360
  %v628 = vunpack.c.h.b16 %v360
  %v629 = vunpack.c.l.b16 %v364
  %v630 = vunpack.c.h.b16 %v364
  %v631 = vunpack.c.l.b16 %v365
  %v632 = vunpack.c.h.b16 %v365
  %v633 = vunpack.c.l.b16 %v369
  %v634 = vunpack.c.h.b16 %v369
  %v635 = vunpack.c.l.b16 %v370
  %v636 = vunpack.c.h.b16 %v370
  %v637 = vunpack.c.l.b16 %v374
  %v638 = vunpack.c.h.b16 %v374
  %v639 = vunpack.c.l.b16 %v375
  %v640 = vunpack.c.h.b16 %v375
  %v641 = vunpack.c.l.b16 %v379
  %v642 = vunpack.c.h.b16 %v379
  %v643 = vunpack.c.l.b16 %v380
  %v644 = vunpack.c.h.b16 %v380
  %v645 = vunpack.c.l.b16 %v384
  %v646 = vunpack.c.h.b16 %v384
  %v647 = vunpack.c.l.b16 %v385
  %v648 = vunpack.c.h.b16 %v385
  %v649 = vunpack.c.l.b16 %v389
  %v650 = vunpack.c.h.b16 %v389
  %v651 = vunpack.c.l.b16 %v390
  %v652 = vunpack.c.h.b16 %v390
  %v653 = vunpack.c.l.b16 %v394
  %v654 = vunpack.c.h.b16 %v394
  %v655 = vunpack.c.l.b16 %v395
  %v656 = vunpack.c.h.b16 %v395
  %v657 = vunpack.c.l.b16 %v399
  %v658 = vunpack.c.h.b16 %v399
  %v659 = vunpack.c.l.b16 %v400
  %v660 = vunpack.c.h.b16 %v400
  %v661 = vunpack.c.l.b16 %v404
  %v662 = vunpack.c.h.b16 %v404
  %v663 = vunpack.c.l.b16 %v405
  %v664 = vunpack.c.h.b16 %v405
  %v665 = vunpack.c.l.b16 %v409
  %v666 = vunpack.c.h.b16 %v409
  %v667 = vunpack.c.l.b16 %v410
  %v668 = vunpack.c.h.b16 %v410
  %v669 = vunpack.c.l.b16 %v414
  %v670 = vunpack.c.h.b16 %v414
  %v671 = vunpack.c.l.b16 %v415
  %v672 = vunpack.c.h.b16 %v415
  %v673 = vunpack.c.l.b16 %v419
  %v674 = vunpack.c.h.b16 %v419
  %v675 = vunpack.c.l.b16 %v420
  %v676 = vunpack.c.h.b16 %v420
  %v677 = vunpack.c.l.b16 %v424
  %v678 = vunpack.c.h.b16 %v424
  %v679 = vunpack.c.l.b16 %v425
  %v680 = vunpack.c.h.b16 %v425
  %v681 = vunpack.c.l.b16 %v429
  %v682 = vunpack.c.h.b16 %v429
  %v683 = vunpack.c.l.b16 %v430
  %v684 = vunpack.c.h.b16 %v430
  %v685 = vunpack.c.l.b16 %v434
  %v686 = vunpack.c.h.b16 %v434
  %v687 = vunpack.c.l.b16 %v435
  %v688 = vunpack.c.h.b16 %v435
  %v689 = vunpack.c.l.b16 %v439
  %v690 = vunpack.c.h.b16 %v439
  %v691 = vunpack.c.l.b16 %v440
  %v692 = vunpack.c.h.b16 %v440
  %v693 = vunpack.c.l.b16 %v444
  %v694 = vunpack.c.h.b16 %v444
  %v695 = vunpack.c.l.b16 %v445
  %v696 = vunpack.c.h.b16 %v445
  %v697 = vunpack.c.l.b16 %v449
  %v698 = vunpack.c.h.b16 %v449
  %v699 = vunpack.c.l.b16 %v450
  %v700 = vunpack.c.h.b16 %v450
  %v701 = vunpack.c.l.b16 %v454
  %v702 = vunpack.c.h.b16 %v454
  %v703 = vunpack.c.l.b16 %v455
  %v704 = vunpack.c.h.b16 %v455
  %v705 = vunpack.c.l.b16 %v459
  %v706 = vunpack.c.h.b16 %v459
  %v707 = vunpack.c.l.b16 %v460
  %v708 = vunpack.c.h.b16 %v460
  %v709 = vunpack.c.l.b16 %v464
  %v710 = vunpack.c.h.b16 %v464
  %v711 = vunpack.c.l.b16 %v465
  %v712 = vunpack.c.h.b16 %v465
  %v713 = vunpack.c.l.b16 %v469
  %v714 = vunpack.c.h.b16 %v469
  %v715 = vunpack.c.l.b16 %v470
  %v716 = vunpack.c.h.b16 %v470
  %v717 = vunpack.c.l.b16 %v474
  %v718 = vunpack.c.h.b16 %v474
  %v719 = vunpack.c.l.b16 %v475
  %v720 = vunpack.c.h.b16 %v475
  %v721 = vpack.c.b16 %v597, %v593
  %v722 = vpack.c.b16 %v598, %v594
  %v723 = vpack.c.b16 %v599, %v595
  %v724 = vpack.c.b16 %v600, %v596
  %v725 = vpack.c.b16 %v605, %v601
  %v726 = vpack.c.b16 %v606, %v602
  %v727 = vpack.c.b16 %v607, %v603
  %v728 = vpack.c.b16 %v608, %v604
  %v729 = vpack.c.b16 %v613, %v609
  %v730 = vpack.c.b16 %v614, %v610
  %v731 = vpack.c.b16 %v615, %v611
  %v732 = vpack.c.b16 %v616, %v612
  %v733 = vpack.c.b16 %v621, %v617
  %v734 = vpack.c.b16 %v622, %v618
  %v735 = vpack.c.b16 %v623, %v619
  %v736 = vpack.c.b16 %v624, %v620
  %v737 = vpack.c.b16 %v629, %v625
  %v738 = vpack.c.b16 %v630, %v626
  %v739 = vpack.c.b16 %v631, %v627
  %v740 = vpack.c.b16 %v632, %v628
  %v741 = vpack.c.b16 %v637, %v633
  %v742 = vpack.c.b16 %v638, %v634
  %v743 = vpack.c.b16 %v639, %v635
  %v744 = vpack.c.b16 %v640, %v636
  %v745 = vpack.c.b16 %v645, %v641
  %v746 = vpack.c.b16 %v646, %v642
  %v747 = vpack.c.b16 %v647, %v643
  %v748 = vpack.c.b16 %v648, %v644
  %v749 = vpack.c.b16 %v653, %v649
  %v750 = vpack.c.b16 %v654, %v650
  %v751 = vpack.c.b16 %v655, %v651
  %v752 = vpack.c.b16 %v656, %v652
  %v753 = vpack.c.b16 %v661, %v657
  %v754 = vpack.c.b16 %v662, %v658
  %v755 = vpack.c.b16 %v663, %v659
  %v756 = vpack.c.b16 %v664, %v660
  %v757 = vpack.c.b16 %v669, %v665
  %v758 = vpack.c.b16 %v670, %v666
  %v759 = vpack.c.b16 %v671, %v667
  %v760 = vpack.c.b16 %v672, %v668
  %v761 = vpack.c.b16 %v677, %v673
  %v762 = vpack.c.b16 %v678, %v674
  %v763 = vpack.c.b16 %v679, %v675
  %v764 = vpack.c.b16 %v680, %v676
  %v765 = vpack.c.b16 %v685, %v681
  %v766 = vpack.c.b16 %v686, %v682
  %v767 = vpack.c.b16 %v687, %v683
  %v768 = vpack.c.b16 %v688, %v684
  %v769 = vpack.c.b16 %v693, %v689
  %v770 = vpack.c.b16 %v694, %v690
  %v771 = vpack.c.b16 %v695, %v691
  %v772 = vpack.c.b16 %v696, %v692
  %v773 = vpack.c.b16 %v701, %v697
  %v774 = vpack.c.b16 %v702, %v698
  %v775 = vpack.c.b16 %v703, %v699
  %v776 = vpack.c.b16 %v704, %v700
  %v777 = vpack.c.b16 %v709, %v705
  %v778 = vpack.c.b16 %v710, %v706
  %v779 = vpack.c.b16 %v711, %v707
  %v780 = vpack.c.b16 %v712, %v708
  %v781 = vpack.c.b16 %v717, %v713
  %v782 = vpack.c.b16 %v718, %v714
  %v783 = vpack.c.b16 %v719, %v715
  %v784 = vpack.c.b16 %v720, %v716
  %849 = vmatprep.subr.bf16.mxu0 %v722
  %850 = vmatpush1.bf16.msra.mxu0 %v721
  %851 = vmatprep.subr.bf16.mxu0 %v726
  %852 = vmatpush1.bf16.msra.mxu0 %v725
  %853 = vmatprep.subr.bf16.mxu0 %v730
  %854 = vmatpush1.bf16.msra.mxu0 %v729
  %855 = vmatprep.subr.bf16.mxu0 %v734
  %856 = vmatpush1.bf16.msra.mxu0 %v733
  %857 = vmatprep.subr.bf16.mxu0 %v738
  %858 = vmatpush1.bf16.msra.mxu0 %v737
  %859 = vmatprep.subr.bf16.mxu0 %v742
  %860 = vmatpush1.bf16.msra.mxu0 %v741
  %861 = vmatprep.subr.bf16.mxu0 %v746
  %862 = vmatpush1.bf16.msra.mxu0 %v745
  %863 = vmatprep.subr.bf16.mxu0 %v750
  %864 = vmatpush1.bf16.msra.mxu0 %v749
  %865 = vmatprep.subr.bf16.mxu0 %v754
  %866 = vmatpush1.bf16.msra.mxu0 %v753
  %867 = vmatprep.subr.bf16.mxu0 %v758
  %868 = vmatpush1.bf16.msra.mxu0 %v757
  %869 = vmatprep.subr.bf16.mxu0 %v762
  %870 = vmatpush1.bf16.msra.mxu0 %v761
  %871 = vmatprep.subr.bf16.mxu0 %v766
  %872 = vmatpush1.bf16.msra.mxu0 %v765
  %873 = vmatprep.subr.bf16.mxu0 %v770
  %874 = vmatpush1.bf16.msra.mxu0 %v769
  %875 = vmatprep.subr.bf16.mxu0 %v774
  %876 = vmatpush1.bf16.msra.mxu0 %v773
  %877 = vmatprep.subr.bf16.mxu0 %v778
  %878 = vmatpush1.bf16.msra.mxu0 %v777
  %879 = vmatprep.subr.bf16.mxu0 %v782
  %880 = vmatpush1.bf16.msra.mxu0 %v781
  %881 = vmatprep.mubr.bf16.mxu0 %v481
  %882 = vmatmul.mubr.bf16.gmra.mrb[0].mxu0 %v481
  %v883 = vpop.f32.mrb[0].mxu0
  %v884 = vadd.f32 %v487, %v883
  %v885 = vpop.f32.mrb[0].mxu0
  %v886 = vadd.f32 %v491, %v885
  %v887 = vpop.f32.mrb[0].mxu0
  %v888 = vpop.f32.mrb[0].mxu0
  %889 = vdwg.mxu0
  %890 = vmatprep.subr.bf16.mxu0 %v724
  %891 = vmatpush1.bf16.msra.mxu0 %v723
  %892 = vmatprep.subr.bf16.mxu0 %v728
  %893 = vmatpush1.bf16.msra.mxu0 %v727
  %894 = vmatprep.subr.bf16.mxu0 %v732
  %895 = vmatpush1.bf16.msra.mxu0 %v731
  %896 = vmatprep.subr.bf16.mxu0 %v736
  %897 = vmatpush1.bf16.msra.mxu0 %v735
  %898 = vmatprep.subr.bf16.mxu0 %v740
  %899 = vmatpush1.bf16.msra.mxu0 %v739
  %900 = vmatprep.subr.bf16.mxu0 %v744
  %901 = vmatpush1.bf16.msra.mxu0 %v743
  %902 = vmatprep.subr.bf16.mxu0 %v748
  %903 = vmatpush1.bf16.msra.mxu0 %v747
  %904 = vmatprep.subr.bf16.mxu0 %v752
  %905 = vmatpush1.bf16.msra.mxu0 %v751
  %906 = vmatprep.subr.bf16.mxu0 %v756
  %907 = vmatpush1.bf16.msra.mxu0 %v755
  %908 = vmatprep.subr.bf16.mxu0 %v760
  %909 = vmatpush1.bf16.msra.mxu0 %v759
  %910 = vmatprep.subr.bf16.mxu0 %v764
  %911 = vmatpush1.bf16.msra.mxu0 %v763
  %912 = vmatprep.subr.bf16.mxu0 %v768
  %913 = vmatpush1.bf16.msra.mxu0 %v767
  %914 = vmatprep.subr.bf16.mxu0 %v772
  %915 = vmatpush1.bf16.msra.mxu0 %v771
  %916 = vmatprep.subr.bf16.mxu0 %v776
  %917 = vmatpush1.bf16.msra.mxu0 %v775
  %918 = vmatprep.subr.bf16.mxu0 %v780
  %919 = vmatpush1.bf16.msra.mxu0 %v779
  %920 = vmatprep.subr.bf16.mxu0 %v784
  %921 = vmatpush1.bf16.msra.mxu0 %v783
  %922 = vmatprep.mubr.bf16.mxu0 %v481
  %923 = vmatmul.mubr.bf16.gmra.mrb[0].mxu0 %v481
  %v924 = vpop.f32.mrb[0].mxu0
  %v925 = vadd.f32 %v495, %v924
  %v926 = vpop.f32.mrb[0].mxu0
  %v927 = vpop.f32.mrb[0].mxu0
  %v928 = vpop.f32.mrb[0].mxu0
  %929 = vdwg.mxu0
  %v930 = vld [vmem:[#allocation2] ss:$4 sm:$0x7]
  %s931 = scalar_lea.vmem [#allocation2], 12
  %v932 = vld [vmem:[%s931] ss:$4 sm:$0x7]
  %s933 = scalar_lea.vmem [#allocation2], 24
  %v934 = vld [vmem:[%s933] ss:$4 sm:$0x7]
  %s935 = scalar_lea.vmem [#allocation2], 36
  %v936 = vld [vmem:[%s935] ss:$4 sm:$0x7]
  %v939 = vunpack.c.l.s4 1966171168
  %v940 = vunpack.c.0.s8 %v939
  %v941 = vlaneseq
  %v942 = vshrl.u32 %v941, 7
  %v943 = vsub.s32 %v940, %v942
  %v944 = vrot.slane %v884, %v943
  %v945 = vcombine.high %v944, %v944
  %v947 = vunpack.c.l.s4 1966171168
  %v948 = vunpack.c.0.s8 %v947
  %v949 = vlaneseq
  %v950 = vshrl.u32 %v949, 7
  %v951 = vsub.s32 %v948, %v950
  %v952 = vrot.slane %v944, %v951
  %v954 = vunpack.c.l.s4 1966171168
  %v955 = vunpack.c.0.s8 %v954
  %v956 = vlaneseq
  %v957 = vshrl.u32 %v956, 7
  %v958 = vsub.s32 %v955, %v957
  %v959 = vrot.slane %v945, %v958
  %v960 = vcombine.high %v952, %v952
  %v961 = vcombine.high %v959, %v959
  %v966 = vadd.f32 %v930, %v952
  %v967 = vadd.f32 %v932, %v959
  %v968 = vadd.f32 %v934, %v960
  %v969 = vadd.f32 %v936, %v961
  %v970 = vxor.u32 %v966, 2147483648
  %v971 = vxor.u32 %v967, 2147483648
  %v972 = vxor.u32 %v968, 2147483648
  %v973 = vxor.u32 %v969, 2147483648
  %v974 = vmul.f32 %v970, 1.442695
  %v975 = vpow.pop %v974
  %v976 = vmul.f32 %v971, 1.442695
  %v977 = vpow.pop %v976
  %v978 = vmul.f32 %v972, 1.442695
  %v979 = vpow.pop %v978
  %v980 = vmul.f32 %v973, 1.442695
  %v981 = vpow.pop %v980
  %v982 = vadd.f32 %v975, 1.0
  %v983 = vadd.f32 %v977, 1.0
  %v984 = vadd.f32 %v979, 1.0
  %v985 = vadd.f32 %v981, 1.0
  %v986 = vrcp.pop %v982
  %v987 = vmul.f32 1.0, %v986
  %v988 = vrcp.pop %v983
  %v989 = vmul.f32 1.0, %v988
  %v990 = vrcp.pop %v984
  %v991 = vmul.f32 1.0, %v990
  %v992 = vrcp.pop %v985
  %v993 = vmul.f32 1.0, %v992
  %v998 = vrot.slane %v930, 1
  %v999 = vrot.slane %v932, 1
  %v1000 = vrot.slane %v934, 1
  %v1001 = vrot.slane %v936, 1
  %v1008 = vunpack.c.l.s4 1966171168
  %v1009 = vunpack.c.0.s8 %v1008
  %v1010 = vlaneseq
  %v1011 = vshrl.u32 %v1010, 7
  %v1012 = vsub.s32 %v1009, %v1011
  %v1013 = vrot.slane %v886, %v1012
  %v1014 = vcombine.high %v1013, %v1013
  %v1016 = vunpack.c.l.s4 1966171168
  %v1017 = vunpack.c.0.s8 %v1016
  %v1018 = vlaneseq
  %v1019 = vshrl.u32 %v1018, 7
  %v1020 = vsub.s32 %v1017, %v1019
  %v1021 = vrot.slane %v1013, %v1020
  %v1023 = vunpack.c.l.s4 1966171168
  %v1024 = vunpack.c.0.s8 %v1023
  %v1025 = vlaneseq
  %v1026 = vshrl.u32 %v1025, 7
  %v1027 = vsub.s32 %v1024, %v1026
  %v1028 = vrot.slane %v1014, %v1027
  %v1029 = vcombine.high %v1021, %v1021
  %v1030 = vcombine.high %v1028, %v1028
  %v1035 = vadd.f32 %v998, %v1021
  %v1036 = vadd.f32 %v999, %v1028
  %v1037 = vadd.f32 %v1000, %v1029
  %v1038 = vadd.f32 %v1001, %v1030
  %v1039 = vxor.u32 %v1035, 2147483648
  %v1040 = vxor.u32 %v1036, 2147483648
  %v1041 = vxor.u32 %v1037, 2147483648
  %v1042 = vxor.u32 %v1038, 2147483648
  %v1043 = vmul.f32 %v1039, 1.442695
  %v1044 = vpow.pop %v1043
  %v1045 = vmul.f32 %v1040, 1.442695
  %v1046 = vpow.pop %v1045
  %v1047 = vmul.f32 %v1041, 1.442695
  %v1048 = vpow.pop %v1047
  %v1049 = vmul.f32 %v1042, 1.442695
  %v1050 = vpow.pop %v1049
  %v1051 = vadd.f32 %v1044, 1.0
  %v1052 = vadd.f32 %v1046, 1.0
  %v1053 = vadd.f32 %v1048, 1.0
  %v1054 = vadd.f32 %v1050, 1.0
  %v1055 = vrcp.pop %v1051
  %v1056 = vmul.f32 1.0, %v1055
  %v1057 = vrcp.pop %v1052
  %v1058 = vmul.f32 1.0, %v1057
  %v1059 = vrcp.pop %v1053
  %v1060 = vmul.f32 1.0, %v1059
  %v1061 = vrcp.pop %v1054
  %v1062 = vmul.f32 1.0, %v1061
  %v1065 = vunpack.c.l.s4 1966171168
  %v1066 = vunpack.c.0.s8 %v1065
  %v1067 = vlaneseq
  %v1068 = vshrl.u32 %v1067, 7
  %v1069 = vsub.s32 %v1066, %v1068
  %v1070 = vrot.slane %v925, %v1069
  %v1071 = vcombine.high %v1070, %v1070
  %v1073 = vunpack.c.l.s4 1966171168
  %v1074 = vunpack.c.0.s8 %v1073
  %v1075 = vlaneseq
  %v1076 = vshrl.u32 %v1075, 7
  %v1077 = vsub.s32 %v1074, %v1076
  %v1078 = vrot.slane %v1070, %v1077
  %v1080 = vunpack.c.l.s4 1966171168
  %v1081 = vunpack.c.0.s8 %v1080
  %v1082 = vlaneseq
  %v1083 = vshrl.u32 %v1082, 7
  %v1084 = vsub.s32 %v1081, %v1083
  %v1085 = vrot.slane %v1071, %v1084
  %v1086 = vcombine.high %v1078, %v1078
  %v1087 = vcombine.high %v1085, %v1085
  %v1092 = vmul.f32 %v987, %v1078
  %v1093 = vmul.f32 %v989, %v1085
  %v1094 = vmul.f32 %v991, %v1086
  %v1095 = vmul.f32 %v993, %v1087
  %v1096 = vrot.slane %v930, 2
  %v1097 = vrot.slane %v932, 2
  %v1098 = vrot.slane %v934, 2
  %v1099 = vrot.slane %v936, 2
  %v1104 = vadd.f32 %v1096, %v1092
  %v1105 = vadd.f32 %v1097, %v1093
  %v1106 = vadd.f32 %v1098, %v1094
  %v1107 = vadd.f32 %v1099, %v1095
  %v1108 = vtanh.pop %v1104
  %v1109 = vtanh.pop %v1105
  %v1110 = vtanh.pop %v1106
  %v1111 = vtanh.pop %v1107
  %v1112 = vsub.f32 1.0, %v1056
  %v1113 = vsub.f32 1.0, %v1058
  %v1114 = vsub.f32 1.0, %v1060
  %v1115 = vsub.f32 1.0, %v1062
  %v1116 = vmul.f32 %v1112, %v1108
  %v1117 = vmul.f32 %v1113, %v1109
  %v1118 = vmul.f32 %v1114, %v1110
  %v1119 = vmul.f32 %v1115, %v1111
  %v1120 = vmul.f32 %v1056, 0.0
  %v1121 = vmul.f32 %v1058, 0.0
  %v1122 = vmul.f32 %v1060, 0.0
  %v1123 = vmul.f32 %v1062, 0.0
  %v1124 = vadd.f32 %v1116, %v1120
  %v1125 = vadd.f32 %v1117, %v1121
  %v1126 = vadd.f32 %v1118, %v1122
  %v1127 = vadd.f32 %v1119, %v1123
  %v1132 = vcombine.low %v1124, %v1125
  %v1133 = vcombine.low %v1126, %v1127
  %v1135 = vunpack.c.l.s4 1966171168
  %v1136 = vunpack.c.0.s8 %v1135
  %v1137 = vlaneseq
  %v1138 = vshrl.u32 %v1137, 7
  %v1139 = vsub.s32 %v1136, %v1138
  %v1140 = vrot.slane %v1132, %v1139
  %v1142 = vunpack.c.l.s4 1966171168
  %v1143 = vunpack.c.0.s8 %v1142
  %v1144 = vlaneseq
  %v1145 = vshrl.u32 %v1144, 7
  %v1146 = vsub.s32 %v1143, %v1145
  %v1147 = vrot.slane %v1133, %v1146
  %v1148 = vcombine.low %v1140, %v1147
  %v1150 = vunpack.c.l.s4 1966171168
  %v1151 = vunpack.c.0.s8 %v1150
  %v1152 = vlaneseq
  %v1153 = vshrl.u32 %v1152, 7
  %v1154 = vsub.s32 %v1151, %v1153
  %v1155 = vrot.slane %v1148, %v1154
  %v1157 = vpack.c.bf16 %v1155, %v1155
  %v1254 = vunpack.c.l.b16 %v321
  %v1255 = vunpack.c.h.b16 %v321
  %v1256 = vunpack.c.l.b16 %v322
  %v1257 = vunpack.c.h.b16 %v322
  %v1258 = vunpack.c.l.b16 %v323
  %v1259 = vunpack.c.l.b16 %v326
  %v1260 = vunpack.c.h.b16 %v326
  %v1261 = vunpack.c.l.b16 %v327
  %v1262 = vunpack.c.h.b16 %v327
  %v1263 = vunpack.c.l.b16 %v328
  %v1264 = vunpack.c.l.b16 %v331
  %v1265 = vunpack.c.h.b16 %v331
  %v1266 = vunpack.c.l.b16 %v332
  %v1267 = vunpack.c.h.b16 %v332
  %v1268 = vunpack.c.l.b16 %v333
  %v1269 = vunpack.c.l.b16 %v336
  %v1270 = vunpack.c.h.b16 %v336
  %v1271 = vunpack.c.l.b16 %v337
  %v1272 = vunpack.c.h.b16 %v337
  %v1273 = vunpack.c.l.b16 %v338
  %v1274 = vunpack.c.l.b16 %v341
  %v1275 = vunpack.c.h.b16 %v341
  %v1276 = vunpack.c.l.b16 %v342
  %v1277 = vunpack.c.h.b16 %v342
  %v1278 = vunpack.c.l.b16 %v343
  %v1279 = vunpack.c.l.b16 %v346
  %v1280 = vunpack.c.h.b16 %v346
  %v1281 = vunpack.c.l.b16 %v347
  %v1282 = vunpack.c.h.b16 %v347
  %v1283 = vunpack.c.l.b16 %v348
  %v1284 = vunpack.c.l.b16 %v351
  %v1285 = vunpack.c.h.b16 %v351
  %v1286 = vunpack.c.l.b16 %v352
  %v1287 = vunpack.c.h.b16 %v352
  %v1288 = vunpack.c.l.b16 %v353
  %v1289 = vunpack.c.l.b16 %v356
  %v1290 = vunpack.c.h.b16 %v356
  %v1291 = vunpack.c.l.b16 %v357
  %v1292 = vunpack.c.h.b16 %v357
  %v1293 = vunpack.c.l.b16 %v358
  %v1294 = vunpack.c.l.b16 %v361
  %v1295 = vunpack.c.h.b16 %v361
  %v1296 = vunpack.c.l.b16 %v362
  %v1297 = vunpack.c.h.b16 %v362
  %v1298 = vunpack.c.l.b16 %v363
  %v1299 = vunpack.c.l.b16 %v366
  %v1300 = vunpack.c.h.b16 %v366
  %v1301 = vunpack.c.l.b16 %v367
  %v1302 = vunpack.c.h.b16 %v367
  %v1303 = vunpack.c.l.b16 %v368
  %v1304 = vunpack.c.l.b16 %v371
  %v1305 = vunpack.c.h.b16 %v371
  %v1306 = vunpack.c.l.b16 %v372
  %v1307 = vunpack.c.h.b16 %v372
  %v1308 = vunpack.c.l.b16 %v373
  %v1309 = vunpack.c.l.b16 %v376
  %v1310 = vunpack.c.h.b16 %v376
  %v1311 = vunpack.c.l.b16 %v377
  %v1312 = vunpack.c.h.b16 %v377
  %v1313 = vunpack.c.l.b16 %v378
  %v1314 = vunpack.c.l.b16 %v381
  %v1315 = vunpack.c.h.b16 %v381
  %v1316 = vunpack.c.l.b16 %v382
  %v1317 = vunpack.c.h.b16 %v382
  %v1318 = vunpack.c.l.b16 %v383
  %v1319 = vunpack.c.l.b16 %v386
  %v1320 = vunpack.c.h.b16 %v386
  %v1321 = vunpack.c.l.b16 %v387
  %v1322 = vunpack.c.h.b16 %v387
  %v1323 = vunpack.c.l.b16 %v388
  %v1324 = vunpack.c.l.b16 %v391
  %v1325 = vunpack.c.h.b16 %v391
  %v1326 = vunpack.c.l.b16 %v392
  %v1327 = vunpack.c.h.b16 %v392
  %v1328 = vunpack.c.l.b16 %v393
  %v1329 = vunpack.c.l.b16 %v396
  %v1330 = vunpack.c.h.b16 %v396
  %v1331 = vunpack.c.l.b16 %v397
  %v1332 = vunpack.c.h.b16 %v397
  %v1333 = vunpack.c.l.b16 %v398
  %v1334 = vunpack.c.l.b16 %v401
  %v1335 = vunpack.c.h.b16 %v401
  %v1336 = vunpack.c.l.b16 %v402
  %v1337 = vunpack.c.h.b16 %v402
  %v1338 = vunpack.c.l.b16 %v403
  %v1339 = vunpack.c.l.b16 %v406
  %v1340 = vunpack.c.h.b16 %v406
  %v1341 = vunpack.c.l.b16 %v407
  %v1342 = vunpack.c.h.b16 %v407
  %v1343 = vunpack.c.l.b16 %v408
  %v1344 = vunpack.c.l.b16 %v411
  %v1345 = vunpack.c.h.b16 %v411
  %v1346 = vunpack.c.l.b16 %v412
  %v1347 = vunpack.c.h.b16 %v412
  %v1348 = vunpack.c.l.b16 %v413
  %v1349 = vunpack.c.l.b16 %v416
  %v1350 = vunpack.c.h.b16 %v416
  %v1351 = vunpack.c.l.b16 %v417
  %v1352 = vunpack.c.h.b16 %v417
  %v1353 = vunpack.c.l.b16 %v418
  %v1354 = vunpack.c.l.b16 %v421
  %v1355 = vunpack.c.h.b16 %v421
  %v1356 = vunpack.c.l.b16 %v422
  %v1357 = vunpack.c.h.b16 %v422
  %v1358 = vunpack.c.l.b16 %v423
  %v1359 = vunpack.c.l.b16 %v426
  %v1360 = vunpack.c.h.b16 %v426
  %v1361 = vunpack.c.l.b16 %v427
  %v1362 = vunpack.c.h.b16 %v427
  %v1363 = vunpack.c.l.b16 %v428
  %v1364 = vunpack.c.l.b16 %v431
  %v1365 = vunpack.c.h.b16 %v431
  %v1366 = vunpack.c.l.b16 %v432
  %v1367 = vunpack.c.h.b16 %v432
  %v1368 = vunpack.c.l.b16 %v433
  %v1369 = vunpack.c.l.b16 %v436
  %v1370 = vunpack.c.h.b16 %v436
  %v1371 = vunpack.c.l.b16 %v437
  %v1372 = vunpack.c.h.b16 %v437
  %v1373 = vunpack.c.l.b16 %v438
  %v1374 = vunpack.c.l.b16 %v441
  %v1375 = vunpack.c.h.b16 %v441
  %v1376 = vunpack.c.l.b16 %v442
  %v1377 = vunpack.c.h.b16 %v442
  %v1378 = vunpack.c.l.b16 %v443
  %v1379 = vunpack.c.l.b16 %v446
  %v1380 = vunpack.c.h.b16 %v446
  %v1381 = vunpack.c.l.b16 %v447
  %v1382 = vunpack.c.h.b16 %v447
  %v1383 = vunpack.c.l.b16 %v448
  %v1384 = vunpack.c.l.b16 %v451
  %v1385 = vunpack.c.h.b16 %v451
  %v1386 = vunpack.c.l.b16 %v452
  %v1387 = vunpack.c.h.b16 %v452
  %v1388 = vunpack.c.l.b16 %v453
  %v1389 = vunpack.c.l.b16 %v456
  %v1390 = vunpack.c.h.b16 %v456
  %v1391 = vunpack.c.l.b16 %v457
  %v1392 = vunpack.c.h.b16 %v457
  %v1393 = vunpack.c.l.b16 %v458
  %v1394 = vunpack.c.l.b16 %v461
  %v1395 = vunpack.c.h.b16 %v461
  %v1396 = vunpack.c.l.b16 %v462
  %v1397 = vunpack.c.h.b16 %v462
  %v1398 = vunpack.c.l.b16 %v463
  %v1399 = vunpack.c.l.b16 %v466
  %v1400 = vunpack.c.h.b16 %v466
  %v1401 = vunpack.c.l.b16 %v467
  %v1402 = vunpack.c.h.b16 %v467
  %v1403 = vunpack.c.l.b16 %v468
  %v1404 = vunpack.c.l.b16 %v471
  %v1405 = vunpack.c.h.b16 %v471
  %v1406 = vunpack.c.l.b16 %v472
  %v1407 = vunpack.c.h.b16 %v472
  %v1408 = vunpack.c.l.b16 %v473
  %v1409 = vunpack.c.l.b16 %v476
  %v1410 = vunpack.c.h.b16 %v476
  %v1411 = vunpack.c.l.b16 %v477
  %v1412 = vunpack.c.h.b16 %v477
  %v1413 = vunpack.c.l.b16 %v478
  %v1414 = vpack.c.b16 %v1259, %v1254
  %v1415 = vpack.c.b16 %v1260, %v1255
  %v1416 = vpack.c.b16 %v1261, %v1256
  %v1417 = vpack.c.b16 %v1262, %v1257
  %v1418 = vpack.c.b16 %v1263, %v1258
  %v1419 = vpack.c.b16 %v1269, %v1264
  %v1420 = vpack.c.b16 %v1270, %v1265
  %v1421 = vpack.c.b16 %v1271, %v1266
  %v1422 = vpack.c.b16 %v1272, %v1267
  %v1423 = vpack.c.b16 %v1273, %v1268
  %v1424 = vpack.c.b16 %v1279, %v1274
  %v1425 = vpack.c.b16 %v1280, %v1275
  %v1426 = vpack.c.b16 %v1281, %v1276
  %v1427 = vpack.c.b16 %v1282, %v1277
  %v1428 = vpack.c.b16 %v1283, %v1278
  %v1429 = vpack.c.b16 %v1289, %v1284
  %v1430 = vpack.c.b16 %v1290, %v1285
  %v1431 = vpack.c.b16 %v1291, %v1286
  %v1432 = vpack.c.b16 %v1292, %v1287
  %v1433 = vpack.c.b16 %v1293, %v1288
  %v1434 = vpack.c.b16 %v1299, %v1294
  %v1435 = vpack.c.b16 %v1300, %v1295
  %v1436 = vpack.c.b16 %v1301, %v1296
  %v1437 = vpack.c.b16 %v1302, %v1297
  %v1438 = vpack.c.b16 %v1303, %v1298
  %v1439 = vpack.c.b16 %v1309, %v1304
  %v1440 = vpack.c.b16 %v1310, %v1305
  %v1441 = vpack.c.b16 %v1311, %v1306
  %v1442 = vpack.c.b16 %v1312, %v1307
  %v1443 = vpack.c.b16 %v1313, %v1308
  %v1444 = vpack.c.b16 %v1319, %v1314
  %v1445 = vpack.c.b16 %v1320, %v1315
  %v1446 = vpack.c.b16 %v1321, %v1316
  %v1447 = vpack.c.b16 %v1322, %v1317
  %v1448 = vpack.c.b16 %v1323, %v1318
  %v1449 = vpack.c.b16 %v1329, %v1324
  %v1450 = vpack.c.b16 %v1330, %v1325
  %v1451 = vpack.c.b16 %v1331, %v1326
  %v1452 = vpack.c.b16 %v1332, %v1327
  %v1453 = vpack.c.b16 %v1333, %v1328
  %v1454 = vpack.c.b16 %v1339, %v1334
  %v1455 = vpack.c.b16 %v1340, %v1335
  %v1456 = vpack.c.b16 %v1341, %v1336
  %v1457 = vpack.c.b16 %v1342, %v1337
  %v1458 = vpack.c.b16 %v1343, %v1338
  %v1459 = vpack.c.b16 %v1349, %v1344
  %v1460 = vpack.c.b16 %v1350, %v1345
  %v1461 = vpack.c.b16 %v1351, %v1346
  %v1462 = vpack.c.b16 %v1352, %v1347
  %v1463 = vpack.c.b16 %v1353, %v1348
  %v1464 = vpack.c.b16 %v1359, %v1354
  %v1465 = vpack.c.b16 %v1360, %v1355
  %v1466 = vpack.c.b16 %v1361, %v1356
  %v1467 = vpack.c.b16 %v1362, %v1357
  %v1468 = vpack.c.b16 %v1363, %v1358
  %v1469 = vpack.c.b16 %v1369, %v1364
  %v1470 = vpack.c.b16 %v1370, %v1365
  %v1471 = vpack.c.b16 %v1371, %v1366
  %v1472 = vpack.c.b16 %v1372, %v1367
  %v1473 = vpack.c.b16 %v1373, %v1368
  %v1474 = vpack.c.b16 %v1379, %v1374
  %v1475 = vpack.c.b16 %v1380, %v1375
  %v1476 = vpack.c.b16 %v1381, %v1376
  %v1477 = vpack.c.b16 %v1382, %v1377
  %v1478 = vpack.c.b16 %v1383, %v1378
  %v1479 = vpack.c.b16 %v1389, %v1384
  %v1480 = vpack.c.b16 %v1390, %v1385
  %v1481 = vpack.c.b16 %v1391, %v1386
  %v1482 = vpack.c.b16 %v1392, %v1387
  %v1483 = vpack.c.b16 %v1393, %v1388
  %v1484 = vpack.c.b16 %v1399, %v1394
  %v1485 = vpack.c.b16 %v1400, %v1395
  %v1486 = vpack.c.b16 %v1401, %v1396
  %v1487 = vpack.c.b16 %v1402, %v1397
  %v1488 = vpack.c.b16 %v1403, %v1398
  %v1489 = vpack.c.b16 %v1409, %v1404
  %v1490 = vpack.c.b16 %v1410, %v1405
  %v1491 = vpack.c.b16 %v1411, %v1406
  %v1492 = vpack.c.b16 %v1412, %v1407
  %v1493 = vpack.c.b16 %v1413, %v1408
  %1574 = vmatprep.subr.bf16.mxu0 %v722
  %1575 = vmatpush1.bf16.msra.mxu0 %v721
  %1576 = vmatprep.subr.bf16.mxu0 %v726
  %1577 = vmatpush1.bf16.msra.mxu0 %v725
  %1578 = vmatprep.subr.bf16.mxu0 %v730
  %1579 = vmatpush1.bf16.msra.mxu0 %v729
  %1580 = vmatprep.subr.bf16.mxu0 %v734
  %1581 = vmatpush1.bf16.msra.mxu0 %v733
  %1582 = vmatprep.subr.bf16.mxu0 %v738
  %1583 = vmatpush1.bf16.msra.mxu0 %v737
  %1584 = vmatprep.subr.bf16.mxu0 %v742
  %1585 = vmatpush1.bf16.msra.mxu0 %v741
  %1586 = vmatprep.subr.bf16.mxu0 %v746
  %1587 = vmatpush1.bf16.msra.mxu0 %v745
  %1588 = vmatprep.subr.bf16.mxu0 %v750
  %1589 = vmatpush1.bf16.msra.mxu0 %v749
  %1590 = vmatprep.subr.bf16.mxu0 %v754
  %1591 = vmatpush1.bf16.msra.mxu0 %v753
  %1592 = vmatprep.subr.bf16.mxu0 %v758
  %1593 = vmatpush1.bf16.msra.mxu0 %v757
  %1594 = vmatprep.subr.bf16.mxu0 %v762
  %1595 = vmatpush1.bf16.msra.mxu0 %v761
  %1596 = vmatprep.subr.bf16.mxu0 %v766
  %1597 = vmatpush1.bf16.msra.mxu0 %v765
  %1598 = vmatprep.subr.bf16.mxu0 %v770
  %1599 = vmatpush1.bf16.msra.mxu0 %v769
  %1600 = vmatprep.subr.bf16.mxu0 %v774
  %1601 = vmatpush1.bf16.msra.mxu0 %v773
  %1602 = vmatprep.subr.bf16.mxu0 %v778
  %1603 = vmatpush1.bf16.msra.mxu0 %v777
  %1604 = vmatprep.subr.bf16.mxu0 %v782
  %1605 = vmatpush1.bf16.msra.mxu0 %v781
  %1606 = vmatprep.mubr.bf16.mxu0 %v481
  %1607 = vmatmul.mubr.bf16.gmra.mrb[0].mxu0 %v1157
  %v1608 = vpop.f32.mrb[0].mxu0
  %v1609 = vadd.f32 %v487, %v1608
  %v1610 = vpop.f32.mrb[0].mxu0
  %v1611 = vadd.f32 %v491, %v1610
  %v1612 = vpop.f32.mrb[0].mxu0
  %v1613 = vpop.f32.mrb[0].mxu0
  %1614 = vdwg.mxu0
  %1615 = vmatprep.subr.bf16.mxu0 %v724
  %1616 = vmatpush1.bf16.msra.mxu0 %v723
  %1617 = vmatprep.subr.bf16.mxu0 %v728
  %1618 = vmatpush1.bf16.msra.mxu0 %v727
  %1619 = vmatprep.subr.bf16.mxu0 %v732
  %1620 = vmatpush1.bf16.msra.mxu0 %v731
  %1621 = vmatprep.subr.bf16.mxu0 %v736
  %1622 = vmatpush1.bf16.msra.mxu0 %v735
  %1623 = vmatprep.subr.bf16.mxu0 %v740
  %1624 = vmatpush1.bf16.msra.mxu0 %v739
  %1625 = vmatprep.subr.bf16.mxu0 %v744
  %1626 = vmatpush1.bf16.msra.mxu0 %v743
  %1627 = vmatprep.subr.bf16.mxu0 %v748
  %1628 = vmatpush1.bf16.msra.mxu0 %v747
  %1629 = vmatprep.subr.bf16.mxu0 %v752
  %1630 = vmatpush1.bf16.msra.mxu0 %v751
  %1631 = vmatprep.subr.bf16.mxu0 %v756
  %1632 = vmatpush1.bf16.msra.mxu0 %v755
  %1633 = vmatprep.subr.bf16.mxu0 %v760
  %1634 = vmatpush1.bf16.msra.mxu0 %v759
  %1635 = vmatprep.subr.bf16.mxu0 %v764
  %1636 = vmatpush1.bf16.msra.mxu0 %v763
  %1637 = vmatprep.subr.bf16.mxu0 %v768
  %1638 = vmatpush1.bf16.msra.mxu0 %v767
  %1639 = vmatprep.subr.bf16.mxu0 %v772
  %1640 = vmatpush1.bf16.msra.mxu0 %v771
  %1641 = vmatprep.subr.bf16.mxu0 %v776
  %1642 = vmatpush1.bf16.msra.mxu0 %v775
  %1643 = vmatprep.subr.bf16.mxu0 %v780
  %1644 = vmatpush1.bf16.msra.mxu0 %v779
  %1645 = vmatprep.subr.bf16.mxu0 %v784
  %1646 = vmatpush1.bf16.msra.mxu0 %v783
  %1647 = vmatprep.mubr.bf16.mxu0 %v481
  %1648 = vmatmul.mubr.bf16.gmra.mrb[0].mxu0 %v1157
  %v1649 = vpop.f32.mrb[0].mxu0
  %v1650 = vadd.f32 %v495, %v1649
  %v1651 = vpop.f32.mrb[0].mxu0
  %v1652 = vadd.f32 %v499, %v1651
  %v1653 = vpop.f32.mrb[0].mxu0
  %v1654 = vpop.f32.mrb[0].mxu0
  %1655 = vdwg.mxu0
  %1656 = vmatprep.subr.bf16.mxu0 %v1415
  %1657 = vmatpush1.bf16.msra.mxu0 %v1414
  %1658 = vmatprep.subr.bf16.mxu0 %v1420
  %1659 = vmatpush1.bf16.msra.mxu0 %v1419
  %1660 = vmatprep.subr.bf16.mxu0 %v1425
  %1661 = vmatpush1.bf16.msra.mxu0 %v1424
  %1662 = vmatprep.subr.bf16.mxu0 %v1430
  %1663 = vmatpush1.bf16.msra.mxu0 %v1429
  %1664 = vmatprep.subr.bf16.mxu0 %v1435
  %1665 = vmatpush1.bf16.msra.mxu0 %v1434
  %1666 = vmatprep.subr.bf16.mxu0 %v1440
  %1667 = vmatpush1.bf16.msra.mxu0 %v1439
  %1668 = vmatprep.subr.bf16.mxu0 %v1445
  %1669 = vmatpush1.bf16.msra.mxu0 %v1444
  %1670 = vmatprep.subr.bf16.mxu0 %v1450
  %1671 = vmatpush1.bf16.msra.mxu0 %v1449
  %1672 = vmatprep.subr.bf16.mxu0 %v1455
  %1673 = vmatpush1.bf16.msra.mxu0 %v1454
  %1674 = vmatprep.subr.bf16.mxu0 %v1460
  %1675 = vmatpush1.bf16.msra.mxu0 %v1459
  %1676 = vmatprep.subr.bf16.mxu0 %v1465
  %1677 = vmatpush1.bf16.msra.mxu0 %v1464
  %1678 = vmatprep.subr.bf16.mxu0 %v1470
  %1679 = vmatpush1.bf16.msra.mxu0 %v1469
  %1680 = vmatprep.subr.bf16.mxu0 %v1475
  %1681 = vmatpush1.bf16.msra.mxu0 %v1474
  %1682 = vmatprep.subr.bf16.mxu0 %v1480
  %1683 = vmatpush1.bf16.msra.mxu0 %v1479
  %1684 = vmatprep.subr.bf16.mxu0 %v1485
  %1685 = vmatpush1.bf16.msra.mxu0 %v1484
  %1686 = vmatprep.subr.bf16.mxu0 %v1490
  %1687 = vmatpush1.bf16.msra.mxu0 %v1489
  %1688 = vmatprep.mubr.bf16.mxu0 %v481
  %1689 = vmatmul.mubr.bf16.gmra.mrb[0].mxu0 %v1157
  %v1690 = vpop.f32.mrb[0].mxu0
  %v1691 = vadd.f32 %v503, %v1690
  %v1692 = vpop.f32.mrb[0].mxu0
  %v1693 = vadd.f32 %v507, %v1692
  %v1694 = vpop.f32.mrb[0].mxu0
  %v1695 = vpop.f32.mrb[0].mxu0
  %1696 = vdwg.mxu0
  %1697 = vmatprep.subr.bf16.mxu0 %v1417
  %1698 = vmatpush1.bf16.msra.mxu0 %v1416
  %1699 = vmatprep.subr.bf16.mxu0 %v1422
  %1700 = vmatpush1.bf16.msra.mxu0 %v1421
  %1701 = vmatprep.subr.bf16.mxu0 %v1427
  %1702 = vmatpush1.bf16.msra.mxu0 %v1426
  %1703 = vmatprep.subr.bf16.mxu0 %v1432
  %1704 = vmatpush1.bf16.msra.mxu0 %v1431
  %1705 = vmatprep.subr.bf16.mxu0 %v1437
  %1706 = vmatpush1.bf16.msra.mxu0 %v1436
  %1707 = vmatprep.subr.bf16.mxu0 %v1442
  %1708 = vmatpush1.bf16.msra.mxu0 %v1441
  %1709 = vmatprep.subr.bf16.mxu0 %v1447
  %1710 = vmatpush1.bf16.msra.mxu0 %v1446
  %1711 = vmatprep.subr.bf16.mxu0 %v1452
  %1712 = vmatpush1.bf16.msra.mxu0 %v1451
  %1713 = vmatprep.subr.bf16.mxu0 %v1457
  %1714 = vmatpush1.bf16.msra.mxu0 %v1456
  %1715 = vmatprep.subr.bf16.mxu0 %v1462
  %1716 = vmatpush1.bf16.msra.mxu0 %v1461
  %1717 = vmatprep.subr.bf16.mxu0 %v1467
  %1718 = vmatpush1.bf16.msra.mxu0 %v1466
  %1719 = vmatprep.subr.bf16.mxu0 %v1472
  %1720 = vmatpush1.bf16.msra.mxu0 %v1471
  %1721 = vmatprep.subr.bf16.mxu0 %v1477
  %1722 = vmatpush1.bf16.msra.mxu0 %v1476
  %1723 = vmatprep.subr.bf16.mxu0 %v1482
  %1724 = vmatpush1.bf16.msra.mxu0 %v1481
  %1725 = vmatprep.subr.bf16.mxu0 %v1487
  %1726 = vmatpush1.bf16.msra.mxu0 %v1486
  %1727 = vmatprep.subr.bf16.mxu0 %v1492
  %1728 = vmatpush1.bf16.msra.mxu0 %v1491
  %1729 = vmatprep.mubr.bf16.mxu0 %v481
  %1730 = vmatmul.mubr.bf16.gmra.mrb[0].mxu0 %v1157
  %v1731 = vpop.f32.mrb[0].mxu0
  %v1732 = vadd.f32 %v511, %v1731
  %v1733 = vpop.f32.mrb[0].mxu0
  %v1734 = vadd.f32 %v515, %v1733
  %v1735 = vpop.f32.mrb[0].mxu0
  %v1736 = vpop.f32.mrb[0].mxu0
  %1737 = vdwg.mxu0
  %1738 = vmatprep.subr.bf16.mxu0 0
  %1739 = vmatpush1.bf16.msra.mxu0 %v1418
  %1740 = vmatprep.subr.bf16.mxu0 0
  %1741 = vmatpush1.bf16.msra.mxu0 %v1423
  %1742 = vmatprep.subr.bf16.mxu0 0
  %1743 = vmatpush1.bf16.msra.mxu0 %v1428
  %1744 = vmatprep.subr.bf16.mxu0 0
  %1745 = vmatpush1.bf16.msra.mxu0 %v1433
  %1746 = vmatprep.subr.bf16.mxu0 0
  %1747 = vmatpush1.bf16.msra.mxu0 %v1438
  %1748 = vmatprep.subr.bf16.mxu0 0
  %1749 = vmatpush1.bf16.msra.mxu0 %v1443
  %1750 = vmatprep.subr.bf16.mxu0 0
  %1751 = vmatpush1.bf16.msra.mxu0 %v1448
  %1752 = vmatprep.subr.bf16.mxu0 0
  %1753 = vmatpush1.bf16.msra.mxu0 %v1453
  %1754 = vmatprep.subr.bf16.mxu0 0
  %1755 = vmatpush1.bf16.msra.mxu0 %v1458
  %1756 = vmatprep.subr.bf16.mxu0 0
  %1757 = vmatpush1.bf16.msra.mxu0 %v1463
  %1758 = vmatprep.subr.bf16.mxu0 0
  %1759 = vmatpush1.bf16.msra.mxu0 %v1468
  %1760 = vmatprep.subr.bf16.mxu0 0
  %1761 = vmatpush1.bf16.msra.mxu0 %v1473
  %1762 = vmatprep.subr.bf16.mxu0 0
  %1763 = vmatpush1.bf16.msra.mxu0 %v1478
  %1764 = vmatprep.subr.bf16.mxu0 0
  %1765 = vmatpush1.bf16.msra.mxu0 %v1483
  %1766 = vmatprep.subr.bf16.mxu0 0
  %1767 = vmatpush1.bf16.msra.mxu0 %v1488
  %1768 = vmatprep.subr.bf16.mxu0 0
  %1769 = vmatpush1.bf16.msra.mxu0 %v1493
  %1770 = vmatprep.mubr.bf16.mxu0 %v481
  %1771 = vmatmul.mubr.bf16.gmra.mrb[0].mxu0 %v1157
  %v1772 = vpop.f32.mrb[0].mxu0
  %v1773 = vadd.f32 %v519, %v1772
  %v1774 = vpop.f32.mrb[0].mxu0
  %v1775 = vpop.f32.mrb[0].mxu0
  %v1776 = vpop.f32.mrb[0].mxu0
  %1777 = vdwg.mxu0
  %s1778 = scalar_lea.vmem [#allocation2], 1
  %v1779 = vld [vmem:[%s1778] ss:$4 sm:$0x7]
  %s1780 = scalar_lea.vmem [#allocation2], 13
  %v1781 = vld [vmem:[%s1780] ss:$4 sm:$0x7]
  %s1782 = scalar_lea.vmem [#allocation2], 25
  %v1783 = vld [vmem:[%s1782] ss:$4 sm:$0x7]
  %s1784 = scalar_lea.vmem [#allocation2], 37
  %v1785 = vld [vmem:[%s1784] ss:$4 sm:$0x7]
  %v1788 = vunpack.c.l.s4 1966171168
  %v1789 = vunpack.c.0.s8 %v1788
  %v1790 = vlaneseq
  %v1791 = vshrl.u32 %v1790, 7
  %v1792 = vsub.s32 %v1789, %v1791
  %v1793 = vrot.slane %v1609, %v1792
  %v1794 = vcombine.high %v1793, %v1793
  %v1796 = vunpack.c.l.s4 1966171168
  %v1797 = vunpack.c.0.s8 %v1796
  %v1798 = vlaneseq
  %v1799 = vshrl.u32 %v1798, 7
  %v1800 = vsub.s32 %v1797, %v1799
  %v1801 = vrot.slane %v1793, %v1800
  %v1803 = vunpack.c.l.s4 1966171168
  %v1804 = vunpack.c.0.s8 %v1803
  %v1805 = vlaneseq
  %v1806 = vshrl.u32 %v1805, 7
  %v1807 = vsub.s32 %v1804, %v1806
  %v1808 = vrot.slane %v1794, %v1807
  %v1809 = vcombine.high %v1801, %v1801
  %v1810 = vcombine.high %v1808, %v1808
  %v1815 = vadd.f32 %v1779, %v1801
  %v1816 = vadd.f32 %v1781, %v1808
  %v1817 = vadd.f32 %v1783, %v1809
  %v1818 = vadd.f32 %v1785, %v1810
  %v1819 = vxor.u32 %v1815, 2147483648
  %v1820 = vxor.u32 %v1816, 2147483648
  %v1821 = vxor.u32 %v1817, 2147483648
  %v1822 = vxor.u32 %v1818, 2147483648
  %v1823 = vmul.f32 %v1819, 1.442695
  %v1824 = vpow.pop %v1823
  %v1825 = vmul.f32 %v1820, 1.442695
  %v1826 = vpow.pop %v1825
  %v1827 = vmul.f32 %v1821, 1.442695
  %v1828 = vpow.pop %v1827
  %v1829 = vmul.f32 %v1822, 1.442695
  %v1830 = vpow.pop %v1829
  %v1831 = vadd.f32 %v1824, 1.0
  %v1832 = vadd.f32 %v1826, 1.0
  %v1833 = vadd.f32 %v1828, 1.0
  %v1834 = vadd.f32 %v1830, 1.0
  %v1835 = vrcp.pop %v1831
  %v1836 = vmul.f32 1.0, %v1835
  %v1837 = vrcp.pop %v1832
  %v1838 = vmul.f32 1.0, %v1837
  %v1839 = vrcp.pop %v1833
  %v1840 = vmul.f32 1.0, %v1839
  %v1841 = vrcp.pop %v1834
  %v1842 = vmul.f32 1.0, %v1841
  %v1847 = vrot.slane %v1779, 1
  %v1848 = vrot.slane %v1781, 1
  %v1849 = vrot.slane %v1783, 1
  %v1850 = vrot.slane %v1785, 1
  %v1857 = vunpack.c.l.s4 1966171168
  %v1858 = vunpack.c.0.s8 %v1857
  %v1859 = vlaneseq
  %v1860 = vshrl.u32 %v1859, 7
  %v1861 = vsub.s32 %v1858, %v1860
  %v1862 = vrot.slane %v1611, %v1861
  %v1863 = vcombine.high %v1862, %v1862
  %v1865 = vunpack.c.l.s4 1966171168
  %v1866 = vunpack.c.0.s8 %v1865
  %v1867 = vlaneseq
  %v1868 = vshrl.u32 %v1867, 7
  %v1869 = vsub.s32 %v1866, %v1868
  %v1870 = vrot.slane %v1862, %v1869
  %v1872 = vunpack.c.l.s4 1966171168
  %v1873 = vunpack.c.0.s8 %v1872
  %v1874 = vlaneseq
  %v1875 = vshrl.u32 %v1874, 7
  %v1876 = vsub.s32 %v1873, %v1875
  %v1877 = vrot.slane %v1863, %v1876
  %v1878 = vcombine.high %v1870, %v1870
  %v1879 = vcombine.high %v1877, %v1877
  %v1884 = vadd.f32 %v1847, %v1870
  %v1885 = vadd.f32 %v1848, %v1877
  %v1886 = vadd.f32 %v1849, %v1878
  %v1887 = vadd.f32 %v1850, %v1879
  %v1888 = vxor.u32 %v1884, 2147483648
  %v1889 = vxor.u32 %v1885, 2147483648
  %v1890 = vxor.u32 %v1886, 2147483648
  %v1891 = vxor.u32 %v1887, 2147483648
  %v1892 = vmul.f32 %v1888, 1.442695
  %v1893 = vpow.pop %v1892
  %v1894 = vmul.f32 %v1889, 1.442695
  %v1895 = vpow.pop %v1894
  %v1896 = vmul.f32 %v1890, 1.442695
  %v1897 = vpow.pop %v1896
  %v1898 = vmul.f32 %v1891, 1.442695
  %v1899 = vpow.pop %v1898
  %v1900 = vadd.f32 %v1893, 1.0
  %v1901 = vadd.f32 %v1895, 1.0
  %v1902 = vadd.f32 %v1897, 1.0
  %v1903 = vadd.f32 %v1899, 1.0
  %v1904 = vrcp.pop %v1900
  %v1905 = vmul.f32 1.0, %v1904
  %v1906 = vrcp.pop %v1901
  %v1907 = vmul.f32 1.0, %v1906
  %v1908 = vrcp.pop %v1902
  %v1909 = vmul.f32 1.0, %v1908
  %v1910 = vrcp.pop %v1903
  %v1911 = vmul.f32 1.0, %v1910
  %v1914 = vunpack.c.l.s4 1966171168
  %v1915 = vunpack.c.0.s8 %v1914
  %v1916 = vlaneseq
  %v1917 = vshrl.u32 %v1916, 7
  %v1918 = vsub.s32 %v1915, %v1917
  %v1919 = vrot.slane %v1650, %v1918
  %v1920 = vcombine.high %v1919, %v1919
  %v1922 = vunpack.c.l.s4 1966171168
  %v1923 = vunpack.c.0.s8 %v1922
  %v1924 = vlaneseq
  %v1925 = vshrl.u32 %v1924, 7
  %v1926 = vsub.s32 %v1923, %v1925
  %v1927 = vrot.slane %v1919, %v1926
  %v1929 = vunpack.c.l.s4 1966171168
  %v1930 = vunpack.c.0.s8 %v1929
  %v1931 = vlaneseq
  %v1932 = vshrl.u32 %v1931, 7
  %v1933 = vsub.s32 %v1930, %v1932
  %v1934 = vrot.slane %v1920, %v1933
  %v1935 = vcombine.high %v1927, %v1927
  %v1936 = vcombine.high %v1934, %v1934
  %v1941 = vmul.f32 %v1836, %v1927
  %v1942 = vmul.f32 %v1838, %v1934
  %v1943 = vmul.f32 %v1840, %v1935
  %v1944 = vmul.f32 %v1842, %v1936
  %v1945 = vrot.slane %v1779, 2
  %v1946 = vrot.slane %v1781, 2
  %v1947 = vrot.slane %v1783, 2
  %v1948 = vrot.slane %v1785, 2
  %v1953 = vadd.f32 %v1945, %v1941
  %v1954 = vadd.f32 %v1946, %v1942
  %v1955 = vadd.f32 %v1947, %v1943
  %v1956 = vadd.f32 %v1948, %v1944
  %v1957 = vtanh.pop %v1953
  %v1958 = vtanh.pop %v1954
  %v1959 = vtanh.pop %v1955
  %v1960 = vtanh.pop %v1956
  %v1961 = vsub.f32 1.0, %v1905
  %v1962 = vsub.f32 1.0, %v1907
  %v1963 = vsub.f32 1.0, %v1909
  %v1964 = vsub.f32 1.0, %v1911
  %v1965 = vmul.f32 %v1961, %v1957
  %v1966 = vmul.f32 %v1962, %v1958
  %v1967 = vmul.f32 %v1963, %v1959
  %v1968 = vmul.f32 %v1964, %v1960
  %v1969 = vmul.f32 %v1905, %v1124
  %v1970 = vmul.f32 %v1907, %v1125
  %v1971 = vmul.f32 %v1909, %v1126
  %v1972 = vmul.f32 %v1911, %v1127
  %v1973 = vadd.f32 %v1965, %v1969
  %v1974 = vadd.f32 %v1966, %v1970
  %v1975 = vadd.f32 %v1967, %v1971
  %v1976 = vadd.f32 %v1968, %v1972
  %v1977 = vadd.f32 %v1652, %v1732
  %v1978 = vxor.u32 %v1977, 2147483648
  %v1979 = vmul.f32 %v1978, 1.442695
  %v1980 = vpow.pop %v1979
  %v1981 = vadd.f32 %v1980, 1.0
  %v1982 = vrcp.pop %v1981
  %v1983 = vmul.f32 1.0, %v1982
  %v1984 = vadd.f32 %v1691, %v1734
  %v1985 = vxor.u32 %v1984, 2147483648
  %v1986 = vmul.f32 %v1985, 1.442695
  %v1987 = vpow.pop %v1986
  %v1988 = vadd.f32 %v1987, 1.0
  %v1989 = vrcp.pop %v1988
  %v1990 = vmul.f32 1.0, %v1989
  %v1991 = vmul.f32 %v1983, %v1773
  %v1992 = vadd.f32 %v1693, %v1991
  %v1993 = vtanh.pop %v1992
  %v1994 = vsub.f32 1.0, %v1990
  %v1995 = vmul.f32 %v1994, %v1993
  %v1996 = vmul.f32 %v1990, 0.0
  %v1997 = vadd.f32 %v1995, %v1996
  %v1998 = vpack.c.bf16 %v1997, %v1997
  %v2001 = vunpack.c.l.s4 1966171168
  %v2002 = vunpack.c.0.s8 %v2001
  %v2003 = vlaneseq
  %v2004 = vshrl.u32 %v2003, 7
  %v2005 = vsub.s32 %v2002, %v2004
  %v2006 = vrot.slane %v1998, %v2005
  %v2007 = vcombine.high %v2006, %v2006
  %v2009 = vunpack.c.l.s4 1966171168
  %v2010 = vunpack.c.0.s8 %v2009
  %v2011 = vlaneseq
  %v2012 = vshrl.u32 %v2011, 7
  %v2013 = vsub.s32 %v2010, %v2012
  %v2014 = vrot.slane %v2006, %v2013
  %v2016 = vunpack.c.l.s4 1966171168
  %v2017 = vunpack.c.0.s8 %v2016
  %v2018 = vlaneseq
  %v2019 = vshrl.u32 %v2018, 7
  %v2020 = vsub.s32 %v2017, %v2019
  %v2021 = vrot.slane %v2007, %v2020
  %v2022 = vunpack.i.l.s16 %v2014
  %v2023 = vunpack.i.h.s16 %v2014
  %v2024 = vunpack.i.l.s16 %v2021
  %v2025 = vunpack.i.h.s16 %v2021
  %v2026 = vpack.i.b16 %v2022, %v2022
  %v2027 = vpack.i.b16 %v2023, %v2023
  %v2028 = vpack.i.b16 %v2024, %v2024
  %v2029 = vpack.i.b16 %v2025, %v2025
  %v2031 = vunpack.c.l.s4 857870592
  %v2032 = vunpack.c.0.s8 %v2031
  %v2033 = vlaneseq
  %v2034 = vshrl.u32 %v2033, 7
  %v2035 = vsub.s32 %v2032, %v2034
  %v2036 = vrot.slane %v2026, %v2035
  %v2038 = vunpack.c.l.s4 857870592
  %v2039 = vunpack.c.0.s8 %v2038
  %v2040 = vlaneseq
  %v2041 = vshrl.u32 %v2040, 7
  %v2042 = vsub.s32 %v2039, %v2041
  %v2043 = vrot.slane %v2027, %v2042
  %v2045 = vunpack.c.l.s4 857870592
  %v2046 = vunpack.c.0.s8 %v2045
  %v2047 = vlaneseq
  %v2048 = vshrl.u32 %v2047, 7
  %v2049 = vsub.s32 %v2046, %v2048
  %v2050 = vrot.slane %v2028, %v2049
  %v2052 = vunpack.c.l.s4 857870592
  %v2053 = vunpack.c.0.s8 %v2052
  %v2054 = vlaneseq
  %v2055 = vshrl.u32 %v2054, 7
  %v2056 = vsub.s32 %v2053, %v2055
  %v2057 = vrot.slane %v2029, %v2056
  %vm2062 = vcmask 1040384
  %vm2063 = vsmask.f32 256
  %vm2064 = vmand %vm2062, %vm2063
  %v2065 = vld [vmem:[%s5] sm:$0x1]
  %v2066 = vsel %vm2064, %v2036, %v2065
  %2067 = vst [vmem:[%s5] sm:$0x1] %v2066
  %v2068 = vld [vmem:[%s5 + $0x2] sm:$0x1]
  %v2069 = vsel %vm2064, %v2043, %v2068
  %2070 = vst [vmem:[%s5 + $0x2] sm:$0x1] %v2069
  %v2071 = vld [vmem:[%s5 + $0x4] sm:$0x1]
  %v2072 = vsel %vm2064, %v2050, %v2071
  %2073 = vst [vmem:[%s5 + $0x4] sm:$0x1] %v2072
  %v2074 = vld [vmem:[%s5 + $0x6] sm:$0x1]
  %v2075 = vsel %vm2064, %v2057, %v2074
  %2076 = vst [vmem:[%s5 + $0x6] sm:$0x1] %v2075
  %v2081 = vcombine.low %v1973, %v1974
  %v2082 = vcombine.low %v1975, %v1976
  %v2084 = vunpack.c.l.s4 1966171168
  %v2085 = vunpack.c.0.s8 %v2084
  %v2086 = vlaneseq
  %v2087 = vshrl.u32 %v2086, 7
  %v2088 = vsub.s32 %v2085, %v2087
  %v2089 = vrot.slane %v2081, %v2088
  %v2091 = vunpack.c.l.s4 1966171168
  %v2092 = vunpack.c.0.s8 %v2091
  %v2093 = vlaneseq
  %v2094 = vshrl.u32 %v2093, 7
  %v2095 = vsub.s32 %v2092, %v2094
  %v2096 = vrot.slane %v2082, %v2095
  %v2097 = vcombine.low %v2089, %v2096
  %v2099 = vunpack.c.l.s4 1966171168
  %v2100 = vunpack.c.0.s8 %v2099
  %v2101 = vlaneseq
  %v2102 = vshrl.u32 %v2101, 7
  %v2103 = vsub.s32 %v2100, %v2102
  %v2104 = vrot.slane %v2097, %v2103
  %v2106 = vpack.c.bf16 %v2104, %v2104
  %2107 = vmatprep.subr.bf16.mxu0 %v722
  %2108 = vmatpush1.bf16.msra.mxu0 %v721
  %2109 = vmatprep.subr.bf16.mxu0 %v726
  %2110 = vmatpush1.bf16.msra.mxu0 %v725
  %2111 = vmatprep.subr.bf16.mxu0 %v730
  %2112 = vmatpush1.bf16.msra.mxu0 %v729
  %2113 = vmatprep.subr.bf16.mxu0 %v734
  %2114 = vmatpush1.bf16.msra.mxu0 %v733
  %2115 = vmatprep.subr.bf16.mxu0 %v738
  %2116 = vmatpush1.bf16.msra.mxu0 %v737
  %2117 = vmatprep.subr.bf16.mxu0 %v742
  %2118 = vmatpush1.bf16.msra.mxu0 %v741
  %2119 = vmatprep.subr.bf16.mxu0 %v746
  %2120 = vmatpush1.bf16.msra.mxu0 %v745
  %2121 = vmatprep.subr.bf16.mxu0 %v750
  %2122 = vmatpush1.bf16.msra.mxu0 %v749
  %2123 = vmatprep.subr.bf16.mxu0 %v754
  %2124 = vmatpush1.bf16.msra.mxu0 %v753
  %2125 = vmatprep.subr.bf16.mxu0 %v758
  %2126 = vmatpush1.bf16.msra.mxu0 %v757
  %2127 = vmatprep.subr.bf16.mxu0 %v762
  %2128 = vmatpush1.bf16.msra.mxu0 %v761
  %2129 = vmatprep.subr.bf16.mxu0 %v766
  %2130 = vmatpush1.bf16.msra.mxu0 %v765
  %2131 = vmatprep.subr.bf16.mxu0 %v770
  %2132 = vmatpush1.bf16.msra.mxu0 %v769
  %2133 = vmatprep.subr.bf16.mxu0 %v774
  %2134 = vmatpush1.bf16.msra.mxu0 %v773
  %2135 = vmatprep.subr.bf16.mxu0 %v778
  %2136 = vmatpush1.bf16.msra.mxu0 %v777
  %2137 = vmatprep.subr.bf16.mxu0 %v782
  %2138 = vmatpush1.bf16.msra.mxu0 %v781
  %2139 = vmatprep.mubr.bf16.mxu0 %v1998
  %2140 = vmatmul.mubr.bf16.gmra.mrb[0].mxu0 %v2106
  %v2141 = vpop.f32.mrb[0].mxu0
  %v2142 = vadd.f32 %v487, %v2141
  %v2143 = vpop.f32.mrb[0].mxu0
  %v2144 = vadd.f32 %v491, %v2143
  %v2145 = vpop.f32.mrb[0].mxu0
  %v2146 = vpop.f32.mrb[0].mxu0
  %2147 = vdwg.mxu0
  %2148 = vmatprep.subr.bf16.mxu0 %v724
  %2149 = vmatpush1.bf16.msra.mxu0 %v723
  %2150 = vmatprep.subr.bf16.mxu0 %v728
  %2151 = vmatpush1.bf16.msra.mxu0 %v727
  %2152 = vmatprep.subr.bf16.mxu0 %v732
  %2153 = vmatpush1.bf16.msra.mxu0 %v731
  %2154 = vmatprep.subr.bf16.mxu0 %v736
  %2155 = vmatpush1.bf16.msra.mxu0 %v735
  %2156 = vmatprep.subr.bf16.mxu0 %v740
  %2157 = vmatpush1.bf16.msra.mxu0 %v739
  %2158 = vmatprep.subr.bf16.mxu0 %v744
  %2159 = vmatpush1.bf16.msra.mxu0 %v743
  %2160 = vmatprep.subr.bf16.mxu0 %v748
  %2161 = vmatpush1.bf16.msra.mxu0 %v747
  %2162 = vmatprep.subr.bf16.mxu0 %v752
  %2163 = vmatpush1.bf16.msra.mxu0 %v751
  %2164 = vmatprep.subr.bf16.mxu0 %v756
  %2165 = vmatpush1.bf16.msra.mxu0 %v755
  %2166 = vmatprep.subr.bf16.mxu0 %v760
  %2167 = vmatpush1.bf16.msra.mxu0 %v759
  %2168 = vmatprep.subr.bf16.mxu0 %v764
  %2169 = vmatpush1.bf16.msra.mxu0 %v763
  %2170 = vmatprep.subr.bf16.mxu0 %v768
  %2171 = vmatpush1.bf16.msra.mxu0 %v767
  %2172 = vmatprep.subr.bf16.mxu0 %v772
  %2173 = vmatpush1.bf16.msra.mxu0 %v771
  %2174 = vmatprep.subr.bf16.mxu0 %v776
  %2175 = vmatpush1.bf16.msra.mxu0 %v775
  %2176 = vmatprep.subr.bf16.mxu0 %v780
  %2177 = vmatpush1.bf16.msra.mxu0 %v779
  %2178 = vmatprep.subr.bf16.mxu0 %v784
  %2179 = vmatpush1.bf16.msra.mxu0 %v783
  %2180 = vmatprep.mubr.bf16.mxu0 %v1998
  %2181 = vmatmul.mubr.bf16.gmra.mrb[0].mxu0 %v2106
  %v2182 = vpop.f32.mrb[0].mxu0
  %v2183 = vadd.f32 %v495, %v2182
  %v2184 = vpop.f32.mrb[0].mxu0
  %v2185 = vadd.f32 %v499, %v2184
  %v2186 = vpop.f32.mrb[0].mxu0
  %v2187 = vpop.f32.mrb[0].mxu0
  %2188 = vdwg.mxu0
  %2189 = vmatprep.subr.bf16.mxu0 %v1415
  %2190 = vmatpush1.bf16.msra.mxu0 %v1414
  %2191 = vmatprep.subr.bf16.mxu0 %v1420
  %2192 = vmatpush1.bf16.msra.mxu0 %v1419
  %2193 = vmatprep.subr.bf16.mxu0 %v1425
  %2194 = vmatpush1.bf16.msra.mxu0 %v1424
  %2195 = vmatprep.subr.bf16.mxu0 %v1430
  %2196 = vmatpush1.bf16.msra.mxu0 %v1429
  %2197 = vmatprep.subr.bf16.mxu0 %v1435
  %2198 = vmatpush1.bf16.msra.mxu0 %v1434
  %2199 = vmatprep.subr.bf16.mxu0 %v1440
  %2200 = vmatpush1.bf16.msra.mxu0 %v1439
  %2201 = vmatprep.subr.bf16.mxu0 %v1445
  %2202 = vmatpush1.bf16.msra.mxu0 %v1444
  %2203 = vmatprep.subr.bf16.mxu0 %v1450
  %2204 = vmatpush1.bf16.msra.mxu0 %v1449
  %2205 = vmatprep.subr.bf16.mxu0 %v1455
  %2206 = vmatpush1.bf16.msra.mxu0 %v1454
  %2207 = vmatprep.subr.bf16.mxu0 %v1460
  %2208 = vmatpush1.bf16.msra.mxu0 %v1459
  %2209 = vmatprep.subr.bf16.mxu0 %v1465
  %2210 = vmatpush1.bf16.msra.mxu0 %v1464
  %2211 = vmatprep.subr.bf16.mxu0 %v1470
  %2212 = vmatpush1.bf16.msra.mxu0 %v1469
  %2213 = vmatprep.subr.bf16.mxu0 %v1475
  %2214 = vmatpush1.bf16.msra.mxu0 %v1474
  %2215 = vmatprep.subr.bf16.mxu0 %v1480
  %2216 = vmatpush1.bf16.msra.mxu0 %v1479
  %2217 = vmatprep.subr.bf16.mxu0 %v1485
  %2218 = vmatpush1.bf16.msra.mxu0 %v1484
  %2219 = vmatprep.subr.bf16.mxu0 %v1490
  %2220 = vmatpush1.bf16.msra.mxu0 %v1489
  %2221 = vmatprep.mubr.bf16.mxu0 %v1998
  %2222 = vmatmul.mubr.bf16.gmra.mrb[0].mxu0 %v2106
  %v2223 = vpop.f32.mrb[0].mxu0
  %v2224 = vadd.f32 %v503, %v2223
  %v2225 = vpop.f32.mrb[0].mxu0
  %v2226 = vadd.f32 %v507, %v2225
  %v2227 = vpop.f32.mrb[0].mxu0
  %v2228 = vpop.f32.mrb[0].mxu0
  %2229 = vdwg.mxu0
  %2230 = vmatprep.subr.bf16.mxu0 %v1417
  %2231 = vmatpush1.bf16.msra.mxu0 %v1416
  %2232 = vmatprep.subr.bf16.mxu0 %v1422
  %2233 = vmatpush1.bf16.msra.mxu0 %v1421
  %2234 = vmatprep.subr.bf16.mxu0 %v1427
  %2235 = vmatpush1.bf16.msra.mxu0 %v1426
  %2236 = vmatprep.subr.bf16.mxu0 %v1432
  %2237 = vmatpush1.bf16.msra.mxu0 %v1431
  %2238 = vmatprep.subr.bf16.mxu0 %v1437
  %2239 = vmatpush1.bf16.msra.mxu0 %v1436
  %2240 = vmatprep.subr.bf16.mxu0 %v1442
  %2241 = vmatpush1.bf16.msra.mxu0 %v1441
  %2242 = vmatprep.subr.bf16.mxu0 %v1447
  %2243 = vmatpush1.bf16.msra.mxu0 %v1446
  %2244 = vmatprep.subr.bf16.mxu0 %v1452
  %2245 = vmatpush1.bf16.msra.mxu0 %v1451
  %2246 = vmatprep.subr.bf16.mxu0 %v1457
  %2247 = vmatpush1.bf16.msra.mxu0 %v1456
  %2248 = vmatprep.subr.bf16.mxu0 %v1462
  %2249 = vmatpush1.bf16.msra.mxu0 %v1461
  %2250 = vmatprep.subr.bf16.mxu0 %v1467
  %2251 = vmatpush1.bf16.msra.mxu0 %v1466
  %2252 = vmatprep.subr.bf16.mxu0 %v1472
  %2253 = vmatpush1.bf16.msra.mxu0 %v1471
  %2254 = vmatprep.subr.bf16.mxu0 %v1477
  %2255 = vmatpush1.bf16.msra.mxu0 %v1476
  %2256 = vmatprep.subr.bf16.mxu0 %v1482
  %2257 = vmatpush1.bf16.msra.mxu0 %v1481
  %2258 = vmatprep.subr.bf16.mxu0 %v1487
  %2259 = vmatpush1.bf16.msra.mxu0 %v1486
  %2260 = vmatprep.subr.bf16.mxu0 %v1492
  %2261 = vmatpush1.bf16.msra.mxu0 %v1491
  %2262 = vmatprep.mubr.bf16.mxu0 %v1998
  %2263 = vmatmul.mubr.bf16.gmra.mrb[0].mxu0 %v2106
  %v2264 = vpop.f32.mrb[0].mxu0
  %v2265 = vadd.f32 %v511, %v2264
  %v2266 = vpop.f32.mrb[0].mxu0
  %v2267 = vadd.f32 %v515, %v2266
  %v2268 = vpop.f32.mrb[0].mxu0
  %v2269 = vpop.f32.mrb[0].mxu0
  %2270 = vdwg.mxu0
  %2271 = vmatprep.subr.bf16.mxu0 0
  %2272 = vmatpush1.bf16.msra.mxu0 %v1418
  %2273 = vmatprep.subr.bf16.mxu0 0
  %2274 = vmatpush1.bf16.msra.mxu0 %v1423
  %2275 = vmatprep.subr.bf16.mxu0 0
  %2276 = vmatpush1.bf16.msra.mxu0 %v1428
  %2277 = vmatprep.subr.bf16.mxu0 0
  %2278 = vmatpush1.bf16.msra.mxu0 %v1433
  %2279 = vmatprep.subr.bf16.mxu0 0
  %2280 = vmatpush1.bf16.msra.mxu0 %v1438
  %2281 = vmatprep.subr.bf16.mxu0 0
  %2282 = vmatpush1.bf16.msra.mxu0 %v1443
  %2283 = vmatprep.subr.bf16.mxu0 0
  %2284 = vmatpush1.bf16.msra.mxu0 %v1448
  %2285 = vmatprep.subr.bf16.mxu0 0
  %2286 = vmatpush1.bf16.msra.mxu0 %v1453
  %2287 = vmatprep.subr.bf16.mxu0 0
  %2288 = vmatpush1.bf16.msra.mxu0 %v1458
  %2289 = vmatprep.subr.bf16.mxu0 0
  %2290 = vmatpush1.bf16.msra.mxu0 %v1463
  %2291 = vmatprep.subr.bf16.mxu0 0
  %2292 = vmatpush1.bf16.msra.mxu0 %v1468
  %2293 = vmatprep.subr.bf16.mxu0 0
  %2294 = vmatpush1.bf16.msra.mxu0 %v1473
  %2295 = vmatprep.subr.bf16.mxu0 0
  %2296 = vmatpush1.bf16.msra.mxu0 %v1478
  %2297 = vmatprep.subr.bf16.mxu0 0
  %2298 = vmatpush1.bf16.msra.mxu0 %v1483
  %2299 = vmatprep.subr.bf16.mxu0 0
  %2300 = vmatpush1.bf16.msra.mxu0 %v1488
  %2301 = vmatprep.subr.bf16.mxu0 0
  %2302 = vmatpush1.bf16.msra.mxu0 %v1493
  %2303 = vmatprep.mubr.bf16.mxu0 %v1998
  %2304 = vmatmul.mubr.bf16.gmra.mrb[0].mxu0 %v2106
  %v2305 = vpop.f32.mrb[0].mxu0
  %v2306 = vadd.f32 %v519, %v2305
  %v2307 = vpop.f32.mrb[0].mxu0
  %v2308 = vpop.f32.mrb[0].mxu0
  %v2309 = vpop.f32.mrb[0].mxu0
  %2310 = vdwg.mxu0
  %s2311 = scalar_lea.vmem [#allocation2], 2
  %v2312 = vld [vmem:[%s2311] ss:$4 sm:$0x7]
  %s2313 = scalar_lea.vmem [#allocation2], 14
  %v2314 = vld [vmem:[%s2313] ss:$4 sm:$0x7]
  %s2315 = scalar_lea.vmem [#allocation2], 26
  %v2316 = vld [vmem:[%s2315] ss:$4 sm:$0x7]
  %s2317 = scalar_lea.vmem [#allocation2], 38
  %v2318 = vld [vmem:[%s2317] ss:$4 sm:$0x7]
  %v2321 = vunpack.c.l.s4 1966171168
  %v2322 = vunpack.c.0.s8 %v2321
  %v2323 = vlaneseq
  %v2324 = vshrl.u32 %v2323, 7
  %v2325 = vsub.s32 %v2322, %v2324
  %v2326 = vrot.slane %v2142, %v2325
  %v2327 = vcombine.high %v2326, %v2326
  %v2329 = vunpack.c.l.s4 1966171168
  %v2330 = vunpack.c.0.s8 %v2329
  %v2331 = vlaneseq
  %v2332 = vshrl.u32 %v2331, 7
  %v2333 = vsub.s32 %v2330, %v2332
  %v2334 = vrot.slane %v2326, %v2333
  %v2336 = vunpack.c.l.s4 1966171168
  %v2337 = vunpack.c.0.s8 %v2336
  %v2338 = vlaneseq
  %v2339 = vshrl.u32 %v2338, 7
  %v2340 = vsub.s32 %v2337, %v2339
  %v2341 = vrot.slane %v2327, %v2340
  %v2342 = vcombine.high %v2334, %v2334
  %v2343 = vcombine.high %v2341, %v2341
  %v2348 = vadd.f32 %v2312, %v2334
  %v2349 = vadd.f32 %v2314, %v2341
  %v2350 = vadd.f32 %v2316, %v2342
  %v2351 = vadd.f32 %v2318, %v2343
  %v2352 = vxor.u32 %v2348, 2147483648
  %v2353 = vxor.u32 %v2349, 2147483648
  %v2354 = vxor.u32 %v2350, 2147483648
  %v2355 = vxor.u32 %v2351, 2147483648
  %v2356 = vmul.f32 %v2352, 1.442695
  %v2357 = vpow.pop %v2356
  %v2358 = vmul.f32 %v2353, 1.442695
  %v2359 = vpow.pop %v2358
  %v2360 = vmul.f32 %v2354, 1.442695
  %v2361 = vpow.pop %v2360
  %v2362 = vmul.f32 %v2355, 1.442695
  %v2363 = vpow.pop %v2362
  %v2364 = vadd.f32 %v2357, 1.0
  %v2365 = vadd.f32 %v2359, 1.0
  %v2366 = vadd.f32 %v2361, 1.0
  %v2367 = vadd.f32 %v2363, 1.0
  %v2368 = vrcp.pop %v2364
  %v2369 = vmul.f32 1.0, %v2368
  %v2370 = vrcp.pop %v2365
  %v2371 = vmul.f32 1.0, %v2370
  %v2372 = vrcp.pop %v2366
  %v2373 = vmul.f32 1.0, %v2372
  %v2374 = vrcp.pop %v2367
  %v2375 = vmul.f32 1.0, %v2374
  %v2380 = vrot.slane %v2312, 1
  %v2381 = vrot.slane %v2314, 1
  %v2382 = vrot.slane %v2316, 1
  %v2383 = vrot.slane %v2318, 1
  %v2390 = vunpack.c.l.s4 1966171168
  %v2391 = vunpack.c.0.s8 %v2390
  %v2392 = vlaneseq
  %v2393 = vshrl.u32 %v2392, 7
  %v2394 = vsub.s32 %v2391, %v2393
  %v2395 = vrot.slane %v2144, %v2394
  %v2396 = vcombine.high %v2395, %v2395
  %v2398 = vunpack.c.l.s4 1966171168
  %v2399 = vunpack.c.0.s8 %v2398
  %v2400 = vlaneseq
  %v2401 = vshrl.u32 %v2400, 7
  %v2402 = vsub.s32 %v2399, %v2401
  %v2403 = vrot.slane %v2395, %v2402
  %v2405 = vunpack.c.l.s4 1966171168
  %v2406 = vunpack.c.0.s8 %v2405
  %v2407 = vlaneseq
  %v2408 = vshrl.u32 %v2407, 7
  %v2409 = vsub.s32 %v2406, %v2408
  %v2410 = vrot.slane %v2396, %v2409
  %v2411 = vcombine.high %v2403, %v2403
  %v2412 = vcombine.high %v2410, %v2410
  %v2417 = vadd.f32 %v2380, %v2403
  %v2418 = vadd.f32 %v2381, %v2410
  %v2419 = vadd.f32 %v2382, %v2411
  %v2420 = vadd.f32 %v2383, %v2412
  %v2421 = vxor.u32 %v2417, 2147483648
  %v2422 = vxor.u32 %v2418, 2147483648
  %v2423 = vxor.u32 %v2419, 2147483648
  %v2424 = vxor.u32 %v2420, 2147483648
  %v2425 = vmul.f32 %v2421, 1.442695
  %v2426 = vpow.pop %v2425
  %v2427 = vmul.f32 %v2422, 1.442695
  %v2428 = vpow.pop %v2427
  %v2429 = vmul.f32 %v2423, 1.442695
  %v2430 = vpow.pop %v2429
  %v2431 = vmul.f32 %v2424, 1.442695
  %v2432 = vpow.pop %v2431
  %v2433 = vadd.f32 %v2426, 1.0
  %v2434 = vadd.f32 %v2428, 1.0
  %v2435 = vadd.f32 %v2430, 1.0
  %v2436 = vadd.f32 %v2432, 1.0
  %v2437 = vrcp.pop %v2433
  %v2438 = vmul.f32 1.0, %v2437
  %v2439 = vrcp.pop %v2434
  %v2440 = vmul.f32 1.0, %v2439
  %v2441 = vrcp.pop %v2435
  %v2442 = vmul.f32 1.0, %v2441
  %v2443 = vrcp.pop %v2436
  %v2444 = vmul.f32 1.0, %v2443
  %v2447 = vunpack.c.l.s4 1966171168
  %v2448 = vunpack.c.0.s8 %v2447
  %v2449 = vlaneseq
  %v2450 = vshrl.u32 %v2449, 7
  %v2451 = vsub.s32 %v2448, %v2450
  %v2452 = vrot.slane %v2183, %v2451
  %v2453 = vcombine.high %v2452, %v2452
  %v2455 = vunpack.c.l.s4 1966171168
  %v2456 = vunpack.c.0.s8 %v2455
  %v2457 = vlaneseq
  %v2458 = vshrl.u32 %v2457, 7
  %v2459 = vsub.s32 %v2456, %v2458
  %v2460 = vrot.slane %v2452, %v2459
  %v2462 = vunpack.c.l.s4 1966171168
  %v2463 = vunpack.c.0.s8 %v2462
  %v2464 = vlaneseq
  %v2465 = vshrl.u32 %v2464, 7
  %v2466 = vsub.s32 %v2463, %v2465
  %v2467 = vrot.slane %v2453, %v2466
  %v2468 = vcombine.high %v2460, %v2460
  %v2469 = vcombine.high %v2467, %v2467
  %v2474 = vmul.f32 %v2369, %v2460
  %v2475 = vmul.f32 %v2371, %v2467
  %v2476 = vmul.f32 %v2373, %v2468
  %v2477 = vmul.f32 %v2375, %v2469
  %v2478 = vrot.slane %v2312, 2
  %v2479 = vrot.slane %v2314, 2
  %v2480 = vrot.slane %v2316, 2
  %v2481 = vrot.slane %v2318, 2
  %v2486 = vadd.f32 %v2478, %v2474
  %v2487 = vadd.f32 %v2479, %v2475
  %v2488 = vadd.f32 %v2480, %v2476
  %v2489 = vadd.f32 %v2481, %v2477
  %v2490 = vtanh.pop %v2486
  %v2491 = vtanh.pop %v2487
  %v2492 = vtanh.pop %v2488
  %v2493 = vtanh.pop %v2489
  %v2494 = vsub.f32 1.0, %v2438
  %v2495 = vsub.f32 1.0, %v2440
  %v2496 = vsub.f32 1.0, %v2442
  %v2497 = vsub.f32 1.0, %v2444
  %v2498 = vmul.f32 %v2494, %v2490
  %v2499 = vmul.f32 %v2495, %v2491
  %v2500 = vmul.f32 %v2496, %v2492
  %v2501 = vmul.f32 %v2497, %v2493
  %v2502 = vmul.f32 %v2438, %v1973
  %v2503 = vmul.f32 %v2440, %v1974
  %v2504 = vmul.f32 %v2442, %v1975
  %v2505 = vmul.f32 %v2444, %v1976
  %v2506 = vadd.f32 %v2498, %v2502
  %v2507 = vadd.f32 %v2499, %v2503
  %v2508 = vadd.f32 %v2500, %v2504
  %v2509 = vadd.f32 %v2501, %v2505
  %v2510 = vadd.f32 %v2185, %v2265
  %v2511 = vxor.u32 %v2510, 2147483648
  %v2512 = vmul.f32 %v2511, 1.442695
  %v2513 = vpow.pop %v2512
  %v2514 = vadd.f32 %v2513, 1.0
  %v2515 = vrcp.pop %v2514
  %v2516 = vmul.f32 1.0, %v2515
  %v2517 = vadd.f32 %v2224, %v2267
  %v2518 = vxor.u32 %v2517, 2147483648
  %v2519 = vmul.f32 %v2518, 1.442695
  %v2520 = vpow.pop %v2519
  %v2521 = vadd.f32 %v2520, 1.0
  %v2522 = vrcp.pop %v2521
  %v2523 = vmul.f32 1.0, %v2522
  %v2524 = vmul.f32 %v2516, %v2306
  %v2525 = vadd.f32 %v2226, %v2524
  %v2526 = vtanh.pop %v2525
  %v2527 = vsub.f32 1.0, %v2523
  %v2528 = vmul.f32 %v2527, %v2526
  %v2529 = vmul.f32 %v2523, %v1997
  %v2530 = vadd.f32 %v2528, %v2529
  %v2531 = vpack.c.bf16 %v2530, %v2530
  %v2534 = vunpack.c.l.s4 1966171168
  %v2535 = vunpack.c.0.s8 %v2534
  %v2536 = vlaneseq
  %v2537 = vshrl.u32 %v2536, 7
  %v2538 = vsub.s32 %v2535, %v2537
  %v2539 = vrot.slane %v2531, %v2538
  %v2540 = vcombine.high %v2539, %v2539
  %v2542 = vunpack.c.l.s4 1966171168
  %v2543 = vunpack.c.0.s8 %v2542
  %v2544 = vlaneseq
  %v2545 = vshrl.u32 %v2544, 7
  %v2546 = vsub.s32 %v2543, %v2545
  %v2547 = vrot.slane %v2539, %v2546
  %v2549 = vunpack.c.l.s4 1966171168
  %v2550 = vunpack.c.0.s8 %v2549
  %v2551 = vlaneseq
  %v2552 = vshrl.u32 %v2551, 7
  %v2553 = vsub.s32 %v2550, %v2552
  %v2554 = vrot.slane %v2540, %v2553
  %v2555 = vunpack.i.l.s16 %v2547
  %v2556 = vunpack.i.h.s16 %v2547
  %v2557 = vunpack.i.l.s16 %v2554
  %v2558 = vunpack.i.h.s16 %v2554
  %v2559 = vpack.i.b16 %v2555, %v2555
  %v2560 = vpack.i.b16 %v2556, %v2556
  %v2561 = vpack.i.b16 %v2557, %v2557
  %v2562 = vpack.i.b16 %v2558, %v2558
  %v2564 = vunpack.c.l.s4 857870592
  %v2565 = vunpack.c.0.s8 %v2564
  %v2566 = vlaneseq
  %v2567 = vshrl.u32 %v2566, 7
  %v2568 = vsub.s32 %v2565, %v2567
  %v2569 = vrot.slane %v2559, %v2568
  %v2571 = vunpack.c.l.s4 857870592
  %v2572 = vunpack.c.0.s8 %v2571
  %v2573 = vlaneseq
  %v2574 = vshrl.u32 %v2573, 7
  %v2575 = vsub.s32 %v2572, %v2574
  %v2576 = vrot.slane %v2560, %v2575
  %v2578 = vunpack.c.l.s4 857870592
  %v2579 = vunpack.c.0.s8 %v2578
  %v2580 = vlaneseq
  %v2581 = vshrl.u32 %v2580, 7
  %v2582 = vsub.s32 %v2579, %v2581
  %v2583 = vrot.slane %v2561, %v2582
  %v2585 = vunpack.c.l.s4 857870592
  %v2586 = vunpack.c.0.s8 %v2585
  %v2587 = vlaneseq
  %v2588 = vshrl.u32 %v2587, 7
  %v2589 = vsub.s32 %v2586, %v2588
  %v2590 = vrot.slane %v2562, %v2589
  %vm2595 = vsmask.f32 7938
  %vm2596 = vmand %vm2062, %vm2595
  %v2597 = vld [vmem:[%s5] sm:$0x1]
  %v2598 = vsel %vm2596, %v2569, %v2597
  %2599 = vst [vmem:[%s5] sm:$0x1] %v2598
  %v2600 = vld [vmem:[%s5 + $0x2] sm:$0x1]
  %v2601 = vsel %vm2596, %v2576, %v2600
  %2602 = vst [vmem:[%s5 + $0x2] sm:$0x1] %v2601
  %v2603 = vld [vmem:[%s5 + $0x4] sm:$0x1]
  %v2604 = vsel %vm2596, %v2583, %v2603
  %2605 = vst [vmem:[%s5 + $0x4] sm:$0x1] %v2604
  %v2606 = vld [vmem:[%s5 + $0x6] sm:$0x1]
  %v2607 = vsel %vm2596, %v2590, %v2606
  %2608 = vst [vmem:[%s5 + $0x6] sm:$0x1] %v2607
  %v2613 = vcombine.low %v2506, %v2507
  %v2614 = vcombine.low %v2508, %v2509
  %v2616 = vunpack.c.l.s4 1966171168
  %v2617 = vunpack.c.0.s8 %v2616
  %v2618 = vlaneseq
  %v2619 = vshrl.u32 %v2618, 7
  %v2620 = vsub.s32 %v2617, %v2619
  %v2621 = vrot.slane %v2613, %v2620
  %v2623 = vunpack.c.l.s4 1966171168
  %v2624 = vunpack.c.0.s8 %v2623
  %v2625 = vlaneseq
  %v2626 = vshrl.u32 %v2625, 7
  %v2627 = vsub.s32 %v2624, %v2626
  %v2628 = vrot.slane %v2614, %v2627
  %v2629 = vcombine.low %v2621, %v2628
  %v2631 = vunpack.c.l.s4 1966171168
  %v2632 = vunpack.c.0.s8 %v2631
  %v2633 = vlaneseq
  %v2634 = vshrl.u32 %v2633, 7
  %v2635 = vsub.s32 %v2632, %v2634
  %v2636 = vrot.slane %v2629, %v2635
  %v2638 = vpack.c.bf16 %v2636, %v2636
  %2639 = vmatprep.subr.bf16.mxu0 %v722
  %2640 = vmatpush1.bf16.msra.mxu0 %v721
  %2641 = vmatprep.subr.bf16.mxu0 %v726
  %2642 = vmatpush1.bf16.msra.mxu0 %v725
  %2643 = vmatprep.subr.bf16.mxu0 %v730
  %2644 = vmatpush1.bf16.msra.mxu0 %v729
  %2645 = vmatprep.subr.bf16.mxu0 %v734
  %2646 = vmatpush1.bf16.msra.mxu0 %v733
  %2647 = vmatprep.subr.bf16.mxu0 %v738
  %2648 = vmatpush1.bf16.msra.mxu0 %v737
  %2649 = vmatprep.subr.bf16.mxu0 %v742
  %2650 = vmatpush1.bf16.msra.mxu0 %v741
  %2651 = vmatprep.subr.bf16.mxu0 %v746
  %2652 = vmatpush1.bf16.msra.mxu0 %v745
  %2653 = vmatprep.subr.bf16.mxu0 %v750
  %2654 = vmatpush1.bf16.msra.mxu0 %v749
  %2655 = vmatprep.subr.bf16.mxu0 %v754
  %2656 = vmatpush1.bf16.msra.mxu0 %v753
  %2657 = vmatprep.subr.bf16.mxu0 %v758
  %2658 = vmatpush1.bf16.msra.mxu0 %v757
  %2659 = vmatprep.subr.bf16.mxu0 %v762
  %2660 = vmatpush1.bf16.msra.mxu0 %v761
  %2661 = vmatprep.subr.bf16.mxu0 %v766
  %2662 = vmatpush1.bf16.msra.mxu0 %v765
  %2663 = vmatprep.subr.bf16.mxu0 %v770
  %2664 = vmatpush1.bf16.msra.mxu0 %v769
  %2665 = vmatprep.subr.bf16.mxu0 %v774
  %2666 = vmatpush1.bf16.msra.mxu0 %v773
  %2667 = vmatprep.subr.bf16.mxu0 %v778
  %2668 = vmatpush1.bf16.msra.mxu0 %v777
  %2669 = vmatprep.subr.bf16.mxu0 %v782
  %2670 = vmatpush1.bf16.msra.mxu0 %v781
  %2671 = vmatprep.mubr.bf16.mxu0 %v2531
  %2672 = vmatmul.mubr.bf16.gmra.mrb[0].mxu0 %v2638
  %v2673 = vpop.f32.mrb[0].mxu0
  %v2674 = vadd.f32 %v487, %v2673
  %v2675 = vpop.f32.mrb[0].mxu0
  %v2676 = vadd.f32 %v491, %v2675
  %v2677 = vpop.f32.mrb[0].mxu0
  %v2678 = vpop.f32.mrb[0].mxu0
  %2679 = vdwg.mxu0
  %2680 = vmatprep.subr.bf16.mxu0 %v724
  %2681 = vmatpush1.bf16.msra.mxu0 %v723
  %2682 = vmatprep.subr.bf16.mxu0 %v728
  %2683 = vmatpush1.bf16.msra.mxu0 %v727
  %2684 = vmatprep.subr.bf16.mxu0 %v732
  %2685 = vmatpush1.bf16.msra.mxu0 %v731
  %2686 = vmatprep.subr.bf16.mxu0 %v736
  %2687 = vmatpush1.bf16.msra.mxu0 %v735
  %2688 = vmatprep.subr.bf16.mxu0 %v740
  %2689 = vmatpush1.bf16.msra.mxu0 %v739
  %2690 = vmatprep.subr.bf16.mxu0 %v744
  %2691 = vmatpush1.bf16.msra.mxu0 %v743
  %2692 = vmatprep.subr.bf16.mxu0 %v748
  %2693 = vmatpush1.bf16.msra.mxu0 %v747
  %2694 = vmatprep.subr.bf16.mxu0 %v752
  %2695 = vmatpush1.bf16.msra.mxu0 %v751
  %2696 = vmatprep.subr.bf16.mxu0 %v756
  %2697 = vmatpush1.bf16.msra.mxu0 %v755
  %2698 = vmatprep.subr.bf16.mxu0 %v760
  %2699 = vmatpush1.bf16.msra.mxu0 %v759
  %2700 = vmatprep.subr.bf16.mxu0 %v764
  %2701 = vmatpush1.bf16.msra.mxu0 %v763
  %2702 = vmatprep.subr.bf16.mxu0 %v768
  %2703 = vmatpush1.bf16.msra.mxu0 %v767
  %2704 = vmatprep.subr.bf16.mxu0 %v772
  %2705 = vmatpush1.bf16.msra.mxu0 %v771
  %2706 = vmatprep.subr.bf16.mxu0 %v776
  %2707 = vmatpush1.bf16.msra.mxu0 %v775
  %2708 = vmatprep.subr.bf16.mxu0 %v780
  %2709 = vmatpush1.bf16.msra.mxu0 %v779
  %2710 = vmatprep.subr.bf16.mxu0 %v784
  %2711 = vmatpush1.bf16.msra.mxu0 %v783
  %2712 = vmatprep.mubr.bf16.mxu0 %v2531
  %2713 = vmatmul.mubr.bf16.gmra.mrb[0].mxu0 %v2638
  %v2714 = vpop.f32.mrb[0].mxu0
  %v2715 = vadd.f32 %v495, %v2714
  %v2716 = vpop.f32.mrb[0].mxu0
  %v2717 = vadd.f32 %v499, %v2716
  %v2718 = vpop.f32.mrb[0].mxu0
  %v2719 = vpop.f32.mrb[0].mxu0
  %2720 = vdwg.mxu0
  %2721 = vmatprep.subr.bf16.mxu0 %v1415
  %2722 = vmatpush1.bf16.msra.mxu0 %v1414
  %2723 = vmatprep.subr.bf16.mxu0 %v1420
  %2724 = vmatpush1.bf16.msra.mxu0 %v1419
  %2725 = vmatprep.subr.bf16.mxu0 %v1425
  %2726 = vmatpush1.bf16.msra.mxu0 %v1424
  %2727 = vmatprep.subr.bf16.mxu0 %v1430
  %2728 = vmatpush1.bf16.msra.mxu0 %v1429
  %2729 = vmatprep.subr.bf16.mxu0 %v1435
  %2730 = vmatpush1.bf16.msra.mxu0 %v1434
  %2731 = vmatprep.subr.bf16.mxu0 %v1440
  %2732 = vmatpush1.bf16.msra.mxu0 %v1439
  %2733 = vmatprep.subr.bf16.mxu0 %v1445
  %2734 = vmatpush1.bf16.msra.mxu0 %v1444
  %2735 = vmatprep.subr.bf16.mxu0 %v1450
  %2736 = vmatpush1.bf16.msra.mxu0 %v1449
  %2737 = vmatprep.subr.bf16.mxu0 %v1455
  %2738 = vmatpush1.bf16.msra.mxu0 %v1454
  %2739 = vmatprep.subr.bf16.mxu0 %v1460
  %2740 = vmatpush1.bf16.msra.mxu0 %v1459
  %2741 = vmatprep.subr.bf16.mxu0 %v1465
  %2742 = vmatpush1.bf16.msra.mxu0 %v1464
  %2743 = vmatprep.subr.bf16.mxu0 %v1470
  %2744 = vmatpush1.bf16.msra.mxu0 %v1469
  %2745 = vmatprep.subr.bf16.mxu0 %v1475
  %2746 = vmatpush1.bf16.msra.mxu0 %v1474
  %2747 = vmatprep.subr.bf16.mxu0 %v1480
  %2748 = vmatpush1.bf16.msra.mxu0 %v1479
  %2749 = vmatprep.subr.bf16.mxu0 %v1485
  %2750 = vmatpush1.bf16.msra.mxu0 %v1484
  %2751 = vmatprep.subr.bf16.mxu0 %v1490
  %2752 = vmatpush1.bf16.msra.mxu0 %v1489
  %2753 = vmatprep.mubr.bf16.mxu0 %v2531
  %2754 = vmatmul.mubr.bf16.gmra.mrb[0].mxu0 %v2638
  %v2755 = vpop.f32.mrb[0].mxu0
  %v2756 = vadd.f32 %v503, %v2755
  %v2757 = vpop.f32.mrb[0].mxu0
  %v2758 = vadd.f32 %v507, %v2757
  %v2759 = vpop.f32.mrb[0].mxu0
  %v2760 = vpop.f32.mrb[0].mxu0
  %2761 = vdwg.mxu0
  %2762 = vmatprep.subr.bf16.mxu0 %v1417
  %2763 = vmatpush1.bf16.msra.mxu0 %v1416
  %2764 = vmatprep.subr.bf16.mxu0 %v1422
  %2765 = vmatpush1.bf16.msra.mxu0 %v1421
  %2766 = vmatprep.subr.bf16.mxu0 %v1427
  %2767 = vmatpush1.bf16.msra.mxu0 %v1426
  %2768 = vmatprep.subr.bf16.mxu0 %v1432
  %2769 = vmatpush1.bf16.msra.mxu0 %v1431
  %2770 = vmatprep.subr.bf16.mxu0 %v1437
  %2771 = vmatpush1.bf16.msra.mxu0 %v1436
  %2772 = vmatprep.subr.bf16.mxu0 %v1442
  %2773 = vmatpush1.bf16.msra.mxu0 %v1441
  %2774 = vmatprep.subr.bf16.mxu0 %v1447
  %2775 = vmatpush1.bf16.msra.mxu0 %v1446
  %2776 = vmatprep.subr.bf16.mxu0 %v1452
  %2777 = vmatpush1.bf16.msra.mxu0 %v1451
  %2778 = vmatprep.subr.bf16.mxu0 %v1457
  %2779 = vmatpush1.bf16.msra.mxu0 %v1456
  %2780 = vmatprep.subr.bf16.mxu0 %v1462
  %2781 = vmatpush1.bf16.msra.mxu0 %v1461
  %2782 = vmatprep.subr.bf16.mxu0 %v1467
  %2783 = vmatpush1.bf16.msra.mxu0 %v1466
  %2784 = vmatprep.subr.bf16.mxu0 %v1472
  %2785 = vmatpush1.bf16.msra.mxu0 %v1471
  %2786 = vmatprep.subr.bf16.mxu0 %v1477
  %2787 = vmatpush1.bf16.msra.mxu0 %v1476
  %2788 = vmatprep.subr.bf16.mxu0 %v1482
  %2789 = vmatpush1.bf16.msra.mxu0 %v1481
  %2790 = vmatprep.subr.bf16.mxu0 %v1487
  %2791 = vmatpush1.bf16.msra.mxu0 %v1486
  %2792 = vmatprep.subr.bf16.mxu0 %v1492
  %2793 = vmatpush1.bf16.msra.mxu0 %v1491
  %2794 = vmatprep.mubr.bf16.mxu0 %v2531
  %2795 = vmatmul.mubr.bf16.gmra.mrb[0].mxu0 %v2638
  %v2796 = vpop.f32.mrb[0].mxu0
  %v2797 = vadd.f32 %v511, %v2796
  %v2798 = vpop.f32.mrb[0].mxu0
  %v2799 = vadd.f32 %v515, %v2798
  %v2800 = vpop.f32.mrb[0].mxu0
  %v2801 = vpop.f32.mrb[0].mxu0
  %2802 = vdwg.mxu0
  %2803 = vmatprep.subr.bf16.mxu0 0
  %2804 = vmatpush1.bf16.msra.mxu0 %v1418
  %2805 = vmatprep.subr.bf16.mxu0 0
  %2806 = vmatpush1.bf16.msra.mxu0 %v1423
  %2807 = vmatprep.subr.bf16.mxu0 0
  %2808 = vmatpush1.bf16.msra.mxu0 %v1428
  %2809 = vmatprep.subr.bf16.mxu0 0
  %2810 = vmatpush1.bf16.msra.mxu0 %v1433
  %2811 = vmatprep.subr.bf16.mxu0 0
  %2812 = vmatpush1.bf16.msra.mxu0 %v1438
  %2813 = vmatprep.subr.bf16.mxu0 0
  %2814 = vmatpush1.bf16.msra.mxu0 %v1443
  %2815 = vmatprep.subr.bf16.mxu0 0
  %2816 = vmatpush1.bf16.msra.mxu0 %v1448
  %2817 = vmatprep.subr.bf16.mxu0 0
  %2818 = vmatpush1.bf16.msra.mxu0 %v1453
  %2819 = vmatprep.subr.bf16.mxu0 0
  %2820 = vmatpush1.bf16.msra.mxu0 %v1458
  %2821 = vmatprep.subr.bf16.mxu0 0
  %2822 = vmatpush1.bf16.msra.mxu0 %v1463
  %2823 = vmatprep.subr.bf16.mxu0 0
  %2824 = vmatpush1.bf16.msra.mxu0 %v1468
  %2825 = vmatprep.subr.bf16.mxu0 0
  %2826 = vmatpush1.bf16.msra.mxu0 %v1473
  %2827 = vmatprep.subr.bf16.mxu0 0
  %2828 = vmatpush1.bf16.msra.mxu0 %v1478
  %2829 = vmatprep.subr.bf16.mxu0 0
  %2830 = vmatpush1.bf16.msra.mxu0 %v1483
  %2831 = vmatprep.subr.bf16.mxu0 0
  %2832 = vmatpush1.bf16.msra.mxu0 %v1488
  %2833 = vmatprep.subr.bf16.mxu0 0
  %2834 = vmatpush1.bf16.msra.mxu0 %v1493
  %2835 = vmatprep.mubr.bf16.mxu0 %v2531
  %2836 = vmatmul.mubr.bf16.gmra.mrb[0].mxu0 %v2638
  %v2837 = vpop.f32.mrb[0].mxu0
  %v2838 = vadd.f32 %v519, %v2837
  %v2839 = vpop.f32.mrb[0].mxu0
  %v2840 = vpop.f32.mrb[0].mxu0
  %v2841 = vpop.f32.mrb[0].mxu0
  %2842 = vdwg.mxu0
  %s2843 = scalar_lea.vmem [#allocation2], 3
  %v2844 = vld [vmem:[%s2843] ss:$4 sm:$0x7]
  %s2845 = scalar_lea.vmem [#allocation2], 15
  %v2846 = vld [vmem:[%s2845] ss:$4 sm:$0x7]
  %s2847 = scalar_lea.vmem [#allocation2], 27
  %v2848 = vld [vmem:[%s2847] ss:$4 sm:$0x7]
  %s2849 = scalar_lea.vmem [#allocation2], 39
  %v2850 = vld [vmem:[%s2849] ss:$4 sm:$0x7]
  %v2853 = vunpack.c.l.s4 1966171168
  %v2854 = vunpack.c.0.s8 %v2853
  %v2855 = vlaneseq
  %v2856 = vshrl.u32 %v2855, 7
  %v2857 = vsub.s32 %v2854, %v2856
  %v2858 = vrot.slane %v2674, %v2857
  %v2859 = vcombine.high %v2858, %v2858
  %v2861 = vunpack.c.l.s4 1966171168
  %v2862 = vunpack.c.0.s8 %v2861
  %v2863 = vlaneseq
  %v2864 = vshrl.u32 %v2863, 7
  %v2865 = vsub.s32 %v2862, %v2864
  %v2866 = vrot.slane %v2858, %v2865
  %v2868 = vunpack.c.l.s4 1966171168
  %v2869 = vunpack.c.0.s8 %v2868
  %v2870 = vlaneseq
  %v2871 = vshrl.u32 %v2870, 7
  %v2872 = vsub.s32 %v2869, %v2871
  %v2873 = vrot.slane %v2859, %v2872
  %v2874 = vcombine.high %v2866, %v2866
  %v2875 = vcombine.high %v2873, %v2873
  %v2880 = vadd.f32 %v2844, %v2866
  %v2881 = vadd.f32 %v2846, %v2873
  %v2882 = vadd.f32 %v2848, %v2874
  %v2883 = vadd.f32 %v2850, %v2875
  %v2884 = vxor.u32 %v2880, 2147483648
  %v2885 = vxor.u32 %v2881, 2147483648
  %v2886 = vxor.u32 %v2882, 2147483648
  %v2887 = vxor.u32 %v2883, 2147483648
  %v2888 = vmul.f32 %v2884, 1.442695
  %v2889 = vpow.pop %v2888
  %v2890 = vmul.f32 %v2885, 1.442695
  %v2891 = vpow.pop %v2890
  %v2892 = vmul.f32 %v2886, 1.442695
  %v2893 = vpow.pop %v2892
  %v2894 = vmul.f32 %v2887, 1.442695
  %v2895 = vpow.pop %v2894
  %v2896 = vadd.f32 %v2889, 1.0
  %v2897 = vadd.f32 %v2891, 1.0
  %v2898 = vadd.f32 %v2893, 1.0
  %v2899 = vadd.f32 %v2895, 1.0
  %v2900 = vrcp.pop %v2896
  %v2901 = vmul.f32 1.0, %v2900
  %v2902 = vrcp.pop %v2897
  %v2903 = vmul.f32 1.0, %v2902
  %v2904 = vrcp.pop %v2898
  %v2905 = vmul.f32 1.0, %v2904
  %v2906 = vrcp.pop %v2899
  %v2907 = vmul.f32 1.0, %v2906
  %v2912 = vrot.slane %v2844, 1
  %v2913 = vrot.slane %v2846, 1
  %v2914 = vrot.slane %v2848, 1
  %v2915 = vrot.slane %v2850, 1
  %v2922 = vunpack.c.l.s4 1966171168
  %v2923 = vunpack.c.0.s8 %v2922
  %v2924 = vlaneseq
  %v2925 = vshrl.u32 %v2924, 7
  %v2926 = vsub.s32 %v2923, %v2925
  %v2927 = vrot.slane %v2676, %v2926
  %v2928 = vcombine.high %v2927, %v2927
  %v2930 = vunpack.c.l.s4 1966171168
  %v2931 = vunpack.c.0.s8 %v2930
  %v2932 = vlaneseq
  %v2933 = vshrl.u32 %v2932, 7
  %v2934 = vsub.s32 %v2931, %v2933
  %v2935 = vrot.slane %v2927, %v2934
  %v2937 = vunpack.c.l.s4 1966171168
  %v2938 = vunpack.c.0.s8 %v2937
  %v2939 = vlaneseq
  %v2940 = vshrl.u32 %v2939, 7
  %v2941 = vsub.s32 %v2938, %v2940
  %v2942 = vrot.slane %v2928, %v2941
  %v2943 = vcombine.high %v2935, %v2935
  %v2944 = vcombine.high %v2942, %v2942
  %v2949 = vadd.f32 %v2912, %v2935
  %v2950 = vadd.f32 %v2913, %v2942
  %v2951 = vadd.f32 %v2914, %v2943
  %v2952 = vadd.f32 %v2915, %v2944
  %v2953 = vxor.u32 %v2949, 2147483648
  %v2954 = vxor.u32 %v2950, 2147483648
  %v2955 = vxor.u32 %v2951, 2147483648
  %v2956 = vxor.u32 %v2952, 2147483648
  %v2957 = vmul.f32 %v2953, 1.442695
  %v2958 = vpow.pop %v2957
  %v2959 = vmul.f32 %v2954, 1.442695
  %v2960 = vpow.pop %v2959
  %v2961 = vmul.f32 %v2955, 1.442695
  %v2962 = vpow.pop %v2961
  %v2963 = vmul.f32 %v2956, 1.442695
  %v2964 = vpow.pop %v2963
  %v2965 = vadd.f32 %v2958, 1.0
  %v2966 = vadd.f32 %v2960, 1.0
  %v2967 = vadd.f32 %v2962, 1.0
  %v2968 = vadd.f32 %v2964, 1.0
  %v2969 = vrcp.pop %v2965
  %v2970 = vmul.f32 1.0, %v2969
  %v2971 = vrcp.pop %v2966
  %v2972 = vmul.f32 1.0, %v2971
  %v2973 = vrcp.pop %v2967
  %v2974 = vmul.f32 1.0, %v2973
  %v2975 = vrcp.pop %v2968
  %v2976 = vmul.f32 1.0, %v2975
  %v2979 = vunpack.c.l.s4 1966171168
  %v2980 = vunpack.c.0.s8 %v2979
  %v2981 = vlaneseq
  %v2982 = vshrl.u32 %v2981, 7
  %v2983 = vsub.s32 %v2980, %v2982
  %v2984 = vrot.slane %v2715, %v2983
  %v2985 = vcombine.high %v2984, %v2984
  %v2987 = vunpack.c.l.s4 1966171168
  %v2988 = vunpack.c.0.s8 %v2987
  %v2989 = vlaneseq
  %v2990 = vshrl.u32 %v2989, 7
  %v2991 = vsub.s32 %v2988, %v2990
  %v2992 = vrot.slane %v2984, %v2991
  %v2994 = vunpack.c.l.s4 1966171168
  %v2995 = vunpack.c.0.s8 %v2994
  %v2996 = vlaneseq
  %v2997 = vshrl.u32 %v2996, 7
  %v2998 = vsub.s32 %v2995, %v2997
  %v2999 = vrot.slane %v2985, %v2998
  %v3000 = vcombine.high %v2992, %v2992
  %v3001 = vcombine.high %v2999, %v2999
  %v3006 = vmul.f32 %v2901, %v2992
  %v3007 = vmul.f32 %v2903, %v2999
  %v3008 = vmul.f32 %v2905, %v3000
  %v3009 = vmul.f32 %v2907, %v3001
  %v3010 = vrot.slane %v2844, 2
  %v3011 = vrot.slane %v2846, 2
  %v3012 = vrot.slane %v2848, 2
  %v3013 = vrot.slane %v2850, 2
  %v3018 = vadd.f32 %v3010, %v3006
  %v3019 = vadd.f32 %v3011, %v3007
  %v3020 = vadd.f32 %v3012, %v3008
  %v3021 = vadd.f32 %v3013, %v3009
  %v3022 = vtanh.pop %v3018
  %v3023 = vtanh.pop %v3019
  %v3024 = vtanh.pop %v3020
  %v3025 = vtanh.pop %v3021
  %v3026 = vsub.f32 1.0, %v2970
  %v3027 = vsub.f32 1.0, %v2972
  %v3028 = vsub.f32 1.0, %v2974
  %v3029 = vsub.f32 1.0, %v2976
  %v3030 = vmul.f32 %v3026, %v3022
  %v3031 = vmul.f32 %v3027, %v3023
  %v3032 = vmul.f32 %v3028, %v3024
  %v3033 = vmul.f32 %v3029, %v3025
  %v3034 = vmul.f32 %v2970, %v2506
  %v3035 = vmul.f32 %v2972, %v2507
  %v3036 = vmul.f32 %v2974, %v2508
  %v3037 = vmul.f32 %v2976, %v2509
  %v3038 = vadd.f32 %v3030, %v3034
  %v3039 = vadd.f32 %v3031, %v3035
  %v3040 = vadd.f32 %v3032, %v3036
  %v3041 = vadd.f32 %v3033, %v3037
  %v3042 = vadd.f32 %v2717, %v2797
  %v3043 = vxor.u32 %v3042, 2147483648
  %v3044 = vmul.f32 %v3043, 1.442695
  %v3045 = vpow.pop %v3044
  %v3046 = vadd.f32 %v3045, 1.0
  %v3047 = vrcp.pop %v3046
  %v3048 = vmul.f32 1.0, %v3047
  %v3049 = vadd.f32 %v2756, %v2799
  %v3050 = vxor.u32 %v3049, 2147483648
  %v3051 = vmul.f32 %v3050, 1.442695
  %v3052 = vpow.pop %v3051
  %v3053 = vadd.f32 %v3052, 1.0
  %v3054 = vrcp.pop %v3053
  %v3055 = vmul.f32 1.0, %v3054
  %v3056 = vmul.f32 %v3048, %v2838
  %v3057 = vadd.f32 %v2758, %v3056
  %v3058 = vtanh.pop %v3057
  %v3059 = vsub.f32 1.0, %v3055
  %v3060 = vmul.f32 %v3059, %v3058
  %v3061 = vmul.f32 %v3055, %v2530
  %v3062 = vadd.f32 %v3060, %v3061
  %v3063 = vpack.c.bf16 %v3062, %v3062
  %v3066 = vunpack.c.l.s4 1966171168
  %v3067 = vunpack.c.0.s8 %v3066
  %v3068 = vlaneseq
  %v3069 = vshrl.u32 %v3068, 7
  %v3070 = vsub.s32 %v3067, %v3069
  %v3071 = vrot.slane %v3063, %v3070
  %v3072 = vcombine.high %v3071, %v3071
  %v3074 = vunpack.c.l.s4 1966171168
  %v3075 = vunpack.c.0.s8 %v3074
  %v3076 = vlaneseq
  %v3077 = vshrl.u32 %v3076, 7
  %v3078 = vsub.s32 %v3075, %v3077
  %v3079 = vrot.slane %v3071, %v3078
  %v3081 = vunpack.c.l.s4 1966171168
  %v3082 = vunpack.c.0.s8 %v3081
  %v3083 = vlaneseq
  %v3084 = vshrl.u32 %v3083, 7
  %v3085 = vsub.s32 %v3082, %v3084
  %v3086 = vrot.slane %v3072, %v3085
  %v3087 = vunpack.i.l.s16 %v3079
  %v3088 = vunpack.i.h.s16 %v3079
  %v3089 = vunpack.i.l.s16 %v3086
  %v3090 = vunpack.i.h.s16 %v3086
  %v3091 = vpack.i.b16 %v3087, %v3087
  %v3092 = vpack.i.b16 %v3088, %v3088
  %v3093 = vpack.i.b16 %v3089, %v3089
  %v3094 = vpack.i.b16 %v3090, %v3090
  %v3096 = vunpack.c.l.s4 857870592
  %v3097 = vunpack.c.0.s8 %v3096
  %v3098 = vlaneseq
  %v3099 = vshrl.u32 %v3098, 7
  %v3100 = vsub.s32 %v3097, %v3099
  %v3101 = vrot.slane %v3091, %v3100
  %v3103 = vunpack.c.l.s4 857870592
  %v3104 = vunpack.c.0.s8 %v3103
  %v3105 = vlaneseq
  %v3106 = vshrl.u32 %v3105, 7
  %v3107 = vsub.s32 %v3104, %v3106
  %v3108 = vrot.slane %v3092, %v3107
  %v3110 = vunpack.c.l.s4 857870592
  %v3111 = vunpack.c.0.s8 %v3110
  %v3112 = vlaneseq
  %v3113 = vshrl.u32 %v3112, 7
  %v3114 = vsub.s32 %v3111, %v3113
  %v3115 = vrot.slane %v3093, %v3114
  %v3117 = vunpack.c.l.s4 857870592
  %v3118 = vunpack.c.0.s8 %v3117
  %v3119 = vlaneseq
  %v3120 = vshrl.u32 %v3119, 7
  %v3121 = vsub.s32 %v3118, %v3120
  %v3122 = vrot.slane %v3094, %v3121
  %vm3127 = vcmask 1041409
  %vm3128 = vsmask.f32 1280
  %vm3129 = vmand %vm3127, %vm3128
  %v3130 = vld [vmem:[%s5] sm:$0x2]
  %v3131 = vsel %vm3129, %v3101, %v3130
  %3132 = vst [vmem:[%s5] sm:$0x2] %v3131
  %v3133 = vld [vmem:[%s5 + $0x2] sm:$0x2]
  %v3134 = vsel %vm3129, %v3108, %v3133
  %3135 = vst [vmem:[%s5 + $0x2] sm:$0x2] %v3134
  %v3136 = vld [vmem:[%s5 + $0x4] sm:$0x2]
  %v3137 = vsel %vm3129, %v3115, %v3136
  %3138 = vst [vmem:[%s5 + $0x4] sm:$0x2] %v3137
  %v3139 = vld [vmem:[%s5 + $0x6] sm:$0x2]
  %v3140 = vsel %vm3129, %v3122, %v3139
  %3141 = vst [vmem:[%s5 + $0x6] sm:$0x2] %v3140
  %v3146 = vcombine.low %v3038, %v3039
  %v3147 = vcombine.low %v3040, %v3041
  %v3149 = vunpack.c.l.s4 1966171168
  %v3150 = vunpack.c.0.s8 %v3149
  %v3151 = vlaneseq
  %v3152 = vshrl.u32 %v3151, 7
  %v3153 = vsub.s32 %v3150, %v3152
  %v3154 = vrot.slane %v3146, %v3153
  %v3156 = vunpack.c.l.s4 1966171168
  %v3157 = vunpack.c.0.s8 %v3156
  %v3158 = vlaneseq
  %v3159 = vshrl.u32 %v3158, 7
  %v3160 = vsub.s32 %v3157, %v3159
  %v3161 = vrot.slane %v3147, %v3160
  %v3162 = vcombine.low %v3154, %v3161
  %v3164 = vunpack.c.l.s4 1966171168
  %v3165 = vunpack.c.0.s8 %v3164
  %v3166 = vlaneseq
  %v3167 = vshrl.u32 %v3166, 7
  %v3168 = vsub.s32 %v3165, %v3167
  %v3169 = vrot.slane %v3162, %v3168
  %v3171 = vpack.c.bf16 %v3169, %v3169
  %3172 = vmatprep.subr.bf16.mxu0 %v724
  %3173 = vmatpush1.bf16.msra.mxu0 %v723
  %3174 = vmatprep.subr.bf16.mxu0 %v728
  %3175 = vmatpush1.bf16.msra.mxu0 %v727
  %3176 = vmatprep.subr.bf16.mxu0 %v732
  %3177 = vmatpush1.bf16.msra.mxu0 %v731
  %3178 = vmatprep.subr.bf16.mxu0 %v736
  %3179 = vmatpush1.bf16.msra.mxu0 %v735
  %3180 = vmatprep.subr.bf16.mxu0 %v740
  %3181 = vmatpush1.bf16.msra.mxu0 %v739
  %3182 = vmatprep.subr.bf16.mxu0 %v744
  %3183 = vmatpush1.bf16.msra.mxu0 %v743
  %3184 = vmatprep.subr.bf16.mxu0 %v748
  %3185 = vmatpush1.bf16.msra.mxu0 %v747
  %3186 = vmatprep.subr.bf16.mxu0 %v752
  %3187 = vmatpush1.bf16.msra.mxu0 %v751
  %3188 = vmatprep.subr.bf16.mxu0 %v756
  %3189 = vmatpush1.bf16.msra.mxu0 %v755
  %3190 = vmatprep.subr.bf16.mxu0 %v760
  %3191 = vmatpush1.bf16.msra.mxu0 %v759
  %3192 = vmatprep.subr.bf16.mxu0 %v764
  %3193 = vmatpush1.bf16.msra.mxu0 %v763
  %3194 = vmatprep.subr.bf16.mxu0 %v768
  %3195 = vmatpush1.bf16.msra.mxu0 %v767
  %3196 = vmatprep.subr.bf16.mxu0 %v772
  %3197 = vmatpush1.bf16.msra.mxu0 %v771
  %3198 = vmatprep.subr.bf16.mxu0 %v776
  %3199 = vmatpush1.bf16.msra.mxu0 %v775
  %3200 = vmatprep.subr.bf16.mxu0 %v780
  %3201 = vmatpush1.bf16.msra.mxu0 %v779
  %3202 = vmatprep.subr.bf16.mxu0 %v784
  %3203 = vmatpush1.bf16.msra.mxu0 %v783
  %3204 = vmatprep.mubr.bf16.mxu0 %v3063
  %3205 = vmatmul.mubr.bf16.gmra.mrb[0].mxu0 %v3171
  %v3206 = vpop.f32.mrb[0].mxu0
  %v3207 = vpop.f32.mrb[0].mxu0
  %v3208 = vadd.f32 %v499, %v3207
  %v3209 = vpop.f32.mrb[0].mxu0
  %v3210 = vpop.f32.mrb[0].mxu0
  %3211 = vdwg.mxu0
  %3212 = vmatprep.subr.bf16.mxu0 %v1415
  %3213 = vmatpush1.bf16.msra.mxu0 %v1414
  %3214 = vmatprep.subr.bf16.mxu0 %v1420
  %3215 = vmatpush1.bf16.msra.mxu0 %v1419
  %3216 = vmatprep.subr.bf16.mxu0 %v1425
  %3217 = vmatpush1.bf16.msra.mxu0 %v1424
  %3218 = vmatprep.subr.bf16.mxu0 %v1430
  %3219 = vmatpush1.bf16.msra.mxu0 %v1429
  %3220 = vmatprep.subr.bf16.mxu0 %v1435
  %3221 = vmatpush1.bf16.msra.mxu0 %v1434
  %3222 = vmatprep.subr.bf16.mxu0 %v1440
  %3223 = vmatpush1.bf16.msra.mxu0 %v1439
  %3224 = vmatprep.subr.bf16.mxu0 %v1445
  %3225 = vmatpush1.bf16.msra.mxu0 %v1444
  %3226 = vmatprep.subr.bf16.mxu0 %v1450
  %3227 = vmatpush1.bf16.msra.mxu0 %v1449
  %3228 = vmatprep.subr.bf16.mxu0 %v1455
  %3229 = vmatpush1.bf16.msra.mxu0 %v1454
  %3230 = vmatprep.subr.bf16.mxu0 %v1460
  %3231 = vmatpush1.bf16.msra.mxu0 %v1459
  %3232 = vmatprep.subr.bf16.mxu0 %v1465
  %3233 = vmatpush1.bf16.msra.mxu0 %v1464
  %3234 = vmatprep.subr.bf16.mxu0 %v1470
  %3235 = vmatpush1.bf16.msra.mxu0 %v1469
  %3236 = vmatprep.subr.bf16.mxu0 %v1475
  %3237 = vmatpush1.bf16.msra.mxu0 %v1474
  %3238 = vmatprep.subr.bf16.mxu0 %v1480
  %3239 = vmatpush1.bf16.msra.mxu0 %v1479
  %3240 = vmatprep.subr.bf16.mxu0 %v1485
  %3241 = vmatpush1.bf16.msra.mxu0 %v1484
  %3242 = vmatprep.subr.bf16.mxu0 %v1490
  %3243 = vmatpush1.bf16.msra.mxu0 %v1489
  %3244 = vmatprep.mubr.bf16.mxu0 %v3063
  %3245 = vmatmul.mubr.bf16.gmra.mrb[0].mxu0 %v3171
  %v3246 = vpop.f32.mrb[0].mxu0
  %v3247 = vadd.f32 %v503, %v3246
  %v3248 = vpop.f32.mrb[0].mxu0
  %v3249 = vadd.f32 %v507, %v3248
  %v3250 = vpop.f32.mrb[0].mxu0
  %v3251 = vpop.f32.mrb[0].mxu0
  %3252 = vdwg.mxu0
  %3253 = vmatprep.subr.bf16.mxu0 %v1417
  %3254 = vmatpush1.bf16.msra.mxu0 %v1416
  %3255 = vmatprep.subr.bf16.mxu0 %v1422
  %3256 = vmatpush1.bf16.msra.mxu0 %v1421
  %3257 = vmatprep.subr.bf16.mxu0 %v1427
  %3258 = vmatpush1.bf16.msra.mxu0 %v1426
  %3259 = vmatprep.subr.bf16.mxu0 %v1432
  %3260 = vmatpush1.bf16.msra.mxu0 %v1431
  %3261 = vmatprep.subr.bf16.mxu0 %v1437
  %3262 = vmatpush1.bf16.msra.mxu0 %v1436
  %3263 = vmatprep.subr.bf16.mxu0 %v1442
  %3264 = vmatpush1.bf16.msra.mxu0 %v1441
  %3265 = vmatprep.subr.bf16.mxu0 %v1447
  %3266 = vmatpush1.bf16.msra.mxu0 %v1446
  %3267 = vmatprep.subr.bf16.mxu0 %v1452
  %3268 = vmatpush1.bf16.msra.mxu0 %v1451
  %3269 = vmatprep.subr.bf16.mxu0 %v1457
  %3270 = vmatpush1.bf16.msra.mxu0 %v1456
  %3271 = vmatprep.subr.bf16.mxu0 %v1462
  %3272 = vmatpush1.bf16.msra.mxu0 %v1461
  %3273 = vmatprep.subr.bf16.mxu0 %v1467
  %3274 = vmatpush1.bf16.msra.mxu0 %v1466
  %3275 = vmatprep.subr.bf16.mxu0 %v1472
  %3276 = vmatpush1.bf16.msra.mxu0 %v1471
  %3277 = vmatprep.subr.bf16.mxu0 %v1477
  %3278 = vmatpush1.bf16.msra.mxu0 %v1476
  %3279 = vmatprep.subr.bf16.mxu0 %v1482
  %3280 = vmatpush1.bf16.msra.mxu0 %v1481
  %3281 = vmatprep.subr.bf16.mxu0 %v1487
  %3282 = vmatpush1.bf16.msra.mxu0 %v1486
  %3283 = vmatprep.subr.bf16.mxu0 %v1492
  %3284 = vmatpush1.bf16.msra.mxu0 %v1491
  %3285 = vmatprep.mubr.bf16.mxu0 %v3063
  %3286 = vmatmul.mubr.bf16.gmra.mrb[0].mxu0 %v3171
  %v3287 = vpop.f32.mrb[0].mxu0
  %v3288 = vadd.f32 %v511, %v3287
  %v3289 = vpop.f32.mrb[0].mxu0
  %v3290 = vadd.f32 %v515, %v3289
  %v3291 = vpop.f32.mrb[0].mxu0
  %v3292 = vpop.f32.mrb[0].mxu0
  %3293 = vdwg.mxu0
  %3294 = vmatprep.subr.bf16.mxu0 0
  %3295 = vmatpush1.bf16.msra.mxu0 %v1418
  %3296 = vmatprep.subr.bf16.mxu0 0
  %3297 = vmatpush1.bf16.msra.mxu0 %v1423
  %3298 = vmatprep.subr.bf16.mxu0 0
  %3299 = vmatpush1.bf16.msra.mxu0 %v1428
  %3300 = vmatprep.subr.bf16.mxu0 0
  %3301 = vmatpush1.bf16.msra.mxu0 %v1433
  %3302 = vmatprep.subr.bf16.mxu0 0
  %3303 = vmatpush1.bf16.msra.mxu0 %v1438
  %3304 = vmatprep.subr.bf16.mxu0 0
  %3305 = vmatpush1.bf16.msra.mxu0 %v1443
  %3306 = vmatprep.subr.bf16.mxu0 0
  %3307 = vmatpush1.bf16.msra.mxu0 %v1448
  %3308 = vmatprep.subr.bf16.mxu0 0
  %3309 = vmatpush1.bf16.msra.mxu0 %v1453
  %3310 = vmatprep.subr.bf16.mxu0 0
  %3311 = vmatpush1.bf16.msra.mxu0 %v1458
  %3312 = vmatprep.subr.bf16.mxu0 0
  %3313 = vmatpush1.bf16.msra.mxu0 %v1463
  %3314 = vmatprep.subr.bf16.mxu0 0
  %3315 = vmatpush1.bf16.msra.mxu0 %v1468
  %3316 = vmatprep.subr.bf16.mxu0 0
  %3317 = vmatpush1.bf16.msra.mxu0 %v1473
  %3318 = vmatprep.subr.bf16.mxu0 0
  %3319 = vmatpush1.bf16.msra.mxu0 %v1478
  %3320 = vmatprep.subr.bf16.mxu0 0
  %3321 = vmatpush1.bf16.msra.mxu0 %v1483
  %3322 = vmatprep.subr.bf16.mxu0 0
  %3323 = vmatpush1.bf16.msra.mxu0 %v1488
  %3324 = vmatprep.subr.bf16.mxu0 0
  %3325 = vmatpush1.bf16.msra.mxu0 %v1493
  %3326 = vmatprep.mubr.bf16.mxu0 %v3063
  %3327 = vmatmul.mubr.bf16.gmra.mrb[0].mxu0 %v3171
  %v3328 = vpop.f32.mrb[0].mxu0
  %v3329 = vadd.f32 %v519, %v3328
  %v3330 = vpop.f32.mrb[0].mxu0
  %v3331 = vpop.f32.mrb[0].mxu0
  %v3332 = vpop.f32.mrb[0].mxu0
  %3333 = vdwg.mxu0
  %v3334 = vadd.f32 %v3208, %v3288
  %v3335 = vxor.u32 %v3334, 2147483648
  %v3336 = vmul.f32 %v3335, 1.442695
  %v3337 = vpow.pop %v3336
  %v3338 = vadd.f32 %v3337, 1.0
  %v3339 = vrcp.pop %v3338
  %v3340 = vmul.f32 1.0, %v3339
  %v3341 = vadd.f32 %v3247, %v3290
  %v3342 = vxor.u32 %v3341, 2147483648
  %v3343 = vmul.f32 %v3342, 1.442695
  %v3344 = vpow.pop %v3343
  %v3345 = vadd.f32 %v3344, 1.0
  %v3346 = vrcp.pop %v3345
  %v3347 = vmul.f32 1.0, %v3346
  %v3348 = vmul.f32 %v3340, %v3329
  %v3349 = vadd.f32 %v3249, %v3348
  %v3350 = vtanh.pop %v3349
  %v3351 = vsub.f32 1.0, %v3347
  %v3352 = vmul.f32 %v3351, %v3350
  %v3353 = vmul.f32 %v3347, %v3062
  %v3354 = vadd.f32 %v3352, %v3353
  %v3355 = vpack.c.bf16 %v3354, %v3354
  %v3358 = vunpack.c.l.s4 1966171168
  %v3359 = vunpack.c.0.s8 %v3358
  %v3360 = vlaneseq
  %v3361 = vshrl.u32 %v3360, 7
  %v3362 = vsub.s32 %v3359, %v3361
  %v3363 = vrot.slane %v3355, %v3362
  %v3364 = vcombine.high %v3363, %v3363
  %v3366 = vunpack.c.l.s4 1966171168
  %v3367 = vunpack.c.0.s8 %v3366
  %v3368 = vlaneseq
  %v3369 = vshrl.u32 %v3368, 7
  %v3370 = vsub.s32 %v3367, %v3369
  %v3371 = vrot.slane %v3363, %v3370
  %v3373 = vunpack.c.l.s4 1966171168
  %v3374 = vunpack.c.0.s8 %v3373
  %v3375 = vlaneseq
  %v3376 = vshrl.u32 %v3375, 7
  %v3377 = vsub.s32 %v3374, %v3376
  %v3378 = vrot.slane %v3364, %v3377
  %v3379 = vunpack.i.l.s16 %v3371
  %v3380 = vunpack.i.h.s16 %v3371
  %v3381 = vunpack.i.l.s16 %v3378
  %v3382 = vunpack.i.h.s16 %v3378
  %v3383 = vpack.i.b16 %v3379, %v3379
  %v3384 = vpack.i.b16 %v3380, %v3380
  %v3385 = vpack.i.b16 %v3381, %v3381
  %v3386 = vpack.i.b16 %v3382, %v3382
  %v3388 = vunpack.c.l.s4 857870592
  %v3389 = vunpack.c.0.s8 %v3388
  %v3390 = vlaneseq
  %v3391 = vshrl.u32 %v3390, 7
  %v3392 = vsub.s32 %v3389, %v3391
  %v3393 = vrot.slane %v3383, %v3392
  %v3395 = vunpack.c.l.s4 857870592
  %v3396 = vunpack.c.0.s8 %v3395
  %v3397 = vlaneseq
  %v3398 = vshrl.u32 %v3397, 7
  %v3399 = vsub.s32 %v3396, %v3398
  %v3400 = vrot.slane %v3384, %v3399
  %v3402 = vunpack.c.l.s4 857870592
  %v3403 = vunpack.c.0.s8 %v3402
  %v3404 = vlaneseq
  %v3405 = vshrl.u32 %v3404, 7
  %v3406 = vsub.s32 %v3403, %v3405
  %v3407 = vrot.slane %v3385, %v3406
  %v3409 = vunpack.c.l.s4 857870592
  %v3410 = vunpack.c.0.s8 %v3409
  %v3411 = vlaneseq
  %v3412 = vshrl.u32 %v3411, 7
  %v3413 = vsub.s32 %v3410, %v3412
  %v3414 = vrot.slane %v3386, %v3413
  %vm3419 = vsmask.f32 7942
  %vm3420 = vmand %vm3127, %vm3419
  %v3421 = vld [vmem:[%s5] sm:$0x2]
  %v3422 = vsel %vm3420, %v3393, %v3421
  %3423 = vst [vmem:[%s5] sm:$0x2] %v3422
  %v3424 = vld [vmem:[%s5 + $0x2] sm:$0x2]
  %v3425 = vsel %vm3420, %v3400, %v3424
  %3426 = vst [vmem:[%s5 + $0x2] sm:$0x2] %v3425
  %v3427 = vld [vmem:[%s5 + $0x4] sm:$0x2]
  %v3428 = vsel %vm3420, %v3407, %v3427
  %3429 = vst [vmem:[%s5 + $0x4] sm:$0x2] %v3428
  %v3430 = vld [vmem:[%s5 + $0x6] sm:$0x2]
  %v3431 = vsel %vm3420, %v3414, %v3430
  %3432 = vst [vmem:[%s5 + $0x6] sm:$0x2] %v3431
  // Predicated region
  $region22: #{crn_net_forward.4} parent=0 // pred_check
    _
  $region23: #{crn_net_forward.4} parent=0 // pred_check_branch
    %3434 = sbr.rel (0) target = $region25
  $region24: #{crn_net_forward.4} parent=0 // pred_region
    _
  $region25: #{crn_net_forward.4} parent=0 // pred_fallthru
    _
  // Predicated region
  $region26: #{crn_net_forward.4} parent=0 // pred_check
    _
  $region27: #{crn_net_forward.4} parent=0 // pred_check_branch
    %3436 = sbr.rel (0) target = $region29
  $region28: #{crn_net_forward.4} parent=0 // pred_region
    _
  $region29: #{crn_net_forward.4} parent=0 // pred_fallthru
    _

// kernel: crn_net_forward.5
$region0: #{crn_net_forward.5}
  #allocation0 [shape = 'u32[]', space=smem, size = 0x4, offset = 0x4, fixed_abs, tag = 'smem constant byte address 0x4 - core index']
  #allocation1 [shape = 'u32[144,128]{1,0:T(1,128)}', space=vmem, size = 0x12000, scoped, tag = 'internal scratch']
  %s0 = inlined_call_operand.vmem [shape: bf16[4,4,128], index: 0, kind: input, shape index: {}]
  %s1 = inlined_call_operand.vmem [shape: bf16[384,192], index: 1, kind: input, shape index: {}]
  %s2 = inlined_call_operand.vmem [shape: f32[1,192], index: 2, kind: input, shape index: {}]
  %s3 = inlined_call_operand.vmem [shape: bf16[576,224], index: 3, kind: input, shape index: {}]
  %s4 = inlined_call_operand.vmem [shape: f32[1,224], index: 4, kind: input, shape index: {}]
  %s5 = inlined_call_operand.vmem [shape: bf16[672,240], index: 5, kind: input, shape index: {}]
  %s6 = inlined_call_operand.vmem [shape: f32[1,240], index: 6, kind: input, shape index: {}]
  %s7 = inlined_call_operand.vmem [shape: bf16[720,62], index: 7, kind: input, shape index: {}]
  %s8 = inlined_call_operand.vmem [shape: f32[1,62], index: 8, kind: input, shape index: {}]
  %s9 = inlined_call_operand.vmem [shape: bf16[2,62,512], index: 9, kind: input, shape index: {}]
  %s10 = inlined_call_operand.vmem [shape: f32[1,512], index: 10, kind: input, shape index: {}]
  %s11 = inlined_call_operand.vmem [shape: bf16[512,7], index: 11, kind: input, shape index: {}]
  %s12 = inlined_call_operand.vmem [shape: f32[1,7], index: 12, kind: input, shape index: {}]
  %s13 = inlined_call_operand.vmem [shape: f32[4,2,12,7], index: 13, kind: output, shape index: {}]
  %s14 = sld [smem:[#allocation0]]
  $region62: #{crn_net_forward.5} parent=0
    _
  %s16 = ssub.s32 1, %s14
  %s17 = scalar_select 0, %s16, %s14
  // Predicated region
  $region2: #{crn_net_forward.5} parent=0 // pred_check
    _
  $region3: #{crn_net_forward.5} parent=0 // pred_check_branch
    %19 = sbr.rel (0) target = $region5
  $region4: #{crn_net_forward.5} parent=0 // pred_region
    _
  $region5: #{crn_net_forward.5} parent=0 // pred_fallthru
    _
  // Predicated region
  $region6: #{crn_net_forward.5} parent=0 // pred_check
    _
  $region7: #{crn_net_forward.5} parent=0 // pred_check_branch
    %21 = sbr.rel (0) target = $region9
  $region8: #{crn_net_forward.5} parent=0 // pred_region
    _
  $region9: #{crn_net_forward.5} parent=0 // pred_fallthru
    _
  // Predicated region
  $region10: #{crn_net_forward.5} parent=0 // pred_check
    _
  $region11: #{crn_net_forward.5} parent=0 // pred_check_branch
    %23 = sbr.rel (0) target = $region13
  $region12: #{crn_net_forward.5} parent=0 // pred_region
    _
  $region13: #{crn_net_forward.5} parent=0 // pred_fallthru
    _
  // Predicated region
  $region14: #{crn_net_forward.5} parent=0 // pred_check
    _
  $region15: #{crn_net_forward.5} parent=0 // pred_check_branch
    %25 = sbr.rel (0) target = $region17
  $region16: #{crn_net_forward.5} parent=0 // pred_region
    _
  $region17: #{crn_net_forward.5} parent=0 // pred_fallthru
    _
  // Predicated region
  $region18: #{crn_net_forward.5} parent=0 // pred_check
    _
  $region19: #{crn_net_forward.5} parent=0 // pred_check_branch
    %27 = sbr.rel (0) target = $region21
  $region20: #{crn_net_forward.5} parent=0 // pred_region
    _
  $region21: #{crn_net_forward.5} parent=0 // pred_fallthru
    _
  // Predicated region
  $region22: #{crn_net_forward.5} parent=0 // pred_check
    _
  $region23: #{crn_net_forward.5} parent=0 // pred_check_branch
    %29 = sbr.rel (0) target = $region25
  $region24: #{crn_net_forward.5} parent=0 // pred_region
    _
  $region25: #{crn_net_forward.5} parent=0 // pred_fallthru
    _
  // Predicated region
  $region26: #{crn_net_forward.5} parent=0 // pred_check
    _
  $region27: #{crn_net_forward.5} parent=0 // pred_check_branch
    %31 = sbr.rel (0) target = $region29
  $region28: #{crn_net_forward.5} parent=0 // pred_region
    _
  $region29: #{crn_net_forward.5} parent=0 // pred_fallthru
    _
  // Predicated region
  $region30: #{crn_net_forward.5} parent=0 // pred_check
    _
  $region31: #{crn_net_forward.5} parent=0 // pred_check_branch
    %33 = sbr.rel (0) target = $region33
  $region32: #{crn_net_forward.5} parent=0 // pred_region
    _
  $region33: #{crn_net_forward.5} parent=0 // pred_fallthru
    _
  // Predicated region
  $region34: #{crn_net_forward.5} parent=0 // pred_check
    _
  $region35: #{crn_net_forward.5} parent=0 // pred_check_branch
    %35 = sbr.rel (0) target = $region37
  $region36: #{crn_net_forward.5} parent=0 // pred_region
    _
  $region37: #{crn_net_forward.5} parent=0 // pred_fallthru
    _
  // Predicated region
  $region38: #{crn_net_forward.5} parent=0 // pred_check
    _
  $region39: #{crn_net_forward.5} parent=0 // pred_check_branch
    %37 = sbr.rel (0) target = $region41
  $region40: #{crn_net_forward.5} parent=0 // pred_region
    _
  $region41: #{crn_net_forward.5} parent=0 // pred_fallthru
    _
  // Predicated region
  $region42: #{crn_net_forward.5} parent=0 // pred_check
    _
  $region43: #{crn_net_forward.5} parent=0 // pred_check_branch
    %39 = sbr.rel (0) target = $region45
  $region44: #{crn_net_forward.5} parent=0 // pred_region
    _
  $region45: #{crn_net_forward.5} parent=0 // pred_fallthru
    _
  // Predicated region
  $region46: #{crn_net_forward.5} parent=0 // pred_check
    _
  $region47: #{crn_net_forward.5} parent=0 // pred_check_branch
    %41 = sbr.rel (0) target = $region49
  $region48: #{crn_net_forward.5} parent=0 // pred_region
    _
  $region49: #{crn_net_forward.5} parent=0 // pred_fallthru
    _
  // Predicated region
  $region50: #{crn_net_forward.5} parent=0 // pred_check
    _
  $region51: #{crn_net_forward.5} parent=0 // pred_check_branch
    %43 = sbr.rel (0) target = $region53
  $region52: #{crn_net_forward.5} parent=0 // pred_region
    _
  $region53: #{crn_net_forward.5} parent=0 // pred_fallthru
    _
  %v45 = vld [vmem:[%s0] sm:$0x3]
  %v46 = vunpack.c.l.bf16 %v45
  %v48 = vrot.slane %v46, 6
  %vm50 = vcmask 1041408
  %v51 = vsel %vm50, 0.0, %v48
  %vm52 = vcmask 1045504
  %v53 = vsel %vm52, %v51, 0.0
  %v55 = vrot.slane %v53, 7
  %v56 = vrot.slane %v53, 6
  %s57 = scalar_lea.vmem %s0, 2
  %v58 = vld [vmem:[%s57] sm:$0x3]
  %v59 = vunpack.c.l.bf16 %v58
  %v61 = vrot.slane %v59, 6
  %v63 = vsel %vm50, 0.0, %v61
  %v64 = vsel %vm52, %v63, 0.0
  %v66 = vrot.slane %v64, 7
  %v67 = vrot.slane %v64, 6
  %s68 = scalar_lea.vmem %s0, 4
  %v69 = vld [vmem:[%s68] sm:$0x3]
  %v70 = vunpack.c.l.bf16 %v69
  %v72 = vrot.slane %v70, 6
  %v74 = vsel %vm50, 0.0, %v72
  %v75 = vsel %vm52, %v74, 0.0
  %v77 = vrot.slane %v75, 7
  %v78 = vrot.slane %v75, 6
  %s79 = scalar_lea.vmem %s0, 6
  %v80 = vld [vmem:[%s79] sm:$0x3]
  %v81 = vunpack.c.l.bf16 %v80
  %v83 = vrot.slane %v81, 6
  %v85 = vsel %vm50, 0.0, %v83
  %v86 = vsel %vm52, %v85, 0.0
  %v88 = vrot.slane %v86, 7
  %v90 = vrot.slane %v86, 6
  %v92 = vrot.slane %v53, 2
  %v93 = vrot.slane %v55, 2
  %v94 = vrot.slane %v56, 2
  %v98 = vrot.slane %v64, 4
  %v99 = vrot.slane %v66, 4
  %v100 = vrot.slane %v67, 4
  %v104 = vrot.slane %v77, 6
  %v105 = vrot.slane %v78, 6
  %v109 = vsel %vm52, %v92, %v98
  %v110 = vsel %vm52, %v93, %v99
  %v111 = vsel %vm52, %v94, %v100
  %vm112 = vcmask 1043456
  %v113 = vsel %vm112, %v98, %v78
  %v114 = vsel %vm112, %v99, %v104
  %v115 = vsel %vm112, %v100, %v105
  %v116 = vsel %vm50, %v78, %v86
  %v117 = vsel %vm50, %v104, %v88
  %v118 = vsel %vm50, %v105, %v90
  %v119 = vpack.c.bf16 %v113, %v109
  %v120 = vpack.c.bf16 %v114, %v110
  %v121 = vpack.c.bf16 %v115, %v111
  %v122 = vpack.c.bf16 %v116, %v116
  %v123 = vpack.c.bf16 %v117, %v117
  %v124 = vpack.c.bf16 %v118, %v118
  %v125 = vld [vmem:[%s1] sm:$0xff]
  %v126 = vld [vmem:[%s1 + $0x8] sm:$0xff]
  %v127 = vld [vmem:[%s1 + $0x10] sm:$0xff]
  %v128 = vld [vmem:[%s1 + $0x18] sm:$0xff]
  %v129 = vld [vmem:[%s1 + $0x20] sm:$0xff]
  %v130 = vld [vmem:[%s1 + $0x28] sm:$0xff]
  %v131 = vld [vmem:[%s1 + $0x30] sm:$0xff]
  %v132 = vld [vmem:[%s1 + $0x38] sm:$0xff]
  %v133 = vld [vmem:[%s1 + $0x40] sm:$0xff]
  %v134 = vld [vmem:[%s1 + $0x48] sm:$0xff]
  %v135 = vld [vmem:[%s1 + $0x50] sm:$0xff]
  %v136 = vld [vmem:[%s1 + $0x58] sm:$0xff]
  %v137 = vld [vmem:[%s1 + $0x60] sm:$0xff]
  %v138 = vld [vmem:[%s1 + $0x68] sm:$0xff]
  %v139 = vld [vmem:[%s1 + $0x70] sm:$0xff]
  %v140 = vld [vmem:[%s1 + $0x78] sm:$0xff]
  %v141 = vld [vmem:[%s1 + $0x80] sm:$0xff]
  %v142 = vld [vmem:[%s1 + $0x88] sm:$0xff]
  %v143 = vld [vmem:[%s1 + $0x90] sm:$0xff]
  %v144 = vld [vmem:[%s1 + $0x98] sm:$0xff]
  %v145 = vld [vmem:[%s1 + $0xa0] sm:$0xff]
  %v146 = vld [vmem:[%s1 + $0xa8] sm:$0xff]
  %v147 = vld [vmem:[%s1 + $0xb0] sm:$0xff]
  %v148 = vld [vmem:[%s1 + $0xb8] sm:$0xff]
  %v149 = vld [vmem:[%s1 + $0xc0] sm:$0xff]
  %v150 = vld [vmem:[%s1 + $0xc8] sm:$0xff]
  %v151 = vld [vmem:[%s1 + $0xd0] sm:$0xff]
  %v152 = vld [vmem:[%s1 + $0xd8] sm:$0xff]
  %v153 = vld [vmem:[%s1 + $0xe0] sm:$0xff]
  %v154 = vld [vmem:[%s1 + $0xe8] sm:$0xff]
  %v155 = vld [vmem:[%s1 + $0xf0] sm:$0xff]
  %v156 = vld [vmem:[%s1 + $0xf8] sm:$0xff]
  %v157 = vld [vmem:[%s1 + $0x100] sm:$0xff]
  %v158 = vld [vmem:[%s1 + $0x108] sm:$0xff]
  %v159 = vld [vmem:[%s1 + $0x110] sm:$0xff]
  %v160 = vld [vmem:[%s1 + $0x118] sm:$0xff]
  %v161 = vld [vmem:[%s1 + $0x120] sm:$0xff]
  %v162 = vld [vmem:[%s1 + $0x128] sm:$0xff]
  %v163 = vld [vmem:[%s1 + $0x130] sm:$0xff]
  %v164 = vld [vmem:[%s1 + $0x138] sm:$0xff]
  %v165 = vld [vmem:[%s1 + $0x140] sm:$0xff]
  %v166 = vld [vmem:[%s1 + $0x148] sm:$0xff]
  %v167 = vld [vmem:[%s1 + $0x150] sm:$0xff]
  %v168 = vld [vmem:[%s1 + $0x158] sm:$0xff]
  %v169 = vld [vmem:[%s1 + $0x160] sm:$0xff]
  %v170 = vld [vmem:[%s1 + $0x168] sm:$0xff]
  %v171 = vld [vmem:[%s1 + $0x170] sm:$0xff]
  %v172 = vld [vmem:[%s1 + $0x178] sm:$0xff]
  %v173 = vld [vmem:[%s2] sm:$0x3]
  %v175 = vlaneseq
  %v176 = vshrl.u32 %v175, 7
  %v177 = vsub.s32 0, %v176
  %v178 = vrot.slane %v173, %v177
  %v179 = vlaneseq
  %v180 = vshrl.u32 %v179, 7
  %v181 = vsub.s32 1, %v180
  %v182 = vrot.slane %v173, %v181
  %v233 = vunpack.c.l.b16 %v125
  %v234 = vunpack.c.h.b16 %v125
  %v235 = vunpack.c.l.b16 %v126
  %v236 = vunpack.c.h.b16 %v126
  %v237 = vunpack.c.l.b16 %v127
  %v238 = vunpack.c.h.b16 %v127
  %v239 = vunpack.c.l.b16 %v128
  %v240 = vunpack.c.h.b16 %v128
  %v241 = vunpack.c.l.b16 %v129
  %v242 = vunpack.c.h.b16 %v129
  %v243 = vunpack.c.l.b16 %v130
  %v244 = vunpack.c.h.b16 %v130
  %v245 = vunpack.c.l.b16 %v131
  %v246 = vunpack.c.h.b16 %v131
  %v247 = vunpack.c.l.b16 %v132
  %v248 = vunpack.c.h.b16 %v132
  %v249 = vunpack.c.l.b16 %v133
  %v250 = vunpack.c.h.b16 %v133
  %v251 = vunpack.c.l.b16 %v134
  %v252 = vunpack.c.h.b16 %v134
  %v253 = vunpack.c.l.b16 %v135
  %v254 = vunpack.c.h.b16 %v135
  %v255 = vunpack.c.l.b16 %v136
  %v256 = vunpack.c.h.b16 %v136
  %v257 = vunpack.c.l.b16 %v137
  %v258 = vunpack.c.h.b16 %v137
  %v259 = vunpack.c.l.b16 %v138
  %v260 = vunpack.c.h.b16 %v138
  %v261 = vunpack.c.l.b16 %v139
  %v262 = vunpack.c.h.b16 %v139
  %v263 = vunpack.c.l.b16 %v140
  %v264 = vunpack.c.h.b16 %v140
  %v265 = vunpack.c.l.b16 %v141
  %v266 = vunpack.c.h.b16 %v141
  %v267 = vunpack.c.l.b16 %v142
  %v268 = vunpack.c.h.b16 %v142
  %v269 = vunpack.c.l.b16 %v143
  %v270 = vunpack.c.h.b16 %v143
  %v271 = vunpack.c.l.b16 %v144
  %v272 = vunpack.c.h.b16 %v144
  %v273 = vunpack.c.l.b16 %v145
  %v274 = vunpack.c.h.b16 %v145
  %v275 = vunpack.c.l.b16 %v146
  %v276 = vunpack.c.h.b16 %v146
  %v277 = vunpack.c.l.b16 %v147
  %v278 = vunpack.c.h.b16 %v147
  %v279 = vunpack.c.l.b16 %v148
  %v280 = vunpack.c.h.b16 %v148
  %v281 = vunpack.c.l.b16 %v149
  %v282 = vunpack.c.h.b16 %v149
  %v283 = vunpack.c.l.b16 %v150
  %v284 = vunpack.c.h.b16 %v150
  %v285 = vunpack.c.l.b16 %v151
  %v286 = vunpack.c.h.b16 %v151
  %v287 = vunpack.c.l.b16 %v152
  %v288 = vunpack.c.h.b16 %v152
  %v289 = vunpack.c.l.b16 %v153
  %v290 = vunpack.c.h.b16 %v153
  %v291 = vunpack.c.l.b16 %v154
  %v292 = vunpack.c.h.b16 %v154
  %v293 = vunpack.c.l.b16 %v155
  %v294 = vunpack.c.h.b16 %v155
  %v295 = vunpack.c.l.b16 %v156
  %v296 = vunpack.c.h.b16 %v156
  %v297 = vunpack.c.l.b16 %v157
  %v298 = vunpack.c.h.b16 %v157
  %v299 = vunpack.c.l.b16 %v158
  %v300 = vunpack.c.h.b16 %v158
  %v301 = vunpack.c.l.b16 %v159
  %v302 = vunpack.c.h.b16 %v159
  %v303 = vunpack.c.l.b16 %v160
  %v304 = vunpack.c.h.b16 %v160
  %v305 = vunpack.c.l.b16 %v161
  %v306 = vunpack.c.h.b16 %v161
  %v307 = vunpack.c.l.b16 %v162
  %v308 = vunpack.c.h.b16 %v162
  %v309 = vunpack.c.l.b16 %v163
  %v310 = vunpack.c.h.b16 %v163
  %v311 = vunpack.c.l.b16 %v164
  %v312 = vunpack.c.h.b16 %v164
  %v313 = vunpack.c.l.b16 %v165
  %v314 = vunpack.c.h.b16 %v165
  %v315 = vunpack.c.l.b16 %v166
  %v316 = vunpack.c.h.b16 %v166
  %v317 = vunpack.c.l.b16 %v167
  %v318 = vunpack.c.h.b16 %v167
  %v319 = vunpack.c.l.b16 %v168
  %v320 = vunpack.c.h.b16 %v168
  %v321 = vunpack.c.l.b16 %v169
  %v322 = vunpack.c.h.b16 %v169
  %v323 = vunpack.c.l.b16 %v170
  %v324 = vunpack.c.h.b16 %v170
  %v325 = vunpack.c.l.b16 %v171
  %v326 = vunpack.c.h.b16 %v171
  %v327 = vunpack.c.l.b16 %v172
  %v328 = vunpack.c.h.b16 %v172
  %v329 = vpack.c.b16 %v235, %v233
  %v330 = vpack.c.b16 %v236, %v234
  %v331 = vpack.c.b16 %v239, %v237
  %v332 = vpack.c.b16 %v240, %v238
  %v333 = vpack.c.b16 %v243, %v241
  %v334 = vpack.c.b16 %v244, %v242
  %v335 = vpack.c.b16 %v247, %v245
  %v336 = vpack.c.b16 %v248, %v246
  %v337 = vpack.c.b16 %v251, %v249
  %v338 = vpack.c.b16 %v252, %v250
  %v339 = vpack.c.b16 %v255, %v253
  %v340 = vpack.c.b16 %v256, %v254
  %v341 = vpack.c.b16 %v259, %v257
  %v342 = vpack.c.b16 %v260, %v258
  %v343 = vpack.c.b16 %v263, %v261
  %v344 = vpack.c.b16 %v264, %v262
  %v345 = vpack.c.b16 %v267, %v265
  %v346 = vpack.c.b16 %v268, %v266
  %v347 = vpack.c.b16 %v271, %v269
  %v348 = vpack.c.b16 %v272, %v270
  %v349 = vpack.c.b16 %v275, %v273
  %v350 = vpack.c.b16 %v276, %v274
  %v351 = vpack.c.b16 %v279, %v277
  %v352 = vpack.c.b16 %v280, %v278
  %v353 = vpack.c.b16 %v283, %v281
  %v354 = vpack.c.b16 %v284, %v282
  %v355 = vpack.c.b16 %v287, %v285
  %v356 = vpack.c.b16 %v288, %v286
  %v357 = vpack.c.b16 %v291, %v289
  %v358 = vpack.c.b16 %v292, %v290
  %v359 = vpack.c.b16 %v295, %v293
  %v360 = vpack.c.b16 %v296, %v294
  %v361 = vpack.c.b16 %v299, %v297
  %v362 = vpack.c.b16 %v300, %v298
  %v363 = vpack.c.b16 %v303, %v301
  %v364 = vpack.c.b16 %v304, %v302
  %v365 = vpack.c.b16 %v307, %v305
  %v366 = vpack.c.b16 %v308, %v306
  %v367 = vpack.c.b16 %v311, %v309
  %v368 = vpack.c.b16 %v312, %v310
  %v369 = vpack.c.b16 %v315, %v313
  %v370 = vpack.c.b16 %v316, %v314
  %v371 = vpack.c.b16 %v319, %v317
  %v372 = vpack.c.b16 %v320, %v318
  %v373 = vpack.c.b16 %v323, %v321
  %v374 = vpack.c.b16 %v324, %v322
  %v375 = vpack.c.b16 %v327, %v325
  %v376 = vpack.c.b16 %v328, %v326
  %425 = vmatprep.subr.bf16.mxu0 %v330
  %426 = vmatpush1.bf16.msra.mxu0 %v329
  %427 = vmatprep.subr.bf16.mxu0 %v332
  %428 = vmatpush1.bf16.msra.mxu0 %v331
  %429 = vmatprep.subr.bf16.mxu0 %v334
  %430 = vmatpush1.bf16.msra.mxu0 %v333
  %431 = vmatprep.subr.bf16.mxu0 %v336
  %432 = vmatpush1.bf16.msra.mxu0 %v335
  %433 = vmatprep.subr.bf16.mxu0 %v338
  %434 = vmatpush1.bf16.msra.mxu0 %v337
  %435 = vmatprep.subr.bf16.mxu0 %v340
  %436 = vmatpush1.bf16.msra.mxu0 %v339
  %437 = vmatprep.subr.bf16.mxu0 %v342
  %438 = vmatpush1.bf16.msra.mxu0 %v341
  %439 = vmatprep.subr.bf16.mxu0 %v344
  %440 = vmatpush1.bf16.msra.mxu0 %v343
  %441 = vmatprep.subr.bf16.mxu0 %v346
  %442 = vmatpush1.bf16.msra.mxu0 %v345
  %443 = vmatprep.subr.bf16.mxu0 %v348
  %444 = vmatpush1.bf16.msra.mxu0 %v347
  %445 = vmatprep.subr.bf16.mxu0 %v350
  %446 = vmatpush1.bf16.msra.mxu0 %v349
  %447 = vmatprep.subr.bf16.mxu0 %v352
  %448 = vmatpush1.bf16.msra.mxu0 %v351
  %449 = vmatprep.subr.bf16.mxu0 %v354
  %450 = vmatpush1.bf16.msra.mxu0 %v353
  %451 = vmatprep.subr.bf16.mxu0 %v356
  %452 = vmatpush1.bf16.msra.mxu0 %v355
  %453 = vmatprep.subr.bf16.mxu0 %v358
  %454 = vmatpush1.bf16.msra.mxu0 %v357
  %455 = vmatprep.subr.bf16.mxu0 %v360
  %456 = vmatpush1.bf16.msra.mxu0 %v359
  %457 = vmatprep.mubr.bf16.mxu0 %v120
  %458 = vmatmul.mubr.bf16.gmra.mrb[0].mxu0 %v119
  %v459 = vpop.f32.mrb[0].mxu0
  %v460 = vadd.f32 %v178, %v459
  %v461 = vpop.f32.mrb[0].mxu0
  %v462 = vadd.f32 %v182, %v461
  %v463 = vpop.f32.mrb[0].mxu0
  %v464 = vadd.f32 %v178, %v463
  %v465 = vpop.f32.mrb[0].mxu0
  %v466 = vadd.f32 %v182, %v465
  %467 = vmatprep.mubr.bf16.mxu0 %v123
  %468 = vmatmul.mubr.bf16.gmra.mrb[0].mxu0 %v122
  %v469 = vpop.f32.mrb[0].mxu0
  %v470 = vadd.f32 %v178, %v469
  %v471 = vpop.f32.mrb[0].mxu0
  %v472 = vadd.f32 %v182, %v471
  %v473 = vpop.f32.mrb[0].mxu0
  %v474 = vpop.f32.mrb[0].mxu0
  %475 = vdwg.mxu0
  %476 = vmatprep.subr.bf16.mxu0 %v362
  %477 = vmatpush1.bf16.msra.mxu0 %v361
  %478 = vmatprep.subr.bf16.mxu0 %v364
  %479 = vmatpush1.bf16.msra.mxu0 %v363
  %480 = vmatprep.subr.bf16.mxu0 %v366
  %481 = vmatpush1.bf16.msra.mxu0 %v365
  %482 = vmatprep.subr.bf16.mxu0 %v368
  %483 = vmatpush1.bf16.msra.mxu0 %v367
  %484 = vmatprep.subr.bf16.mxu0 %v370
  %485 = vmatpush1.bf16.msra.mxu0 %v369
  %486 = vmatprep.subr.bf16.mxu0 %v372
  %487 = vmatpush1.bf16.msra.mxu0 %v371
  %488 = vmatprep.subr.bf16.mxu0 %v374
  %489 = vmatpush1.bf16.msra.mxu0 %v373
  %490 = vmatprep.subr.bf16.mxu0 %v376
  %491 = vmatpush1.bf16.msra.mxu0 %v375
  %492 = vmatprep.subr.bf16.mxu0 0
  %493 = vmatpush1.bf16.msra.mxu0 0
  %494 = vmatprep.subr.bf16.mxu0 0
  %495 = vmatpush1.bf16.msra.mxu0 0
  %496 = vmatprep.subr.bf16.mxu0 0
  %497 = vmatpush1.bf16.msra.mxu0 0
  %498 = vmatprep.subr.bf16.mxu0 0
  %499 = vmatpush1.bf16.msra.mxu0 0
  %500 = vmatprep.subr.bf16.mxu0 0
  %501 = vmatpush1.bf16.msra.mxu0 0
  %502 = vmatprep.subr.bf16.mxu0 0
  %503 = vmatpush1.bf16.msra.mxu0 0
  %504 = vmatprep.subr.bf16.mxu0 0
  %505 = vmatpush1.bf16.msra.mxu0 0
  %506 = vmatprep.subr.bf16.mxu0 0
  %507 = vmatpush1.bf16.msra.mxu0 0
  %508 = vmatprep.mubr.bf16.mxu0 0
  %509 = vmatmul.mubr.bf16.gmra.mrb[0].mxu0 %v121
  %v510 = vpop.f32.mrb[0].mxu0
  %v511 = vadd.f32 %v460, %v510
  %v512 = vpop.f32.mrb[0].mxu0
  %v513 = vadd.f32 %v462, %v512
  %v514 = vpop.f32.mrb[0].mxu0
  %v515 = vadd.f32 %v464, %v514
  %v516 = vpop.f32.mrb[0].mxu0
  %v517 = vadd.f32 %v466, %v516
  %518 = vmatprep.mubr.bf16.mxu0 0
  %519 = vmatmul.mubr.bf16.gmra.mrb[0].mxu0 %v124
  %v520 = vpop.f32.mrb[0].mxu0
  %v521 = vadd.f32 %v470, %v520
  %v522 = vpop.f32.mrb[0].mxu0
  %v523 = vadd.f32 %v472, %v522
  %v524 = vpop.f32.mrb[0].mxu0
  %v525 = vpop.f32.mrb[0].mxu0
  %526 = vdwg.mxu0
  %v529 = vrot.slane %v511, 6
  %v530 = vrot.slane %v513, 6
  %v533 = vsel %vm50, 0.0, %v529
  %v534 = vsel %vm50, 0.0, %v530
  %vm538 = vcmask 1040384
  %v539 = vrot.slane %v533, 7
  %v540 = vrot.slane %v534, 7
  %v541 = vrot.slane 0.0, 7
  %v542 = vsel %vm538, %v539, %v541
  %v543 = vsel %vm538, %v540, %v541
  %544 = vrot.lane.b32.xlu0 %v539, 64
  %v545 = vpop.permute.xlu0 %544
  %546 = vrot.lane.b32.xlu0 %v540, 64
  %v547 = vpop.permute.xlu0 %546
  %548 = vrot.lane.b32.xlu0 %v542, 64
  %v549 = vpop.permute.xlu0 %548
  %550 = vrot.lane.b32.xlu0 %v543, 64
  %v551 = vpop.permute.xlu0 %550
  %vm552 = vcmask 523264
  %v553 = vsel %vm552, %v545, %v547
  %v554 = vsel %vm552, %v549, %v551
  %v557 = vrot.slane %v533, 6
  %v558 = vrot.slane %v534, 6
  %v559 = vsel %vm552, %v534, %v545
  %v560 = vsel %vm552, 0.0, %v549
  %v563 = vrot.slane %v511, 4
  %v564 = vrot.slane %v515, 4
  %v565 = vsel %vm112, %v563, %v564
  %v566 = vrot.slane %v513, 4
  %v567 = vrot.slane %v517, 4
  %v568 = vsel %vm112, %v566, %v567
  %v571 = vsel %vm50, 0.0, %v565
  %v572 = vsel %vm50, 0.0, %v568
  %v575 = vrot.slane %v571, 7
  %v576 = vrot.slane %v572, 7
  %v577 = vsel %vm538, %v575, %v541
  %v578 = vsel %vm538, %v576, %v541
  %579 = vrot.lane.b32.xlu0 %v575, 64
  %v580 = vpop.permute.xlu0 %579
  %581 = vrot.lane.b32.xlu0 %v576, 64
  %v582 = vpop.permute.xlu0 %581
  %583 = vrot.lane.b32.xlu0 %v577, 64
  %v584 = vpop.permute.xlu0 %583
  %585 = vrot.lane.b32.xlu0 %v578, 64
  %v586 = vpop.permute.xlu0 %585
  %v587 = vsel %vm552, %v580, %v582
  %v588 = vsel %vm552, %v584, %v586
  %v591 = vrot.slane %v571, 6
  %v592 = vrot.slane %v572, 6
  %v593 = vsel %vm552, %v572, %v580
  %v594 = vsel %vm552, 0.0, %v584
  %v597 = vrot.slane %v515, 2
  %v598 = vrot.slane %v521, 2
  %v599 = vsel %vm52, %v597, %v598
  %v600 = vrot.slane %v517, 2
  %v601 = vrot.slane %v523, 2
  %v602 = vsel %vm52, %v600, %v601
  %v605 = vsel %vm50, 0.0, %v599
  %v606 = vsel %vm50, 0.0, %v602
  %v609 = vrot.slane %v605, 7
  %v610 = vrot.slane %v606, 7
  %v611 = vsel %vm538, %v609, %v541
  %v612 = vsel %vm538, %v610, %v541
  %613 = vrot.lane.b32.xlu0 %v609, 64
  %v614 = vpop.permute.xlu0 %613
  %615 = vrot.lane.b32.xlu0 %v610, 64
  %v616 = vpop.permute.xlu0 %615
  %617 = vrot.lane.b32.xlu0 %v611, 64
  %v618 = vpop.permute.xlu0 %617
  %619 = vrot.lane.b32.xlu0 %v612, 64
  %v620 = vpop.permute.xlu0 %619
  %v621 = vsel %vm552, %v614, %v616
  %v622 = vsel %vm552, %v618, %v620
  %v625 = vrot.slane %v605, 6
  %v626 = vrot.slane %v606, 6
  %v627 = vsel %vm552, %v606, %v614
  %v628 = vsel %vm552, 0.0, %v618
  %v629 = vsel %vm50, 0.0, %v521
  %v630 = vsel %vm50, 0.0, %v523
  %v633 = vrot.slane %v629, 7
  %v634 = vrot.slane %v630, 7
  %v635 = vsel %vm538, %v633, %v541
  %v636 = vsel %vm538, %v634, %v541
  %637 = vrot.lane.b32.xlu0 %v633, 64
  %v638 = vpop.permute.xlu0 %637
  %639 = vrot.lane.b32.xlu0 %v634, 64
  %v640 = vpop.permute.xlu0 %639
  %641 = vrot.lane.b32.xlu0 %v635, 64
  %v642 = vpop.permute.xlu0 %641
  %643 = vrot.lane.b32.xlu0 %v636, 64
  %v644 = vpop.permute.xlu0 %643
  %v645 = vsel %vm552, %v638, %v640
  %v646 = vsel %vm552, %v642, %v644
  %v649 = vrot.slane %v629, 6
  %v650 = vrot.slane %v630, 6
  %v651 = vsel %vm552, %v630, %v638
  %v652 = vsel %vm552, 0.0, %v642
  %v655 = vrot.slane %v533, 2
  %v656 = vrot.slane 0.0, 2
  %v657 = vsel %vm52, %v655, %v656
  %v658 = vrot.slane %v559, 2
  %v659 = vrot.slane %v560, 2
  %v660 = vsel %vm52, %v658, %v659
  %v661 = vrot.slane %v553, 2
  %v662 = vrot.slane %v554, 2
  %v663 = vsel %vm52, %v661, %v662
  %v664 = vrot.slane %v557, 2
  %v665 = vsel %vm52, %v664, %v664
  %v666 = vrot.slane %v558, 2
  %v667 = vsel %vm52, %v666, %v666
  %v675 = vrot.slane %v571, 2
  %v676 = vsel %vm52, %v675, %v656
  %v677 = vrot.slane %v593, 2
  %v678 = vrot.slane %v594, 2
  %v679 = vsel %vm52, %v677, %v678
  %v680 = vrot.slane %v587, 2
  %v681 = vrot.slane %v588, 2
  %v682 = vsel %vm52, %v680, %v681
  %v683 = vrot.slane %v591, 2
  %v684 = vsel %vm52, %v683, %v683
  %v685 = vrot.slane %v592, 2
  %v686 = vsel %vm52, %v685, %v685
  %v694 = vrot.slane %v605, 2
  %v695 = vsel %vm52, %v694, %v656
  %v696 = vrot.slane %v627, 2
  %v697 = vrot.slane %v628, 2
  %v698 = vsel %vm52, %v696, %v697
  %v699 = vrot.slane %v621, 2
  %v700 = vrot.slane %v622, 2
  %v701 = vsel %vm52, %v699, %v700
  %v702 = vrot.slane %v625, 2
  %v703 = vsel %vm52, %v702, %v702
  %v704 = vrot.slane %v626, 2
  %v705 = vsel %vm52, %v704, %v704
  %v713 = vrot.slane %v629, 2
  %v714 = vsel %vm52, %v713, %v656
  %v715 = vrot.slane %v651, 2
  %v716 = vrot.slane %v652, 2
  %v717 = vsel %vm52, %v715, %v716
  %v718 = vrot.slane %v645, 2
  %v719 = vrot.slane %v646, 2
  %v720 = vsel %vm52, %v718, %v719
  %v721 = vrot.slane %v649, 2
  %v722 = vsel %vm52, %v721, %v721
  %v723 = vrot.slane %v650, 2
  %v724 = vsel %vm52, %v723, %v723
  %v730 = vpack.c.bf16 %v676, %v657
  %v731 = vpack.c.bf16 %v679, %v660
  %v732 = vpack.c.bf16 %v682, %v663
  %v733 = vpack.c.bf16 %v684, %v665
  %v734 = vpack.c.bf16 %v686, %v667
  %v735 = vpack.c.bf16 %v714, %v695
  %v736 = vpack.c.bf16 %v717, %v698
  %v737 = vpack.c.bf16 %v720, %v701
  %v738 = vpack.c.bf16 %v722, %v703
  %v739 = vpack.c.bf16 %v724, %v705
  %v740 = vld [vmem:[%s3] sm:$0xff]
  %v741 = vld [vmem:[%s3 + $0x8] sm:$0xff]
  %v742 = vld [vmem:[%s3 + $0x10] sm:$0xff]
  %v743 = vld [vmem:[%s3 + $0x18] sm:$0xff]
  %v744 = vld [vmem:[%s3 + $0x20] sm:$0xff]
  %v745 = vld [vmem:[%s3 + $0x28] sm:$0xff]
  %v746 = vld [vmem:[%s3 + $0x30] sm:$0xff]
  %v747 = vld [vmem:[%s3 + $0x38] sm:$0xff]
  %v748 = vld [vmem:[%s3 + $0x40] sm:$0xff]
  %v749 = vld [vmem:[%s3 + $0x48] sm:$0xff]
  %v750 = vld [vmem:[%s3 + $0x50] sm:$0xff]
  %v751 = vld [vmem:[%s3 + $0x58] sm:$0xff]
  %v752 = vld [vmem:[%s3 + $0x60] sm:$0xff]
  %v753 = vld [vmem:[%s3 + $0x68] sm:$0xff]
  %v754 = vld [vmem:[%s3 + $0x70] sm:$0xff]
  %v755 = vld [vmem:[%s3 + $0x78] sm:$0xff]
  %v756 = vld [vmem:[%s3 + $0x80] sm:$0xff]
  %v757 = vld [vmem:[%s3 + $0x88] sm:$0xff]
  %v758 = vld [vmem:[%s3 + $0x90] sm:$0xff]
  %v759 = vld [vmem:[%s3 + $0x98] sm:$0xff]
  %v760 = vld [vmem:[%s3 + $0xa0] sm:$0xff]
  %v761 = vld [vmem:[%s3 + $0xa8] sm:$0xff]
  %v762 = vld [vmem:[%s3 + $0xb0] sm:$0xff]
  %v763 = vld [vmem:[%s3 + $0xb8] sm:$0xff]
  %v764 = vld [vmem:[%s3 + $0xc0] sm:$0xff]
  %v765 = vld [vmem:[%s3 + $0xc8] sm:$0xff]
  %v766 = vld [vmem:[%s3 + $0xd0] sm:$0xff]
  %v767 = vld [vmem:[%s3 + $0xd8] sm:$0xff]
  %v768 = vld [vmem:[%s3 + $0xe0] sm:$0xff]
  %v769 = vld [vmem:[%s3 + $0xe8] sm:$0xff]
  %v770 = vld [vmem:[%s3 + $0xf0] sm:$0xff]
  %v771 = vld [vmem:[%s3 + $0xf8] sm:$0xff]
  %v772 = vld [vmem:[%s3 + $0x100] sm:$0xff]
  %v773 = vld [vmem:[%s3 + $0x108] sm:$0xff]
  %v774 = vld [vmem:[%s3 + $0x110] sm:$0xff]
  %v775 = vld [vmem:[%s3 + $0x118] sm:$0xff]
  %v776 = vld [vmem:[%s3 + $0x120] sm:$0xff]
  %v777 = vld [vmem:[%s3 + $0x128] sm:$0xff]
  %v778 = vld [vmem:[%s3 + $0x130] sm:$0xff]
  %v779 = vld [vmem:[%s3 + $0x138] sm:$0xff]
  %v780 = vld [vmem:[%s3 + $0x140] sm:$0xff]
  %v781 = vld [vmem:[%s3 + $0x148] sm:$0xff]
  %v782 = vld [vmem:[%s3 + $0x150] sm:$0xff]
  %v783 = vld [vmem:[%s3 + $0x158] sm:$0xff]
  %v784 = vld [vmem:[%s3 + $0x160] sm:$0xff]
  %v785 = vld [vmem:[%s3 + $0x168] sm:$0xff]
  %v786 = vld [vmem:[%s3 + $0x170] sm:$0xff]
  %v787 = vld [vmem:[%s3 + $0x178] sm:$0xff]
  %v788 = vld [vmem:[%s3 + $0x180] sm:$0xff]
  %v789 = vld [vmem:[%s3 + $0x188] sm:$0xff]
  %v790 = vld [vmem:[%s3 + $0x190] sm:$0xff]
  %v791 = vld [vmem:[%s3 + $0x198] sm:$0xff]
  %v792 = vld [vmem:[%s3 + $0x1a0] sm:$0xff]
  %v793 = vld [vmem:[%s3 + $0x1a8] sm:$0xff]
  %v794 = vld [vmem:[%s3 + $0x1b0] sm:$0xff]
  %v795 = vld [vmem:[%s3 + $0x1b8] sm:$0xff]
  %v796 = vld [vmem:[%s3 + $0x1c0] sm:$0xff]
  %v797 = vld [vmem:[%s3 + $0x1c8] sm:$0xff]
  %v798 = vld [vmem:[%s3 + $0x1d0] sm:$0xff]
  %v799 = vld [vmem:[%s3 + $0x1d8] sm:$0xff]
  %v800 = vld [vmem:[%s3 + $0x1e0] sm:$0xff]
  %v801 = vld [vmem:[%s3 + $0x1e8] sm:$0xff]
  %v802 = vld [vmem:[%s3 + $0x1f0] sm:$0xff]
  %v803 = vld [vmem:[%s3 + $0x1f8] sm:$0xff]
  %v804 = vld [vmem:[%s3 + $0x200] sm:$0xff]
  %v805 = vld [vmem:[%s3 + $0x208] sm:$0xff]
  %v806 = vld [vmem:[%s3 + $0x210] sm:$0xff]
  %v807 = vld [vmem:[%s3 + $0x218] sm:$0xff]
  %v808 = vld [vmem:[%s3 + $0x220] sm:$0xff]
  %v809 = vld [vmem:[%s3 + $0x228] sm:$0xff]
  %v810 = vld [vmem:[%s3 + $0x230] sm:$0xff]
  %v811 = vld [vmem:[%s3 + $0x238] sm:$0xff]
  %v812 = vld [vmem:[%s4] sm:$0x3]
  %v814 = vlaneseq
  %v815 = vshrl.u32 %v814, 7
  %v816 = vsub.s32 0, %v815
  %v817 = vrot.slane %v812, %v816
  %v818 = vlaneseq
  %v819 = vshrl.u32 %v818, 7
  %v820 = vsub.s32 1, %v819
  %v821 = vrot.slane %v812, %v820
  %v896 = vunpack.c.l.b16 %v740
  %v897 = vunpack.c.h.b16 %v740
  %v898 = vunpack.c.l.b16 %v741
  %v899 = vunpack.c.h.b16 %v741
  %v900 = vunpack.c.l.b16 %v742
  %v901 = vunpack.c.h.b16 %v742
  %v902 = vunpack.c.l.b16 %v743
  %v903 = vunpack.c.h.b16 %v743
  %v904 = vunpack.c.l.b16 %v744
  %v905 = vunpack.c.h.b16 %v744
  %v906 = vunpack.c.l.b16 %v745
  %v907 = vunpack.c.h.b16 %v745
  %v908 = vunpack.c.l.b16 %v746
  %v909 = vunpack.c.h.b16 %v746
  %v910 = vunpack.c.l.b16 %v747
  %v911 = vunpack.c.h.b16 %v747
  %v912 = vunpack.c.l.b16 %v748
  %v913 = vunpack.c.h.b16 %v748
  %v914 = vunpack.c.l.b16 %v749
  %v915 = vunpack.c.h.b16 %v749
  %v916 = vunpack.c.l.b16 %v750
  %v917 = vunpack.c.h.b16 %v750
  %v918 = vunpack.c.l.b16 %v751
  %v919 = vunpack.c.h.b16 %v751
  %v920 = vunpack.c.l.b16 %v752
  %v921 = vunpack.c.h.b16 %v752
  %v922 = vunpack.c.l.b16 %v753
  %v923 = vunpack.c.h.b16 %v753
  %v924 = vunpack.c.l.b16 %v754
  %v925 = vunpack.c.h.b16 %v754
  %v926 = vunpack.c.l.b16 %v755
  %v927 = vunpack.c.h.b16 %v755
  %v928 = vunpack.c.l.b16 %v756
  %v929 = vunpack.c.h.b16 %v756
  %v930 = vunpack.c.l.b16 %v757
  %v931 = vunpack.c.h.b16 %v757
  %v932 = vunpack.c.l.b16 %v758
  %v933 = vunpack.c.h.b16 %v758
  %v934 = vunpack.c.l.b16 %v759
  %v935 = vunpack.c.h.b16 %v759
  %v936 = vunpack.c.l.b16 %v760
  %v937 = vunpack.c.h.b16 %v760
  %v938 = vunpack.c.l.b16 %v761
  %v939 = vunpack.c.h.b16 %v761
  %v940 = vunpack.c.l.b16 %v762
  %v941 = vunpack.c.h.b16 %v762
  %v942 = vunpack.c.l.b16 %v763
  %v943 = vunpack.c.h.b16 %v763
  %v944 = vunpack.c.l.b16 %v764
  %v945 = vunpack.c.h.b16 %v764
  %v946 = vunpack.c.l.b16 %v765
  %v947 = vunpack.c.h.b16 %v765
  %v948 = vunpack.c.l.b16 %v766
  %v949 = vunpack.c.h.b16 %v766
  %v950 = vunpack.c.l.b16 %v767
  %v951 = vunpack.c.h.b16 %v767
  %v952 = vunpack.c.l.b16 %v768
  %v953 = vunpack.c.h.b16 %v768
  %v954 = vunpack.c.l.b16 %v769
  %v955 = vunpack.c.h.b16 %v769
  %v956 = vunpack.c.l.b16 %v770
  %v957 = vunpack.c.h.b16 %v770
  %v958 = vunpack.c.l.b16 %v771
  %v959 = vunpack.c.h.b16 %v771
  %v960 = vunpack.c.l.b16 %v772
  %v961 = vunpack.c.h.b16 %v772
  %v962 = vunpack.c.l.b16 %v773
  %v963 = vunpack.c.h.b16 %v773
  %v964 = vunpack.c.l.b16 %v774
  %v965 = vunpack.c.h.b16 %v774
  %v966 = vunpack.c.l.b16 %v775
  %v967 = vunpack.c.h.b16 %v775
  %v968 = vunpack.c.l.b16 %v776
  %v969 = vunpack.c.h.b16 %v776
  %v970 = vunpack.c.l.b16 %v777
  %v971 = vunpack.c.h.b16 %v777
  %v972 = vunpack.c.l.b16 %v778
  %v973 = vunpack.c.h.b16 %v778
  %v974 = vunpack.c.l.b16 %v779
  %v975 = vunpack.c.h.b16 %v779
  %v976 = vunpack.c.l.b16 %v780
  %v977 = vunpack.c.h.b16 %v780
  %v978 = vunpack.c.l.b16 %v781
  %v979 = vunpack.c.h.b16 %v781
  %v980 = vunpack.c.l.b16 %v782
  %v981 = vunpack.c.h.b16 %v782
  %v982 = vunpack.c.l.b16 %v783
  %v983 = vunpack.c.h.b16 %v783
  %v984 = vunpack.c.l.b16 %v784
  %v985 = vunpack.c.h.b16 %v784
  %v986 = vunpack.c.l.b16 %v785
  %v987 = vunpack.c.h.b16 %v785
  %v988 = vunpack.c.l.b16 %v786
  %v989 = vunpack.c.h.b16 %v786
  %v990 = vunpack.c.l.b16 %v787
  %v991 = vunpack.c.h.b16 %v787
  %v992 = vunpack.c.l.b16 %v788
  %v993 = vunpack.c.h.b16 %v788
  %v994 = vunpack.c.l.b16 %v789
  %v995 = vunpack.c.h.b16 %v789
  %v996 = vunpack.c.l.b16 %v790
  %v997 = vunpack.c.h.b16 %v790
  %v998 = vunpack.c.l.b16 %v791
  %v999 = vunpack.c.h.b16 %v791
  %v1000 = vunpack.c.l.b16 %v792
  %v1001 = vunpack.c.h.b16 %v792
  %v1002 = vunpack.c.l.b16 %v793
  %v1003 = vunpack.c.h.b16 %v793
  %v1004 = vunpack.c.l.b16 %v794
  %v1005 = vunpack.c.h.b16 %v794
  %v1006 = vunpack.c.l.b16 %v795
  %v1007 = vunpack.c.h.b16 %v795
  %v1008 = vunpack.c.l.b16 %v796
  %v1009 = vunpack.c.h.b16 %v796
  %v1010 = vunpack.c.l.b16 %v797
  %v1011 = vunpack.c.h.b16 %v797
  %v1012 = vunpack.c.l.b16 %v798
  %v1013 = vunpack.c.h.b16 %v798
  %v1014 = vunpack.c.l.b16 %v799
  %v1015 = vunpack.c.h.b16 %v799
  %v1016 = vunpack.c.l.b16 %v800
  %v1017 = vunpack.c.h.b16 %v800
  %v1018 = vunpack.c.l.b16 %v801
  %v1019 = vunpack.c.h.b16 %v801
  %v1020 = vunpack.c.l.b16 %v802
  %v1021 = vunpack.c.h.b16 %v802
  %v1022 = vunpack.c.l.b16 %v803
  %v1023 = vunpack.c.h.b16 %v803
  %v1024 = vunpack.c.l.b16 %v804
  %v1025 = vunpack.c.h.b16 %v804
  %v1026 = vunpack.c.l.b16 %v805
  %v1027 = vunpack.c.h.b16 %v805
  %v1028 = vunpack.c.l.b16 %v806
  %v1029 = vunpack.c.h.b16 %v806
  %v1030 = vunpack.c.l.b16 %v807
  %v1031 = vunpack.c.h.b16 %v807
  %v1032 = vunpack.c.l.b16 %v808
  %v1033 = vunpack.c.h.b16 %v808
  %v1034 = vunpack.c.l.b16 %v809
  %v1035 = vunpack.c.h.b16 %v809
  %v1036 = vunpack.c.l.b16 %v810
  %v1037 = vunpack.c.h.b16 %v810
  %v1038 = vunpack.c.l.b16 %v811
  %v1039 = vunpack.c.h.b16 %v811
  %v1040 = vpack.c.b16 %v898, %v896
  %v1041 = vpack.c.b16 %v899, %v897
  %v1042 = vpack.c.b16 %v902, %v900
  %v1043 = vpack.c.b16 %v903, %v901
  %v1044 = vpack.c.b16 %v906, %v904
  %v1045 = vpack.c.b16 %v907, %v905
  %v1046 = vpack.c.b16 %v910, %v908
  %v1047 = vpack.c.b16 %v911, %v909
  %v1048 = vpack.c.b16 %v914, %v912
  %v1049 = vpack.c.b16 %v915, %v913
  %v1050 = vpack.c.b16 %v918, %v916
  %v1051 = vpack.c.b16 %v919, %v917
  %v1052 = vpack.c.b16 %v922, %v920
  %v1053 = vpack.c.b16 %v923, %v921
  %v1054 = vpack.c.b16 %v926, %v924
  %v1055 = vpack.c.b16 %v927, %v925
  %v1056 = vpack.c.b16 %v930, %v928
  %v1057 = vpack.c.b16 %v931, %v929
  %v1058 = vpack.c.b16 %v934, %v932
  %v1059 = vpack.c.b16 %v935, %v933
  %v1060 = vpack.c.b16 %v938, %v936
  %v1061 = vpack.c.b16 %v939, %v937
  %v1062 = vpack.c.b16 %v942, %v940
  %v1063 = vpack.c.b16 %v943, %v941
  %v1064 = vpack.c.b16 %v946, %v944
  %v1065 = vpack.c.b16 %v947, %v945
  %v1066 = vpack.c.b16 %v950, %v948
  %v1067 = vpack.c.b16 %v951, %v949
  %v1068 = vpack.c.b16 %v954, %v952
  %v1069 = vpack.c.b16 %v955, %v953
  %v1070 = vpack.c.b16 %v958, %v956
  %v1071 = vpack.c.b16 %v959, %v957
  %v1072 = vpack.c.b16 %v962, %v960
  %v1073 = vpack.c.b16 %v963, %v961
  %v1074 = vpack.c.b16 %v966, %v964
  %v1075 = vpack.c.b16 %v967, %v965
  %v1076 = vpack.c.b16 %v970, %v968
  %v1077 = vpack.c.b16 %v971, %v969
  %v1078 = vpack.c.b16 %v974, %v972
  %v1079 = vpack.c.b16 %v975, %v973
  %v1080 = vpack.c.b16 %v978, %v976
  %v1081 = vpack.c.b16 %v979, %v977
  %v1082 = vpack.c.b16 %v982, %v980
  %v1083 = vpack.c.b16 %v983, %v981
  %v1084 = vpack.c.b16 %v986, %v984
  %v1085 = vpack.c.b16 %v987, %v985
  %v1086 = vpack.c.b16 %v990, %v988
  %v1087 = vpack.c.b16 %v991, %v989
  %v1088 = vpack.c.b16 %v994, %v992
  %v1089 = vpack.c.b16 %v995, %v993
  %v1090 = vpack.c.b16 %v998, %v996
  %v1091 = vpack.c.b16 %v999, %v997
  %v1092 = vpack.c.b16 %v1002, %v1000
  %v1093 = vpack.c.b16 %v1003, %v1001
  %v1094 = vpack.c.b16 %v1006, %v1004
  %v1095 = vpack.c.b16 %v1007, %v1005
  %v1096 = vpack.c.b16 %v1010, %v1008
  %v1097 = vpack.c.b16 %v1011, %v1009
  %v1098 = vpack.c.b16 %v1014, %v1012
  %v1099 = vpack.c.b16 %v1015, %v1013
  %v1100 = vpack.c.b16 %v1018, %v1016
  %v1101 = vpack.c.b16 %v1019, %v1017
  %v1102 = vpack.c.b16 %v1022, %v1020
  %v1103 = vpack.c.b16 %v1023, %v1021
  %v1104 = vpack.c.b16 %v1026, %v1024
  %v1105 = vpack.c.b16 %v1027, %v1025
  %v1106 = vpack.c.b16 %v1030, %v1028
  %v1107 = vpack.c.b16 %v1031, %v1029
  %v1108 = vpack.c.b16 %v1034, %v1032
  %v1109 = vpack.c.b16 %v1035, %v1033
  %v1110 = vpack.c.b16 %v1038, %v1036
  %v1111 = vpack.c.b16 %v1039, %v1037
  %v1185 = vsel %vm552, %v734, 0
  %v1188 = vsel %vm552, %v739, 0
  %1190 = vmatprep.subr.bf16.mxu0 %v1041
  %1191 = vmatpush1.bf16.msra.mxu0 %v1040
  %1192 = vmatprep.subr.bf16.mxu0 %v1043
  %1193 = vmatpush1.bf16.msra.mxu0 %v1042
  %1194 = vmatprep.subr.bf16.mxu0 %v1045
  %1195 = vmatpush1.bf16.msra.mxu0 %v1044
  %1196 = vmatprep.subr.bf16.mxu0 %v1047
  %1197 = vmatpush1.bf16.msra.mxu0 %v1046
  %1198 = vmatprep.subr.bf16.mxu0 %v1049
  %1199 = vmatpush1.bf16.msra.mxu0 %v1048
  %1200 = vmatprep.subr.bf16.mxu0 %v1051
  %1201 = vmatpush1.bf16.msra.mxu0 %v1050
  %1202 = vmatprep.subr.bf16.mxu0 %v1053
  %1203 = vmatpush1.bf16.msra.mxu0 %v1052
  %1204 = vmatprep.subr.bf16.mxu0 %v1055
  %1205 = vmatpush1.bf16.msra.mxu0 %v1054
  %1206 = vmatprep.subr.bf16.mxu0 %v1057
  %1207 = vmatpush1.bf16.msra.mxu0 %v1056
  %1208 = vmatprep.subr.bf16.mxu0 %v1059
  %1209 = vmatpush1.bf16.msra.mxu0 %v1058
  %1210 = vmatprep.subr.bf16.mxu0 %v1061
  %1211 = vmatpush1.bf16.msra.mxu0 %v1060
  %1212 = vmatprep.subr.bf16.mxu0 %v1063
  %1213 = vmatpush1.bf16.msra.mxu0 %v1062
  %1214 = vmatprep.subr.bf16.mxu0 %v1065
  %1215 = vmatpush1.bf16.msra.mxu0 %v1064
  %1216 = vmatprep.subr.bf16.mxu0 %v1067
  %1217 = vmatpush1.bf16.msra.mxu0 %v1066
  %1218 = vmatprep.subr.bf16.mxu0 %v1069
  %1219 = vmatpush1.bf16.msra.mxu0 %v1068
  %1220 = vmatprep.subr.bf16.mxu0 %v1071
  %1221 = vmatpush1.bf16.msra.mxu0 %v1070
  %1222 = vmatprep.mubr.bf16.mxu0 %v731
  %1223 = vmatmul.mubr.bf16.gmra.mrb[0].mxu0 %v730
  %v1224 = vpop.f32.mrb[0].mxu0
  %v1225 = vadd.f32 %v817, %v1224
  %v1226 = vpop.f32.mrb[0].mxu0
  %v1227 = vadd.f32 %v821, %v1226
  %v1228 = vpop.f32.mrb[0].mxu0
  %v1229 = vadd.f32 %v817, %v1228
  %v1230 = vpop.f32.mrb[0].mxu0
  %v1231 = vadd.f32 %v821, %v1230
  %1232 = vmatprep.mubr.bf16.mxu0 %v736
  %1233 = vmatmul.mubr.bf16.gmra.mrb[0].mxu0 %v735
  %v1234 = vpop.f32.mrb[0].mxu0
  %v1235 = vadd.f32 %v817, %v1234
  %v1236 = vpop.f32.mrb[0].mxu0
  %v1237 = vadd.f32 %v821, %v1236
  %v1238 = vpop.f32.mrb[0].mxu0
  %v1239 = vadd.f32 %v817, %v1238
  %v1240 = vpop.f32.mrb[0].mxu0
  %v1241 = vadd.f32 %v821, %v1240
  %1242 = vdwg.mxu0
  %1243 = vmatprep.subr.bf16.mxu0 %v1073
  %1244 = vmatpush1.bf16.msra.mxu0 %v1072
  %1245 = vmatprep.subr.bf16.mxu0 %v1075
  %1246 = vmatpush1.bf16.msra.mxu0 %v1074
  %1247 = vmatprep.subr.bf16.mxu0 %v1077
  %1248 = vmatpush1.bf16.msra.mxu0 %v1076
  %1249 = vmatprep.subr.bf16.mxu0 %v1079
  %1250 = vmatpush1.bf16.msra.mxu0 %v1078
  %1251 = vmatprep.subr.bf16.mxu0 %v1081
  %1252 = vmatpush1.bf16.msra.mxu0 %v1080
  %1253 = vmatprep.subr.bf16.mxu0 %v1083
  %1254 = vmatpush1.bf16.msra.mxu0 %v1082
  %1255 = vmatprep.subr.bf16.mxu0 %v1085
  %1256 = vmatpush1.bf16.msra.mxu0 %v1084
  %1257 = vmatprep.subr.bf16.mxu0 %v1087
  %1258 = vmatpush1.bf16.msra.mxu0 %v1086
  %1259 = vmatprep.subr.bf16.mxu0 %v1089
  %1260 = vmatpush1.bf16.msra.mxu0 %v1088
  %1261 = vmatprep.subr.bf16.mxu0 %v1091
  %1262 = vmatpush1.bf16.msra.mxu0 %v1090
  %1263 = vmatprep.subr.bf16.mxu0 %v1093
  %1264 = vmatpush1.bf16.msra.mxu0 %v1092
  %1265 = vmatprep.subr.bf16.mxu0 %v1095
  %1266 = vmatpush1.bf16.msra.mxu0 %v1094
  %1267 = vmatprep.subr.bf16.mxu0 %v1097
  %1268 = vmatpush1.bf16.msra.mxu0 %v1096
  %1269 = vmatprep.subr.bf16.mxu0 %v1099
  %1270 = vmatpush1.bf16.msra.mxu0 %v1098
  %1271 = vmatprep.subr.bf16.mxu0 %v1101
  %1272 = vmatpush1.bf16.msra.mxu0 %v1100
  %1273 = vmatprep.subr.bf16.mxu0 %v1103
  %1274 = vmatpush1.bf16.msra.mxu0 %v1102
  %1275 = vmatprep.mubr.bf16.mxu0 %v733
  %1276 = vmatmul.mubr.bf16.gmra.mrb[0].mxu0 %v732
  %v1277 = vpop.f32.mrb[0].mxu0
  %v1278 = vadd.f32 %v1225, %v1277
  %v1279 = vpop.f32.mrb[0].mxu0
  %v1280 = vadd.f32 %v1227, %v1279
  %v1281 = vpop.f32.mrb[0].mxu0
  %v1282 = vadd.f32 %v1229, %v1281
  %v1283 = vpop.f32.mrb[0].mxu0
  %v1284 = vadd.f32 %v1231, %v1283
  %1285 = vmatprep.mubr.bf16.mxu0 %v738
  %1286 = vmatmul.mubr.bf16.gmra.mrb[0].mxu0 %v737
  %v1287 = vpop.f32.mrb[0].mxu0
  %v1288 = vadd.f32 %v1235, %v1287
  %v1289 = vpop.f32.mrb[0].mxu0
  %v1290 = vadd.f32 %v1237, %v1289
  %v1291 = vpop.f32.mrb[0].mxu0
  %v1292 = vadd.f32 %v1239, %v1291
  %v1293 = vpop.f32.mrb[0].mxu0
  %v1294 = vadd.f32 %v1241, %v1293
  %1295 = vdwg.mxu0
  %1296 = vmatprep.subr.bf16.mxu0 %v1105
  %1297 = vmatpush1.bf16.msra.mxu0 %v1104
  %1298 = vmatprep.subr.bf16.mxu0 %v1107
  %1299 = vmatpush1.bf16.msra.mxu0 %v1106
  %1300 = vmatprep.subr.bf16.mxu0 %v1109
  %1301 = vmatpush1.bf16.msra.mxu0 %v1108
  %1302 = vmatprep.subr.bf16.mxu0 %v1111
  %1303 = vmatpush1.bf16.msra.mxu0 %v1110
  %1304 = vmatprep.subr.bf16.mxu0 0
  %1305 = vmatpush1.bf16.msra.mxu0 0
  %1306 = vmatprep.subr.bf16.mxu0 0
  %1307 = vmatpush1.bf16.msra.mxu0 0
  %1308 = vmatprep.subr.bf16.mxu0 0
  %1309 = vmatpush1.bf16.msra.mxu0 0
  %1310 = vmatprep.subr.bf16.mxu0 0
  %1311 = vmatpush1.bf16.msra.mxu0 0
  %1312 = vmatprep.subr.bf16.mxu0 0
  %1313 = vmatpush1.bf16.msra.mxu0 0
  %1314 = vmatprep.subr.bf16.mxu0 0
  %1315 = vmatpush1.bf16.msra.mxu0 0
  %1316 = vmatprep.subr.bf16.mxu0 0
  %1317 = vmatpush1.bf16.msra.mxu0 0
  %1318 = vmatprep.subr.bf16.mxu0 0
  %1319 = vmatpush1.bf16.msra.mxu0 0
  %1320 = vmatprep.subr.bf16.mxu0 0
  %1321 = vmatpush1.bf16.msra.mxu0 0
  %1322 = vmatprep.subr.bf16.mxu0 0
  %1323 = vmatpush1.bf16.msra.mxu0 0
  %1324 = vmatprep.subr.bf16.mxu0 0
  %1325 = vmatpush1.bf16.msra.mxu0 0
  %1326 = vmatprep.subr.bf16.mxu0 0
  %1327 = vmatpush1.bf16.msra.mxu0 0
  %1328 = vmatprep.mubr.bf16.mxu0 0
  %1329 = vmatmul.mubr.bf16.gmra.mrb[0].mxu0 %v1185
  %v1330 = vpop.f32.mrb[0].mxu0
  %v1331 = vadd.f32 %v1278, %v1330
  %v1332 = vpop.f32.mrb[0].mxu0
  %v1333 = vadd.f32 %v1280, %v1332
  %v1334 = vpop.f32.mrb[0].mxu0
  %v1335 = vadd.f32 %v1282, %v1334
  %v1336 = vpop.f32.mrb[0].mxu0
  %v1337 = vadd.f32 %v1284, %v1336
  %1338 = vmatprep.mubr.bf16.mxu0 0
  %1339 = vmatmul.mubr.bf16.gmra.mrb[0].mxu0 %v1188
  %v1340 = vpop.f32.mrb[0].mxu0
  %v1341 = vadd.f32 %v1288, %v1340
  %v1342 = vpop.f32.mrb[0].mxu0
  %v1343 = vadd.f32 %v1290, %v1342
  %v1344 = vpop.f32.mrb[0].mxu0
  %v1345 = vadd.f32 %v1292, %v1344
  %v1346 = vpop.f32.mrb[0].mxu0
  %v1347 = vadd.f32 %v1294, %v1346
  %1348 = vdwg.mxu0
  %v1351 = vrot.slane %v1331, 6
  %v1352 = vrot.slane %v1333, 6
  %v1355 = vsel %vm50, 0.0, %v1351
  %v1356 = vsel %vm50, 0.0, %v1352
  %v1357 = vsel %vm50, %v1351, 0.0
  %v1358 = vsel %vm50, %v1352, 0.0
  %v1363 = vrot.slane %v1355, 7
  %v1364 = vrot.slane %v1356, 7
  %v1365 = vrot.slane %v1357, 7
  %v1366 = vsel %vm538, %v1363, %v1365
  %v1367 = vrot.slane %v1358, 7
  %v1368 = vsel %vm538, %v1364, %v1367
  %1369 = vrot.lane.b32.xlu0 %v1363, 96
  %v1370 = vpop.permute.xlu0 %1369
  %1371 = vrot.lane.b32.xlu0 %v1364, 96
  %v1372 = vpop.permute.xlu0 %1371
  %1373 = vrot.lane.b32.xlu0 %v1366, 96
  %v1374 = vpop.permute.xlu0 %1373
  %1375 = vrot.lane.b32.xlu0 %v1368, 96
  %v1376 = vpop.permute.xlu0 %1375
  %vm1377 = vcmask 785408
  %v1378 = vsel %vm1377, %v1370, %v1372
  %v1379 = vsel %vm1377, %v1374, %v1376
  %v1384 = vrot.slane %v1355, 6
  %v1385 = vrot.slane %v1356, 6
  %v1386 = vrot.slane %v1357, 6
  %v1387 = vsel %vm50, %v1384, %v1386
  %v1388 = vrot.slane %v1358, 6
  %v1389 = vsel %vm50, %v1385, %v1388
  %1390 = vrot.lane.b32.xlu0 %v1384, 64
  %v1391 = vpop.permute.xlu0 %1390
  %1392 = vrot.lane.b32.xlu0 %v1385, 64
  %v1393 = vpop.permute.xlu0 %1392
  %1394 = vrot.lane.b32.xlu0 %v1387, 64
  %v1395 = vpop.permute.xlu0 %1394
  %1396 = vrot.lane.b32.xlu0 %v1389, 64
  %v1397 = vpop.permute.xlu0 %1396
  %v1398 = vsel %vm552, %v1391, %v1393
  %v1399 = vsel %vm552, %v1395, %v1397
  %v1402 = vsel %vm1377, %v1356, %v1370
  %v1403 = vsel %vm1377, %v1358, %v1374
  %v1404 = vsel %vm552, %v1372, %v1391
  %v1405 = vsel %vm552, %v1376, %v1395
  %v1408 = vrot.slane %v1335, 6
  %v1409 = vrot.slane %v1337, 6
  %v1412 = vsel %vm50, 0.0, %v1408
  %v1413 = vsel %vm50, 0.0, %v1409
  %v1414 = vsel %vm50, %v1408, 0.0
  %v1415 = vsel %vm50, %v1409, 0.0
  %v1420 = vrot.slane %v1412, 7
  %v1421 = vrot.slane %v1413, 7
  %v1422 = vrot.slane %v1414, 7
  %v1423 = vsel %vm538, %v1420, %v1422
  %v1424 = vrot.slane %v1415, 7
  %v1425 = vsel %vm538, %v1421, %v1424
  %1426 = vrot.lane.b32.xlu0 %v1420, 96
  %v1427 = vpop.permute.xlu0 %1426
  %1428 = vrot.lane.b32.xlu0 %v1421, 96
  %v1429 = vpop.permute.xlu0 %1428
  %1430 = vrot.lane.b32.xlu0 %v1423, 96
  %v1431 = vpop.permute.xlu0 %1430
  %1432 = vrot.lane.b32.xlu0 %v1425, 96
  %v1433 = vpop.permute.xlu0 %1432
  %v1434 = vsel %vm1377, %v1427, %v1429
  %v1435 = vsel %vm1377, %v1431, %v1433
  %v1442 = vrot.slane %v1412, 6
  %v1443 = vrot.slane %v1413, 6
  %v1444 = vrot.slane %v1414, 6
  %v1445 = vsel %vm50, %v1442, %v1444
  %v1446 = vrot.slane %v1415, 6
  %v1447 = vsel %vm50, %v1443, %v1446
  %1448 = vrot.lane.b32.xlu0 %v1442, 64
  %v1449 = vpop.permute.xlu0 %1448
  %1450 = vrot.lane.b32.xlu0 %v1443, 64
  %v1451 = vpop.permute.xlu0 %1450
  %1452 = vrot.lane.b32.xlu0 %v1445, 64
  %v1453 = vpop.permute.xlu0 %1452
  %1454 = vrot.lane.b32.xlu0 %v1447, 64
  %v1455 = vpop.permute.xlu0 %1454
  %v1456 = vsel %vm552, %v1449, %v1451
  %v1457 = vsel %vm552, %v1453, %v1455
  %v1464 = vsel %vm1377, %v1413, %v1427
  %v1465 = vsel %vm1377, %v1415, %v1431
  %v1466 = vsel %vm552, %v1429, %v1449
  %v1467 = vsel %vm552, %v1433, %v1453
  %v1470 = vrot.slane %v1341, 6
  %v1471 = vrot.slane %v1343, 6
  %v1474 = vsel %vm50, 0.0, %v1470
  %v1475 = vsel %vm50, 0.0, %v1471
  %v1476 = vsel %vm50, %v1470, 0.0
  %v1477 = vsel %vm50, %v1471, 0.0
  %v1482 = vrot.slane %v1474, 7
  %v1483 = vrot.slane %v1475, 7
  %v1484 = vrot.slane %v1476, 7
  %v1485 = vsel %vm538, %v1482, %v1484
  %v1486 = vrot.slane %v1477, 7
  %v1487 = vsel %vm538, %v1483, %v1486
  %1488 = vrot.lane.b32.xlu0 %v1482, 96
  %v1489 = vpop.permute.xlu0 %1488
  %1490 = vrot.lane.b32.xlu0 %v1483, 96
  %v1491 = vpop.permute.xlu0 %1490
  %1492 = vrot.lane.b32.xlu0 %v1485, 96
  %v1493 = vpop.permute.xlu0 %1492
  %1494 = vrot.lane.b32.xlu0 %v1487, 96
  %v1495 = vpop.permute.xlu0 %1494
  %v1496 = vsel %vm1377, %v1489, %v1491
  %v1497 = vsel %vm1377, %v1493, %v1495
  %v1502 = vrot.slane %v1474, 6
  %v1503 = vrot.slane %v1475, 6
  %v1504 = vrot.slane %v1476, 6
  %v1505 = vsel %vm50, %v1502, %v1504
  %v1506 = vrot.slane %v1477, 6
  %v1507 = vsel %vm50, %v1503, %v1506
  %1508 = vrot.lane.b32.xlu0 %v1502, 64
  %v1509 = vpop.permute.xlu0 %1508
  %1510 = vrot.lane.b32.xlu0 %v1503, 64
  %v1511 = vpop.permute.xlu0 %1510
  %1512 = vrot.lane.b32.xlu0 %v1505, 64
  %v1513 = vpop.permute.xlu0 %1512
  %1514 = vrot.lane.b32.xlu0 %v1507, 64
  %v1515 = vpop.permute.xlu0 %1514
  %v1516 = vsel %vm552, %v1509, %v1511
  %v1517 = vsel %vm552, %v1513, %v1515
  %v1520 = vsel %vm1377, %v1475, %v1489
  %v1521 = vsel %vm1377, %v1477, %v1493
  %v1522 = vsel %vm552, %v1491, %v1509
  %v1523 = vsel %vm552, %v1495, %v1513
  %v1526 = vrot.slane %v1345, 6
  %v1527 = vrot.slane %v1347, 6
  %v1530 = vsel %vm50, 0.0, %v1526
  %v1531 = vsel %vm50, 0.0, %v1527
  %v1532 = vsel %vm50, %v1526, 0.0
  %v1533 = vsel %vm50, %v1527, 0.0
  %v1538 = vrot.slane %v1530, 7
  %v1539 = vrot.slane %v1531, 7
  %v1540 = vrot.slane %v1532, 7
  %v1541 = vsel %vm538, %v1538, %v1540
  %v1542 = vrot.slane %v1533, 7
  %v1543 = vsel %vm538, %v1539, %v1542
  %1544 = vrot.lane.b32.xlu0 %v1538, 96
  %v1545 = vpop.permute.xlu0 %1544
  %1546 = vrot.lane.b32.xlu0 %v1539, 96
  %v1547 = vpop.permute.xlu0 %1546
  %1548 = vrot.lane.b32.xlu0 %v1541, 96
  %v1549 = vpop.permute.xlu0 %1548
  %1550 = vrot.lane.b32.xlu0 %v1543, 96
  %v1551 = vpop.permute.xlu0 %1550
  %v1552 = vsel %vm1377, %v1545, %v1547
  %v1553 = vsel %vm1377, %v1549, %v1551
  %v1558 = vrot.slane %v1530, 6
  %v1559 = vrot.slane %v1531, 6
  %v1560 = vrot.slane %v1532, 6
  %v1561 = vsel %vm50, %v1558, %v1560
  %v1562 = vrot.slane %v1533, 6
  %v1563 = vsel %vm50, %v1559, %v1562
  %1564 = vrot.lane.b32.xlu0 %v1558, 64
  %v1565 = vpop.permute.xlu0 %1564
  %1566 = vrot.lane.b32.xlu0 %v1559, 64
  %v1567 = vpop.permute.xlu0 %1566
  %1568 = vrot.lane.b32.xlu0 %v1561, 64
  %v1569 = vpop.permute.xlu0 %1568
  %1570 = vrot.lane.b32.xlu0 %v1563, 64
  %v1571 = vpop.permute.xlu0 %1570
  %v1572 = vsel %vm552, %v1565, %v1567
  %v1573 = vsel %vm552, %v1569, %v1571
  %v1576 = vsel %vm1377, %v1531, %v1545
  %v1577 = vsel %vm1377, %v1533, %v1549
  %v1578 = vsel %vm552, %v1547, %v1565
  %v1579 = vsel %vm552, %v1551, %v1569
  %v1584 = vrot.slane %v1355, 2
  %v1585 = vrot.slane %v1357, 2
  %v1586 = vsel %vm52, %v1584, %v1585
  %v1587 = vrot.slane %v1402, 2
  %v1588 = vrot.slane %v1403, 2
  %v1589 = vsel %vm52, %v1587, %v1588
  %v1590 = vrot.slane %v1378, 2
  %v1591 = vrot.slane %v1379, 2
  %v1592 = vsel %vm52, %v1590, %v1591
  %v1593 = vrot.slane %v1404, 2
  %v1594 = vrot.slane %v1405, 2
  %v1595 = vsel %vm52, %v1593, %v1594
  %v1596 = vrot.slane %v1398, 2
  %v1597 = vrot.slane %v1399, 2
  %v1598 = vsel %vm52, %v1596, %v1597
  %v1599 = vrot.slane %v1393, 2
  %v1600 = vrot.slane %v1397, 2
  %v1601 = vsel %vm52, %v1599, %v1600
  %v1618 = vrot.slane %v1520, 6
  %v1619 = vrot.slane %v1496, 6
  %v1620 = vrot.slane %v1522, 6
  %v1621 = vrot.slane %v1516, 6
  %v1622 = vrot.slane %v1511, 6
  %v1623 = vrot.slane %v1521, 6
  %v1624 = vsel %vm50, %v1618, %v1623
  %v1625 = vrot.slane %v1497, 6
  %v1626 = vsel %vm50, %v1619, %v1625
  %v1627 = vrot.slane %v1523, 6
  %v1628 = vsel %vm50, %v1620, %v1627
  %v1629 = vrot.slane %v1517, 6
  %v1630 = vsel %vm50, %v1621, %v1629
  %v1631 = vrot.slane %v1515, 6
  %v1632 = vsel %vm50, %v1622, %v1631
  %v1649 = vrot.slane %v1530, 4
  %v1650 = vrot.slane %v1576, 4
  %v1651 = vrot.slane %v1552, 4
  %v1652 = vrot.slane %v1578, 4
  %v1653 = vrot.slane %v1572, 4
  %v1654 = vrot.slane %v1567, 4
  %v1655 = vrot.slane %v1532, 4
  %v1656 = vsel %vm112, %v1649, %v1655
  %v1657 = vrot.slane %v1577, 4
  %v1658 = vsel %vm112, %v1650, %v1657
  %v1659 = vrot.slane %v1553, 4
  %v1660 = vsel %vm112, %v1651, %v1659
  %v1661 = vrot.slane %v1579, 4
  %v1662 = vsel %vm112, %v1652, %v1661
  %v1663 = vrot.slane %v1573, 4
  %v1664 = vsel %vm112, %v1653, %v1663
  %v1665 = vrot.slane %v1571, 4
  %v1666 = vsel %vm112, %v1654, %v1665
  %v1679 = vsel %vm50, %v1585, %v1412
  %v1680 = vsel %vm50, %v1588, %v1464
  %v1681 = vsel %vm50, %v1591, %v1434
  %v1682 = vsel %vm50, %v1594, %v1466
  %v1683 = vsel %vm50, %v1597, %v1456
  %v1684 = vsel %vm50, %v1600, %v1451
  %v1685 = vsel %vm112, %v1414, %v1502
  %v1686 = vsel %vm112, %v1465, %v1618
  %v1687 = vsel %vm112, %v1435, %v1619
  %v1688 = vsel %vm112, %v1467, %v1620
  %v1689 = vsel %vm112, %v1457, %v1621
  %v1690 = vsel %vm112, %v1455, %v1622
  %v1691 = vsel %vm52, %v1505, %v1649
  %v1692 = vsel %vm52, %v1624, %v1650
  %v1693 = vsel %vm52, %v1626, %v1651
  %v1694 = vsel %vm52, %v1628, %v1652
  %v1695 = vsel %vm52, %v1630, %v1653
  %v1696 = vsel %vm52, %v1632, %v1654
  %v1697 = vpack.c.bf16 %v1679, %v1586
  %v1698 = vpack.c.bf16 %v1680, %v1589
  %v1699 = vpack.c.bf16 %v1681, %v1592
  %v1700 = vpack.c.bf16 %v1682, %v1595
  %v1701 = vpack.c.bf16 %v1683, %v1598
  %v1702 = vpack.c.bf16 %v1684, %v1601
  %v1703 = vpack.c.bf16 %v1691, %v1685
  %v1704 = vpack.c.bf16 %v1692, %v1686
  %v1705 = vpack.c.bf16 %v1693, %v1687
  %v1706 = vpack.c.bf16 %v1694, %v1688
  %v1707 = vpack.c.bf16 %v1695, %v1689
  %v1708 = vpack.c.bf16 %v1696, %v1690
  %v1709 = vpack.c.bf16 %v1656, %v1656
  %v1710 = vpack.c.bf16 %v1658, %v1658
  %v1711 = vpack.c.bf16 %v1660, %v1660
  %v1712 = vpack.c.bf16 %v1662, %v1662
  %v1713 = vpack.c.bf16 %v1664, %v1664
  %v1714 = vpack.c.bf16 %v1666, %v1666
  %v1715 = vld [vmem:[%s5] sm:$0xff]
  %v1716 = vld [vmem:[%s5 + $0x8] sm:$0xff]
  %v1717 = vld [vmem:[%s5 + $0x10] sm:$0xff]
  %v1718 = vld [vmem:[%s5 + $0x18] sm:$0xff]
  %v1719 = vld [vmem:[%s5 + $0x20] sm:$0xff]
  %v1720 = vld [vmem:[%s5 + $0x28] sm:$0xff]
  %v1721 = vld [vmem:[%s5 + $0x30] sm:$0xff]
  %v1722 = vld [vmem:[%s5 + $0x38] sm:$0xff]
  %v1723 = vld [vmem:[%s5 + $0x40] sm:$0xff]
  %v1724 = vld [vmem:[%s5 + $0x48] sm:$0xff]
  %v1725 = vld [vmem:[%s5 + $0x50] sm:$0xff]
  %v1726 = vld [vmem:[%s5 + $0x58] sm:$0xff]
  %v1727 = vld [vmem:[%s5 + $0x60] sm:$0xff]
  %v1728 = vld [vmem:[%s5 + $0x68] sm:$0xff]
  %v1729 = vld [vmem:[%s5 + $0x70] sm:$0xff]
  %v1730 = vld [vmem:[%s5 + $0x78] sm:$0xff]
  %v1731 = vld [vmem:[%s5 + $0x80] sm:$0xff]
  %v1732 = vld [vmem:[%s5 + $0x88] sm:$0xff]
  %v1733 = vld [vmem:[%s5 + $0x90] sm:$0xff]
  %v1734 = vld [vmem:[%s5 + $0x98] sm:$0xff]
  %v1735 = vld [vmem:[%s5 + $0xa0] sm:$0xff]
  %v1736 = vld [vmem:[%s5 + $0xa8] sm:$0xff]
  %v1737 = vld [vmem:[%s5 + $0xb0] sm:$0xff]
  %v1738 = vld [vmem:[%s5 + $0xb8] sm:$0xff]
  %v1739 = vld [vmem:[%s5 + $0xc0] sm:$0xff]
  %v1740 = vld [vmem:[%s5 + $0xc8] sm:$0xff]
  %v1741 = vld [vmem:[%s5 + $0xd0] sm:$0xff]
  %v1742 = vld [vmem:[%s5 + $0xd8] sm:$0xff]
  %v1743 = vld [vmem:[%s5 + $0xe0] sm:$0xff]
  %v1744 = vld [vmem:[%s5 + $0xe8] sm:$0xff]
  %v1745 = vld [vmem:[%s5 + $0xf0] sm:$0xff]
  %v1746 = vld [vmem:[%s5 + $0xf8] sm:$0xff]
  %v1747 = vld [vmem:[%s5 + $0x100] sm:$0xff]
  %v1748 = vld [vmem:[%s5 + $0x108] sm:$0xff]
  %v1749 = vld [vmem:[%s5 + $0x110] sm:$0xff]
  %v1750 = vld [vmem:[%s5 + $0x118] sm:$0xff]
  %v1751 = vld [vmem:[%s5 + $0x120] sm:$0xff]
  %v1752 = vld [vmem:[%s5 + $0x128] sm:$0xff]
  %v1753 = vld [vmem:[%s5 + $0x130] sm:$0xff]
  %v1754 = vld [vmem:[%s5 + $0x138] sm:$0xff]
  %v1755 = vld [vmem:[%s5 + $0x140] sm:$0xff]
  %v1756 = vld [vmem:[%s5 + $0x148] sm:$0xff]
  %v1757 = vld [vmem:[%s5 + $0x150] sm:$0xff]
  %v1758 = vld [vmem:[%s5 + $0x158] sm:$0xff]
  %v1759 = vld [vmem:[%s5 + $0x160] sm:$0xff]
  %v1760 = vld [vmem:[%s5 + $0x168] sm:$0xff]
  %v1761 = vld [vmem:[%s5 + $0x170] sm:$0xff]
  %v1762 = vld [vmem:[%s5 + $0x178] sm:$0xff]
  %v1763 = vld [vmem:[%s5 + $0x180] sm:$0xff]
  %v1764 = vld [vmem:[%s5 + $0x188] sm:$0xff]
  %v1765 = vld [vmem:[%s5 + $0x190] sm:$0xff]
  %v1766 = vld [vmem:[%s5 + $0x198] sm:$0xff]
  %v1767 = vld [vmem:[%s5 + $0x1a0] sm:$0xff]
  %v1768 = vld [vmem:[%s5 + $0x1a8] sm:$0xff]
  %v1769 = vld [vmem:[%s5 + $0x1b0] sm:$0xff]
  %v1770 = vld [vmem:[%s5 + $0x1b8] sm:$0xff]
  %v1771 = vld [vmem:[%s5 + $0x1c0] sm:$0xff]
  %v1772 = vld [vmem:[%s5 + $0x1c8] sm:$0xff]
  %v1773 = vld [vmem:[%s5 + $0x1d0] sm:$0xff]
  %v1774 = vld [vmem:[%s5 + $0x1d8] sm:$0xff]
  %v1775 = vld [vmem:[%s5 + $0x1e0] sm:$0xff]
  %v1776 = vld [vmem:[%s5 + $0x1e8] sm:$0xff]
  %v1777 = vld [vmem:[%s5 + $0x1f0] sm:$0xff]
  %v1778 = vld [vmem:[%s5 + $0x1f8] sm:$0xff]
  %v1779 = vld [vmem:[%s5 + $0x200] sm:$0xff]
  %v1780 = vld [vmem:[%s5 + $0x208] sm:$0xff]
  %v1781 = vld [vmem:[%s5 + $0x210] sm:$0xff]
  %v1782 = vld [vmem:[%s5 + $0x218] sm:$0xff]
  %v1783 = vld [vmem:[%s5 + $0x220] sm:$0xff]
  %v1784 = vld [vmem:[%s5 + $0x228] sm:$0xff]
  %v1785 = vld [vmem:[%s5 + $0x230] sm:$0xff]
  %v1786 = vld [vmem:[%s5 + $0x238] sm:$0xff]
  %v1787 = vld [vmem:[%s5 + $0x240] sm:$0xff]
  %v1788 = vld [vmem:[%s5 + $0x248] sm:$0xff]
  %v1789 = vld [vmem:[%s5 + $0x250] sm:$0xff]
  %v1790 = vld [vmem:[%s5 + $0x258] sm:$0xff]
  %v1791 = vld [vmem:[%s5 + $0x260] sm:$0xff]
  %v1792 = vld [vmem:[%s5 + $0x268] sm:$0xff]
  %v1793 = vld [vmem:[%s5 + $0x270] sm:$0xff]
  %v1794 = vld [vmem:[%s5 + $0x278] sm:$0xff]
  %v1795 = vld [vmem:[%s5 + $0x280] sm:$0xff]
  %v1796 = vld [vmem:[%s5 + $0x288] sm:$0xff]
  %v1797 = vld [vmem:[%s5 + $0x290] sm:$0xff]
  %v1798 = vld [vmem:[%s5 + $0x298] sm:$0xff]
  %v1799 = vld [vmem:[%s6] sm:$0x3]
  %v1801 = vlaneseq
  %v1802 = vshrl.u32 %v1801, 7
  %v1803 = vsub.s32 0, %v1802
  %v1804 = vrot.slane %v1799, %v1803
  %v1805 = vlaneseq
  %v1806 = vshrl.u32 %v1805, 7
  %v1807 = vsub.s32 1, %v1806
  %v1808 = vrot.slane %v1799, %v1807
  %v1895 = vunpack.c.l.b16 %v1715
  %v1896 = vunpack.c.h.b16 %v1715
  %v1897 = vunpack.c.l.b16 %v1716
  %v1898 = vunpack.c.h.b16 %v1716
  %v1899 = vunpack.c.l.b16 %v1717
  %v1900 = vunpack.c.h.b16 %v1717
  %v1901 = vunpack.c.l.b16 %v1718
  %v1902 = vunpack.c.h.b16 %v1718
  %v1903 = vunpack.c.l.b16 %v1719
  %v1904 = vunpack.c.h.b16 %v1719
  %v1905 = vunpack.c.l.b16 %v1720
  %v1906 = vunpack.c.h.b16 %v1720
  %v1907 = vunpack.c.l.b16 %v1721
  %v1908 = vunpack.c.h.b16 %v1721
  %v1909 = vunpack.c.l.b16 %v1722
  %v1910 = vunpack.c.h.b16 %v1722
  %v1911 = vunpack.c.l.b16 %v1723
  %v1912 = vunpack.c.h.b16 %v1723
  %v1913 = vunpack.c.l.b16 %v1724
  %v1914 = vunpack.c.h.b16 %v1724
  %v1915 = vunpack.c.l.b16 %v1725
  %v1916 = vunpack.c.h.b16 %v1725
  %v1917 = vunpack.c.l.b16 %v1726
  %v1918 = vunpack.c.h.b16 %v1726
  %v1919 = vunpack.c.l.b16 %v1727
  %v1920 = vunpack.c.h.b16 %v1727
  %v1921 = vunpack.c.l.b16 %v1728
  %v1922 = vunpack.c.h.b16 %v1728
  %v1923 = vunpack.c.l.b16 %v1729
  %v1924 = vunpack.c.h.b16 %v1729
  %v1925 = vunpack.c.l.b16 %v1730
  %v1926 = vunpack.c.h.b16 %v1730
  %v1927 = vunpack.c.l.b16 %v1731
  %v1928 = vunpack.c.h.b16 %v1731
  %v1929 = vunpack.c.l.b16 %v1732
  %v1930 = vunpack.c.h.b16 %v1732
  %v1931 = vunpack.c.l.b16 %v1733
  %v1932 = vunpack.c.h.b16 %v1733
  %v1933 = vunpack.c.l.b16 %v1734
  %v1934 = vunpack.c.h.b16 %v1734
  %v1935 = vunpack.c.l.b16 %v1735
  %v1936 = vunpack.c.h.b16 %v1735
  %v1937 = vunpack.c.l.b16 %v1736
  %v1938 = vunpack.c.h.b16 %v1736
  %v1939 = vunpack.c.l.b16 %v1737
  %v1940 = vunpack.c.h.b16 %v1737
  %v1941 = vunpack.c.l.b16 %v1738
  %v1942 = vunpack.c.h.b16 %v1738
  %v1943 = vunpack.c.l.b16 %v1739
  %v1944 = vunpack.c.h.b16 %v1739
  %v1945 = vunpack.c.l.b16 %v1740
  %v1946 = vunpack.c.h.b16 %v1740
  %v1947 = vunpack.c.l.b16 %v1741
  %v1948 = vunpack.c.h.b16 %v1741
  %v1949 = vunpack.c.l.b16 %v1742
  %v1950 = vunpack.c.h.b16 %v1742
  %v1951 = vunpack.c.l.b16 %v1743
  %v1952 = vunpack.c.h.b16 %v1743
  %v1953 = vunpack.c.l.b16 %v1744
  %v1954 = vunpack.c.h.b16 %v1744
  %v1955 = vunpack.c.l.b16 %v1745
  %v1956 = vunpack.c.h.b16 %v1745
  %v1957 = vunpack.c.l.b16 %v1746
  %v1958 = vunpack.c.h.b16 %v1746
  %v1959 = vunpack.c.l.b16 %v1747
  %v1960 = vunpack.c.h.b16 %v1747
  %v1961 = vunpack.c.l.b16 %v1748
  %v1962 = vunpack.c.h.b16 %v1748
  %v1963 = vunpack.c.l.b16 %v1749
  %v1964 = vunpack.c.h.b16 %v1749
  %v1965 = vunpack.c.l.b16 %v1750
  %v1966 = vunpack.c.h.b16 %v1750
  %v1967 = vunpack.c.l.b16 %v1751
  %v1968 = vunpack.c.h.b16 %v1751
  %v1969 = vunpack.c.l.b16 %v1752
  %v1970 = vunpack.c.h.b16 %v1752
  %v1971 = vunpack.c.l.b16 %v1753
  %v1972 = vunpack.c.h.b16 %v1753
  %v1973 = vunpack.c.l.b16 %v1754
  %v1974 = vunpack.c.h.b16 %v1754
  %v1975 = vunpack.c.l.b16 %v1755
  %v1976 = vunpack.c.h.b16 %v1755
  %v1977 = vunpack.c.l.b16 %v1756
  %v1978 = vunpack.c.h.b16 %v1756
  %v1979 = vunpack.c.l.b16 %v1757
  %v1980 = vunpack.c.h.b16 %v1757
  %v1981 = vunpack.c.l.b16 %v1758
  %v1982 = vunpack.c.h.b16 %v1758
  %v1983 = vunpack.c.l.b16 %v1759
  %v1984 = vunpack.c.h.b16 %v1759
  %v1985 = vunpack.c.l.b16 %v1760
  %v1986 = vunpack.c.h.b16 %v1760
  %v1987 = vunpack.c.l.b16 %v1761
  %v1988 = vunpack.c.h.b16 %v1761
  %v1989 = vunpack.c.l.b16 %v1762
  %v1990 = vunpack.c.h.b16 %v1762
  %v1991 = vunpack.c.l.b16 %v1763
  %v1992 = vunpack.c.h.b16 %v1763
  %v1993 = vunpack.c.l.b16 %v1764
  %v1994 = vunpack.c.h.b16 %v1764
  %v1995 = vunpack.c.l.b16 %v1765
  %v1996 = vunpack.c.h.b16 %v1765
  %v1997 = vunpack.c.l.b16 %v1766
  %v1998 = vunpack.c.h.b16 %v1766
  %v1999 = vunpack.c.l.b16 %v1767
  %v2000 = vunpack.c.h.b16 %v1767
  %v2001 = vunpack.c.l.b16 %v1768
  %v2002 = vunpack.c.h.b16 %v1768
  %v2003 = vunpack.c.l.b16 %v1769
  %v2004 = vunpack.c.h.b16 %v1769
  %v2005 = vunpack.c.l.b16 %v1770
  %v2006 = vunpack.c.h.b16 %v1770
  %v2007 = vunpack.c.l.b16 %v1771
  %v2008 = vunpack.c.h.b16 %v1771
  %v2009 = vunpack.c.l.b16 %v1772
  %v2010 = vunpack.c.h.b16 %v1772
  %v2011 = vunpack.c.l.b16 %v1773
  %v2012 = vunpack.c.h.b16 %v1773
  %v2013 = vunpack.c.l.b16 %v1774
  %v2014 = vunpack.c.h.b16 %v1774
  %v2015 = vunpack.c.l.b16 %v1775
  %v2016 = vunpack.c.h.b16 %v1775
  %v2017 = vunpack.c.l.b16 %v1776
  %v2018 = vunpack.c.h.b16 %v1776
  %v2019 = vunpack.c.l.b16 %v1777
  %v2020 = vunpack.c.h.b16 %v1777
  %v2021 = vunpack.c.l.b16 %v1778
  %v2022 = vunpack.c.h.b16 %v1778
  %v2023 = vunpack.c.l.b16 %v1779
  %v2024 = vunpack.c.h.b16 %v1779
  %v2025 = vunpack.c.l.b16 %v1780
  %v2026 = vunpack.c.h.b16 %v1780
  %v2027 = vunpack.c.l.b16 %v1781
  %v2028 = vunpack.c.h.b16 %v1781
  %v2029 = vunpack.c.l.b16 %v1782
  %v2030 = vunpack.c.h.b16 %v1782
  %v2031 = vunpack.c.l.b16 %v1783
  %v2032 = vunpack.c.h.b16 %v1783
  %v2033 = vunpack.c.l.b16 %v1784
  %v2034 = vunpack.c.h.b16 %v1784
  %v2035 = vunpack.c.l.b16 %v1785
  %v2036 = vunpack.c.h.b16 %v1785
  %v2037 = vunpack.c.l.b16 %v1786
  %v2038 = vunpack.c.h.b16 %v1786
  %v2039 = vunpack.c.l.b16 %v1787
  %v2040 = vunpack.c.h.b16 %v1787
  %v2041 = vunpack.c.l.b16 %v1788
  %v2042 = vunpack.c.h.b16 %v1788
  %v2043 = vunpack.c.l.b16 %v1789
  %v2044 = vunpack.c.h.b16 %v1789
  %v2045 = vunpack.c.l.b16 %v1790
  %v2046 = vunpack.c.h.b16 %v1790
  %v2047 = vunpack.c.l.b16 %v1791
  %v2048 = vunpack.c.h.b16 %v1791
  %v2049 = vunpack.c.l.b16 %v1792
  %v2050 = vunpack.c.h.b16 %v1792
  %v2051 = vunpack.c.l.b16 %v1793
  %v2052 = vunpack.c.h.b16 %v1793
  %v2053 = vunpack.c.l.b16 %v1794
  %v2054 = vunpack.c.h.b16 %v1794
  %v2055 = vunpack.c.l.b16 %v1795
  %v2056 = vunpack.c.h.b16 %v1795
  %v2057 = vunpack.c.l.b16 %v1796
  %v2058 = vunpack.c.h.b16 %v1796
  %v2059 = vunpack.c.l.b16 %v1797
  %v2060 = vunpack.c.h.b16 %v1797
  %v2061 = vunpack.c.l.b16 %v1798
  %v2062 = vunpack.c.h.b16 %v1798
  %v2063 = vpack.c.b16 %v1897, %v1895
  %v2064 = vpack.c.b16 %v1898, %v1896
  %v2065 = vpack.c.b16 %v1901, %v1899
  %v2066 = vpack.c.b16 %v1902, %v1900
  %v2067 = vpack.c.b16 %v1905, %v1903
  %v2068 = vpack.c.b16 %v1906, %v1904
  %v2069 = vpack.c.b16 %v1909, %v1907
  %v2070 = vpack.c.b16 %v1910, %v1908
  %v2071 = vpack.c.b16 %v1913, %v1911
  %v2072 = vpack.c.b16 %v1914, %v1912
  %v2073 = vpack.c.b16 %v1917, %v1915
  %v2074 = vpack.c.b16 %v1918, %v1916
  %v2075 = vpack.c.b16 %v1921, %v1919
  %v2076 = vpack.c.b16 %v1922, %v1920
  %v2077 = vpack.c.b16 %v1925, %v1923
  %v2078 = vpack.c.b16 %v1926, %v1924
  %v2079 = vpack.c.b16 %v1929, %v1927
  %v2080 = vpack.c.b16 %v1930, %v1928
  %v2081 = vpack.c.b16 %v1933, %v1931
  %v2082 = vpack.c.b16 %v1934, %v1932
  %v2083 = vpack.c.b16 %v1937, %v1935
  %v2084 = vpack.c.b16 %v1938, %v1936
  %v2085 = vpack.c.b16 %v1941, %v1939
  %v2086 = vpack.c.b16 %v1942, %v1940
  %v2087 = vpack.c.b16 %v1945, %v1943
  %v2088 = vpack.c.b16 %v1946, %v1944
  %v2089 = vpack.c.b16 %v1949, %v1947
  %v2090 = vpack.c.b16 %v1950, %v1948
  %v2091 = vpack.c.b16 %v1953, %v1951
  %v2092 = vpack.c.b16 %v1954, %v1952
  %v2093 = vpack.c.b16 %v1957, %v1955
  %v2094 = vpack.c.b16 %v1958, %v1956
  %v2095 = vpack.c.b16 %v1961, %v1959
  %v2096 = vpack.c.b16 %v1962, %v1960
  %v2097 = vpack.c.b16 %v1965, %v1963
  %v2098 = vpack.c.b16 %v1966, %v1964
  %v2099 = vpack.c.b16 %v1969, %v1967
  %v2100 = vpack.c.b16 %v1970, %v1968
  %v2101 = vpack.c.b16 %v1973, %v1971
  %v2102 = vpack.c.b16 %v1974, %v1972
  %v2103 = vpack.c.b16 %v1977, %v1975
  %v2104 = vpack.c.b16 %v1978, %v1976
  %v2105 = vpack.c.b16 %v1981, %v1979
  %v2106 = vpack.c.b16 %v1982, %v1980
  %v2107 = vpack.c.b16 %v1985, %v1983
  %v2108 = vpack.c.b16 %v1986, %v1984
  %v2109 = vpack.c.b16 %v1989, %v1987
  %v2110 = vpack.c.b16 %v1990, %v1988
  %v2111 = vpack.c.b16 %v1993, %v1991
  %v2112 = vpack.c.b16 %v1994, %v1992
  %v2113 = vpack.c.b16 %v1997, %v1995
  %v2114 = vpack.c.b16 %v1998, %v1996
  %v2115 = vpack.c.b16 %v2001, %v1999
  %v2116 = vpack.c.b16 %v2002, %v2000
  %v2117 = vpack.c.b16 %v2005, %v2003
  %v2118 = vpack.c.b16 %v2006, %v2004
  %v2119 = vpack.c.b16 %v2009, %v2007
  %v2120 = vpack.c.b16 %v2010, %v2008
  %v2121 = vpack.c.b16 %v2013, %v2011
  %v2122 = vpack.c.b16 %v2014, %v2012
  %v2123 = vpack.c.b16 %v2017, %v2015
  %v2124 = vpack.c.b16 %v2018, %v2016
  %v2125 = vpack.c.b16 %v2021, %v2019
  %v2126 = vpack.c.b16 %v2022, %v2020
  %v2127 = vpack.c.b16 %v2025, %v2023
  %v2128 = vpack.c.b16 %v2026, %v2024
  %v2129 = vpack.c.b16 %v2029, %v2027
  %v2130 = vpack.c.b16 %v2030, %v2028
  %v2131 = vpack.c.b16 %v2033, %v2031
  %v2132 = vpack.c.b16 %v2034, %v2032
  %v2133 = vpack.c.b16 %v2037, %v2035
  %v2134 = vpack.c.b16 %v2038, %v2036
  %v2135 = vpack.c.b16 %v2041, %v2039
  %v2136 = vpack.c.b16 %v2042, %v2040
  %v2137 = vpack.c.b16 %v2045, %v2043
  %v2138 = vpack.c.b16 %v2046, %v2044
  %v2139 = vpack.c.b16 %v2049, %v2047
  %v2140 = vpack.c.b16 %v2050, %v2048
  %v2141 = vpack.c.b16 %v2053, %v2051
  %v2142 = vpack.c.b16 %v2054, %v2052
  %v2143 = vpack.c.b16 %v2057, %v2055
  %v2144 = vpack.c.b16 %v2058, %v2056
  %v2145 = vpack.c.b16 %v2061, %v2059
  %v2146 = vpack.c.b16 %v2062, %v2060
  %vm2231 = vcmask 261120
  %v2233 = vsel %vm2231, %v1702, 0
  %v2236 = vsel %vm2231, %v1708, 0
  %v2239 = vsel %vm2231, %v1714, 0
  %2241 = vmatprep.subr.bf16.mxu0 %v2064
  %2242 = vmatpush1.bf16.msra.mxu0 %v2063
  %2243 = vmatprep.subr.bf16.mxu0 %v2066
  %2244 = vmatpush1.bf16.msra.mxu0 %v2065
  %2245 = vmatprep.subr.bf16.mxu0 %v2068
  %2246 = vmatpush1.bf16.msra.mxu0 %v2067
  %2247 = vmatprep.subr.bf16.mxu0 %v2070
  %2248 = vmatpush1.bf16.msra.mxu0 %v2069
  %2249 = vmatprep.subr.bf16.mxu0 %v2072
  %2250 = vmatpush1.bf16.msra.mxu0 %v2071
  %2251 = vmatprep.subr.bf16.mxu0 %v2074
  %2252 = vmatpush1.bf16.msra.mxu0 %v2073
  %2253 = vmatprep.subr.bf16.mxu0 %v2076
  %2254 = vmatpush1.bf16.msra.mxu0 %v2075
  %2255 = vmatprep.subr.bf16.mxu0 %v2078
  %2256 = vmatpush1.bf16.msra.mxu0 %v2077
  %2257 = vmatprep.subr.bf16.mxu0 %v2080
  %2258 = vmatpush1.bf16.msra.mxu0 %v2079
  %2259 = vmatprep.subr.bf16.mxu0 %v2082
  %2260 = vmatpush1.bf16.msra.mxu0 %v2081
  %2261 = vmatprep.subr.bf16.mxu0 %v2084
  %2262 = vmatpush1.bf16.msra.mxu0 %v2083
  %2263 = vmatprep.subr.bf16.mxu0 %v2086
  %2264 = vmatpush1.bf16.msra.mxu0 %v2085
  %2265 = vmatprep.subr.bf16.mxu0 %v2088
  %2266 = vmatpush1.bf16.msra.mxu0 %v2087
  %2267 = vmatprep.subr.bf16.mxu0 %v2090
  %2268 = vmatpush1.bf16.msra.mxu0 %v2089
  %2269 = vmatprep.subr.bf16.mxu0 %v2092
  %2270 = vmatpush1.bf16.msra.mxu0 %v2091
  %2271 = vmatprep.subr.bf16.mxu0 %v2094
  %2272 = vmatpush1.bf16.msra.mxu0 %v2093
  %2273 = vmatprep.mubr.bf16.mxu0 %v1698
  %2274 = vmatmul.mubr.bf16.gmra.mrb[0].mxu0 %v1697
  %v2275 = vpop.f32.mrb[0].mxu0
  %v2276 = vadd.f32 %v1804, %v2275
  %v2277 = vpop.f32.mrb[0].mxu0
  %v2278 = vadd.f32 %v1808, %v2277
  %v2279 = vpop.f32.mrb[0].mxu0
  %v2280 = vadd.f32 %v1804, %v2279
  %v2281 = vpop.f32.mrb[0].mxu0
  %v2282 = vadd.f32 %v1808, %v2281
  %2283 = vmatprep.mubr.bf16.mxu0 %v1704
  %2284 = vmatmul.mubr.bf16.gmra.mrb[0].mxu0 %v1703
  %v2285 = vpop.f32.mrb[0].mxu0
  %v2286 = vadd.f32 %v1804, %v2285
  %v2287 = vpop.f32.mrb[0].mxu0
  %v2288 = vadd.f32 %v1808, %v2287
  %v2289 = vpop.f32.mrb[0].mxu0
  %v2290 = vadd.f32 %v1804, %v2289
  %v2291 = vpop.f32.mrb[0].mxu0
  %v2292 = vadd.f32 %v1808, %v2291
  %2293 = vmatprep.mubr.bf16.mxu0 %v1710
  %2294 = vmatmul.mubr.bf16.gmra.mrb[0].mxu0 %v1709
  %v2295 = vpop.f32.mrb[0].mxu0
  %v2296 = vadd.f32 %v1804, %v2295
  %v2297 = vpop.f32.mrb[0].mxu0
  %v2298 = vadd.f32 %v1808, %v2297
  %v2299 = vpop.f32.mrb[0].mxu0
  %v2300 = vpop.f32.mrb[0].mxu0
  %2301 = vdwg.mxu0
  %2302 = vmatprep.subr.bf16.mxu0 %v2096
  %2303 = vmatpush1.bf16.msra.mxu0 %v2095
  %2304 = vmatprep.subr.bf16.mxu0 %v2098
  %2305 = vmatpush1.bf16.msra.mxu0 %v2097
  %2306 = vmatprep.subr.bf16.mxu0 %v2100
  %2307 = vmatpush1.bf16.msra.mxu0 %v2099
  %2308 = vmatprep.subr.bf16.mxu0 %v2102
  %2309 = vmatpush1.bf16.msra.mxu0 %v2101
  %2310 = vmatprep.subr.bf16.mxu0 %v2104
  %2311 = vmatpush1.bf16.msra.mxu0 %v2103
  %2312 = vmatprep.subr.bf16.mxu0 %v2106
  %2313 = vmatpush1.bf16.msra.mxu0 %v2105
  %2314 = vmatprep.subr.bf16.mxu0 %v2108
  %2315 = vmatpush1.bf16.msra.mxu0 %v2107
  %2316 = vmatprep.subr.bf16.mxu0 %v2110
  %2317 = vmatpush1.bf16.msra.mxu0 %v2109
  %2318 = vmatprep.subr.bf16.mxu0 %v2112
  %2319 = vmatpush1.bf16.msra.mxu0 %v2111
  %2320 = vmatprep.subr.bf16.mxu0 %v2114
  %2321 = vmatpush1.bf16.msra.mxu0 %v2113
  %2322 = vmatprep.subr.bf16.mxu0 %v2116
  %2323 = vmatpush1.bf16.msra.mxu0 %v2115
  %2324 = vmatprep.subr.bf16.mxu0 %v2118
  %2325 = vmatpush1.bf16.msra.mxu0 %v2117
  %2326 = vmatprep.subr.bf16.mxu0 %v2120
  %2327 = vmatpush1.bf16.msra.mxu0 %v2119
  %2328 = vmatprep.subr.bf16.mxu0 %v2122
  %2329 = vmatpush1.bf16.msra.mxu0 %v2121
  %2330 = vmatprep.subr.bf16.mxu0 %v2124
  %2331 = vmatpush1.bf16.msra.mxu0 %v2123
  %2332 = vmatprep.subr.bf16.mxu0 %v2126
  %2333 = vmatpush1.bf16.msra.mxu0 %v2125
  %2334 = vmatprep.mubr.bf16.mxu0 %v1700
  %2335 = vmatmul.mubr.bf16.gmra.mrb[0].mxu0 %v1699
  %v2336 = vpop.f32.mrb[0].mxu0
  %v2337 = vadd.f32 %v2276, %v2336
  %v2338 = vpop.f32.mrb[0].mxu0
  %v2339 = vadd.f32 %v2278, %v2338
  %v2340 = vpop.f32.mrb[0].mxu0
  %v2341 = vadd.f32 %v2280, %v2340
  %v2342 = vpop.f32.mrb[0].mxu0
  %v2343 = vadd.f32 %v2282, %v2342
  %2344 = vmatprep.mubr.bf16.mxu0 %v1706
  %2345 = vmatmul.mubr.bf16.gmra.mrb[0].mxu0 %v1705
  %v2346 = vpop.f32.mrb[0].mxu0
  %v2347 = vadd.f32 %v2286, %v2346
  %v2348 = vpop.f32.mrb[0].mxu0
  %v2349 = vadd.f32 %v2288, %v2348
  %v2350 = vpop.f32.mrb[0].mxu0
  %v2351 = vadd.f32 %v2290, %v2350
  %v2352 = vpop.f32.mrb[0].mxu0
  %v2353 = vadd.f32 %v2292, %v2352
  %2354 = vmatprep.mubr.bf16.mxu0 %v1712
  %2355 = vmatmul.mubr.bf16.gmra.mrb[0].mxu0 %v1711
  %v2356 = vpop.f32.mrb[0].mxu0
  %v2357 = vadd.f32 %v2296, %v2356
  %v2358 = vpop.f32.mrb[0].mxu0
  %v2359 = vadd.f32 %v2298, %v2358
  %v2360 = vpop.f32.mrb[0].mxu0
  %v2361 = vpop.f32.mrb[0].mxu0
  %2362 = vdwg.mxu0
  %2363 = vmatprep.subr.bf16.mxu0 %v2128
  %2364 = vmatpush1.bf16.msra.mxu0 %v2127
  %2365 = vmatprep.subr.bf16.mxu0 %v2130
  %2366 = vmatpush1.bf16.msra.mxu0 %v2129
  %2367 = vmatprep.subr.bf16.mxu0 %v2132
  %2368 = vmatpush1.bf16.msra.mxu0 %v2131
  %2369 = vmatprep.subr.bf16.mxu0 %v2134
  %2370 = vmatpush1.bf16.msra.mxu0 %v2133
  %2371 = vmatprep.subr.bf16.mxu0 %v2136
  %2372 = vmatpush1.bf16.msra.mxu0 %v2135
  %2373 = vmatprep.subr.bf16.mxu0 %v2138
  %2374 = vmatpush1.bf16.msra.mxu0 %v2137
  %2375 = vmatprep.subr.bf16.mxu0 %v2140
  %2376 = vmatpush1.bf16.msra.mxu0 %v2139
  %2377 = vmatprep.subr.bf16.mxu0 %v2142
  %2378 = vmatpush1.bf16.msra.mxu0 %v2141
  %2379 = vmatprep.subr.bf16.mxu0 %v2144
  %2380 = vmatpush1.bf16.msra.mxu0 %v2143
  %2381 = vmatprep.subr.bf16.mxu0 %v2146
  %2382 = vmatpush1.bf16.msra.mxu0 %v2145
  %2383 = vmatprep.subr.bf16.mxu0 0
  %2384 = vmatpush1.bf16.msra.mxu0 0
  %2385 = vmatprep.subr.bf16.mxu0 0
  %2386 = vmatpush1.bf16.msra.mxu0 0
  %2387 = vmatprep.subr.bf16.mxu0 0
  %2388 = vmatpush1.bf16.msra.mxu0 0
  %2389 = vmatprep.subr.bf16.mxu0 0
  %2390 = vmatpush1.bf16.msra.mxu0 0
  %2391 = vmatprep.subr.bf16.mxu0 0
  %2392 = vmatpush1.bf16.msra.mxu0 0
  %2393 = vmatprep.subr.bf16.mxu0 0
  %2394 = vmatpush1.bf16.msra.mxu0 0
  %2395 = vmatprep.mubr.bf16.mxu0 %v2233
  %2396 = vmatmul.mubr.bf16.gmra.mrb[0].mxu0 %v1701
  %v2397 = vpop.f32.mrb[0].mxu0
  %v2398 = vadd.f32 %v2337, %v2397
  %v2399 = vpop.f32.mrb[0].mxu0
  %v2400 = vadd.f32 %v2339, %v2399
  %v2401 = vpop.f32.mrb[0].mxu0
  %v2402 = vadd.f32 %v2341, %v2401
  %v2403 = vpop.f32.mrb[0].mxu0
  %v2404 = vadd.f32 %v2343, %v2403
  %2405 = vmatprep.mubr.bf16.mxu0 %v2236
  %2406 = vmatmul.mubr.bf16.gmra.mrb[0].mxu0 %v1707
  %v2407 = vpop.f32.mrb[0].mxu0
  %v2408 = vadd.f32 %v2347, %v2407
  %v2409 = vpop.f32.mrb[0].mxu0
  %v2410 = vadd.f32 %v2349, %v2409
  %v2411 = vpop.f32.mrb[0].mxu0
  %v2412 = vadd.f32 %v2351, %v2411
  %v2413 = vpop.f32.mrb[0].mxu0
  %v2414 = vadd.f32 %v2353, %v2413
  %2415 = vmatprep.mubr.bf16.mxu0 %v2239
  %2416 = vmatmul.mubr.bf16.gmra.mrb[0].mxu0 %v1713
  %v2417 = vpop.f32.mrb[0].mxu0
  %v2418 = vadd.f32 %v2357, %v2417
  %v2419 = vpop.f32.mrb[0].mxu0
  %v2420 = vadd.f32 %v2359, %v2419
  %v2421 = vpop.f32.mrb[0].mxu0
  %v2422 = vpop.f32.mrb[0].mxu0
  %2423 = vdwg.mxu0
  %v2428 = vrot.slane %v2398, 6
  %v2429 = vrot.slane %v2400, 6
  %v2430 = vrot.slane %v2402, 6
  %v2431 = vsel %vm50, %v2428, %v2430
  %v2432 = vrot.slane %v2404, 6
  %v2433 = vsel %vm50, %v2429, %v2432
  %v2438 = vsel %vm50, 0.0, %v2428
  %v2439 = vsel %vm50, 0.0, %v2429
  %v2440 = vsel %vm112, %v2431, 0.0
  %v2441 = vsel %vm112, %v2433, 0.0
  %v2446 = vrot.slane %v2438, 7
  %v2447 = vrot.slane %v2439, 7
  %v2448 = vrot.slane %v2440, 7
  %v2449 = vsel %vm538, %v2446, %v2448
  %v2450 = vrot.slane %v2441, 7
  %v2451 = vsel %vm538, %v2447, %v2450
  %2452 = vrot.lane.b32.xlu0 %v2446, 112
  %v2453 = vpop.permute.xlu0 %2452
  %2454 = vrot.lane.b32.xlu0 %v2447, 112
  %v2455 = vpop.permute.xlu0 %2454
  %2456 = vrot.lane.b32.xlu0 %v2449, 112
  %v2457 = vpop.permute.xlu0 %2456
  %2458 = vrot.lane.b32.xlu0 %v2451, 112
  %v2459 = vpop.permute.xlu0 %2458
  %vm2460 = vcmask 916480
  %v2461 = vsel %vm2460, %v2453, %v2455
  %v2462 = vsel %vm2460, %v2457, %v2459
  %v2467 = vrot.slane %v2438, 6
  %v2468 = vrot.slane %v2439, 6
  %v2469 = vrot.slane %v2440, 6
  %v2470 = vsel %vm50, %v2467, %v2469
  %v2471 = vrot.slane %v2441, 6
  %v2472 = vsel %vm50, %v2468, %v2471
  %2473 = vrot.lane.b32.xlu0 %v2467, 96
  %v2474 = vpop.permute.xlu0 %2473
  %2475 = vrot.lane.b32.xlu0 %v2468, 96
  %v2476 = vpop.permute.xlu0 %2475
  %2477 = vrot.lane.b32.xlu0 %v2470, 96
  %v2478 = vpop.permute.xlu0 %2477
  %2479 = vrot.lane.b32.xlu0 %v2472, 96
  %v2480 = vpop.permute.xlu0 %2479
  %v2481 = vsel %vm1377, %v2474, %v2476
  %v2482 = vsel %vm1377, %v2478, %v2480
  %v2485 = vsel %vm2460, %v2439, %v2453
  %v2486 = vsel %vm2460, %v2441, %v2457
  %v2487 = vsel %vm1377, %v2455, %v2474
  %v2488 = vsel %vm1377, %v2459, %v2478
  %v2489 = vsel %vm50, 0.0, %v2402
  %v2490 = vsel %vm50, 0.0, %v2404
  %v2491 = vsel %vm112, %v2408, 0.0
  %v2492 = vsel %vm112, %v2410, 0.0
  %v2497 = vrot.slane %v2489, 7
  %v2498 = vrot.slane %v2490, 7
  %v2499 = vrot.slane %v2491, 7
  %v2500 = vsel %vm538, %v2497, %v2499
  %v2501 = vrot.slane %v2492, 7
  %v2502 = vsel %vm538, %v2498, %v2501
  %2503 = vrot.lane.b32.xlu0 %v2497, 112
  %v2504 = vpop.permute.xlu0 %2503
  %2505 = vrot.lane.b32.xlu0 %v2498, 112
  %v2506 = vpop.permute.xlu0 %2505
  %2507 = vrot.lane.b32.xlu0 %v2500, 112
  %v2508 = vpop.permute.xlu0 %2507
  %2509 = vrot.lane.b32.xlu0 %v2502, 112
  %v2510 = vpop.permute.xlu0 %2509
  %v2511 = vsel %vm2460, %v2504, %v2506
  %v2512 = vsel %vm2460, %v2508, %v2510
  %v2517 = vrot.slane %v2489, 6
  %v2518 = vrot.slane %v2490, 6
  %v2519 = vrot.slane %v2491, 6
  %v2520 = vsel %vm50, %v2517, %v2519
  %v2521 = vrot.slane %v2492, 6
  %v2522 = vsel %vm50, %v2518, %v2521
  %2523 = vrot.lane.b32.xlu0 %v2517, 96
  %v2524 = vpop.permute.xlu0 %2523
  %2525 = vrot.lane.b32.xlu0 %v2518, 96
  %v2526 = vpop.permute.xlu0 %2525
  %2527 = vrot.lane.b32.xlu0 %v2520, 96
  %v2528 = vpop.permute.xlu0 %2527
  %2529 = vrot.lane.b32.xlu0 %v2522, 96
  %v2530 = vpop.permute.xlu0 %2529
  %v2531 = vsel %vm1377, %v2524, %v2526
  %v2532 = vsel %vm1377, %v2528, %v2530
  %v2535 = vsel %vm2460, %v2490, %v2504
  %v2536 = vsel %vm2460, %v2492, %v2508
  %v2537 = vsel %vm1377, %v2506, %v2524
  %v2538 = vsel %vm1377, %v2510, %v2528
  %v2543 = vrot.slane %v2408, 2
  %v2544 = vrot.slane %v2412, 2
  %v2545 = vsel %vm52, %v2543, %v2544
  %v2546 = vrot.slane %v2410, 2
  %v2547 = vrot.slane %v2414, 2
  %v2548 = vsel %vm52, %v2546, %v2547
  %v2553 = vsel %vm50, 0.0, %v2545
  %v2554 = vsel %vm50, 0.0, %v2548
  %v2555 = vsel %vm112, %v2544, 0.0
  %v2556 = vsel %vm112, %v2547, 0.0
  %v2561 = vrot.slane %v2553, 7
  %v2562 = vrot.slane %v2554, 7
  %v2563 = vrot.slane %v2555, 7
  %v2564 = vsel %vm538, %v2561, %v2563
  %v2565 = vrot.slane %v2556, 7
  %v2566 = vsel %vm538, %v2562, %v2565
  %2567 = vrot.lane.b32.xlu0 %v2561, 112
  %v2568 = vpop.permute.xlu0 %2567
  %2569 = vrot.lane.b32.xlu0 %v2562, 112
  %v2570 = vpop.permute.xlu0 %2569
  %2571 = vrot.lane.b32.xlu0 %v2564, 112
  %v2572 = vpop.permute.xlu0 %2571
  %2573 = vrot.lane.b32.xlu0 %v2566, 112
  %v2574 = vpop.permute.xlu0 %2573
  %v2575 = vsel %vm2460, %v2568, %v2570
  %v2576 = vsel %vm2460, %v2572, %v2574
  %v2581 = vrot.slane %v2553, 6
  %v2582 = vrot.slane %v2554, 6
  %v2583 = vrot.slane %v2555, 6
  %v2584 = vsel %vm50, %v2581, %v2583
  %v2585 = vrot.slane %v2556, 6
  %v2586 = vsel %vm50, %v2582, %v2585
  %2587 = vrot.lane.b32.xlu0 %v2581, 96
  %v2588 = vpop.permute.xlu0 %2587
  %2589 = vrot.lane.b32.xlu0 %v2582, 96
  %v2590 = vpop.permute.xlu0 %2589
  %2591 = vrot.lane.b32.xlu0 %v2584, 96
  %v2592 = vpop.permute.xlu0 %2591
  %2593 = vrot.lane.b32.xlu0 %v2586, 96
  %v2594 = vpop.permute.xlu0 %2593
  %v2595 = vsel %vm1377, %v2588, %v2590
  %v2596 = vsel %vm1377, %v2592, %v2594
  %v2599 = vsel %vm2460, %v2554, %v2568
  %v2600 = vsel %vm2460, %v2556, %v2572
  %v2601 = vsel %vm1377, %v2570, %v2588
  %v2602 = vsel %vm1377, %v2574, %v2592
  %v2605 = vrot.slane %v2412, 4
  %v2606 = vrot.slane %v2418, 4
  %v2607 = vsel %vm112, %v2605, %v2606
  %v2608 = vrot.slane %v2414, 4
  %v2609 = vrot.slane %v2420, 4
  %v2610 = vsel %vm112, %v2608, %v2609
  %v2615 = vsel %vm50, 0.0, %v2607
  %v2616 = vsel %vm50, 0.0, %v2610
  %v2617 = vsel %vm112, %v2606, 0.0
  %v2618 = vsel %vm112, %v2609, 0.0
  %v2623 = vrot.slane %v2615, 7
  %v2624 = vrot.slane %v2616, 7
  %v2625 = vrot.slane %v2617, 7
  %v2626 = vsel %vm538, %v2623, %v2625
  %v2627 = vrot.slane %v2618, 7
  %v2628 = vsel %vm538, %v2624, %v2627
  %2629 = vrot.lane.b32.xlu0 %v2623, 112
  %v2630 = vpop.permute.xlu0 %2629
  %2631 = vrot.lane.b32.xlu0 %v2624, 112
  %v2632 = vpop.permute.xlu0 %2631
  %2633 = vrot.lane.b32.xlu0 %v2626, 112
  %v2634 = vpop.permute.xlu0 %2633
  %2635 = vrot.lane.b32.xlu0 %v2628, 112
  %v2636 = vpop.permute.xlu0 %2635
  %v2637 = vsel %vm2460, %v2630, %v2632
  %v2638 = vsel %vm2460, %v2634, %v2636
  %v2643 = vrot.slane %v2615, 6
  %v2644 = vrot.slane %v2616, 6
  %v2645 = vrot.slane %v2617, 6
  %v2646 = vsel %vm50, %v2643, %v2645
  %v2647 = vrot.slane %v2618, 6
  %v2648 = vsel %vm50, %v2644, %v2647
  %2649 = vrot.lane.b32.xlu0 %v2643, 96
  %v2650 = vpop.permute.xlu0 %2649
  %2651 = vrot.lane.b32.xlu0 %v2644, 96
  %v2652 = vpop.permute.xlu0 %2651
  %2653 = vrot.lane.b32.xlu0 %v2646, 96
  %v2654 = vpop.permute.xlu0 %2653
  %2655 = vrot.lane.b32.xlu0 %v2648, 96
  %v2656 = vpop.permute.xlu0 %2655
  %v2657 = vsel %vm1377, %v2650, %v2652
  %v2658 = vsel %vm1377, %v2654, %v2656
  %v2661 = vsel %vm2460, %v2616, %v2630
  %v2662 = vsel %vm2460, %v2618, %v2634
  %v2663 = vsel %vm1377, %v2632, %v2650
  %v2664 = vsel %vm1377, %v2636, %v2654
  %v2669 = vrot.slane %v2438, 2
  %v2670 = vrot.slane %v2440, 2
  %v2671 = vsel %vm52, %v2669, %v2670
  %v2672 = vrot.slane %v2485, 2
  %v2673 = vrot.slane %v2486, 2
  %v2674 = vsel %vm52, %v2672, %v2673
  %v2675 = vrot.slane %v2461, 2
  %v2676 = vrot.slane %v2462, 2
  %v2677 = vsel %vm52, %v2675, %v2676
  %v2678 = vrot.slane %v2487, 2
  %v2679 = vrot.slane %v2488, 2
  %v2680 = vsel %vm52, %v2678, %v2679
  %v2681 = vrot.slane %v2481, 2
  %v2682 = vrot.slane %v2482, 2
  %v2683 = vsel %vm52, %v2681, %v2682
  %v2684 = vrot.slane %v2476, 2
  %v2685 = vrot.slane %v2480, 2
  %v2686 = vsel %vm52, %v2684, %v2685
  %v2703 = vrot.slane %v2535, 6
  %v2704 = vrot.slane %v2511, 6
  %v2705 = vrot.slane %v2537, 6
  %v2706 = vrot.slane %v2531, 6
  %v2707 = vrot.slane %v2526, 6
  %v2708 = vrot.slane %v2536, 6
  %v2709 = vsel %vm50, %v2703, %v2708
  %v2710 = vrot.slane %v2512, 6
  %v2711 = vsel %vm50, %v2704, %v2710
  %v2712 = vrot.slane %v2538, 6
  %v2713 = vsel %vm50, %v2705, %v2712
  %v2714 = vrot.slane %v2532, 6
  %v2715 = vsel %vm50, %v2706, %v2714
  %v2716 = vrot.slane %v2530, 6
  %v2717 = vsel %vm50, %v2707, %v2716
  %v2734 = vrot.slane %v2553, 2
  %v2735 = vrot.slane %v2555, 2
  %v2736 = vsel %vm52, %v2734, %v2735
  %v2737 = vrot.slane %v2599, 2
  %v2738 = vrot.slane %v2600, 2
  %v2739 = vsel %vm52, %v2737, %v2738
  %v2740 = vrot.slane %v2575, 2
  %v2741 = vrot.slane %v2576, 2
  %v2742 = vsel %vm52, %v2740, %v2741
  %v2743 = vrot.slane %v2601, 2
  %v2744 = vrot.slane %v2602, 2
  %v2745 = vsel %vm52, %v2743, %v2744
  %v2746 = vrot.slane %v2595, 2
  %v2747 = vrot.slane %v2596, 2
  %v2748 = vsel %vm52, %v2746, %v2747
  %v2749 = vrot.slane %v2590, 2
  %v2750 = vrot.slane %v2594, 2
  %v2751 = vsel %vm52, %v2749, %v2750
  %v2768 = vrot.slane %v2661, 6
  %v2769 = vrot.slane %v2637, 6
  %v2770 = vrot.slane %v2663, 6
  %v2771 = vrot.slane %v2657, 6
  %v2772 = vrot.slane %v2652, 6
  %v2773 = vrot.slane %v2662, 6
  %v2774 = vsel %vm50, %v2768, %v2773
  %v2775 = vrot.slane %v2638, 6
  %v2776 = vsel %vm50, %v2769, %v2775
  %v2777 = vrot.slane %v2664, 6
  %v2778 = vsel %vm50, %v2770, %v2777
  %v2779 = vrot.slane %v2658, 6
  %v2780 = vsel %vm50, %v2771, %v2779
  %v2781 = vrot.slane %v2656, 6
  %v2782 = vsel %vm50, %v2772, %v2781
  %v2795 = vsel %vm112, %v2670, %v2517
  %v2796 = vsel %vm112, %v2673, %v2703
  %v2797 = vsel %vm112, %v2676, %v2704
  %v2798 = vsel %vm112, %v2679, %v2705
  %v2799 = vsel %vm112, %v2682, %v2706
  %v2800 = vsel %vm112, %v2685, %v2707
  %v2801 = vsel %vm112, %v2735, %v2643
  %v2802 = vsel %vm112, %v2738, %v2768
  %v2803 = vsel %vm112, %v2741, %v2769
  %v2804 = vsel %vm112, %v2744, %v2770
  %v2805 = vsel %vm112, %v2747, %v2771
  %v2806 = vsel %vm112, %v2750, %v2772
  %v2807 = vpack.c.bf16 %v2795, %v2671
  %v2808 = vpack.c.bf16 %v2796, %v2674
  %v2809 = vpack.c.bf16 %v2797, %v2677
  %v2810 = vpack.c.bf16 %v2798, %v2680
  %v2811 = vpack.c.bf16 %v2799, %v2683
  %v2812 = vpack.c.bf16 %v2800, %v2686
  %v2813 = vpack.c.bf16 %v2736, %v2520
  %v2814 = vpack.c.bf16 %v2739, %v2709
  %v2815 = vpack.c.bf16 %v2742, %v2711
  %v2816 = vpack.c.bf16 %v2745, %v2713
  %v2817 = vpack.c.bf16 %v2748, %v2715
  %v2818 = vpack.c.bf16 %v2751, %v2717
  %v2819 = vpack.c.bf16 %v2646, %v2801
  %v2820 = vpack.c.bf16 %v2774, %v2802
  %v2821 = vpack.c.bf16 %v2776, %v2803
  %v2822 = vpack.c.bf16 %v2778, %v2804
  %v2823 = vpack.c.bf16 %v2780, %v2805
  %v2824 = vpack.c.bf16 %v2782, %v2806
  %v2825 = vld [vmem:[%s7] sm:$0xf]
  %v2826 = vld [vmem:[%s7 + $0x4] sm:$0xf]
  %v2827 = vld [vmem:[%s7 + $0x8] sm:$0xf]
  %v2828 = vld [vmem:[%s7 + $0xc] sm:$0xf]
  %v2829 = vld [vmem:[%s7 + $0x10] sm:$0xf]
  %v2830 = vld [vmem:[%s7 + $0x14] sm:$0xf]
  %v2831 = vld [vmem:[%s7 + $0x18] sm:$0xf]
  %v2832 = vld [vmem:[%s7 + $0x1c] sm:$0xf]
  %v2833 = vld [vmem:[%s7 + $0x20] sm:$0xf]
  %v2834 = vld [vmem:[%s7 + $0x24] sm:$0xf]
  %v2835 = vld [vmem:[%s7 + $0x28] sm:$0xf]
  %v2836 = vld [vmem:[%s7 + $0x2c] sm:$0xf]
  %v2837 = vld [vmem:[%s7 + $0x30] sm:$0xf]
  %v2838 = vld [vmem:[%s7 + $0x34] sm:$0xf]
  %v2839 = vld [vmem:[%s7 + $0x38] sm:$0xf]
  %v2840 = vld [vmem:[%s7 + $0x3c] sm:$0xf]
  %v2841 = vld [vmem:[%s7 + $0x40] sm:$0xf]
  %v2842 = vld [vmem:[%s7 + $0x44] sm:$0xf]
  %v2843 = vld [vmem:[%s7 + $0x48] sm:$0xf]
  %v2844 = vld [vmem:[%s7 + $0x4c] sm:$0xf]
  %v2845 = vld [vmem:[%s7 + $0x50] sm:$0xf]
  %v2846 = vld [vmem:[%s7 + $0x54] sm:$0xf]
  %v2847 = vld [vmem:[%s7 + $0x58] sm:$0xf]
  %v2848 = vld [vmem:[%s7 + $0x5c] sm:$0xf]
  %v2849 = vld [vmem:[%s7 + $0x60] sm:$0xf]
  %v2850 = vld [vmem:[%s7 + $0x64] sm:$0xf]
  %v2851 = vld [vmem:[%s7 + $0x68] sm:$0xf]
  %v2852 = vld [vmem:[%s7 + $0x6c] sm:$0xf]
  %v2853 = vld [vmem:[%s7 + $0x70] sm:$0xf]
  %v2854 = vld [vmem:[%s7 + $0x74] sm:$0xf]
  %v2855 = vld [vmem:[%s7 + $0x78] sm:$0xf]
  %v2856 = vld [vmem:[%s7 + $0x7c] sm:$0xf]
  %v2857 = vld [vmem:[%s7 + $0x80] sm:$0xf]
  %v2858 = vld [vmem:[%s7 + $0x84] sm:$0xf]
  %v2859 = vld [vmem:[%s7 + $0x88] sm:$0xf]
  %v2860 = vld [vmem:[%s7 + $0x8c] sm:$0xf]
  %v2861 = vld [vmem:[%s7 + $0x90] sm:$0xf]
  %v2862 = vld [vmem:[%s7 + $0x94] sm:$0xf]
  %v2863 = vld [vmem:[%s7 + $0x98] sm:$0xf]
  %v2864 = vld [vmem:[%s7 + $0x9c] sm:$0xf]
  %v2865 = vld [vmem:[%s7 + $0xa0] sm:$0xf]
  %v2866 = vld [vmem:[%s7 + $0xa4] sm:$0xf]
  %v2867 = vld [vmem:[%s7 + $0xa8] sm:$0xf]
  %v2868 = vld [vmem:[%s7 + $0xac] sm:$0xf]
  %v2869 = vld [vmem:[%s7 + $0xb0] sm:$0xf]
  %v2870 = vld [vmem:[%s7 + $0xb4] sm:$0xf]
  %v2871 = vld [vmem:[%s7 + $0xb8] sm:$0xf]
  %v2872 = vld [vmem:[%s7 + $0xbc] sm:$0xf]
  %v2873 = vld [vmem:[%s7 + $0xc0] sm:$0xf]
  %v2874 = vld [vmem:[%s7 + $0xc4] sm:$0xf]
  %v2875 = vld [vmem:[%s7 + $0xc8] sm:$0xf]
  %v2876 = vld [vmem:[%s7 + $0xcc] sm:$0xf]
  %v2877 = vld [vmem:[%s7 + $0xd0] sm:$0xf]
  %v2878 = vld [vmem:[%s7 + $0xd4] sm:$0xf]
  %v2879 = vld [vmem:[%s7 + $0xd8] sm:$0xf]
  %v2880 = vld [vmem:[%s7 + $0xdc] sm:$0xf]
  %v2881 = vld [vmem:[%s7 + $0xe0] sm:$0xf]
  %v2882 = vld [vmem:[%s7 + $0xe4] sm:$0xf]
  %v2883 = vld [vmem:[%s7 + $0xe8] sm:$0xf]
  %v2884 = vld [vmem:[%s7 + $0xec] sm:$0xf]
  %v2885 = vld [vmem:[%s7 + $0xf0] sm:$0xf]
  %v2886 = vld [vmem:[%s7 + $0xf4] sm:$0xf]
  %v2887 = vld [vmem:[%s7 + $0xf8] sm:$0xf]
  %v2888 = vld [vmem:[%s7 + $0xfc] sm:$0xf]
  %v2889 = vld [vmem:[%s7 + $0x100] sm:$0xf]
  %v2890 = vld [vmem:[%s7 + $0x104] sm:$0xf]
  %v2891 = vld [vmem:[%s7 + $0x108] sm:$0xf]
  %v2892 = vld [vmem:[%s7 + $0x10c] sm:$0xf]
  %v2893 = vld [vmem:[%s7 + $0x110] sm:$0xf]
  %v2894 = vld [vmem:[%s7 + $0x114] sm:$0xf]
  %v2895 = vld [vmem:[%s7 + $0x118] sm:$0xf]
  %v2896 = vld [vmem:[%s7 + $0x11c] sm:$0xf]
  %v2897 = vld [vmem:[%s7 + $0x120] sm:$0xf]
  %v2898 = vld [vmem:[%s7 + $0x124] sm:$0xf]
  %v2899 = vld [vmem:[%s7 + $0x128] sm:$0xf]
  %v2900 = vld [vmem:[%s7 + $0x12c] sm:$0xf]
  %v2901 = vld [vmem:[%s7 + $0x130] sm:$0xf]
  %v2902 = vld [vmem:[%s7 + $0x134] sm:$0xf]
  %v2903 = vld [vmem:[%s7 + $0x138] sm:$0xf]
  %v2904 = vld [vmem:[%s7 + $0x13c] sm:$0xf]
  %v2905 = vld [vmem:[%s7 + $0x140] sm:$0xf]
  %v2906 = vld [vmem:[%s7 + $0x144] sm:$0xf]
  %v2907 = vld [vmem:[%s7 + $0x148] sm:$0xf]
  %v2908 = vld [vmem:[%s7 + $0x14c] sm:$0xf]
  %v2909 = vld [vmem:[%s7 + $0x150] sm:$0xf]
  %v2910 = vld [vmem:[%s7 + $0x154] sm:$0xf]
  %v2911 = vld [vmem:[%s7 + $0x158] sm:$0xf]
  %v2912 = vld [vmem:[%s7 + $0x15c] sm:$0xf]
  %v2913 = vld [vmem:[%s7 + $0x160] sm:$0xf]
  %v2914 = vld [vmem:[%s7 + $0x164] sm:$0xf]
  %v2915 = vld [vmem:[%s8] sm:$0x1]
  %v2917 = vlaneseq
  %v2918 = vshrl.u32 %v2917, 7
  %v2919 = vsub.s32 0, %v2918
  %v2920 = vrot.slane %v2915, %v2919
  %v3012 = vunpack.c.l.b16 %v2825
  %v3013 = vunpack.c.l.b16 %v2826
  %v3014 = vunpack.c.l.b16 %v2827
  %v3015 = vunpack.c.l.b16 %v2828
  %v3016 = vunpack.c.l.b16 %v2829
  %v3017 = vunpack.c.l.b16 %v2830
  %v3018 = vunpack.c.l.b16 %v2831
  %v3019 = vunpack.c.l.b16 %v2832
  %v3020 = vunpack.c.l.b16 %v2833
  %v3021 = vunpack.c.l.b16 %v2834
  %v3022 = vunpack.c.l.b16 %v2835
  %v3023 = vunpack.c.l.b16 %v2836
  %v3024 = vunpack.c.l.b16 %v2837
  %v3025 = vunpack.c.l.b16 %v2838
  %v3026 = vunpack.c.l.b16 %v2839
  %v3027 = vunpack.c.l.b16 %v2840
  %v3028 = vunpack.c.l.b16 %v2841
  %v3029 = vunpack.c.l.b16 %v2842
  %v3030 = vunpack.c.l.b16 %v2843
  %v3031 = vunpack.c.l.b16 %v2844
  %v3032 = vunpack.c.l.b16 %v2845
  %v3033 = vunpack.c.l.b16 %v2846
  %v3034 = vunpack.c.l.b16 %v2847
  %v3035 = vunpack.c.l.b16 %v2848
  %v3036 = vunpack.c.l.b16 %v2849
  %v3037 = vunpack.c.l.b16 %v2850
  %v3038 = vunpack.c.l.b16 %v2851
  %v3039 = vunpack.c.l.b16 %v2852
  %v3040 = vunpack.c.l.b16 %v2853
  %v3041 = vunpack.c.l.b16 %v2854
  %v3042 = vunpack.c.l.b16 %v2855
  %v3043 = vunpack.c.l.b16 %v2856
  %v3044 = vunpack.c.l.b16 %v2857
  %v3045 = vunpack.c.l.b16 %v2858
  %v3046 = vunpack.c.l.b16 %v2859
  %v3047 = vunpack.c.l.b16 %v2860
  %v3048 = vunpack.c.l.b16 %v2861
  %v3049 = vunpack.c.l.b16 %v2862
  %v3050 = vunpack.c.l.b16 %v2863
  %v3051 = vunpack.c.l.b16 %v2864
  %v3052 = vunpack.c.l.b16 %v2865
  %v3053 = vunpack.c.l.b16 %v2866
  %v3054 = vunpack.c.l.b16 %v2867
  %v3055 = vunpack.c.l.b16 %v2868
  %v3056 = vunpack.c.l.b16 %v2869
  %v3057 = vunpack.c.l.b16 %v2870
  %v3058 = vunpack.c.l.b16 %v2871
  %v3059 = vunpack.c.l.b16 %v2872
  %v3060 = vunpack.c.l.b16 %v2873
  %v3061 = vunpack.c.l.b16 %v2874
  %v3062 = vunpack.c.l.b16 %v2875
  %v3063 = vunpack.c.l.b16 %v2876
  %v3064 = vunpack.c.l.b16 %v2877
  %v3065 = vunpack.c.l.b16 %v2878
  %v3066 = vunpack.c.l.b16 %v2879
  %v3067 = vunpack.c.l.b16 %v2880
  %v3068 = vunpack.c.l.b16 %v2881
  %v3069 = vunpack.c.l.b16 %v2882
  %v3070 = vunpack.c.l.b16 %v2883
  %v3071 = vunpack.c.l.b16 %v2884
  %v3072 = vunpack.c.l.b16 %v2885
  %v3073 = vunpack.c.l.b16 %v2886
  %v3074 = vunpack.c.l.b16 %v2887
  %v3075 = vunpack.c.l.b16 %v2888
  %v3076 = vunpack.c.l.b16 %v2889
  %v3077 = vunpack.c.l.b16 %v2890
  %v3078 = vunpack.c.l.b16 %v2891
  %v3079 = vunpack.c.l.b16 %v2892
  %v3080 = vunpack.c.l.b16 %v2893
  %v3081 = vunpack.c.l.b16 %v2894
  %v3082 = vunpack.c.l.b16 %v2895
  %v3083 = vunpack.c.l.b16 %v2896
  %v3084 = vunpack.c.l.b16 %v2897
  %v3085 = vunpack.c.l.b16 %v2898
  %v3086 = vunpack.c.l.b16 %v2899
  %v3087 = vunpack.c.l.b16 %v2900
  %v3088 = vunpack.c.l.b16 %v2901
  %v3089 = vunpack.c.l.b16 %v2902
  %v3090 = vunpack.c.l.b16 %v2903
  %v3091 = vunpack.c.l.b16 %v2904
  %v3092 = vunpack.c.l.b16 %v2905
  %v3093 = vunpack.c.l.b16 %v2906
  %v3094 = vunpack.c.l.b16 %v2907
  %v3095 = vunpack.c.l.b16 %v2908
  %v3096 = vunpack.c.l.b16 %v2909
  %v3097 = vunpack.c.l.b16 %v2910
  %v3098 = vunpack.c.l.b16 %v2911
  %v3099 = vunpack.c.l.b16 %v2912
  %v3100 = vunpack.c.l.b16 %v2913
  %v3101 = vunpack.c.l.b16 %v2914
  %v3102 = vpack.c.b16 %v3013, %v3012
  %v3103 = vpack.c.b16 %v3015, %v3014
  %v3104 = vpack.c.b16 %v3017, %v3016
  %v3105 = vpack.c.b16 %v3019, %v3018
  %v3106 = vpack.c.b16 %v3021, %v3020
  %v3107 = vpack.c.b16 %v3023, %v3022
  %v3108 = vpack.c.b16 %v3025, %v3024
  %v3109 = vpack.c.b16 %v3027, %v3026
  %v3110 = vpack.c.b16 %v3029, %v3028
  %v3111 = vpack.c.b16 %v3031, %v3030
  %v3112 = vpack.c.b16 %v3033, %v3032
  %v3113 = vpack.c.b16 %v3035, %v3034
  %v3114 = vpack.c.b16 %v3037, %v3036
  %v3115 = vpack.c.b16 %v3039, %v3038
  %v3116 = vpack.c.b16 %v3041, %v3040
  %v3117 = vpack.c.b16 %v3043, %v3042
  %v3118 = vpack.c.b16 %v3045, %v3044
  %v3119 = vpack.c.b16 %v3047, %v3046
  %v3120 = vpack.c.b16 %v3049, %v3048
  %v3121 = vpack.c.b16 %v3051, %v3050
  %v3122 = vpack.c.b16 %v3053, %v3052
  %v3123 = vpack.c.b16 %v3055, %v3054
  %v3124 = vpack.c.b16 %v3057, %v3056
  %v3125 = vpack.c.b16 %v3059, %v3058
  %v3126 = vpack.c.b16 %v3061, %v3060
  %v3127 = vpack.c.b16 %v3063, %v3062
  %v3128 = vpack.c.b16 %v3065, %v3064
  %v3129 = vpack.c.b16 %v3067, %v3066
  %v3130 = vpack.c.b16 %v3069, %v3068
  %v3131 = vpack.c.b16 %v3071, %v3070
  %v3132 = vpack.c.b16 %v3073, %v3072
  %v3133 = vpack.c.b16 %v3075, %v3074
  %v3134 = vpack.c.b16 %v3077, %v3076
  %v3135 = vpack.c.b16 %v3079, %v3078
  %v3136 = vpack.c.b16 %v3081, %v3080
  %v3137 = vpack.c.b16 %v3083, %v3082
  %v3138 = vpack.c.b16 %v3085, %v3084
  %v3139 = vpack.c.b16 %v3087, %v3086
  %v3140 = vpack.c.b16 %v3089, %v3088
  %v3141 = vpack.c.b16 %v3091, %v3090
  %v3142 = vpack.c.b16 %v3093, %v3092
  %v3143 = vpack.c.b16 %v3095, %v3094
  %v3144 = vpack.c.b16 %v3097, %v3096
  %v3145 = vpack.c.b16 %v3099, %v3098
  %v3146 = vpack.c.b16 %v3101, %v3100
  %vm3192 = vcmask 654336
  %v3194 = vsel %vm3192, %v2812, 0
  %v3197 = vsel %vm3192, %v2818, 0
  %v3200 = vsel %vm3192, %v2824, 0
  %3202 = vmatprep.subr.bf16.mxu0 0
  %3203 = vmatpush1.bf16.msra.mxu0 %v3102
  %3204 = vmatprep.subr.bf16.mxu0 0
  %3205 = vmatpush1.bf16.msra.mxu0 %v3103
  %3206 = vmatprep.subr.bf16.mxu0 0
  %3207 = vmatpush1.bf16.msra.mxu0 %v3104
  %3208 = vmatprep.subr.bf16.mxu0 0
  %3209 = vmatpush1.bf16.msra.mxu0 %v3105
  %3210 = vmatprep.subr.bf16.mxu0 0
  %3211 = vmatpush1.bf16.msra.mxu0 %v3106
  %3212 = vmatprep.subr.bf16.mxu0 0
  %3213 = vmatpush1.bf16.msra.mxu0 %v3107
  %3214 = vmatprep.subr.bf16.mxu0 0
  %3215 = vmatpush1.bf16.msra.mxu0 %v3108
  %3216 = vmatprep.subr.bf16.mxu0 0
  %3217 = vmatpush1.bf16.msra.mxu0 %v3109
  %3218 = vmatprep.subr.bf16.mxu0 0
  %3219 = vmatpush1.bf16.msra.mxu0 %v3110
  %3220 = vmatprep.subr.bf16.mxu0 0
  %3221 = vmatpush1.bf16.msra.mxu0 %v3111
  %3222 = vmatprep.subr.bf16.mxu0 0
  %3223 = vmatpush1.bf16.msra.mxu0 %v3112
  %3224 = vmatprep.subr.bf16.mxu0 0
  %3225 = vmatpush1.bf16.msra.mxu0 %v3113
  %3226 = vmatprep.subr.bf16.mxu0 0
  %3227 = vmatpush1.bf16.msra.mxu0 %v3114
  %3228 = vmatprep.subr.bf16.mxu0 0
  %3229 = vmatpush1.bf16.msra.mxu0 %v3115
  %3230 = vmatprep.subr.bf16.mxu0 0
  %3231 = vmatpush1.bf16.msra.mxu0 %v3116
  %3232 = vmatprep.subr.bf16.mxu0 0
  %3233 = vmatpush1.bf16.msra.mxu0 %v3117
  %3234 = vmatprep.mubr.bf16.mxu0 %v2808
  %3235 = vmatmul.mubr.bf16.gmra.mrb[0].mxu0 %v2807
  %v3236 = vpop.f32.mrb[0].mxu0
  %v3237 = vadd.f32 %v2920, %v3236
  %v3238 = vpop.f32.mrb[0].mxu0
  %v3239 = vpop.f32.mrb[0].mxu0
  %v3240 = vadd.f32 %v2920, %v3239
  %v3241 = vpop.f32.mrb[0].mxu0
  %3242 = vmatprep.mubr.bf16.mxu0 %v2814
  %3243 = vmatmul.mubr.bf16.gmra.mrb[0].mxu0 %v2813
  %v3244 = vpop.f32.mrb[0].mxu0
  %v3245 = vadd.f32 %v2920, %v3244
  %v3246 = vpop.f32.mrb[0].mxu0
  %v3247 = vpop.f32.mrb[0].mxu0
  %v3248 = vadd.f32 %v2920, %v3247
  %v3249 = vpop.f32.mrb[0].mxu0
  %3250 = vmatprep.mubr.bf16.mxu0 %v2820
  %3251 = vmatmul.mubr.bf16.gmra.mrb[0].mxu0 %v2819
  %v3252 = vpop.f32.mrb[0].mxu0
  %v3253 = vadd.f32 %v2920, %v3252
  %v3254 = vpop.f32.mrb[0].mxu0
  %v3255 = vpop.f32.mrb[0].mxu0
  %v3256 = vadd.f32 %v2920, %v3255
  %v3257 = vpop.f32.mrb[0].mxu0
  %3258 = vdwg.mxu0
  %3259 = vmatprep.subr.bf16.mxu0 0
  %3260 = vmatpush1.bf16.msra.mxu0 %v3118
  %3261 = vmatprep.subr.bf16.mxu0 0
  %3262 = vmatpush1.bf16.msra.mxu0 %v3119
  %3263 = vmatprep.subr.bf16.mxu0 0
  %3264 = vmatpush1.bf16.msra.mxu0 %v3120
  %3265 = vmatprep.subr.bf16.mxu0 0
  %3266 = vmatpush1.bf16.msra.mxu0 %v3121
  %3267 = vmatprep.subr.bf16.mxu0 0
  %3268 = vmatpush1.bf16.msra.mxu0 %v3122
  %3269 = vmatprep.subr.bf16.mxu0 0
  %3270 = vmatpush1.bf16.msra.mxu0 %v3123
  %3271 = vmatprep.subr.bf16.mxu0 0
  %3272 = vmatpush1.bf16.msra.mxu0 %v3124
  %3273 = vmatprep.subr.bf16.mxu0 0
  %3274 = vmatpush1.bf16.msra.mxu0 %v3125
  %3275 = vmatprep.subr.bf16.mxu0 0
  %3276 = vmatpush1.bf16.msra.mxu0 %v3126
  %3277 = vmatprep.subr.bf16.mxu0 0
  %3278 = vmatpush1.bf16.msra.mxu0 %v3127
  %3279 = vmatprep.subr.bf16.mxu0 0
  %3280 = vmatpush1.bf16.msra.mxu0 %v3128
  %3281 = vmatprep.subr.bf16.mxu0 0
  %3282 = vmatpush1.bf16.msra.mxu0 %v3129
  %3283 = vmatprep.subr.bf16.mxu0 0
  %3284 = vmatpush1.bf16.msra.mxu0 %v3130
  %3285 = vmatprep.subr.bf16.mxu0 0
  %3286 = vmatpush1.bf16.msra.mxu0 %v3131
  %3287 = vmatprep.subr.bf16.mxu0 0
  %3288 = vmatpush1.bf16.msra.mxu0 %v3132
  %3289 = vmatprep.subr.bf16.mxu0 0
  %3290 = vmatpush1.bf16.msra.mxu0 %v3133
  %3291 = vmatprep.mubr.bf16.mxu0 %v2810
  %3292 = vmatmul.mubr.bf16.gmra.mrb[0].mxu0 %v2809
  %v3293 = vpop.f32.mrb[0].mxu0
  %v3294 = vadd.f32 %v3237, %v3293
  %v3295 = vpop.f32.mrb[0].mxu0
  %v3296 = vpop.f32.mrb[0].mxu0
  %v3297 = vadd.f32 %v3240, %v3296
  %v3298 = vpop.f32.mrb[0].mxu0
  %3299 = vmatprep.mubr.bf16.mxu0 %v2816
  %3300 = vmatmul.mubr.bf16.gmra.mrb[0].mxu0 %v2815
  %v3301 = vpop.f32.mrb[0].mxu0
  %v3302 = vadd.f32 %v3245, %v3301
  %v3303 = vpop.f32.mrb[0].mxu0
  %v3304 = vpop.f32.mrb[0].mxu0
  %v3305 = vadd.f32 %v3248, %v3304
  %v3306 = vpop.f32.mrb[0].mxu0
  %3307 = vmatprep.mubr.bf16.mxu0 %v2822
  %3308 = vmatmul.mubr.bf16.gmra.mrb[0].mxu0 %v2821
  %v3309 = vpop.f32.mrb[0].mxu0
  %v3310 = vadd.f32 %v3253, %v3309
  %v3311 = vpop.f32.mrb[0].mxu0
  %v3312 = vpop.f32.mrb[0].mxu0
  %v3313 = vadd.f32 %v3256, %v3312
  %v3314 = vpop.f32.mrb[0].mxu0
  %3315 = vdwg.mxu0
  %3316 = vmatprep.subr.bf16.mxu0 0
  %3317 = vmatpush1.bf16.msra.mxu0 %v3134
  %3318 = vmatprep.subr.bf16.mxu0 0
  %3319 = vmatpush1.bf16.msra.mxu0 %v3135
  %3320 = vmatprep.subr.bf16.mxu0 0
  %3321 = vmatpush1.bf16.msra.mxu0 %v3136
  %3322 = vmatprep.subr.bf16.mxu0 0
  %3323 = vmatpush1.bf16.msra.mxu0 %v3137
  %3324 = vmatprep.subr.bf16.mxu0 0
  %3325 = vmatpush1.bf16.msra.mxu0 %v3138
  %3326 = vmatprep.subr.bf16.mxu0 0
  %3327 = vmatpush1.bf16.msra.mxu0 %v3139
  %3328 = vmatprep.subr.bf16.mxu0 0
  %3329 = vmatpush1.bf16.msra.mxu0 %v3140
  %3330 = vmatprep.subr.bf16.mxu0 0
  %3331 = vmatpush1.bf16.msra.mxu0 %v3141
  %3332 = vmatprep.subr.bf16.mxu0 0
  %3333 = vmatpush1.bf16.msra.mxu0 %v3142
  %3334 = vmatprep.subr.bf16.mxu0 0
  %3335 = vmatpush1.bf16.msra.mxu0 %v3143
  %3336 = vmatprep.subr.bf16.mxu0 0
  %3337 = vmatpush1.bf16.msra.mxu0 %v3144
  %3338 = vmatprep.subr.bf16.mxu0 0
  %3339 = vmatpush1.bf16.msra.mxu0 %v3145
  %3340 = vmatprep.subr.bf16.mxu0 0
  %3341 = vmatpush1.bf16.msra.mxu0 %v3146
  %3342 = vmatprep.subr.bf16.mxu0 0
  %3343 = vmatpush1.bf16.msra.mxu0 0
  %3344 = vmatprep.subr.bf16.mxu0 0
  %3345 = vmatpush1.bf16.msra.mxu0 0
  %3346 = vmatprep.subr.bf16.mxu0 0
  %3347 = vmatpush1.bf16.msra.mxu0 0
  %3348 = vmatprep.mubr.bf16.mxu0 %v3194
  %3349 = vmatmul.mubr.bf16.gmra.mrb[0].mxu0 %v2811
  %v3350 = vpop.f32.mrb[0].mxu0
  %v3351 = vadd.f32 %v3294, %v3350
  %v3352 = vpop.f32.mrb[0].mxu0
  %v3353 = vpop.f32.mrb[0].mxu0
  %v3354 = vadd.f32 %v3297, %v3353
  %v3355 = vpop.f32.mrb[0].mxu0
  %3356 = vmatprep.mubr.bf16.mxu0 %v3197
  %3357 = vmatmul.mubr.bf16.gmra.mrb[0].mxu0 %v2817
  %v3358 = vpop.f32.mrb[0].mxu0
  %v3359 = vadd.f32 %v3302, %v3358
  %v3360 = vpop.f32.mrb[0].mxu0
  %v3361 = vpop.f32.mrb[0].mxu0
  %v3362 = vadd.f32 %v3305, %v3361
  %v3363 = vpop.f32.mrb[0].mxu0
  %3364 = vmatprep.mubr.bf16.mxu0 %v3200
  %3365 = vmatmul.mubr.bf16.gmra.mrb[0].mxu0 %v2823
  %v3366 = vpop.f32.mrb[0].mxu0
  %v3367 = vadd.f32 %v3310, %v3366
  %v3368 = vpop.f32.mrb[0].mxu0
  %v3369 = vpop.f32.mrb[0].mxu0
  %v3370 = vadd.f32 %v3313, %v3369
  %v3371 = vpop.f32.mrb[0].mxu0
  %3372 = vdwg.mxu0
  %v3373 = vpack.c.bf16 %v3354, %v3351
  %v3374 = vpack.c.bf16 %v3362, %v3359
  %v3375 = vpack.c.bf16 %v3370, %v3367
  %v3376 = vld [vmem:[%s10] sm:$0xf]
  %v3377 = vld [vmem:[%s11] sm:$0xf]
  %v3378 = vld [vmem:[%s11 + $0x4] sm:$0xf]
  %v3379 = vld [vmem:[%s11 + $0x8] sm:$0xf]
  %v3380 = vld [vmem:[%s11 + $0xc] sm:$0xf]
  %v3381 = vld [vmem:[%s11 + $0x10] sm:$0xf]
  %v3382 = vld [vmem:[%s11 + $0x14] sm:$0xf]
  %v3383 = vld [vmem:[%s11 + $0x18] sm:$0xf]
  %v3384 = vld [vmem:[%s11 + $0x1c] sm:$0xf]
  %v3385 = vld [vmem:[%s11 + $0x20] sm:$0xf]
  %v3386 = vld [vmem:[%s11 + $0x24] sm:$0xf]
  %v3387 = vld [vmem:[%s11 + $0x28] sm:$0xf]
  %v3388 = vld [vmem:[%s11 + $0x2c] sm:$0xf]
  %v3389 = vld [vmem:[%s11 + $0x30] sm:$0xf]
  %v3390 = vld [vmem:[%s11 + $0x34] sm:$0xf]
  %v3391 = vld [vmem:[%s11 + $0x38] sm:$0xf]
  %v3392 = vld [vmem:[%s11 + $0x3c] sm:$0xf]
  %v3393 = vld [vmem:[%s11 + $0x40] sm:$0xf]
  %v3394 = vld [vmem:[%s11 + $0x44] sm:$0xf]
  %v3395 = vld [vmem:[%s11 + $0x48] sm:$0xf]
  %v3396 = vld [vmem:[%s11 + $0x4c] sm:$0xf]
  %v3397 = vld [vmem:[%s11 + $0x50] sm:$0xf]
  %v3398 = vld [vmem:[%s11 + $0x54] sm:$0xf]
  %v3399 = vld [vmem:[%s11 + $0x58] sm:$0xf]
  %v3400 = vld [vmem:[%s11 + $0x5c] sm:$0xf]
  %v3401 = vld [vmem:[%s11 + $0x60] sm:$0xf]
  %v3402 = vld [vmem:[%s11 + $0x64] sm:$0xf]
  %v3403 = vld [vmem:[%s11 + $0x68] sm:$0xf]
  %v3404 = vld [vmem:[%s11 + $0x6c] sm:$0xf]
  %v3405 = vld [vmem:[%s11 + $0x70] sm:$0xf]
  %v3406 = vld [vmem:[%s11 + $0x74] sm:$0xf]
  %v3407 = vld [vmem:[%s11 + $0x78] sm:$0xf]
  %v3408 = vld [vmem:[%s11 + $0x7c] sm:$0xf]
  %v3409 = vld [vmem:[%s11 + $0x80] sm:$0xf]
  %v3410 = vld [vmem:[%s11 + $0x84] sm:$0xf]
  %v3411 = vld [vmem:[%s11 + $0x88] sm:$0xf]
  %v3412 = vld [vmem:[%s11 + $0x8c] sm:$0xf]
  %v3413 = vld [vmem:[%s11 + $0x90] sm:$0xf]
  %v3414 = vld [vmem:[%s11 + $0x94] sm:$0xf]
  %v3415 = vld [vmem:[%s11 + $0x98] sm:$0xf]
  %v3416 = vld [vmem:[%s11 + $0x9c] sm:$0xf]
  %v3417 = vld [vmem:[%s11 + $0xa0] sm:$0xf]
  %v3418 = vld [vmem:[%s11 + $0xa4] sm:$0xf]
  %v3419 = vld [vmem:[%s11 + $0xa8] sm:$0xf]
  %v3420 = vld [vmem:[%s11 + $0xac] sm:$0xf]
  %v3421 = vld [vmem:[%s11 + $0xb0] sm:$0xf]
  %v3422 = vld [vmem:[%s11 + $0xb4] sm:$0xf]
  %v3423 = vld [vmem:[%s11 + $0xb8] sm:$0xf]
  %v3424 = vld [vmem:[%s11 + $0xbc] sm:$0xf]
  %v3425 = vld [vmem:[%s11 + $0xc0] sm:$0xf]
  %v3426 = vld [vmem:[%s11 + $0xc4] sm:$0xf]
  %v3427 = vld [vmem:[%s11 + $0xc8] sm:$0xf]
  %v3428 = vld [vmem:[%s11 + $0xcc] sm:$0xf]
  %v3429 = vld [vmem:[%s11 + $0xd0] sm:$0xf]
  %v3430 = vld [vmem:[%s11 + $0xd4] sm:$0xf]
  %v3431 = vld [vmem:[%s11 + $0xd8] sm:$0xf]
  %v3432 = vld [vmem:[%s11 + $0xdc] sm:$0xf]
  %v3433 = vld [vmem:[%s11 + $0xe0] sm:$0xf]
  %v3434 = vld [vmem:[%s11 + $0xe4] sm:$0xf]
  %v3435 = vld [vmem:[%s11 + $0xe8] sm:$0xf]
  %v3436 = vld [vmem:[%s11 + $0xec] sm:$0xf]
  %v3437 = vld [vmem:[%s11 + $0xf0] sm:$0xf]
  %v3438 = vld [vmem:[%s11 + $0xf4] sm:$0xf]
  %v3439 = vld [vmem:[%s11 + $0xf8] sm:$0xf]
  %v3440 = vld [vmem:[%s11 + $0xfc] sm:$0xf]
  %v3441 = vld [vmem:[%s12] sm:$0x1]
  %v3442 = vld [vmem:[%s9] sm:$0xff]
  %v3443 = vld [vmem:[%s9 + $0x8] sm:$0xff]
  %v3444 = vld [vmem:[%s9 + $0x10] sm:$0xff]
  %v3445 = vld [vmem:[%s9 + $0x18] sm:$0xff]
  %v3446 = vld [vmem:[%s9 + $0x20] sm:$0xff]
  %v3447 = vld [vmem:[%s9 + $0x28] sm:$0xff]
  %v3448 = vld [vmem:[%s9 + $0x30] sm:$0xff]
  %v3449 = vld [vmem:[%s9 + $0x38] sm:$0xff]
  %v3450 = vld [vmem:[%s9 + $0x40] sm:$0xff]
  %v3451 = vld [vmem:[%s9 + $0x48] sm:$0xff]
  %v3452 = vld [vmem:[%s9 + $0x50] sm:$0xff]
  %v3453 = vld [vmem:[%s9 + $0x58] sm:$0xff]
  %v3454 = vld [vmem:[%s9 + $0x60] sm:$0xff]
  %v3455 = vld [vmem:[%s9 + $0x68] sm:$0xff]
  %v3456 = vld [vmem:[%s9 + $0x70] sm:$0x77]
  %v3457 = vld [vmem:[%s9 + $0x78] sm:$0x77]
  %v3459 = vlaneseq
  %v3460 = vshrl.u32 %v3459, 7
  %v3461 = vsub.s32 0, %v3460
  %v3462 = vrot.slane %v3376, %v3461
  %v3463 = vlaneseq
  %v3464 = vshrl.u32 %v3463, 7
  %v3465 = vsub.s32 1, %v3464
  %v3466 = vrot.slane %v3376, %v3465
  %v3467 = vlaneseq
  %v3468 = vshrl.u32 %v3467, 7
  %v3469 = vsub.s32 2, %v3468
  %v3470 = vrot.slane %v3376, %v3469
  %v3471 = vlaneseq
  %v3472 = vshrl.u32 %v3471, 7
  %v3473 = vsub.s32 3, %v3472
  %v3474 = vrot.slane %v3376, %v3473
  %v3495 = vunpack.c.l.b16 %v3442
  %v3496 = vunpack.c.h.b16 %v3442
  %v3497 = vunpack.c.l.b16 %v3443
  %v3498 = vunpack.c.h.b16 %v3443
  %v3499 = vunpack.c.l.b16 %v3444
  %v3500 = vunpack.c.h.b16 %v3444
  %v3501 = vunpack.c.l.b16 %v3445
  %v3502 = vunpack.c.h.b16 %v3445
  %v3503 = vunpack.c.l.b16 %v3446
  %v3504 = vunpack.c.h.b16 %v3446
  %v3505 = vunpack.c.l.b16 %v3447
  %v3506 = vunpack.c.h.b16 %v3447
  %v3507 = vunpack.c.l.b16 %v3448
  %v3508 = vunpack.c.h.b16 %v3448
  %v3509 = vunpack.c.l.b16 %v3449
  %v3510 = vunpack.c.h.b16 %v3449
  %v3511 = vunpack.c.l.b16 %v3450
  %v3512 = vunpack.c.h.b16 %v3450
  %v3513 = vunpack.c.l.b16 %v3451
  %v3514 = vunpack.c.h.b16 %v3451
  %v3515 = vunpack.c.l.b16 %v3452
  %v3516 = vunpack.c.h.b16 %v3452
  %v3517 = vunpack.c.l.b16 %v3453
  %v3518 = vunpack.c.h.b16 %v3453
  %v3519 = vunpack.c.l.b16 %v3454
  %v3520 = vunpack.c.h.b16 %v3454
  %v3521 = vunpack.c.l.b16 %v3455
  %v3522 = vunpack.c.h.b16 %v3455
  %v3523 = vunpack.c.l.b16 %v3456
  %v3524 = vunpack.c.h.b16 %v3456
  %v3525 = vunpack.c.l.b16 %v3457
  %v3526 = vunpack.c.h.b16 %v3457
  %v3527 = vpack.c.b16 %v3499, %v3495
  %v3528 = vpack.c.b16 %v3500, %v3496
  %v3529 = vpack.c.b16 %v3501, %v3497
  %v3530 = vpack.c.b16 %v3502, %v3498
  %v3531 = vpack.c.b16 %v3507, %v3503
  %v3532 = vpack.c.b16 %v3508, %v3504
  %v3533 = vpack.c.b16 %v3509, %v3505
  %v3534 = vpack.c.b16 %v3510, %v3506
  %v3535 = vpack.c.b16 %v3515, %v3511
  %v3536 = vpack.c.b16 %v3516, %v3512
  %v3537 = vpack.c.b16 %v3517, %v3513
  %v3538 = vpack.c.b16 %v3518, %v3514
  %v3539 = vpack.c.b16 %v3523, %v3519
  %v3540 = vpack.c.b16 %v3524, %v3520
  %v3541 = vpack.c.b16 %v3525, %v3521
  %v3542 = vpack.c.b16 %v3526, %v3522
  %vm3555 = vcmask 506880
  %v3557 = vsel %vm3555, %v3373, 0
  %v3560 = vsel %vm3555, %v3374, 0
  %v3563 = vsel %vm3555, %v3375, 0
  %vm3565 = vcmask 1046528
  %v3567 = vsel %vm3565, %v3539, 0
  %v3570 = vsel %vm3565, %v3540, 0
  %v3573 = vsel %vm3565, %v3541, 0
  %v3576 = vsel %vm3565, %v3542, 0
  %3578 = vmatprep.subr.bf16.mxu0 %v3528
  %3579 = vmatpush1.bf16.msra.mxu0 %v3527
  %3580 = vmatprep.subr.bf16.mxu0 %v3532
  %3581 = vmatpush1.bf16.msra.mxu0 %v3531
  %3582 = vmatprep.subr.bf16.mxu0 %v3536
  %3583 = vmatpush1.bf16.msra.mxu0 %v3535
  %3584 = vmatprep.subr.bf16.mxu0 %v3570
  %3585 = vmatpush1.bf16.msra.mxu0 %v3567
  %3586 = vmatprep.subr.bf16.mxu0 0
  %3587 = vmatpush1.bf16.msra.mxu0 0
  %3588 = vmatprep.subr.bf16.mxu0 0
  %3589 = vmatpush1.bf16.msra.mxu0 0
  %3590 = vmatprep.subr.bf16.mxu0 0
  %3591 = vmatpush1.bf16.msra.mxu0 0
  %3592 = vmatprep.subr.bf16.mxu0 0
  %3593 = vmatpush1.bf16.msra.mxu0 0
  %3594 = vmatprep.subr.bf16.mxu0 0
  %3595 = vmatpush1.bf16.msra.mxu0 0
  %3596 = vmatprep.subr.bf16.mxu0 0
  %3597 = vmatpush1.bf16.msra.mxu0 0
  %3598 = vmatprep.subr.bf16.mxu0 0
  %3599 = vmatpush1.bf16.msra.mxu0 0
  %3600 = vmatprep.subr.bf16.mxu0 0
  %3601 = vmatpush1.bf16.msra.mxu0 0
  %3602 = vmatprep.subr.bf16.mxu0 0
  %3603 = vmatpush1.bf16.msra.mxu0 0
  %3604 = vmatprep.subr.bf16.mxu0 0
  %3605 = vmatpush1.bf16.msra.mxu0 0
  %3606 = vmatprep.subr.bf16.mxu0 0
  %3607 = vmatpush1.bf16.msra.mxu0 0
  %3608 = vmatprep.subr.bf16.mxu0 0
  %3609 = vmatpush1.bf16.msra.mxu0 0
  %3610 = vmatprep.mubr.bf16.mxu0 0
  %3611 = vmatmul.mubr.bf16.gmra.mrb[0].mxu0 %v3557
  %v3612 = vpop.f32.mrb[0].mxu0
  %v3613 = vadd.f32 %v3462, %v3612
  %v3614 = vpop.f32.mrb[0].mxu0
  %v3615 = vadd.f32 %v3466, %v3614
  %v3616 = vpop.f32.mrb[0].mxu0
  %v3617 = vadd.f32 %v3462, %v3616
  %v3618 = vpop.f32.mrb[0].mxu0
  %v3619 = vadd.f32 %v3466, %v3618
  %3620 = vmatprep.mubr.bf16.mxu0 0
  %3621 = vmatmul.mubr.bf16.gmra.mrb[0].mxu0 %v3560
  %v3622 = vpop.f32.mrb[0].mxu0
  %v3623 = vadd.f32 %v3462, %v3622
  %v3624 = vpop.f32.mrb[0].mxu0
  %v3625 = vadd.f32 %v3466, %v3624
  %v3626 = vpop.f32.mrb[0].mxu0
  %v3627 = vadd.f32 %v3462, %v3626
  %v3628 = vpop.f32.mrb[0].mxu0
  %v3629 = vadd.f32 %v3466, %v3628
  %3630 = vmatprep.mubr.bf16.mxu0 0
  %3631 = vmatmul.mubr.bf16.gmra.mrb[0].mxu0 %v3563
  %v3632 = vpop.f32.mrb[0].mxu0
  %v3633 = vadd.f32 %v3462, %v3632
  %v3634 = vpop.f32.mrb[0].mxu0
  %v3635 = vadd.f32 %v3466, %v3634
  %v3636 = vpop.f32.mrb[0].mxu0
  %v3637 = vadd.f32 %v3462, %v3636
  %v3638 = vpop.f32.mrb[0].mxu0
  %v3639 = vadd.f32 %v3466, %v3638
  %3640 = vdwg.mxu0
  %3641 = vmatprep.subr.bf16.mxu0 %v3530
  %3642 = vmatpush1.bf16.msra.mxu0 %v3529
  %3643 = vmatprep.subr.bf16.mxu0 %v3534
  %3644 = vmatpush1.bf16.msra.mxu0 %v3533
  %3645 = vmatprep.subr.bf16.mxu0 %v3538
  %3646 = vmatpush1.bf16.msra.mxu0 %v3537
  %3647 = vmatprep.subr.bf16.mxu0 %v3576
  %3648 = vmatpush1.bf16.msra.mxu0 %v3573
  %3649 = vmatprep.subr.bf16.mxu0 0
  %3650 = vmatpush1.bf16.msra.mxu0 0
  %3651 = vmatprep.subr.bf16.mxu0 0
  %3652 = vmatpush1.bf16.msra.mxu0 0
  %3653 = vmatprep.subr.bf16.mxu0 0
  %3654 = vmatpush1.bf16.msra.mxu0 0
  %3655 = vmatprep.subr.bf16.mxu0 0
  %3656 = vmatpush1.bf16.msra.mxu0 0
  %3657 = vmatprep.subr.bf16.mxu0 0
  %3658 = vmatpush1.bf16.msra.mxu0 0
  %3659 = vmatprep.subr.bf16.mxu0 0
  %3660 = vmatpush1.bf16.msra.mxu0 0
  %3661 = vmatprep.subr.bf16.mxu0 0
  %3662 = vmatpush1.bf16.msra.mxu0 0
  %3663 = vmatprep.subr.bf16.mxu0 0
  %3664 = vmatpush1.bf16.msra.mxu0 0
  %3665 = vmatprep.subr.bf16.mxu0 0
  %3666 = vmatpush1.bf16.msra.mxu0 0
  %3667 = vmatprep.subr.bf16.mxu0 0
  %3668 = vmatpush1.bf16.msra.mxu0 0
  %3669 = vmatprep.subr.bf16.mxu0 0
  %3670 = vmatpush1.bf16.msra.mxu0 0
  %3671 = vmatprep.subr.bf16.mxu0 0
  %3672 = vmatpush1.bf16.msra.mxu0 0
  %3673 = vmatprep.mubr.bf16.mxu0 0
  %3674 = vmatmul.mubr.bf16.gmra.mrb[0].mxu0 %v3557
  %v3675 = vpop.f32.mrb[0].mxu0
  %v3676 = vadd.f32 %v3470, %v3675
  %v3677 = vpop.f32.mrb[0].mxu0
  %v3678 = vadd.f32 %v3474, %v3677
  %v3679 = vpop.f32.mrb[0].mxu0
  %v3680 = vadd.f32 %v3470, %v3679
  %v3681 = vpop.f32.mrb[0].mxu0
  %v3682 = vadd.f32 %v3474, %v3681
  %3683 = vmatprep.mubr.bf16.mxu0 0
  %3684 = vmatmul.mubr.bf16.gmra.mrb[0].mxu0 %v3560
  %v3685 = vpop.f32.mrb[0].mxu0
  %v3686 = vadd.f32 %v3470, %v3685
  %v3687 = vpop.f32.mrb[0].mxu0
  %v3688 = vadd.f32 %v3474, %v3687
  %v3689 = vpop.f32.mrb[0].mxu0
  %v3690 = vadd.f32 %v3470, %v3689
  %v3691 = vpop.f32.mrb[0].mxu0
  %v3692 = vadd.f32 %v3474, %v3691
  %3693 = vmatprep.mubr.bf16.mxu0 0
  %3694 = vmatmul.mubr.bf16.gmra.mrb[0].mxu0 %v3563
  %v3695 = vpop.f32.mrb[0].mxu0
  %v3696 = vadd.f32 %v3470, %v3695
  %v3697 = vpop.f32.mrb[0].mxu0
  %v3698 = vadd.f32 %v3474, %v3697
  %v3699 = vpop.f32.mrb[0].mxu0
  %v3700 = vadd.f32 %v3470, %v3699
  %v3701 = vpop.f32.mrb[0].mxu0
  %v3702 = vadd.f32 %v3474, %v3701
  %3703 = vdwg.mxu0
  %v3704 = vtanh.pop %v3613
  %v3705 = vtanh.pop %v3615
  %v3706 = vtanh.pop %v3676
  %v3707 = vtanh.pop %v3678
  %v3708 = vtanh.pop %v3617
  %v3709 = vtanh.pop %v3619
  %v3710 = vtanh.pop %v3680
  %v3711 = vtanh.pop %v3682
  %v3712 = vtanh.pop %v3623
  %v3713 = vtanh.pop %v3625
  %v3714 = vtanh.pop %v3686
  %v3715 = vtanh.pop %v3688
  %v3716 = vtanh.pop %v3627
  %v3717 = vtanh.pop %v3629
  %v3718 = vtanh.pop %v3690
  %v3719 = vtanh.pop %v3692
  %v3720 = vtanh.pop %v3633
  %v3721 = vtanh.pop %v3635
  %v3722 = vtanh.pop %v3696
  %v3723 = vtanh.pop %v3698
  %v3724 = vtanh.pop %v3637
  %v3725 = vtanh.pop %v3639
  %v3726 = vtanh.pop %v3700
  %v3727 = vtanh.pop %v3702
  %v3728 = vpack.c.bf16 %v3708, %v3704
  %v3729 = vpack.c.bf16 %v3709, %v3705
  %v3730 = vpack.c.bf16 %v3710, %v3706
  %v3731 = vpack.c.bf16 %v3711, %v3707
  %v3732 = vpack.c.bf16 %v3716, %v3712
  %v3733 = vpack.c.bf16 %v3717, %v3713
  %v3734 = vpack.c.bf16 %v3718, %v3714
  %v3735 = vpack.c.bf16 %v3719, %v3715
  %v3736 = vpack.c.bf16 %v3724, %v3720
  %v3737 = vpack.c.bf16 %v3725, %v3721
  %v3738 = vpack.c.bf16 %v3726, %v3722
  %v3739 = vpack.c.bf16 %v3727, %v3723
  %v3741 = vlaneseq
  %v3742 = vshrl.u32 %v3741, 7
  %v3743 = vsub.s32 0, %v3742
  %v3744 = vrot.slane %v3441, %v3743
  %v3810 = vunpack.c.l.b16 %v3377
  %v3811 = vunpack.c.l.b16 %v3378
  %v3812 = vunpack.c.l.b16 %v3379
  %v3813 = vunpack.c.l.b16 %v3380
  %v3814 = vunpack.c.l.b16 %v3381
  %v3815 = vunpack.c.l.b16 %v3382
  %v3816 = vunpack.c.l.b16 %v3383
  %v3817 = vunpack.c.l.b16 %v3384
  %v3818 = vunpack.c.l.b16 %v3385
  %v3819 = vunpack.c.l.b16 %v3386
  %v3820 = vunpack.c.l.b16 %v3387
  %v3821 = vunpack.c.l.b16 %v3388
  %v3822 = vunpack.c.l.b16 %v3389
  %v3823 = vunpack.c.l.b16 %v3390
  %v3824 = vunpack.c.l.b16 %v3391
  %v3825 = vunpack.c.l.b16 %v3392
  %v3826 = vunpack.c.l.b16 %v3393
  %v3827 = vunpack.c.l.b16 %v3394
  %v3828 = vunpack.c.l.b16 %v3395
  %v3829 = vunpack.c.l.b16 %v3396
  %v3830 = vunpack.c.l.b16 %v3397
  %v3831 = vunpack.c.l.b16 %v3398
  %v3832 = vunpack.c.l.b16 %v3399
  %v3833 = vunpack.c.l.b16 %v3400
  %v3834 = vunpack.c.l.b16 %v3401
  %v3835 = vunpack.c.l.b16 %v3402
  %v3836 = vunpack.c.l.b16 %v3403
  %v3837 = vunpack.c.l.b16 %v3404
  %v3838 = vunpack.c.l.b16 %v3405
  %v3839 = vunpack.c.l.b16 %v3406
  %v3840 = vunpack.c.l.b16 %v3407
  %v3841 = vunpack.c.l.b16 %v3408
  %v3842 = vunpack.c.l.b16 %v3409
  %v3843 = vunpack.c.l.b16 %v3410
  %v3844 = vunpack.c.l.b16 %v3411
  %v3845 = vunpack.c.l.b16 %v3412
  %v3846 = vunpack.c.l.b16 %v3413
  %v3847 = vunpack.c.l.b16 %v3414
  %v3848 = vunpack.c.l.b16 %v3415
  %v3849 = vunpack.c.l.b16 %v3416
  %v3850 = vunpack.c.l.b16 %v3417
  %v3851 = vunpack.c.l.b16 %v3418
  %v3852 = vunpack.c.l.b16 %v3419
  %v3853 = vunpack.c.l.b16 %v3420
  %v3854 = vunpack.c.l.b16 %v3421
  %v3855 = vunpack.c.l.b16 %v3422
  %v3856 = vunpack.c.l.b16 %v3423
  %v3857 = vunpack.c.l.b16 %v3424
  %v3858 = vunpack.c.l.b16 %v3425
  %v3859 = vunpack.c.l.b16 %v3426
  %v3860 = vunpack.c.l.b16 %v3427
  %v3861 = vunpack.c.l.b16 %v3428
  %v3862 = vunpack.c.l.b16 %v3429
  %v3863 = vunpack.c.l.b16 %v3430
  %v3864 = vunpack.c.l.b16 %v3431
  %v3865 = vunpack.c.l.b16 %v3432
  %v3866 = vunpack.c.l.b16 %v3433
  %v3867 = vunpack.c.l.b16 %v3434
  %v3868 = vunpack.c.l.b16 %v3435
  %v3869 = vunpack.c.l.b16 %v3436
  %v3870 = vunpack.c.l.b16 %v3437
  %v3871 = vunpack.c.l.b16 %v3438
  %v3872 = vunpack.c.l.b16 %v3439
  %v3873 = vunpack.c.l.b16 %v3440
  %v3874 = vpack.c.b16 %v3811, %v3810
  %v3875 = vpack.c.b16 %v3813, %v3812
  %v3876 = vpack.c.b16 %v3815, %v3814
  %v3877 = vpack.c.b16 %v3817, %v3816
  %v3878 = vpack.c.b16 %v3819, %v3818
  %v3879 = vpack.c.b16 %v3821, %v3820
  %v3880 = vpack.c.b16 %v3823, %v3822
  %v3881 = vpack.c.b16 %v3825, %v3824
  %v3882 = vpack.c.b16 %v3827, %v3826
  %v3883 = vpack.c.b16 %v3829, %v3828
  %v3884 = vpack.c.b16 %v3831, %v3830
  %v3885 = vpack.c.b16 %v3833, %v3832
  %v3886 = vpack.c.b16 %v3835, %v3834
  %v3887 = vpack.c.b16 %v3837, %v3836
  %v3888 = vpack.c.b16 %v3839, %v3838
  %v3889 = vpack.c.b16 %v3841, %v3840
  %v3890 = vpack.c.b16 %v3843, %v3842
  %v3891 = vpack.c.b16 %v3845, %v3844
  %v3892 = vpack.c.b16 %v3847, %v3846
  %v3893 = vpack.c.b16 %v3849, %v3848
  %v3894 = vpack.c.b16 %v3851, %v3850
  %v3895 = vpack.c.b16 %v3853, %v3852
  %v3896 = vpack.c.b16 %v3855, %v3854
  %v3897 = vpack.c.b16 %v3857, %v3856
  %v3898 = vpack.c.b16 %v3859, %v3858
  %v3899 = vpack.c.b16 %v3861, %v3860
  %v3900 = vpack.c.b16 %v3863, %v3862
  %v3901 = vpack.c.b16 %v3865, %v3864
  %v3902 = vpack.c.b16 %v3867, %v3866
  %v3903 = vpack.c.b16 %v3869, %v3868
  %v3904 = vpack.c.b16 %v3871, %v3870
  %v3905 = vpack.c.b16 %v3873, %v3872
  %3938 = vmatprep.subr.bf16.mxu0 0
  %3939 = vmatpush1.bf16.msra.mxu0 %v3874
  %3940 = vmatprep.subr.bf16.mxu0 0
  %3941 = vmatpush1.bf16.msra.mxu0 %v3875
  %3942 = vmatprep.subr.bf16.mxu0 0
  %3943 = vmatpush1.bf16.msra.mxu0 %v3876
  %3944 = vmatprep.subr.bf16.mxu0 0
  %3945 = vmatpush1.bf16.msra.mxu0 %v3877
  %3946 = vmatprep.subr.bf16.mxu0 0
  %3947 = vmatpush1.bf16.msra.mxu0 %v3878
  %3948 = vmatprep.subr.bf16.mxu0 0
  %3949 = vmatpush1.bf16.msra.mxu0 %v3879
  %3950 = vmatprep.subr.bf16.mxu0 0
  %3951 = vmatpush1.bf16.msra.mxu0 %v3880
  %3952 = vmatprep.subr.bf16.mxu0 0
  %3953 = vmatpush1.bf16.msra.mxu0 %v3881
  %3954 = vmatprep.subr.bf16.mxu0 0
  %3955 = vmatpush1.bf16.msra.mxu0 %v3882
  %3956 = vmatprep.subr.bf16.mxu0 0
  %3957 = vmatpush1.bf16.msra.mxu0 %v3883
  %3958 = vmatprep.subr.bf16.mxu0 0
  %3959 = vmatpush1.bf16.msra.mxu0 %v3884
  %3960 = vmatprep.subr.bf16.mxu0 0
  %3961 = vmatpush1.bf16.msra.mxu0 %v3885
  %3962 = vmatprep.subr.bf16.mxu0 0
  %3963 = vmatpush1.bf16.msra.mxu0 %v3886
  %3964 = vmatprep.subr.bf16.mxu0 0
  %3965 = vmatpush1.bf16.msra.mxu0 %v3887
  %3966 = vmatprep.subr.bf16.mxu0 0
  %3967 = vmatpush1.bf16.msra.mxu0 %v3888
  %3968 = vmatprep.subr.bf16.mxu0 0
  %3969 = vmatpush1.bf16.msra.mxu0 %v3889
  %3970 = vmatprep.mubr.bf16.mxu0 %v3729
  %3971 = vmatmul.mubr.bf16.gmra.mrb[0].mxu0 %v3728
  %v3972 = vpop.f32.mrb[0].mxu0
  %v3973 = vadd.f32 %v3744, %v3972
  %v3974 = vpop.f32.mrb[0].mxu0
  %v3975 = vpop.f32.mrb[0].mxu0
  %v3976 = vadd.f32 %v3744, %v3975
  %v3977 = vpop.f32.mrb[0].mxu0
  %3978 = vmatprep.mubr.bf16.mxu0 %v3733
  %3979 = vmatmul.mubr.bf16.gmra.mrb[0].mxu0 %v3732
  %v3980 = vpop.f32.mrb[0].mxu0
  %v3981 = vadd.f32 %v3744, %v3980
  %v3982 = vpop.f32.mrb[0].mxu0
  %v3983 = vpop.f32.mrb[0].mxu0
  %v3984 = vadd.f32 %v3744, %v3983
  %v3985 = vpop.f32.mrb[0].mxu0
  %3986 = vmatprep.mubr.bf16.mxu0 %v3737
  %3987 = vmatmul.mubr.bf16.gmra.mrb[0].mxu0 %v3736
  %v3988 = vpop.f32.mrb[0].mxu0
  %v3989 = vadd.f32 %v3744, %v3988
  %v3990 = vpop.f32.mrb[0].mxu0
  %v3991 = vpop.f32.mrb[0].mxu0
  %v3992 = vadd.f32 %v3744, %v3991
  %v3993 = vpop.f32.mrb[0].mxu0
  %3994 = vdwg.mxu0
  %3995 = vmatprep.subr.bf16.mxu0 0
  %3996 = vmatpush1.bf16.msra.mxu0 %v3890
  %3997 = vmatprep.subr.bf16.mxu0 0
  %3998 = vmatpush1.bf16.msra.mxu0 %v3891
  %3999 = vmatprep.subr.bf16.mxu0 0
  %4000 = vmatpush1.bf16.msra.mxu0 %v3892
  %4001 = vmatprep.subr.bf16.mxu0 0
  %4002 = vmatpush1.bf16.msra.mxu0 %v3893
  %4003 = vmatprep.subr.bf16.mxu0 0
  %4004 = vmatpush1.bf16.msra.mxu0 %v3894
  %4005 = vmatprep.subr.bf16.mxu0 0
  %4006 = vmatpush1.bf16.msra.mxu0 %v3895
  %4007 = vmatprep.subr.bf16.mxu0 0
  %4008 = vmatpush1.bf16.msra.mxu0 %v3896
  %4009 = vmatprep.subr.bf16.mxu0 0
  %4010 = vmatpush1.bf16.msra.mxu0 %v3897
  %4011 = vmatprep.subr.bf16.mxu0 0
  %4012 = vmatpush1.bf16.msra.mxu0 %v3898
  %4013 = vmatprep.subr.bf16.mxu0 0
  %4014 = vmatpush1.bf16.msra.mxu0 %v3899
  %4015 = vmatprep.subr.bf16.mxu0 0
  %4016 = vmatpush1.bf16.msra.mxu0 %v3900
  %4017 = vmatprep.subr.bf16.mxu0 0
  %4018 = vmatpush1.bf16.msra.mxu0 %v3901
  %4019 = vmatprep.subr.bf16.mxu0 0
  %4020 = vmatpush1.bf16.msra.mxu0 %v3902
  %4021 = vmatprep.subr.bf16.mxu0 0
  %4022 = vmatpush1.bf16.msra.mxu0 %v3903
  %4023 = vmatprep.subr.bf16.mxu0 0
  %4024 = vmatpush1.bf16.msra.mxu0 %v3904
  %4025 = vmatprep.subr.bf16.mxu0 0
  %4026 = vmatpush1.bf16.msra.mxu0 %v3905
  %4027 = vmatprep.mubr.bf16.mxu0 %v3731
  %4028 = vmatmul.mubr.bf16.gmra.mrb[0].mxu0 %v3730
  %v4029 = vpop.f32.mrb[0].mxu0
  %v4030 = vadd.f32 %v3973, %v4029
  %v4031 = vpop.f32.mrb[0].mxu0
  %v4032 = vpop.f32.mrb[0].mxu0
  %v4033 = vadd.f32 %v3976, %v4032
  %v4034 = vpop.f32.mrb[0].mxu0
  %4035 = vmatprep.mubr.bf16.mxu0 %v3735
  %4036 = vmatmul.mubr.bf16.gmra.mrb[0].mxu0 %v3734
  %v4037 = vpop.f32.mrb[0].mxu0
  %v4038 = vadd.f32 %v3981, %v4037
  %v4039 = vpop.f32.mrb[0].mxu0
  %v4040 = vpop.f32.mrb[0].mxu0
  %v4041 = vadd.f32 %v3984, %v4040
  %v4042 = vpop.f32.mrb[0].mxu0
  %4043 = vmatprep.mubr.bf16.mxu0 %v3739
  %4044 = vmatmul.mubr.bf16.gmra.mrb[0].mxu0 %v3738
  %v4045 = vpop.f32.mrb[0].mxu0
  %v4046 = vadd.f32 %v3989, %v4045
  %v4047 = vpop.f32.mrb[0].mxu0
  %v4048 = vpop.f32.mrb[0].mxu0
  %v4049 = vadd.f32 %v3992, %v4048
  %v4050 = vpop.f32.mrb[0].mxu0
  %4051 = vdwg.mxu0
  %vm4052 = vcmask 56320
  %4053 = vst.msk [vmem:[%s13] sm:$0xff] %vm4052, %v4030
  %vm4054 = vcmask 52224
  %4055 = vst.msk [vmem:[%s13 + $0x8] sm:$0xf] %vm4054, %v4033
  %s4056 = scalar_lea.vmem %s13, 32
  %vm4057 = vcmask 56324
  %4058 = vst.msk [vmem:[%s4056 - $0x4] sm:$0xf0] %vm4057, %v4033
  %4059 = vst.msk [vmem:[%s4056 + $0x4] sm:$0xff] %vm4052, %v4038
  %s4060 = scalar_lea.vmem %s13, 64
  %4061 = vst.msk [vmem:[%s4060] sm:$0xff] %vm4052, %v4041
  %4062 = vst.msk [vmem:[%s4060 + $0x8] sm:$0xf] %vm4054, %v4046
  %s4063 = scalar_lea.vmem %s13, 96
  %4064 = vst.msk [vmem:[%s4063 - $0x4] sm:$0xf0] %vm4057, %v4046
  %4065 = vst.msk [vmem:[%s4063 + $0x4] sm:$0xff] %vm4052, %v4049
  %s4066 = scalar_lea.vmem %s9, 128
  %v4067 = vld [vmem:[%s4066] sm:$0xff]
  %v4068 = vld [vmem:[%s4066 + $0x8] sm:$0xff]
  %v4069 = vld [vmem:[%s4066 + $0x10] sm:$0xff]
  %v4070 = vld [vmem:[%s4066 + $0x18] sm:$0xff]
  %v4071 = vld [vmem:[%s4066 + $0x20] sm:$0xff]
  %v4072 = vld [vmem:[%s4066 + $0x28] sm:$0xff]
  %v4073 = vld [vmem:[%s4066 + $0x30] sm:$0xff]
  %v4074 = vld [vmem:[%s4066 + $0x38] sm:$0xff]
  %v4075 = vld [vmem:[%s4066 + $0x40] sm:$0xff]
  %v4076 = vld [vmem:[%s4066 + $0x48] sm:$0xff]
  %v4077 = vld [vmem:[%s4066 + $0x50] sm:$0xff]
  %v4078 = vld [vmem:[%s4066 + $0x58] sm:$0xff]
  %v4079 = vld [vmem:[%s4066 + $0x60] sm:$0xff]
  %v4080 = vld [vmem:[%s4066 + $0x68] sm:$0xff]
  %v4081 = vld [vmem:[%s4066 + $0x70] sm:$0x77]
  %v4082 = vld [vmem:[%s4066 + $0x78] sm:$0x77]
  %v4099 = vunpack.c.l.b16 %v4067
  %v4100 = vunpack.c.h.b16 %v4067
  %v4101 = vunpack.c.l.b16 %v4068
  %v4102 = vunpack.c.h.b16 %v4068
  %v4103 = vunpack.c.l.b16 %v4069
  %v4104 = vunpack.c.h.b16 %v4069
  %v4105 = vunpack.c.l.b16 %v4070
  %v4106 = vunpack.c.h.b16 %v4070
  %v4107 = vunpack.c.l.b16 %v4071
  %v4108 = vunpack.c.h.b16 %v4071
  %v4109 = vunpack.c.l.b16 %v4072
  %v4110 = vunpack.c.h.b16 %v4072
  %v4111 = vunpack.c.l.b16 %v4073
  %v4112 = vunpack.c.h.b16 %v4073
  %v4113 = vunpack.c.l.b16 %v4074
  %v4114 = vunpack.c.h.b16 %v4074
  %v4115 = vunpack.c.l.b16 %v4075
  %v4116 = vunpack.c.h.b16 %v4075
  %v4117 = vunpack.c.l.b16 %v4076
  %v4118 = vunpack.c.h.b16 %v4076
  %v4119 = vunpack.c.l.b16 %v4077
  %v4120 = vunpack.c.h.b16 %v4077
  %v4121 = vunpack.c.l.b16 %v4078
  %v4122 = vunpack.c.h.b16 %v4078
  %v4123 = vunpack.c.l.b16 %v4079
  %v4124 = vunpack.c.h.b16 %v4079
  %v4125 = vunpack.c.l.b16 %v4080
  %v4126 = vunpack.c.h.b16 %v4080
  %v4127 = vunpack.c.l.b16 %v4081
  %v4128 = vunpack.c.h.b16 %v4081
  %v4129 = vunpack.c.l.b16 %v4082
  %v4130 = vunpack.c.h.b16 %v4082
  %v4131 = vpack.c.b16 %v4103, %v4099
  %v4132 = vpack.c.b16 %v4104, %v4100
  %v4133 = vpack.c.b16 %v4105, %v4101
  %v4134 = vpack.c.b16 %v4106, %v4102
  %v4135 = vpack.c.b16 %v4111, %v4107
  %v4136 = vpack.c.b16 %v4112, %v4108
  %v4137 = vpack.c.b16 %v4113, %v4109
  %v4138 = vpack.c.b16 %v4114, %v4110
  %v4139 = vpack.c.b16 %v4119, %v4115
  %v4140 = vpack.c.b16 %v4120, %v4116
  %v4141 = vpack.c.b16 %v4121, %v4117
  %v4142 = vpack.c.b16 %v4122, %v4118
  %v4143 = vpack.c.b16 %v4127, %v4123
  %v4144 = vpack.c.b16 %v4128, %v4124
  %v4145 = vpack.c.b16 %v4129, %v4125
  %v4146 = vpack.c.b16 %v4130, %v4126
  %v4160 = vsel %vm3565, %v4143, 0
  %v4163 = vsel %vm3565, %v4144, 0
  %v4166 = vsel %vm3565, %v4145, 0
  %v4169 = vsel %vm3565, %v4146, 0
  %4171 = vmatprep.subr.bf16.mxu0 %v4132
  %4172 = vmatpush1.bf16.msra.mxu0 %v4131
  %4173 = vmatprep.subr.bf16.mxu0 %v4136
  %4174 = vmatpush1.bf16.msra.mxu0 %v4135
  %4175 = vmatprep.subr.bf16.mxu0 %v4140
  %4176 = vmatpush1.bf16.msra.mxu0 %v4139
  %4177 = vmatprep.subr.bf16.mxu0 %v4163
  %4178 = vmatpush1.bf16.msra.mxu0 %v4160
  %4179 = vmatprep.subr.bf16.mxu0 0
  %4180 = vmatpush1.bf16.msra.mxu0 0
  %4181 = vmatprep.subr.bf16.mxu0 0
  %4182 = vmatpush1.bf16.msra.mxu0 0
  %4183 = vmatprep.subr.bf16.mxu0 0
  %4184 = vmatpush1.bf16.msra.mxu0 0
  %4185 = vmatprep.subr.bf16.mxu0 0
  %4186 = vmatpush1.bf16.msra.mxu0 0
  %4187 = vmatprep.subr.bf16.mxu0 0
  %4188 = vmatpush1.bf16.msra.mxu0 0
  %4189 = vmatprep.subr.bf16.mxu0 0
  %4190 = vmatpush1.bf16.msra.mxu0 0
  %4191 = vmatprep.subr.bf16.mxu0 0
  %4192 = vmatpush1.bf16.msra.mxu0 0
  %4193 = vmatprep.subr.bf16.mxu0 0
  %4194 = vmatpush1.bf16.msra.mxu0 0
  %4195 = vmatprep.subr.bf16.mxu0 0
  %4196 = vmatpush1.bf16.msra.mxu0 0
  %4197 = vmatprep.subr.bf16.mxu0 0
  %4198 = vmatpush1.bf16.msra.mxu0 0
  %4199 = vmatprep.subr.bf16.mxu0 0
  %4200 = vmatpush1.bf16.msra.mxu0 0
  %4201 = vmatprep.subr.bf16.mxu0 0
  %4202 = vmatpush1.bf16.msra.mxu0 0
  %4203 = vmatprep.mubr.bf16.mxu0 0
  %4204 = vmatmul.mubr.bf16.gmra.mrb[0].mxu0 %v3557
  %v4205 = vpop.f32.mrb[0].mxu0
  %v4206 = vadd.f32 %v3462, %v4205
  %v4207 = vpop.f32.mrb[0].mxu0
  %v4208 = vadd.f32 %v3466, %v4207
  %v4209 = vpop.f32.mrb[0].mxu0
  %v4210 = vadd.f32 %v3462, %v4209
  %v4211 = vpop.f32.mrb[0].mxu0
  %v4212 = vadd.f32 %v3466, %v4211
  %4213 = vmatprep.mubr.bf16.mxu0 0
  %4214 = vmatmul.mubr.bf16.gmra.mrb[0].mxu0 %v3560
  %v4215 = vpop.f32.mrb[0].mxu0
  %v4216 = vadd.f32 %v3462, %v4215
  %v4217 = vpop.f32.mrb[0].mxu0
  %v4218 = vadd.f32 %v3466, %v4217
  %v4219 = vpop.f32.mrb[0].mxu0
  %v4220 = vadd.f32 %v3462, %v4219
  %v4221 = vpop.f32.mrb[0].mxu0
  %v4222 = vadd.f32 %v3466, %v4221
  %4223 = vmatprep.mubr.bf16.mxu0 0
  %4224 = vmatmul.mubr.bf16.gmra.mrb[0].mxu0 %v3563
  %v4225 = vpop.f32.mrb[0].mxu0
  %v4226 = vadd.f32 %v3462, %v4225
  %v4227 = vpop.f32.mrb[0].mxu0
  %v4228 = vadd.f32 %v3466, %v4227
  %v4229 = vpop.f32.mrb[0].mxu0
  %v4230 = vadd.f32 %v3462, %v4229
  %v4231 = vpop.f32.mrb[0].mxu0
  %v4232 = vadd.f32 %v3466, %v4231
  %4233 = vdwg.mxu0
  %4234 = vmatprep.subr.bf16.mxu0 %v4134
  %4235 = vmatpush1.bf16.msra.mxu0 %v4133
  %4236 = vmatprep.subr.bf16.mxu0 %v4138
  %4237 = vmatpush1.bf16.msra.mxu0 %v4137
  %4238 = vmatprep.subr.bf16.mxu0 %v4142
  %4239 = vmatpush1.bf16.msra.mxu0 %v4141
  %4240 = vmatprep.subr.bf16.mxu0 %v4169
  %4241 = vmatpush1.bf16.msra.mxu0 %v4166
  %4242 = vmatprep.subr.bf16.mxu0 0
  %4243 = vmatpush1.bf16.msra.mxu0 0
  %4244 = vmatprep.subr.bf16.mxu0 0
  %4245 = vmatpush1.bf16.msra.mxu0 0
  %4246 = vmatprep.subr.bf16.mxu0 0
  %4247 = vmatpush1.bf16.msra.mxu0 0
  %4248 = vmatprep.subr.bf16.mxu0 0
  %4249 = vmatpush1.bf16.msra.mxu0 0
  %4250 = vmatprep.subr.bf16.mxu0 0
  %4251 = vmatpush1.bf16.msra.mxu0 0
  %4252 = vmatprep.subr.bf16.mxu0 0
  %4253 = vmatpush1.bf16.msra.mxu0 0
  %4254 = vmatprep.subr.bf16.mxu0 0
  %4255 = vmatpush1.bf16.msra.mxu0 0
  %4256 = vmatprep.subr.bf16.mxu0 0
  %4257 = vmatpush1.bf16.msra.mxu0 0
  %4258 = vmatprep.subr.bf16.mxu0 0
  %4259 = vmatpush1.bf16.msra.mxu0 0
  %4260 = vmatprep.subr.bf16.mxu0 0
  %4261 = vmatpush1.bf16.msra.mxu0 0
  %4262 = vmatprep.subr.bf16.mxu0 0
  %4263 = vmatpush1.bf16.msra.mxu0 0
  %4264 = vmatprep.subr.bf16.mxu0 0
  %4265 = vmatpush1.bf16.msra.mxu0 0
  %4266 = vmatprep.mubr.bf16.mxu0 0
  %4267 = vmatmul.mubr.bf16.gmra.mrb[0].mxu0 %v3557
  %v4268 = vpop.f32.mrb[0].mxu0
  %v4269 = vadd.f32 %v3470, %v4268
  %v4270 = vpop.f32.mrb[0].mxu0
  %v4271 = vadd.f32 %v3474, %v4270
  %v4272 = vpop.f32.mrb[0].mxu0
  %v4273 = vadd.f32 %v3470, %v4272
  %v4274 = vpop.f32.mrb[0].mxu0
  %v4275 = vadd.f32 %v3474, %v4274
  %4276 = vmatprep.mubr.bf16.mxu0 0
  %4277 = vmatmul.mubr.bf16.gmra.mrb[0].mxu0 %v3560
  %v4278 = vpop.f32.mrb[0].mxu0
  %v4279 = vadd.f32 %v3470, %v4278
  %v4280 = vpop.f32.mrb[0].mxu0
  %v4281 = vadd.f32 %v3474, %v4280
  %v4282 = vpop.f32.mrb[0].mxu0
  %v4283 = vadd.f32 %v3470, %v4282
  %v4284 = vpop.f32.mrb[0].mxu0
  %v4285 = vadd.f32 %v3474, %v4284
  %4286 = vmatprep.mubr.bf16.mxu0 0
  %4287 = vmatmul.mubr.bf16.gmra.mrb[0].mxu0 %v3563
  %v4288 = vpop.f32.mrb[0].mxu0
  %v4289 = vadd.f32 %v3470, %v4288
  %v4290 = vpop.f32.mrb[0].mxu0
  %v4291 = vadd.f32 %v3474, %v4290
  %v4292 = vpop.f32.mrb[0].mxu0
  %v4293 = vadd.f32 %v3470, %v4292
  %v4294 = vpop.f32.mrb[0].mxu0
  %v4295 = vadd.f32 %v3474, %v4294
  %4296 = vdwg.mxu0
  %v4297 = vtanh.pop %v4206
  %v4298 = vtanh.pop %v4208
  %v4299 = vtanh.pop %v4269
  %v4300 = vtanh.pop %v4271
  %v4301 = vtanh.pop %v4210
  %v4302 = vtanh.pop %v4212
  %v4303 = vtanh.pop %v4273
  %v4304 = vtanh.pop %v4275
  %v4305 = vtanh.pop %v4216
  %v4306 = vtanh.pop %v4218
  %v4307 = vtanh.pop %v4279
  %v4308 = vtanh.pop %v4281
  %v4309 = vtanh.pop %v4220
  %v4310 = vtanh.pop %v4222
  %v4311 = vtanh.pop %v4283
  %v4312 = vtanh.pop %v4285
  %v4313 = vtanh.pop %v4226
  %v4314 = vtanh.pop %v4228
  %v4315 = vtanh.pop %v4289
  %v4316 = vtanh.pop %v4291
  %v4317 = vtanh.pop %v4230
  %v4318 = vtanh.pop %v4232
  %v4319 = vtanh.pop %v4293
  %v4320 = vtanh.pop %v4295
  %v4321 = vpack.c.bf16 %v4301, %v4297
  %v4322 = vpack.c.bf16 %v4302, %v4298
  %v4323 = vpack.c.bf16 %v4303, %v4299
  %v4324 = vpack.c.bf16 %v4304, %v4300
  %v4325 = vpack.c.bf16 %v4309, %v4305
  %v4326 = vpack.c.bf16 %v4310, %v4306
  %v4327 = vpack.c.bf16 %v4311, %v4307
  %v4328 = vpack.c.bf16 %v4312, %v4308
  %v4329 = vpack.c.bf16 %v4317, %v4313
  %v4330 = vpack.c.bf16 %v4318, %v4314
  %v4331 = vpack.c.bf16 %v4319, %v4315
  %v4332 = vpack.c.bf16 %v4320, %v4316
  %4333 = vmatprep.subr.bf16.mxu0 0
  %4334 = vmatpush1.bf16.msra.mxu0 %v3874
  %4335 = vmatprep.subr.bf16.mxu0 0
  %4336 = vmatpush1.bf16.msra.mxu0 %v3875
  %4337 = vmatprep.subr.bf16.mxu0 0
  %4338 = vmatpush1.bf16.msra.mxu0 %v3876
  %4339 = vmatprep.subr.bf16.mxu0 0
  %4340 = vmatpush1.bf16.msra.mxu0 %v3877
  %4341 = vmatprep.subr.bf16.mxu0 0
  %4342 = vmatpush1.bf16.msra.mxu0 %v3878
  %4343 = vmatprep.subr.bf16.mxu0 0
  %4344 = vmatpush1.bf16.msra.mxu0 %v3879
  %4345 = vmatprep.subr.bf16.mxu0 0
  %4346 = vmatpush1.bf16.msra.mxu0 %v3880
  %4347 = vmatprep.subr.bf16.mxu0 0
  %4348 = vmatpush1.bf16.msra.mxu0 %v3881
  %4349 = vmatprep.subr.bf16.mxu0 0
  %4350 = vmatpush1.bf16.msra.mxu0 %v3882
  %4351 = vmatprep.subr.bf16.mxu0 0
  %4352 = vmatpush1.bf16.msra.mxu0 %v3883
  %4353 = vmatprep.subr.bf16.mxu0 0
  %4354 = vmatpush1.bf16.msra.mxu0 %v3884
  %4355 = vmatprep.subr.bf16.mxu0 0
  %4356 = vmatpush1.bf16.msra.mxu0 %v3885
  %4357 = vmatprep.subr.bf16.mxu0 0
  %4358 = vmatpush1.bf16.msra.mxu0 %v3886
  %4359 = vmatprep.subr.bf16.mxu0 0
  %4360 = vmatpush1.bf16.msra.mxu0 %v3887
  %4361 = vmatprep.subr.bf16.mxu0 0
  %4362 = vmatpush1.bf16.msra.mxu0 %v3888
  %4363 = vmatprep.subr.bf16.mxu0 0
  %4364 = vmatpush1.bf16.msra.mxu0 %v3889
  %4365 = vmatprep.mubr.bf16.mxu0 %v4322
  %4366 = vmatmul.mubr.bf16.gmra.mrb[0].mxu0 %v4321
  %v4367 = vpop.f32.mrb[0].mxu0
  %v4368 = vadd.f32 %v3744, %v4367
  %v4369 = vpop.f32.mrb[0].mxu0
  %v4370 = vpop.f32.mrb[0].mxu0
  %v4371 = vadd.f32 %v3744, %v4370
  %v4372 = vpop.f32.mrb[0].mxu0
  %4373 = vmatprep.mubr.bf16.mxu0 %v4326
  %4374 = vmatmul.mubr.bf16.gmra.mrb[0].mxu0 %v4325
  %v4375 = vpop.f32.mrb[0].mxu0
  %v4376 = vadd.f32 %v3744, %v4375
  %v4377 = vpop.f32.mrb[0].mxu0
  %v4378 = vpop.f32.mrb[0].mxu0
  %v4379 = vadd.f32 %v3744, %v4378
  %v4380 = vpop.f32.mrb[0].mxu0
  %4381 = vmatprep.mubr.bf16.mxu0 %v4330
  %4382 = vmatmul.mubr.bf16.gmra.mrb[0].mxu0 %v4329
  %v4383 = vpop.f32.mrb[0].mxu0
  %v4384 = vadd.f32 %v3744, %v4383
  %v4385 = vpop.f32.mrb[0].mxu0
  %v4386 = vpop.f32.mrb[0].mxu0
  %v4387 = vadd.f32 %v3744, %v4386
  %v4388 = vpop.f32.mrb[0].mxu0
  %4389 = vdwg.mxu0
  %4390 = vmatprep.subr.bf16.mxu0 0
  %4391 = vmatpush1.bf16.msra.mxu0 %v3890
  %4392 = vmatprep.subr.bf16.mxu0 0
  %4393 = vmatpush1.bf16.msra.mxu0 %v3891
  %4394 = vmatprep.subr.bf16.mxu0 0
  %4395 = vmatpush1.bf16.msra.mxu0 %v3892
  %4396 = vmatprep.subr.bf16.mxu0 0
  %4397 = vmatpush1.bf16.msra.mxu0 %v3893
  %4398 = vmatprep.subr.bf16.mxu0 0
  %4399 = vmatpush1.bf16.msra.mxu0 %v3894
  %4400 = vmatprep.subr.bf16.mxu0 0
  %4401 = vmatpush1.bf16.msra.mxu0 %v3895
  %4402 = vmatprep.subr.bf16.mxu0 0
  %4403 = vmatpush1.bf16.msra.mxu0 %v3896
  %4404 = vmatprep.subr.bf16.mxu0 0
  %4405 = vmatpush1.bf16.msra.mxu0 %v3897
  %4406 = vmatprep.subr.bf16.mxu0 0
  %4407 = vmatpush1.bf16.msra.mxu0 %v3898
  %4408 = vmatprep.subr.bf16.mxu0 0
  %4409 = vmatpush1.bf16.msra.mxu0 %v3899
  %4410 = vmatprep.subr.bf16.mxu0 0
  %4411 = vmatpush1.bf16.msra.mxu0 %v3900
  %4412 = vmatprep.subr.bf16.mxu0 0
  %4413 = vmatpush1.bf16.msra.mxu0 %v3901
  %4414 = vmatprep.subr.bf16.mxu0 0
  %4415 = vmatpush1.bf16.msra.mxu0 %v3902
  %4416 = vmatprep.subr.bf16.mxu0 0
  %4417 = vmatpush1.bf16.msra.mxu0 %v3903
  %4418 = vmatprep.subr.bf16.mxu0 0
  %4419 = vmatpush1.bf16.msra.mxu0 %v3904
  %4420 = vmatprep.subr.bf16.mxu0 0
  %4421 = vmatpush1.bf16.msra.mxu0 %v3905
  %4422 = vmatprep.mubr.bf16.mxu0 %v4324
  %4423 = vmatmul.mubr.bf16.gmra.mrb[0].mxu0 %v4323
  %v4424 = vpop.f32.mrb[0].mxu0
  %v4425 = vadd.f32 %v4368, %v4424
  %v4426 = vpop.f32.mrb[0].mxu0
  %v4427 = vpop.f32.mrb[0].mxu0
  %v4428 = vadd.f32 %v4371, %v4427
  %v4429 = vpop.f32.mrb[0].mxu0
  %4430 = vmatprep.mubr.bf16.mxu0 %v4328
  %4431 = vmatmul.mubr.bf16.gmra.mrb[0].mxu0 %v4327
  %v4432 = vpop.f32.mrb[0].mxu0
  %v4433 = vadd.f32 %v4376, %v4432
  %v4434 = vpop.f32.mrb[0].mxu0
  %v4435 = vpop.f32.mrb[0].mxu0
  %v4436 = vadd.f32 %v4379, %v4435
  %v4437 = vpop.f32.mrb[0].mxu0
  %4438 = vmatprep.mubr.bf16.mxu0 %v4332
  %4439 = vmatmul.mubr.bf16.gmra.mrb[0].mxu0 %v4331
  %v4440 = vpop.f32.mrb[0].mxu0
  %v4441 = vadd.f32 %v4384, %v4440
  %v4442 = vpop.f32.mrb[0].mxu0
  %v4443 = vpop.f32.mrb[0].mxu0
  %v4444 = vadd.f32 %v4387, %v4443
  %v4445 = vpop.f32.mrb[0].mxu0
  %4446 = vdwg.mxu0
  %s4447 = scalar_lea.vmem %s13, 16
  %4448 = vst.msk [vmem:[%s4447] sm:$0xff] %vm4052, %v4425
  %4449 = vst.msk [vmem:[%s4447 + $0x8] sm:$0xf] %vm4054, %v4428
  %s4450 = scalar_lea.vmem %s13, 48
  %4451 = vst.msk [vmem:[%s4450 - $0x4] sm:$0xf0] %vm4057, %v4428
  %4452 = vst.msk [vmem:[%s4450 + $0x4] sm:$0xff] %vm4052, %v4433
  %s4453 = scalar_lea.vmem %s13, 80
  %4454 = vst.msk [vmem:[%s4453] sm:$0xff] %vm4052, %v4436
  %4455 = vst.msk [vmem:[%s4453 + $0x8] sm:$0xf] %vm4054, %v4441
  %s4456 = scalar_lea.vmem %s13, 112
  %4457 = vst.msk [vmem:[%s4456 - $0x4] sm:$0xf0] %vm4057, %v4441
  %4458 = vst.msk [vmem:[%s4456 + $0x4] sm:$0xff] %vm4052, %v4444
  // Predicated region
  $region54: #{crn_net_forward.5} parent=0 // pred_check
    _
  $region55: #{crn_net_forward.5} parent=0 // pred_check_branch
    %4460 = sbr.rel (0) target = $region57
  $region56: #{crn_net_forward.5} parent=0 // pred_region
    _
  $region57: #{crn_net_forward.5} parent=0 // pred_fallthru
    _
  // Predicated region
  $region58: #{crn_net_forward.5} parent=0 // pred_check
    _
  $region59: #{crn_net_forward.5} parent=0 // pred_check_branch
    %4462 = sbr.rel (0) target = $region61
  $region60: #{crn_net_forward.5} parent=0 // pred_region
    _
  $region61: #{crn_net_forward.5} parent=0 // pred_fallthru
    _

</llo_original>
